<compile_context>
chip_gen: v5e
topology: v5e:2x2
jax: 0.10.0
libtpu: 0.0.40
codegen_flags: <defaults>
</compile_context>

<pallas_src>
import functools

import jax
import jax.numpy as jnp
from jax import lax
from jax.experimental import pallas as pl
from jax.experimental.pallas import tpu as pltpu


_COMPILER_PARAMS = pltpu.CompilerParams(
    dimension_semantics=("arbitrary",),
    # Everything is VMEM-resident per call; largest call uses < 2 MiB, so this
    # also fits v7x's 64 MiB (32 MiB scoped-default) VMEM with wide headroom.
    vmem_limit_bytes=32 * 1024 * 1024,
)


def _full_spec(a):
    """Full-array block for a grid=(1,) call."""
    nd = a.ndim
    return pl.BlockSpec(a.shape, lambda i, _nd=nd: (0,) * _nd)


# ------------------------------- Pallas kernels ------------------------------

def _stem_pool_kernel(ph0, ph1, rhs, b, pr, pc, o_ref, *, n, k, stride, phs, ho):
    """Fused stem: conv7x7/s2 (+BN bias +ReLU) and 3x3/s2 maxpool in one call.

    phases : (N*PHq, W*Cin) bf16, H-padded input split into H-stride phases.
    rhs    : (k, W*Cin, Wo*Cout) bf16 banded weights (W taps/stride/pad folded).
    b      : (1, Wo*Cout) f32 bias.
    pr/pc  : 0/1 pool selector matrices (3, Po, Ho) / (3, Wo*C, Pw*C), f32.
    out    : (N*Po, Pw*Cout) f32.
    """
    phases = (ph0[...], ph1[...])
    per_img = [None] * n
    for dy in range(k):                         # tap-outer: k MXU dots total
        ph = dy % stride
        off = dy // stride
        d = jnp.dot(phases[ph], rhs[dy], preferred_element_type=jnp.float32)
        for i in range(n):                      # cheap VPU slice-adds only
            r0 = i * phs[ph] + off
            s = d[r0:r0 + ho, :]
            per_img[i] = s if per_img[i] is None else per_img[i] + s
    bias = b[...]
    pieces = []
    for i in range(n):
        y = jnp.maximum(per_img[i] + bias, 0.0)           # (Ho, Wo*C) f32, >= 0
        # 3x3/s2 maxpool on the lane-dense layout via selector matmuls.
        hs = None
        for t in range(3):                                # H taps of the pool
            v = jnp.dot(pr[t], y, preferred_element_type=jnp.float32)
            hs = v if hs is None else jnp.maximum(hs, v)
        pooled = None
        for t in range(3):                                # W taps of the pool
            v = jnp.dot(hs, pc[t], preferred_element_type=jnp.float32)
            pooled = v if pooled is None else jnp.maximum(pooled, v)
        pieces.append(pooled)
    o_ref[...] = jnp.concatenate(pieces, axis=0)          # one full unmasked store


def _make_block_kernel(n, stride, phs, ho1, lanes1, has_down, has_res):
    """Fused BasicBlock: conv1(+downsample head) -> conv2 + residual + ReLU.

    Ref order: [phase_0, (phase_1 if stride==2)], rhs1, b1, rhs2, b2, [res], out.
      rhs1 : (3, W*Cin, lanes_total) bf16, conv1 band in lanes [:lanes1] and the
             1x1/s2 downsample band (embedded as a 3x3 centre tap) in the rest.
      rhs2 : (3, lanes1, lanes1) bf16 conv2 band (3x3/s1/p1).
      b1/b2: (1, lanes) f32 biases;  res: (N*Ho, lanes1) f32 identity (layer1).
    """
    k = 3

    def kernel(*refs):
        idx = 0
        phases = [refs[idx + q][...] for q in range(stride)]
        idx += stride
        rhs1 = refs[idx]; idx += 1
        b1 = refs[idx][...]; idx += 1
        rhs2 = refs[idx]; idx += 1
        b2 = refs[idx][...]; idx += 1
        res = None
        if has_res:
            res = refs[idx][...]; idx += 1
        o_ref = refs[idx]

        # ---- conv1 (+ fused 1x1/s2 downsample head on extra output lanes) ----
        per_img = [None] * n
        for dy in range(k):
            ph = dy % stride
            off = dy // stride
            d = jnp.dot(phases[ph], rhs1[dy], preferred_element_type=jnp.float32)
            for i in range(n):
                r0 = i * phs[ph] + off
                s = d[r0:r0 + ho1, :]
                per_img[i] = s if per_img[i] is None else per_img[i] + s
        y1full = jnp.concatenate(per_img, axis=0) + b1        # (N*Ho, lanes_total)
        y1 = jnp.maximum(y1full[:, :lanes1], 0.0)              # conv1 + ReLU
        identity = y1full[:, lanes1:] if has_down else res     # f32, no ReLU

        # ---- conv2 (3x3/s1/p1) on the VMEM-resident conv1 output ----
        ph2 = ho1 + 2
        zrow = jnp.zeros((1, lanes1), jnp.bfloat16)
        x2_parts = []
        for i in range(n):
            x2_parts += [zrow, y1[i * ho1:(i + 1) * ho1, :].astype(jnp.bfloat16),
                         zrow]
        x2 = jnp.concatenate(x2_parts, axis=0)                 # (N*(Ho+2), lanes1)
        per2 = [None] * n
        for dy in range(k):
            d = jnp.dot(x2, rhs2[dy], preferred_element_type=jnp.float32)
            for i in range(n):
                r0 = i * ph2 + dy
                s = d[r0:r0 + ho1, :]
                per2[i] = s if per2[i] is None else per2[i] + s
        out = jnp.concatenate(per2, axis=0) + b2 + identity
        o_ref[...] = jnp.maximum(out, 0.0)                     # one full store

    return kernel


# ---------------------------- wrapper-side helpers ----------------------------

def _phases(x, k, stride, pad):
    """H-pad + H-stride-phase split + lane-dense flatten + bf16 cast.

    Returns ([(N*PHq, W*Cin) bf16], [PHq per phase], Ho).  W-padding is NOT
    materialized -- it is folded into the banded weight matrices.
    """
    n, h, w_sp, c = x.shape
    ho = (h + 2 * pad - k) // stride + 1
    xp = jnp.pad(x, ((0, 0), (pad, pad), (0, 0), (0, 0)))
    mats, rows = [], []
    for q in range(stride):
        p = xp[:, q::stride] if stride > 1 else xp
        rows.append(p.shape[1])
        mats.append(p.reshape(n * p.shape[1], w_sp * c).astype(jnp.bfloat16))
    return mats, rows, ho


def _band_weights(w, scale, stride, w_in, w_out, pad):
    """Block-banded weight matrices (BN scale, W-taps, W-stride, W-pad folded).

    w: (k,k,Cin,Cout) HWIO.  Returns (k, w_in*Cin, w_out*Cout) where entry
    [dy, iw*Cin+ci, ow*Cout+co] = (w*scale)[dy, iw - (stride*ow - pad), ci, co]
    when that tap index lies in [0, k), else 0.
    """
    k, _, cin, cout = w.shape
    wsc = (w * scale[None, None, None, :]).astype(jnp.float32)
    iw = jnp.arange(w_in)[:, None]
    ow = jnp.arange(w_out)[None, :]
    mats = []
    for dy in range(k):
        acc = jnp.zeros((w_in, cin, w_out, cout), jnp.float32)
        for dx in range(k):
            sel = (iw == stride * ow + dx - pad).astype(jnp.float32)   # (w_in, w_out)
            acc = acc + sel[:, None, :, None] * wsc[dy, dx][None, :, None, :]
        mats.append(acc.reshape(w_in * cin, w_out * cout))
    return jnp.stack(mats)


def _pool_selectors(ho_conv, wo_conv, c, po, pw):
    """0/1 selector matrices for a 3x3/s2/p1 maxpool on (Ho, Wo*C) data.

    rows[t] : (Po, Ho)        rows[t] @ y   selects conv row  2*po + t - 1
    cols[t] : (Wo*C, Pw*C)    hs @ cols[t]  selects conv col  2*pw + t - 1
    Out-of-range taps select nothing (zero), which is a safe max identity for
    post-ReLU (non-negative) activations.
    """
    rows, cols = [], []
    eye_c = jnp.eye(c, dtype=jnp.float32)
    for t in range(3):
        ih = 2 * jnp.arange(po) + t - 1
        rows.append((jnp.arange(ho_conv)[None, :] == ih[:, None]).astype(jnp.float32))
        iw = 2 * jnp.arange(pw) + t - 1
        m = (jnp.arange(wo_conv)[:, None] == iw[None, :]).astype(jnp.float32)
        cols.append(jnp.kron(m, eye_c))
    return jnp.stack(rows), jnp.stack(cols)


def stem_pool_call(x, w, scale, bias):
    """conv7x7/s2/p3 + frozen-BN + ReLU + maxpool3x3/s2/p1 in ONE pallas_call."""
    n, h, w_sp, cin = x.shape
    cout = w.shape[3]
    phases, phs, ho = _phases(x, 7, 2, 3)
    wo = (w_sp + 2 * 3 - 7) // 2 + 1
    po = (ho + 2 - 3) // 2 + 1
    pw = (wo + 2 - 3) // 2 + 1
    rhs = _band_weights(w, scale, 2, w_sp, wo, 3).astype(jnp.bfloat16)
    b = jnp.tile(bias.astype(jnp.float32), wo).reshape(1, wo * cout)
    pr, pc = _pool_selectors(ho, wo, cout, po, pw)

    inputs = list(phases) + [rhs, b, pr, pc]
    kernel = functools.partial(_stem_pool_kernel, n=n, k=7, stride=2,
                               phs=tuple(phs), ho=ho)
    out = pl.pallas_call(
        kernel,
        out_shape=jax.ShapeDtypeStruct((n * po, pw * cout), jnp.float32),
        grid=(1,),
        in_specs=[_full_spec(a) for a in inputs],
        out_specs=pl.BlockSpec((n * po, pw * cout), lambda i: (0, 0)),
        compiler_params=_COMPILER_PARAMS,
    )(*inputs)
    return out.reshape(n, po, pw, cout)


def basic_block_call(x, p, stride):
    """One fused BasicBlock pallas_call.  x: (N,H,W,Cin) f32 -> (N,Ho,Wo,Cout)."""
    n, h, w_sp, cin = x.shape
    cout = p['w1'].shape[3]
    ho = (h + 2 - 3) // stride + 1
    wo = (w_sp + 2 - 3) // stride + 1
    phases, phs, _ = _phases(x, 3, stride, 1)

    rhs1 = _band_weights(p['w1'], p['scale1'], stride, w_sp, wo, 1)
    b1 = jnp.tile(p['bias1'].astype(jnp.float32), wo)
    has_down = 'down_w' in p
    if has_down:
        # Embed the 1x1/s2/p0 downsample as the centre tap of a 3x3/s2/p1 conv so
        # it shares conv1's phase inputs and rides in the same (wider) dot.
        w3 = jnp.zeros((3, 3, cin, cout), jnp.float32).at[1, 1].set(p['down_w'][0, 0])
        rhs_d = _band_weights(w3, p['down_scale'], stride, w_sp, wo, 1)
        rhs1 = jnp.concatenate([rhs1, rhs_d], axis=-1)
        b1 = jnp.concatenate([b1, jnp.tile(p['down_bias'].astype(jnp.float32), wo)])
    rhs1 = rhs1.astype(jnp.bfloat16)
    b1 = b1.reshape(1, -1)
    rhs2 = _band_weights(p['w2'], p['scale2'], 1, wo, wo, 1).astype(jnp.bfloat16)
    b2 = jnp.tile(p['bias2'].astype(jnp.float32), wo).reshape(1, wo * cout)

    inputs = list(phases) + [rhs1, b1, rhs2, b2]
    has_res = not has_down
    if has_res:
        # Identity residual (stride 1, Cin==Cout): the block input itself, f32,
        # already lane-dense -- avoids quantizing the residual path to bf16.
        inputs.append(x.reshape(n * h, w_sp * cin).astype(jnp.float32))

    kernel = _make_block_kernel(n, stride, tuple(phs), ho, wo * cout,
                                has_down, has_res)
    out = pl.pallas_call(
        kernel,
        out_shape=jax.ShapeDtypeStruct((n * ho, wo * cout), jnp.float32),
        grid=(1,),
        in_specs=[_full_spec(a) for a in inputs],
        out_specs=pl.BlockSpec((n * ho, wo * cout), lambda i: (0, 0)),
        compiler_params=_COMPILER_PARAMS,
    )(*inputs)
    return out.reshape(n, ho, wo, cout)


# ------------------------------- backbone body --------------------------------

def backbone_base_forward(x_nchw, params, return_interm_layers=False):
    """BackboneBase.forward: returns xs['0'] of the IntermediateLayerGetter.
    '0' == layer1 output when return_interm_layers else layer4 output."""
    x = jnp.transpose(x_nchw, (0, 2, 3, 1)).astype(jnp.float32)   # NCHW -> NHWC
    st = params['stem']
    x = stem_pool_call(x, st['w'], st['scale'], st['bias'])
    outs = {}
    for i, name in enumerate(('layer1', 'layer2', 'layer3', 'layer4')):
        stride = 1 if i == 0 else 2
        x = basic_block_call(x, params[name], stride)
        outs[name] = x
    sel = outs['layer1'] if return_interm_layers else outs['layer4']
    return jnp.transpose(sel, (0, 3, 1, 2))                        # NHWC -> NCHW


# ---------------------- pure-JAX reference (for checking) ---------------------
# Applies the same bf16 weight/input quantization with f32 accumulation so the
# comparison is apples-to-apples (intentional precision choice vs. f32 PyTorch).

def conv_bn_ref(x, w, scale, bias, stride, padding, relu=True, residual=None):
    wq = (w * scale[None, None, None, :]).astype(jnp.bfloat16)
    y = lax.conv_general_dilated(
        x.astype(jnp.bfloat16), wq, (stride, stride),
        [(padding, padding), (padding, padding)],
        dimension_numbers=('NHWC', 'HWIO', 'NHWC'),
        preferred_element_type=jnp.float32)
    y = y + bias
    if residual is not None:
        y = y + residual
    if relu:
        y = jnp.maximum(y, 0.0)
    return y


def maxpool_3x3_s2_ref(x):
    return lax.reduce_window(x, -jnp.inf, lax.max, (1, 3, 3, 1), (1, 2, 2, 1),
                             [(0, 0), (1, 1), (1, 1), (0, 0)])


def backbone_base_forward_ref(x_nchw, params, return_interm_layers=False):
    x = jnp.transpose(x_nchw, (0, 2, 3, 1)).astype(jnp.float32)
    st = params['stem']
    x = conv_bn_ref(x, st['w'], st['scale'], st['bias'], 2, 3, relu=True)
    x = maxpool_3x3_s2_ref(x)
    outs = {}
    for i, name in enumerate(('layer1', 'layer2', 'layer3', 'layer4')):
        p = params[name]
        stride = 1 if i == 0 else 2
        if 'down_w' in p:
            identity = conv_bn_ref(x, p['down_w'], p['down_scale'],
                                   p['down_bias'], stride, 0, relu=False)
        else:
            identity = x
        y1 = conv_bn_ref(x, p['w1'], p['scale1'], p['bias1'], stride, 1, relu=True)
        x = conv_bn_ref(y1, p['w2'], p['scale2'], p['bias2'], 1, 1, relu=True,
                        residual=identity)
        outs[name] = x
    sel = outs['layer1'] if return_interm_layers else outs['layer4']
    return jnp.transpose(sel, (0, 3, 1, 2))


# ----------------------------- deterministic params ---------------------------

def _conv_w(key, k, cin, cout):
    return (jax.random.normal(key, (k, k, cin, cout), jnp.float32)
            / jnp.sqrt(float(k * k * cin)))


def _frozen_bn(key, c, eps=1e-5):
    k1, k2, k3, k4 = jax.random.split(key, 4)
    gamma = 1.0 + 0.1 * jax.random.normal(k1, (c,), jnp.float32)
    beta = 0.1 * jax.random.normal(k2, (c,), jnp.float32)
    mean = 0.1 * jax.random.normal(k3, (c,), jnp.float32)
    var = jax.random.uniform(k4, (c,), jnp.float32, minval=0.5, maxval=1.5)
    scale = gamma / jnp.sqrt(var + eps)
    bias = beta - mean * scale
    return scale, bias


def init_backbone_params(key, in_ch=3, widths=(8, 16, 32, 64)):
    keys = iter(jax.random.split(key, 64))
    params = {}
    s, b = _frozen_bn(next(keys), widths[0])
    params['stem'] = {'w': _conv_w(next(keys), 7, in_ch, widths[0]),
                      'scale': s, 'bias': b}
    cin = widths[0]
    for i, name in enumerate(('layer1', 'layer2', 'layer3', 'layer4')):
        cout = widths[i]
        stride = 1 if i == 0 else 2
        blk = {}
        blk['w1'] = _conv_w(next(keys), 3, cin, cout)
        blk['scale1'], blk['bias1'] = _frozen_bn(next(keys), cout)
        blk['w2'] = _conv_w(next(keys), 3, cout, cout)
        blk['scale2'], blk['bias2'] = _frozen_bn(next(keys), cout)
        if stride != 1 or cin != cout:
            blk['down_w'] = _conv_w(next(keys), 1, cin, cout)
            blk['down_scale'], blk['down_bias'] = _frozen_bn(next(keys), cout)
        params[name] = blk
        cin = cout
    return params


# ------------------------------------ main -------------------------------------

if __name__ == "__main__":
    key = jax.random.PRNGKey(0)
    kp, kx = jax.random.split(key)
    params = init_backbone_params(kp)                       # num_channels = 64
    x = jax.random.normal(kx, (2, 3, 64, 64), jnp.float32)  # NCHW, like PyTorch

    fwd = jax.jit(functools.partial(backbone_base_forward,
                                    return_interm_layers=False))
    out = jax.block_until_ready(fwd(x, params))             # [2, 64, 2, 2]

    ref = jax.block_until_ready(
        backbone_base_forward_ref(x, params, return_interm_layers=False))

    assert out.shape == ref.shape == (2, 64, 2, 2), out.shape
    err = float(jnp.max(jnp.abs(out - ref)))
    assert bool(jnp.allclose(out, ref, rtol=2e-2, atol=2e-2)), err

    print("KERNEL_OK")
</pallas_src>

<mosaic_0001>
module attributes {stable_mosaic.version = 11 : i64} {
  func.func @_stem_pool_kernel(%arg0: i32, %arg1: memref<70x192xbf16, #tpu.memory_space<vmem>>, %arg2: memref<70x192xbf16, #tpu.memory_space<vmem>>, %arg3: memref<7x192x256xbf16, #tpu.memory_space<vmem>>, %arg4: memref<1x256xf32, #tpu.memory_space<vmem>>, %arg5: memref<3x16x32xf32, #tpu.memory_space<vmem>>, %arg6: memref<3x256x128xf32, #tpu.memory_space<vmem>>, %arg7: memref<32x128xf32, #tpu.memory_space<vmem>>) attributes {dimension_semantics = [#tpu.dimension_semantics<arbitrary>], iteration_bounds = array<i64: 1>, scalar_prefetch = 0 : i64, scratch_operands = 0 : i64, tpu.core_type = #tpu.core_type<tc>, window_params = [{pipeline_mode = #tpu.pipeline_mode<synchronous>, transform_indices = @transform_0, window_bounds = array<i64: 70, 192>}, {pipeline_mode = #tpu.pipeline_mode<synchronous>, transform_indices = @transform_1, window_bounds = array<i64: 70, 192>}, {pipeline_mode = #tpu.pipeline_mode<synchronous>, transform_indices = @transform_2, window_bounds = array<i64: 7, 192, 256>}, {pipeline_mode = #tpu.pipeline_mode<synchronous>, transform_indices = @transform_3, window_bounds = array<i64: 1, 256>}, {pipeline_mode = #tpu.pipeline_mode<synchronous>, transform_indices = @transform_4, window_bounds = array<i64: 3, 16, 32>}, {pipeline_mode = #tpu.pipeline_mode<synchronous>, transform_indices = @transform_5, window_bounds = array<i64: 3, 256, 128>}, {pipeline_mode = #tpu.pipeline_mode<synchronous>, transform_indices = @transform_6, window_bounds = array<i64: 32, 128>}]} {
    %c0 = arith.constant 0 : index
    %c0_0 = arith.constant 0 : index
    %0 = vector.load %arg1[%c0, %c0_0] : memref<70x192xbf16, #tpu.memory_space<vmem>>, vector<70x192xbf16>
    %c0_1 = arith.constant 0 : index
    %c0_2 = arith.constant 0 : index
    %1 = vector.load %arg2[%c0_1, %c0_2] : memref<70x192xbf16, #tpu.memory_space<vmem>>, vector<70x192xbf16>
    %c0_3 = arith.constant 0 : index
    %c0_4 = arith.constant 0 : index
    %c0_5 = arith.constant 0 : index
    %2 = vector.load %arg3[%c0_3, %c0_4, %c0_5] : memref<7x192x256xbf16, #tpu.memory_space<vmem>>, vector<1x192x256xbf16>
    %3 = vector.shape_cast %2 : vector<1x192x256xbf16> to vector<192x256xbf16>
    %cst = arith.constant dense<0.000000e+00> : vector<70x256xf32>
    %4 = tpu.matmul %0, %3, %cst {dimension_numbers = #tpu.dot_dimension_numbers<[1], [0], [0], [1], [0, 0, 1, 1], [], []>} : vector<70x192xbf16>, vector<192x256xbf16>, vector<70x256xf32> -> vector<70x256xf32>
    %5 = vector.extract_strided_slice %4 {offsets = [0, 0], sizes = [32, 256], strides = [1, 1]} : vector<70x256xf32> to vector<32x256xf32>
    %6 = vector.extract_strided_slice %4 {offsets = [35, 0], sizes = [32, 256], strides = [1, 1]} : vector<70x256xf32> to vector<32x256xf32>
    %c1 = arith.constant 1 : index
    %c0_6 = arith.constant 0 : index
    %c0_7 = arith.constant 0 : index
    %7 = vector.load %arg3[%c1, %c0_6, %c0_7] : memref<7x192x256xbf16, #tpu.memory_space<vmem>>, vector<1x192x256xbf16>
    %8 = vector.shape_cast %7 : vector<1x192x256xbf16> to vector<192x256xbf16>
    %cst_8 = arith.constant dense<0.000000e+00> : vector<70x256xf32>
    %9 = tpu.matmul %1, %8, %cst_8 {dimension_numbers = #tpu.dot_dimension_numbers<[1], [0], [0], [1], [0, 0, 1, 1], [], []>} : vector<70x192xbf16>, vector<192x256xbf16>, vector<70x256xf32> -> vector<70x256xf32>
    %10 = vector.extract_strided_slice %9 {offsets = [0, 0], sizes = [32, 256], strides = [1, 1]} : vector<70x256xf32> to vector<32x256xf32>
    %11 = arith.addf %5, %10 : vector<32x256xf32>
    %12 = vector.extract_strided_slice %9 {offsets = [35, 0], sizes = [32, 256], strides = [1, 1]} : vector<70x256xf32> to vector<32x256xf32>
    %13 = arith.addf %6, %12 : vector<32x256xf32>
    %c2 = arith.constant 2 : index
    %c0_9 = arith.constant 0 : index
    %c0_10 = arith.constant 0 : index
    %14 = vector.load %arg3[%c2, %c0_9, %c0_10] : memref<7x192x256xbf16, #tpu.memory_space<vmem>>, vector<1x192x256xbf16>
    %15 = vector.shape_cast %14 : vector<1x192x256xbf16> to vector<192x256xbf16>
    %cst_11 = arith.constant dense<0.000000e+00> : vector<70x256xf32>
    %16 = tpu.matmul %0, %15, %cst_11 {dimension_numbers = #tpu.dot_dimension_numbers<[1], [0], [0], [1], [0, 0, 1, 1], [], []>} : vector<70x192xbf16>, vector<192x256xbf16>, vector<70x256xf32> -> vector<70x256xf32>
    %17 = vector.extract_strided_slice %16 {offsets = [1, 0], sizes = [32, 256], strides = [1, 1]} : vector<70x256xf32> to vector<32x256xf32>
    %18 = arith.addf %11, %17 : vector<32x256xf32>
    %19 = vector.extract_strided_slice %16 {offsets = [36, 0], sizes = [32, 256], strides = [1, 1]} : vector<70x256xf32> to vector<32x256xf32>
    %20 = arith.addf %13, %19 : vector<32x256xf32>
    %c3 = arith.constant 3 : index
    %c0_12 = arith.constant 0 : index
    %c0_13 = arith.constant 0 : index
    %21 = vector.load %arg3[%c3, %c0_12, %c0_13] : memref<7x192x256xbf16, #tpu.memory_space<vmem>>, vector<1x192x256xbf16>
    %22 = vector.shape_cast %21 : vector<1x192x256xbf16> to vector<192x256xbf16>
    %cst_14 = arith.constant dense<0.000000e+00> : vector<70x256xf32>
    %23 = tpu.matmul %1, %22, %cst_14 {dimension_numbers = #tpu.dot_dimension_numbers<[1], [0], [0], [1], [0, 0, 1, 1], [], []>} : vector<70x192xbf16>, vector<192x256xbf16>, vector<70x256xf32> -> vector<70x256xf32>
    %24 = vector.extract_strided_slice %23 {offsets = [1, 0], sizes = [32, 256], strides = [1, 1]} : vector<70x256xf32> to vector<32x256xf32>
    %25 = arith.addf %18, %24 : vector<32x256xf32>
    %26 = vector.extract_strided_slice %23 {offsets = [36, 0], sizes = [32, 256], strides = [1, 1]} : vector<70x256xf32> to vector<32x256xf32>
    %27 = arith.addf %20, %26 : vector<32x256xf32>
    %c4 = arith.constant 4 : index
    %c0_15 = arith.constant 0 : index
    %c0_16 = arith.constant 0 : index
    %28 = vector.load %arg3[%c4, %c0_15, %c0_16] : memref<7x192x256xbf16, #tpu.memory_space<vmem>>, vector<1x192x256xbf16>
    %29 = vector.shape_cast %28 : vector<1x192x256xbf16> to vector<192x256xbf16>
    %cst_17 = arith.constant dense<0.000000e+00> : vector<70x256xf32>
    %30 = tpu.matmul %0, %29, %cst_17 {dimension_numbers = #tpu.dot_dimension_numbers<[1], [0], [0], [1], [0, 0, 1, 1], [], []>} : vector<70x192xbf16>, vector<192x256xbf16>, vector<70x256xf32> -> vector<70x256xf32>
    %31 = vector.extract_strided_slice %30 {offsets = [2, 0], sizes = [32, 256], strides = [1, 1]} : vector<70x256xf32> to vector<32x256xf32>
    %32 = arith.addf %25, %31 : vector<32x256xf32>
    %33 = vector.extract_strided_slice %30 {offsets = [37, 0], sizes = [32, 256], strides = [1, 1]} : vector<70x256xf32> to vector<32x256xf32>
    %34 = arith.addf %27, %33 : vector<32x256xf32>
    %c5 = arith.constant 5 : index
    %c0_18 = arith.constant 0 : index
    %c0_19 = arith.constant 0 : index
    %35 = vector.load %arg3[%c5, %c0_18, %c0_19] : memref<7x192x256xbf16, #tpu.memory_space<vmem>>, vector<1x192x256xbf16>
    %36 = vector.shape_cast %35 : vector<1x192x256xbf16> to vector<192x256xbf16>
    %cst_20 = arith.constant dense<0.000000e+00> : vector<70x256xf32>
    %37 = tpu.matmul %1, %36, %cst_20 {dimension_numbers = #tpu.dot_dimension_numbers<[1], [0], [0], [1], [0, 0, 1, 1], [], []>} : vector<70x192xbf16>, vector<192x256xbf16>, vector<70x256xf32> -> vector<70x256xf32>
    %38 = vector.extract_strided_slice %37 {offsets = [2, 0], sizes = [32, 256], strides = [1, 1]} : vector<70x256xf32> to vector<32x256xf32>
    %39 = arith.addf %32, %38 : vector<32x256xf32>
    %40 = vector.extract_strided_slice %37 {offsets = [37, 0], sizes = [32, 256], strides = [1, 1]} : vector<70x256xf32> to vector<32x256xf32>
    %41 = arith.addf %34, %40 : vector<32x256xf32>
    %c6 = arith.constant 6 : index
    %c0_21 = arith.constant 0 : index
    %c0_22 = arith.constant 0 : index
    %42 = vector.load %arg3[%c6, %c0_21, %c0_22] : memref<7x192x256xbf16, #tpu.memory_space<vmem>>, vector<1x192x256xbf16>
    %43 = vector.shape_cast %42 : vector<1x192x256xbf16> to vector<192x256xbf16>
    %cst_23 = arith.constant dense<0.000000e+00> : vector<70x256xf32>
    %44 = tpu.matmul %0, %43, %cst_23 {dimension_numbers = #tpu.dot_dimension_numbers<[1], [0], [0], [1], [0, 0, 1, 1], [], []>} : vector<70x192xbf16>, vector<192x256xbf16>, vector<70x256xf32> -> vector<70x256xf32>
    %45 = vector.extract_strided_slice %44 {offsets = [3, 0], sizes = [32, 256], strides = [1, 1]} : vector<70x256xf32> to vector<32x256xf32>
    %46 = arith.addf %39, %45 : vector<32x256xf32>
    %47 = vector.extract_strided_slice %44 {offsets = [38, 0], sizes = [32, 256], strides = [1, 1]} : vector<70x256xf32> to vector<32x256xf32>
    %48 = arith.addf %41, %47 : vector<32x256xf32>
    %c0_24 = arith.constant 0 : index
    %c0_25 = arith.constant 0 : index
    %49 = vector.load %arg4[%c0_24, %c0_25] : memref<1x256xf32, #tpu.memory_space<vmem>>, vector<1x256xf32>
    %50 = vector.broadcast %49 : vector<1x256xf32> to vector<32x256xf32>
    %51 = arith.addf %46, %50 : vector<32x256xf32>
    %cst_26 = arith.constant 0.000000e+00 : f32
    %52 = vector.broadcast %cst_26 : f32 to vector<32x256xf32>
    %53 = arith.maximumf %51, %52 : vector<32x256xf32>
    %c0_27 = arith.constant 0 : index
    %c0_28 = arith.constant 0 : index
    %c0_29 = arith.constant 0 : index
    %54 = vector.load %arg5[%c0_27, %c0_28, %c0_29] : memref<3x16x32xf32, #tpu.memory_space<vmem>>, vector<1x16x32xf32>
    %55 = vector.shape_cast %54 : vector<1x16x32xf32> to vector<16x32xf32>
    %cst_30 = arith.constant dense<0.000000e+00> : vector<16x256xf32>
    %56 = tpu.matmul %55, %53, %cst_30 {dimension_numbers = #tpu.dot_dimension_numbers<[1], [0], [0], [1], [0, 0, 1, 1], [], []>} : vector<16x32xf32>, vector<32x256xf32>, vector<16x256xf32> -> vector<16x256xf32>
    %c1_31 = arith.constant 1 : index
    %c0_32 = arith.constant 0 : index
    %c0_33 = arith.constant 0 : index
    %57 = vector.load %arg5[%c1_31, %c0_32, %c0_33] : memref<3x16x32xf32, #tpu.memory_space<vmem>>, vector<1x16x32xf32>
    %58 = vector.shape_cast %57 : vector<1x16x32xf32> to vector<16x32xf32>
    %cst_34 = arith.constant dense<0.000000e+00> : vector<16x256xf32>
    %59 = tpu.matmul %58, %53, %cst_34 {dimension_numbers = #tpu.dot_dimension_numbers<[1], [0], [0], [1], [0, 0, 1, 1], [], []>} : vector<16x32xf32>, vector<32x256xf32>, vector<16x256xf32> -> vector<16x256xf32>
    %60 = arith.maximumf %56, %59 : vector<16x256xf32>
    %c2_35 = arith.constant 2 : index
    %c0_36 = arith.constant 0 : index
    %c0_37 = arith.constant 0 : index
    %61 = vector.load %arg5[%c2_35, %c0_36, %c0_37] : memref<3x16x32xf32, #tpu.memory_space<vmem>>, vector<1x16x32xf32>
    %62 = vector.shape_cast %61 : vector<1x16x32xf32> to vector<16x32xf32>
    %cst_38 = arith.constant dense<0.000000e+00> : vector<16x256xf32>
    %63 = tpu.matmul %62, %53, %cst_38 {dimension_numbers = #tpu.dot_dimension_numbers<[1], [0], [0], [1], [0, 0, 1, 1], [], []>} : vector<16x32xf32>, vector<32x256xf32>, vector<16x256xf32> -> vector<16x256xf32>
    %64 = arith.maximumf %60, %63 : vector<16x256xf32>
    %c0_39 = arith.constant 0 : index
    %c0_40 = arith.constant 0 : index
    %c0_41 = arith.constant 0 : index
    %65 = vector.load %arg6[%c0_39, %c0_40, %c0_41] : memref<3x256x128xf32, #tpu.memory_space<vmem>>, vector<1x256x128xf32>
    %66 = vector.shape_cast %65 : vector<1x256x128xf32> to vector<256x128xf32>
    %cst_42 = arith.constant dense<0.000000e+00> : vector<16x128xf32>
    %67 = tpu.matmul %64, %66, %cst_42 {dimension_numbers = #tpu.dot_dimension_numbers<[1], [0], [0], [1], [0, 0, 1, 1], [], []>} : vector<16x256xf32>, vector<256x128xf32>, vector<16x128xf32> -> vector<16x128xf32>
    %c1_43 = arith.constant 1 : index
    %c0_44 = arith.constant 0 : index
    %c0_45 = arith.constant 0 : index
    %68 = vector.load %arg6[%c1_43, %c0_44, %c0_45] : memref<3x256x128xf32, #tpu.memory_space<vmem>>, vector<1x256x128xf32>
    %69 = vector.shape_cast %68 : vector<1x256x128xf32> to vector<256x128xf32>
    %cst_46 = arith.constant dense<0.000000e+00> : vector<16x128xf32>
    %70 = tpu.matmul %64, %69, %cst_46 {dimension_numbers = #tpu.dot_dimension_numbers<[1], [0], [0], [1], [0, 0, 1, 1], [], []>} : vector<16x256xf32>, vector<256x128xf32>, vector<16x128xf32> -> vector<16x128xf32>
    %71 = arith.maximumf %67, %70 : vector<16x128xf32>
    %c2_47 = arith.constant 2 : index
    %c0_48 = arith.constant 0 : index
    %c0_49 = arith.constant 0 : index
    %72 = vector.load %arg6[%c2_47, %c0_48, %c0_49] : memref<3x256x128xf32, #tpu.memory_space<vmem>>, vector<1x256x128xf32>
    %73 = vector.shape_cast %72 : vector<1x256x128xf32> to vector<256x128xf32>
    %cst_50 = arith.constant dense<0.000000e+00> : vector<16x128xf32>
    %74 = tpu.matmul %64, %73, %cst_50 {dimension_numbers = #tpu.dot_dimension_numbers<[1], [0], [0], [1], [0, 0, 1, 1], [], []>} : vector<16x256xf32>, vector<256x128xf32>, vector<16x128xf32> -> vector<16x128xf32>
    %75 = arith.maximumf %71, %74 : vector<16x128xf32>
    %76 = vector.broadcast %49 : vector<1x256xf32> to vector<32x256xf32>
    %77 = arith.addf %48, %76 : vector<32x256xf32>
    %cst_51 = arith.constant 0.000000e+00 : f32
    %78 = vector.broadcast %cst_51 : f32 to vector<32x256xf32>
    %79 = arith.maximumf %77, %78 : vector<32x256xf32>
    %c0_52 = arith.constant 0 : index
    %c0_53 = arith.constant 0 : index
    %c0_54 = arith.constant 0 : index
    %80 = vector.load %arg5[%c0_52, %c0_53, %c0_54] : memref<3x16x32xf32, #tpu.memory_space<vmem>>, vector<1x16x32xf32>
    %81 = vector.shape_cast %80 : vector<1x16x32xf32> to vector<16x32xf32>
    %cst_55 = arith.constant dense<0.000000e+00> : vector<16x256xf32>
    %82 = tpu.matmul %81, %79, %cst_55 {dimension_numbers = #tpu.dot_dimension_numbers<[1], [0], [0], [1], [0, 0, 1, 1], [], []>} : vector<16x32xf32>, vector<32x256xf32>, vector<16x256xf32> -> vector<16x256xf32>
    %c1_56 = arith.constant 1 : index
    %c0_57 = arith.constant 0 : index
    %c0_58 = arith.constant 0 : index
    %83 = vector.load %arg5[%c1_56, %c0_57, %c0_58] : memref<3x16x32xf32, #tpu.memory_space<vmem>>, vector<1x16x32xf32>
    %84 = vector.shape_cast %83 : vector<1x16x32xf32> to vector<16x32xf32>
    %cst_59 = arith.constant dense<0.000000e+00> : vector<16x256xf32>
    %85 = tpu.matmul %84, %79, %cst_59 {dimension_numbers = #tpu.dot_dimension_numbers<[1], [0], [0], [1], [0, 0, 1, 1], [], []>} : vector<16x32xf32>, vector<32x256xf32>, vector<16x256xf32> -> vector<16x256xf32>
    %86 = arith.maximumf %82, %85 : vector<16x256xf32>
    %c2_60 = arith.constant 2 : index
    %c0_61 = arith.constant 0 : index
    %c0_62 = arith.constant 0 : index
    %87 = vector.load %arg5[%c2_60, %c0_61, %c0_62] : memref<3x16x32xf32, #tpu.memory_space<vmem>>, vector<1x16x32xf32>
    %88 = vector.shape_cast %87 : vector<1x16x32xf32> to vector<16x32xf32>
    %cst_63 = arith.constant dense<0.000000e+00> : vector<16x256xf32>
    %89 = tpu.matmul %88, %79, %cst_63 {dimension_numbers = #tpu.dot_dimension_numbers<[1], [0], [0], [1], [0, 0, 1, 1], [], []>} : vector<16x32xf32>, vector<32x256xf32>, vector<16x256xf32> -> vector<16x256xf32>
    %90 = arith.maximumf %86, %89 : vector<16x256xf32>
    %c0_64 = arith.constant 0 : index
    %c0_65 = arith.constant 0 : index
    %c0_66 = arith.constant 0 : index
    %91 = vector.load %arg6[%c0_64, %c0_65, %c0_66] : memref<3x256x128xf32, #tpu.memory_space<vmem>>, vector<1x256x128xf32>
    %92 = vector.shape_cast %91 : vector<1x256x128xf32> to vector<256x128xf32>
    %cst_67 = arith.constant dense<0.000000e+00> : vector<16x128xf32>
    %93 = tpu.matmul %90, %92, %cst_67 {dimension_numbers = #tpu.dot_dimension_numbers<[1], [0], [0], [1], [0, 0, 1, 1], [], []>} : vector<16x256xf32>, vector<256x128xf32>, vector<16x128xf32> -> vector<16x128xf32>
    %c1_68 = arith.constant 1 : index
    %c0_69 = arith.constant 0 : index
    %c0_70 = arith.constant 0 : index
    %94 = vector.load %arg6[%c1_68, %c0_69, %c0_70] : memref<3x256x128xf32, #tpu.memory_space<vmem>>, vector<1x256x128xf32>
    %95 = vector.shape_cast %94 : vector<1x256x128xf32> to vector<256x128xf32>
    %cst_71 = arith.constant dense<0.000000e+00> : vector<16x128xf32>
    %96 = tpu.matmul %90, %95, %cst_71 {dimension_numbers = #tpu.dot_dimension_numbers<[1], [0], [0], [1], [0, 0, 1, 1], [], []>} : vector<16x256xf32>, vector<256x128xf32>, vector<16x128xf32> -> vector<16x128xf32>
    %97 = arith.maximumf %93, %96 : vector<16x128xf32>
    %c2_72 = arith.constant 2 : index
    %c0_73 = arith.constant 0 : index
    %c0_74 = arith.constant 0 : index
    %98 = vector.load %arg6[%c2_72, %c0_73, %c0_74] : memref<3x256x128xf32, #tpu.memory_space<vmem>>, vector<1x256x128xf32>
    %99 = vector.shape_cast %98 : vector<1x256x128xf32> to vector<256x128xf32>
    %cst_75 = arith.constant dense<0.000000e+00> : vector<16x128xf32>
    %100 = tpu.matmul %90, %99, %cst_75 {dimension_numbers = #tpu.dot_dimension_numbers<[1], [0], [0], [1], [0, 0, 1, 1], [], []>} : vector<16x256xf32>, vector<256x128xf32>, vector<16x128xf32> -> vector<16x128xf32>
    %101 = arith.maximumf %97, %100 : vector<16x128xf32>
    %102 = tpu.concatenate %75, %101 in 0 : vector<16x128xf32>, vector<16x128xf32> -> vector<32x128xf32>
    %c0_76 = arith.constant 0 : index
    %c0_77 = arith.constant 0 : index
    %103 = vector.load %arg7[%c0_76, %c0_77] : memref<32x128xf32, #tpu.memory_space<vmem>>, vector<32x128xf32>
    tpu.vector_store %arg7[%c0_76, %c0_77], %102 {strides = array<i32>} : memref<32x128xf32, #tpu.memory_space<vmem>>, vector<32x128xf32>,
    return
  }
  func.func @transform_0(%arg0: i32) -> (i32, i32) {
    %c0_i32 = arith.constant 0 : i32
    %c0_i32_0 = arith.constant 0 : i32
    %c0_i32_1 = arith.constant 0 : i32
    return %c0_i32, %c0_i32_0 : i32, i32
  }
  func.func @transform_1(%arg0: i32) -> (i32, i32) {
    %c0_i32 = arith.constant 0 : i32
    %c0_i32_0 = arith.constant 0 : i32
    %c0_i32_1 = arith.constant 0 : i32
    return %c0_i32, %c0_i32_0 : i32, i32
  }
  func.func @transform_2(%arg0: i32) -> (i32, i32, i32) {
    %c0_i32 = arith.constant 0 : i32
    %c0_i32_0 = arith.constant 0 : i32
    %c0_i32_1 = arith.constant 0 : i32
    %c0_i32_2 = arith.constant 0 : i32
    return %c0_i32, %c0_i32_0, %c0_i32_1 : i32, i32, i32
  }
  func.func @transform_3(%arg0: i32) -> (i32, i32) {
    %c0_i32 = arith.constant 0 : i32
    %c0_i32_0 = arith.constant 0 : i32
    %c0_i32_1 = arith.constant 0 : i32
    return %c0_i32, %c0_i32_0 : i32, i32
  }
  func.func @transform_4(%arg0: i32) -> (i32, i32, i32) {
    %c0_i32 = arith.constant 0 : i32
    %c0_i32_0 = arith.constant 0 : i32
    %c0_i32_1 = arith.constant 0 : i32
    %c0_i32_2 = arith.constant 0 : i32
    return %c0_i32, %c0_i32_0, %c0_i32_1 : i32, i32, i32
  }
  func.func @transform_5(%arg0: i32) -> (i32, i32, i32) {
    %c0_i32 = arith.constant 0 : i32
    %c0_i32_0 = arith.constant 0 : i32
    %c0_i32_1 = arith.constant 0 : i32
    %c0_i32_2 = arith.constant 0 : i32
    return %c0_i32, %c0_i32_0, %c0_i32_1 : i32, i32, i32
  }
  func.func @transform_6(%arg0: i32) -> (i32, i32) {
    %c0_i32 = arith.constant 0 : i32
    %c0_i32_0 = arith.constant 0 : i32
    %c0_i32_1 = arith.constant 0 : i32
    return %c0_i32, %c0_i32_0 : i32, i32
  }
}

module attributes {stable_mosaic.version = 11 : i64} {
  func.func @kernel(%arg0: i32, %arg1: memref<36x128xbf16, #tpu.memory_space<vmem>>, %arg2: memref<3x128x128xbf16, #tpu.memory_space<vmem>>, %arg3: memref<1x128xf32, #tpu.memory_space<vmem>>, %arg4: memref<3x128x128xbf16, #tpu.memory_space<vmem>>, %arg5: memref<1x128xf32, #tpu.memory_space<vmem>>, %arg6: memref<32x128xf32, #tpu.memory_space<vmem>>, %arg7: memref<32x128xf32, #tpu.memory_space<vmem>>) attributes {dimension_semantics = [#tpu.dimension_semantics<arbitrary>], iteration_bounds = array<i64: 1>, scalar_prefetch = 0 : i64, scratch_operands = 0 : i64, tpu.core_type = #tpu.core_type<tc>, window_params = [{pipeline_mode = #tpu.pipeline_mode<synchronous>, transform_indices = @transform_0, window_bounds = array<i64: 36, 128>}, {pipeline_mode = #tpu.pipeline_mode<synchronous>, transform_indices = @transform_1, window_bounds = array<i64: 3, 128, 128>}, {pipeline_mode = #tpu.pipeline_mode<synchronous>, transform_indices = @transform_2, window_bounds = array<i64: 1, 128>}, {pipeline_mode = #tpu.pipeline_mode<synchronous>, transform_indices = @transform_3, window_bounds = array<i64: 3, 128, 128>}, {pipeline_mode = #tpu.pipeline_mode<synchronous>, transform_indices = @transform_4, window_bounds = array<i64: 1, 128>}, {pipeline_mode = #tpu.pipeline_mode<synchronous>, transform_indices = @transform_5, window_bounds = array<i64: 32, 128>}, {pipeline_mode = #tpu.pipeline_mode<synchronous>, transform_indices = @transform_6, window_bounds = array<i64: 32, 128>}]} {
    %c0 = arith.constant 0 : index
    %c0_0 = arith.constant 0 : index
    %0 = vector.load %arg1[%c0, %c0_0] : memref<36x128xbf16, #tpu.memory_space<vmem>>, vector<36x128xbf16>
    %c0_1 = arith.constant 0 : index
    %c0_2 = arith.constant 0 : index
    %1 = vector.load %arg3[%c0_1, %c0_2] : memref<1x128xf32, #tpu.memory_space<vmem>>, vector<1x128xf32>
    %c0_3 = arith.constant 0 : index
    %c0_4 = arith.constant 0 : index
    %2 = vector.load %arg5[%c0_3, %c0_4] : memref<1x128xf32, #tpu.memory_space<vmem>>, vector<1x128xf32>
    %c0_5 = arith.constant 0 : index
    %c0_6 = arith.constant 0 : index
    %3 = vector.load %arg6[%c0_5, %c0_6] : memref<32x128xf32, #tpu.memory_space<vmem>>, vector<32x128xf32>
    %c0_7 = arith.constant 0 : index
    %c0_8 = arith.constant 0 : index
    %c0_9 = arith.constant 0 : index
    %4 = vector.load %arg2[%c0_7, %c0_8, %c0_9] : memref<3x128x128xbf16, #tpu.memory_space<vmem>>, vector<1x128x128xbf16>
    %5 = vector.shape_cast %4 : vector<1x128x128xbf16> to vector<128x128xbf16>
    %cst = arith.constant dense<0.000000e+00> : vector<36x128xf32>
    %6 = tpu.matmul %0, %5, %cst {dimension_numbers = #tpu.dot_dimension_numbers<[1], [0], [0], [1], [0, 0, 1, 1], [], []>} : vector<36x128xbf16>, vector<128x128xbf16>, vector<36x128xf32> -> vector<36x128xf32>
    %7 = vector.extract_strided_slice %6 {offsets = [0, 0], sizes = [16, 128], strides = [1, 1]} : vector<36x128xf32> to vector<16x128xf32>
    %8 = vector.extract_strided_slice %6 {offsets = [18, 0], sizes = [16, 128], strides = [1, 1]} : vector<36x128xf32> to vector<16x128xf32>
    %c1 = arith.constant 1 : index
    %c0_10 = arith.constant 0 : index
    %c0_11 = arith.constant 0 : index
    %9 = vector.load %arg2[%c1, %c0_10, %c0_11] : memref<3x128x128xbf16, #tpu.memory_space<vmem>>, vector<1x128x128xbf16>
    %10 = vector.shape_cast %9 : vector<1x128x128xbf16> to vector<128x128xbf16>
    %cst_12 = arith.constant dense<0.000000e+00> : vector<36x128xf32>
    %11 = tpu.matmul %0, %10, %cst_12 {dimension_numbers = #tpu.dot_dimension_numbers<[1], [0], [0], [1], [0, 0, 1, 1], [], []>} : vector<36x128xbf16>, vector<128x128xbf16>, vector<36x128xf32> -> vector<36x128xf32>
    %12 = vector.extract_strided_slice %11 {offsets = [1, 0], sizes = [16, 128], strides = [1, 1]} : vector<36x128xf32> to vector<16x128xf32>
    %13 = arith.addf %7, %12 : vector<16x128xf32>
    %14 = vector.extract_strided_slice %11 {offsets = [19, 0], sizes = [16, 128], strides = [1, 1]} : vector<36x128xf32> to vector<16x128xf32>
    %15 = arith.addf %8, %14 : vector<16x128xf32>
    %c2 = arith.constant 2 : index
    %c0_13 = arith.constant 0 : index
    %c0_14 = arith.constant 0 : index
    %16 = vector.load %arg2[%c2, %c0_13, %c0_14] : memref<3x128x128xbf16, #tpu.memory_space<vmem>>, vector<1x128x128xbf16>
    %17 = vector.shape_cast %16 : vector<1x128x128xbf16> to vector<128x128xbf16>
    %cst_15 = arith.constant dense<0.000000e+00> : vector<36x128xf32>
    %18 = tpu.matmul %0, %17, %cst_15 {dimension_numbers = #tpu.dot_dimension_numbers<[1], [0], [0], [1], [0, 0, 1, 1], [], []>} : vector<36x128xbf16>, vector<128x128xbf16>, vector<36x128xf32> -> vector<36x128xf32>
    %19 = vector.extract_strided_slice %18 {offsets = [2, 0], sizes = [16, 128], strides = [1, 1]} : vector<36x128xf32> to vector<16x128xf32>
    %20 = arith.addf %13, %19 : vector<16x128xf32>
    %21 = vector.extract_strided_slice %18 {offsets = [20, 0], sizes = [16, 128], strides = [1, 1]} : vector<36x128xf32> to vector<16x128xf32>
    %22 = arith.addf %15, %21 : vector<16x128xf32>
    %23 = tpu.concatenate %20, %22 in 0 : vector<16x128xf32>, vector<16x128xf32> -> vector<32x128xf32>
    %24 = vector.broadcast %1 : vector<1x128xf32> to vector<32x128xf32>
    %25 = arith.addf %23, %24 : vector<32x128xf32>
    %cst_16 = arith.constant 0.000000e+00 : f32
    %26 = vector.broadcast %cst_16 : f32 to vector<32x128xf32>
    %27 = arith.maximumf %25, %26 : vector<32x128xf32>
    %cst_17 = arith.constant 0.000000e+00 : bf16
    %28 = vector.broadcast %cst_17 : bf16 to vector<1x128xbf16>
    %29 = vector.extract_strided_slice %27 {offsets = [0, 0], sizes = [16, 128], strides = [1, 1]} : vector<32x128xf32> to vector<16x128xf32>
    %30 = arith.truncf %29 : vector<16x128xf32> to vector<16x128xbf16>
    %31 = vector.extract_strided_slice %27 {offsets = [16, 0], sizes = [16, 128], strides = [1, 1]} : vector<32x128xf32> to vector<16x128xf32>
    %32 = arith.truncf %31 : vector<16x128xf32> to vector<16x128xbf16>
    %33 = tpu.concatenate %28, %30, %28, %28, %32, %28 in 0 : vector<1x128xbf16>, vector<16x128xbf16>, vector<1x128xbf16>, vector<1x128xbf16>, vector<16x128xbf16>, vector<1x128xbf16> -> vector<36x128xbf16>
    %c0_18 = arith.constant 0 : index
    %c0_19 = arith.constant 0 : index
    %c0_20 = arith.constant 0 : index
    %34 = vector.load %arg4[%c0_18, %c0_19, %c0_20] : memref<3x128x128xbf16, #tpu.memory_space<vmem>>, vector<1x128x128xbf16>
    %35 = vector.shape_cast %34 : vector<1x128x128xbf16> to vector<128x128xbf16>
    %cst_21 = arith.constant dense<0.000000e+00> : vector<36x128xf32>
    %36 = tpu.matmul %33, %35, %cst_21 {dimension_numbers = #tpu.dot_dimension_numbers<[1], [0], [0], [1], [0, 0, 1, 1], [], []>} : vector<36x128xbf16>, vector<128x128xbf16>, vector<36x128xf32> -> vector<36x128xf32>
    %37 = vector.extract_strided_slice %36 {offsets = [0, 0], sizes = [16, 128], strides = [1, 1]} : vector<36x128xf32> to vector<16x128xf32>
    %38 = vector.extract_strided_slice %36 {offsets = [18, 0], sizes = [16, 128], strides = [1, 1]} : vector<36x128xf32> to vector<16x128xf32>
    %c1_22 = arith.constant 1 : index
    %c0_23 = arith.constant 0 : index
    %c0_24 = arith.constant 0 : index
    %39 = vector.load %arg4[%c1_22, %c0_23, %c0_24] : memref<3x128x128xbf16, #tpu.memory_space<vmem>>, vector<1x128x128xbf16>
    %40 = vector.shape_cast %39 : vector<1x128x128xbf16> to vector<128x128xbf16>
    %cst_25 = arith.constant dense<0.000000e+00> : vector<36x128xf32>
    %41 = tpu.matmul %33, %40, %cst_25 {dimension_numbers = #tpu.dot_dimension_numbers<[1], [0], [0], [1], [0, 0, 1, 1], [], []>} : vector<36x128xbf16>, vector<128x128xbf16>, vector<36x128xf32> -> vector<36x128xf32>
    %42 = vector.extract_strided_slice %41 {offsets = [1, 0], sizes = [16, 128], strides = [1, 1]} : vector<36x128xf32> to vector<16x128xf32>
    %43 = arith.addf %37, %42 : vector<16x128xf32>
    %44 = vector.extract_strided_slice %41 {offsets = [19, 0], sizes = [16, 128], strides = [1, 1]} : vector<36x128xf32> to vector<16x128xf32>
    %45 = arith.addf %38, %44 : vector<16x128xf32>
    %c2_26 = arith.constant 2 : index
    %c0_27 = arith.constant 0 : index
    %c0_28 = arith.constant 0 : index
    %46 = vector.load %arg4[%c2_26, %c0_27, %c0_28] : memref<3x128x128xbf16, #tpu.memory_space<vmem>>, vector<1x128x128xbf16>
    %47 = vector.shape_cast %46 : vector<1x128x128xbf16> to vector<128x128xbf16>
    %cst_29 = arith.constant dense<0.000000e+00> : vector<36x128xf32>
    %48 = tpu.matmul %33, %47, %cst_29 {dimension_numbers = #tpu.dot_dimension_numbers<[1], [0], [0], [1], [0, 0, 1, 1], [], []>} : vector<36x128xbf16>, vector<128x128xbf16>, vector<36x128xf32> -> vector<36x128xf32>
    %49 = vector.extract_strided_slice %48 {offsets = [2, 0], sizes = [16, 128], strides = [1, 1]} : vector<36x128xf32> to vector<16x128xf32>
    %50 = arith.addf %43, %49 : vector<16x128xf32>
    %51 = vector.extract_strided_slice %48 {offsets = [20, 0], sizes = [16, 128], strides = [1, 1]} : vector<36x128xf32> to vector<16x128xf32>
    %52 = arith.addf %45, %51 : vector<16x128xf32>
    %53 = tpu.concatenate %50, %52 in 0 : vector<16x128xf32>, vector<16x128xf32> -> vector<32x128xf32>
    %54 = vector.broadcast %2 : vector<1x128xf32> to vector<32x128xf32>
    %55 = arith.addf %53, %54 : vector<32x128xf32>
    %56 = arith.addf %55, %3 : vector<32x128xf32>
    %cst_30 = arith.constant 0.000000e+00 : f32
    %57 = vector.broadcast %cst_30 : f32 to vector<32x128xf32>
    %58 = arith.maximumf %56, %57 : vector<32x128xf32>
    %c0_31 = arith.constant 0 : index
    %c0_32 = arith.constant 0 : index
    %59 = vector.load %arg7[%c0_31, %c0_32] : memref<32x128xf32, #tpu.memory_space<vmem>>, vector<32x128xf32>
    tpu.vector_store %arg7[%c0_31, %c0_32], %58 {strides = array<i32>} : memref<32x128xf32, #tpu.memory_space<vmem>>, vector<32x128xf32>,
    return
  }
  func.func @transform_0(%arg0: i32) -> (i32, i32) {
    %c0_i32 = arith.constant 0 : i32
    %c0_i32_0 = arith.constant 0 : i32
    %c0_i32_1 = arith.constant 0 : i32
    return %c0_i32, %c0_i32_0 : i32, i32
  }
  func.func @transform_1(%arg0: i32) -> (i32, i32, i32) {
    %c0_i32 = arith.constant 0 : i32
    %c0_i32_0 = arith.constant 0 : i32
    %c0_i32_1 = arith.constant 0 : i32
    %c0_i32_2 = arith.constant 0 : i32
    return %c0_i32, %c0_i32_0, %c0_i32_1 : i32, i32, i32
  }
  func.func @transform_2(%arg0: i32) -> (i32, i32) {
    %c0_i32 = arith.constant 0 : i32
    %c0_i32_0 = arith.constant 0 : i32
    %c0_i32_1 = arith.constant 0 : i32
    return %c0_i32, %c0_i32_0 : i32, i32
  }
  func.func @transform_3(%arg0: i32) -> (i32, i32, i32) {
    %c0_i32 = arith.constant 0 : i32
    %c0_i32_0 = arith.constant 0 : i32
    %c0_i32_1 = arith.constant 0 : i32
    %c0_i32_2 = arith.constant 0 : i32
    return %c0_i32, %c0_i32_0, %c0_i32_1 : i32, i32, i32
  }
  func.func @transform_4(%arg0: i32) -> (i32, i32) {
    %c0_i32 = arith.constant 0 : i32
    %c0_i32_0 = arith.constant 0 : i32
    %c0_i32_1 = arith.constant 0 : i32
    return %c0_i32, %c0_i32_0 : i32, i32
  }
  func.func @transform_5(%arg0: i32) -> (i32, i32) {
    %c0_i32 = arith.constant 0 : i32
    %c0_i32_0 = arith.constant 0 : i32
    %c0_i32_1 = arith.constant 0 : i32
    return %c0_i32, %c0_i32_0 : i32, i32
  }
  func.func @transform_6(%arg0: i32) -> (i32, i32) {
    %c0_i32 = arith.constant 0 : i32
    %c0_i32_0 = arith.constant 0 : i32
    %c0_i32_1 = arith.constant 0 : i32
    return %c0_i32, %c0_i32_0 : i32, i32
  }
}

module attributes {stable_mosaic.version = 11 : i64} {
  func.func @kernel(%arg0: i32, %arg1: memref<18x128xbf16, #tpu.memory_space<vmem>>, %arg2: memref<18x128xbf16, #tpu.memory_space<vmem>>, %arg3: memref<3x128x256xbf16, #tpu.memory_space<vmem>>, %arg4: memref<1x256xf32, #tpu.memory_space<vmem>>, %arg5: memref<3x128x128xbf16, #tpu.memory_space<vmem>>, %arg6: memref<1x128xf32, #tpu.memory_space<vmem>>, %arg7: memref<16x128xf32, #tpu.memory_space<vmem>>) attributes {dimension_semantics = [#tpu.dimension_semantics<arbitrary>], iteration_bounds = array<i64: 1>, scalar_prefetch = 0 : i64, scratch_operands = 0 : i64, tpu.core_type = #tpu.core_type<tc>, window_params = [{pipeline_mode = #tpu.pipeline_mode<synchronous>, transform_indices = @transform_0, window_bounds = array<i64: 18, 128>}, {pipeline_mode = #tpu.pipeline_mode<synchronous>, transform_indices = @transform_1, window_bounds = array<i64: 18, 128>}, {pipeline_mode = #tpu.pipeline_mode<synchronous>, transform_indices = @transform_2, window_bounds = array<i64: 3, 128, 256>}, {pipeline_mode = #tpu.pipeline_mode<synchronous>, transform_indices = @transform_3, window_bounds = array<i64: 1, 256>}, {pipeline_mode = #tpu.pipeline_mode<synchronous>, transform_indices = @transform_4, window_bounds = array<i64: 3, 128, 128>}, {pipeline_mode = #tpu.pipeline_mode<synchronous>, transform_indices = @transform_5, window_bounds = array<i64: 1, 128>}, {pipeline_mode = #tpu.pipeline_mode<synchronous>, transform_indices = @transform_6, window_bounds = array<i64: 16, 128>}]} {
    %c0 = arith.constant 0 : index
    %c0_0 = arith.constant 0 : index
    %0 = vector.load %arg1[%c0, %c0_0] : memref<18x128xbf16, #tpu.memory_space<vmem>>, vector<18x128xbf16>
    %c0_1 = arith.constant 0 : index
    %c0_2 = arith.constant 0 : index
    %1 = vector.load %arg2[%c0_1, %c0_2] : memref<18x128xbf16, #tpu.memory_space<vmem>>, vector<18x128xbf16>
    %c0_3 = arith.constant 0 : index
    %c0_4 = arith.constant 0 : index
    %2 = vector.load %arg4[%c0_3, %c0_4] : memref<1x256xf32, #tpu.memory_space<vmem>>, vector<1x256xf32>
    %c0_5 = arith.constant 0 : index
    %c0_6 = arith.constant 0 : index
    %3 = vector.load %arg6[%c0_5, %c0_6] : memref<1x128xf32, #tpu.memory_space<vmem>>, vector<1x128xf32>
    %c0_7 = arith.constant 0 : index
    %c0_8 = arith.constant 0 : index
    %c0_9 = arith.constant 0 : index
    %4 = vector.load %arg3[%c0_7, %c0_8, %c0_9] : memref<3x128x256xbf16, #tpu.memory_space<vmem>>, vector<1x128x256xbf16>
    %5 = vector.shape_cast %4 : vector<1x128x256xbf16> to vector<128x256xbf16>
    %cst = arith.constant dense<0.000000e+00> : vector<18x256xf32>
    %6 = tpu.matmul %0, %5, %cst {dimension_numbers = #tpu.dot_dimension_numbers<[1], [0], [0], [1], [0, 0, 1, 1], [], []>} : vector<18x128xbf16>, vector<128x256xbf16>, vector<18x256xf32> -> vector<18x256xf32>
    %7 = vector.extract_strided_slice %6 {offsets = [0, 0], sizes = [8, 256], strides = [1, 1]} : vector<18x256xf32> to vector<8x256xf32>
    %8 = vector.extract_strided_slice %6 {offsets = [9, 0], sizes = [8, 256], strides = [1, 1]} : vector<18x256xf32> to vector<8x256xf32>
    %c1 = arith.constant 1 : index
    %c0_10 = arith.constant 0 : index
    %c0_11 = arith.constant 0 : index
    %9 = vector.load %arg3[%c1, %c0_10, %c0_11] : memref<3x128x256xbf16, #tpu.memory_space<vmem>>, vector<1x128x256xbf16>
    %10 = vector.shape_cast %9 : vector<1x128x256xbf16> to vector<128x256xbf16>
    %cst_12 = arith.constant dense<0.000000e+00> : vector<18x256xf32>
    %11 = tpu.matmul %1, %10, %cst_12 {dimension_numbers = #tpu.dot_dimension_numbers<[1], [0], [0], [1], [0, 0, 1, 1], [], []>} : vector<18x128xbf16>, vector<128x256xbf16>, vector<18x256xf32> -> vector<18x256xf32>
    %12 = vector.extract_strided_slice %11 {offsets = [0, 0], sizes = [8, 256], strides = [1, 1]} : vector<18x256xf32> to vector<8x256xf32>
    %13 = arith.addf %7, %12 : vector<8x256xf32>
    %14 = vector.extract_strided_slice %11 {offsets = [9, 0], sizes = [8, 256], strides = [1, 1]} : vector<18x256xf32> to vector<8x256xf32>
    %15 = arith.addf %8, %14 : vector<8x256xf32>
    %c2 = arith.constant 2 : index
    %c0_13 = arith.constant 0 : index
    %c0_14 = arith.constant 0 : index
    %16 = vector.load %arg3[%c2, %c0_13, %c0_14] : memref<3x128x256xbf16, #tpu.memory_space<vmem>>, vector<1x128x256xbf16>
    %17 = vector.shape_cast %16 : vector<1x128x256xbf16> to vector<128x256xbf16>
    %cst_15 = arith.constant dense<0.000000e+00> : vector<18x256xf32>
    %18 = tpu.matmul %0, %17, %cst_15 {dimension_numbers = #tpu.dot_dimension_numbers<[1], [0], [0], [1], [0, 0, 1, 1], [], []>} : vector<18x128xbf16>, vector<128x256xbf16>, vector<18x256xf32> -> vector<18x256xf32>
    %19 = vector.extract_strided_slice %18 {offsets = [1, 0], sizes = [8, 256], strides = [1, 1]} : vector<18x256xf32> to vector<8x256xf32>
    %20 = arith.addf %13, %19 : vector<8x256xf32>
    %21 = vector.extract_strided_slice %18 {offsets = [10, 0], sizes = [8, 256], strides = [1, 1]} : vector<18x256xf32> to vector<8x256xf32>
    %22 = arith.addf %15, %21 : vector<8x256xf32>
    %23 = tpu.concatenate %20, %22 in 0 : vector<8x256xf32>, vector<8x256xf32> -> vector<16x256xf32>
    %24 = vector.broadcast %2 : vector<1x256xf32> to vector<16x256xf32>
    %25 = arith.addf %23, %24 : vector<16x256xf32>
    %26 = vector.extract_strided_slice %25 {offsets = [0, 0], sizes = [16, 128], strides = [1, 1]} : vector<16x256xf32> to vector<16x128xf32>
    %cst_16 = arith.constant 0.000000e+00 : f32
    %27 = vector.broadcast %cst_16 : f32 to vector<16x128xf32>
    %28 = arith.maximumf %26, %27 : vector<16x128xf32>
    %29 = vector.extract_strided_slice %25 {offsets = [0, 128], sizes = [16, 128], strides = [1, 1]} : vector<16x256xf32> to vector<16x128xf32>
    %cst_17 = arith.constant 0.000000e+00 : bf16
    %30 = vector.broadcast %cst_17 : bf16 to vector<1x128xbf16>
    %31 = vector.extract_strided_slice %28 {offsets = [0, 0], sizes = [8, 128], strides = [1, 1]} : vector<16x128xf32> to vector<8x128xf32>
    %32 = arith.truncf %31 : vector<8x128xf32> to vector<8x128xbf16>
    %33 = vector.extract_strided_slice %28 {offsets = [8, 0], sizes = [8, 128], strides = [1, 1]} : vector<16x128xf32> to vector<8x128xf32>
    %34 = arith.truncf %33 : vector<8x128xf32> to vector<8x128xbf16>
    %35 = tpu.concatenate %30, %32, %30, %30, %34, %30 in 0 : vector<1x128xbf16>, vector<8x128xbf16>, vector<1x128xbf16>, vector<1x128xbf16>, vector<8x128xbf16>, vector<1x128xbf16> -> vector<20x128xbf16>
    %c0_18 = arith.constant 0 : index
    %c0_19 = arith.constant 0 : index
    %c0_20 = arith.constant 0 : index
    %36 = vector.load %arg5[%c0_18, %c0_19, %c0_20] : memref<3x128x128xbf16, #tpu.memory_space<vmem>>, vector<1x128x128xbf16>
    %37 = vector.shape_cast %36 : vector<1x128x128xbf16> to vector<128x128xbf16>
    %cst_21 = arith.constant dense<0.000000e+00> : vector<20x128xf32>
    %38 = tpu.matmul %35, %37, %cst_21 {dimension_numbers = #tpu.dot_dimension_numbers<[1], [0], [0], [1], [0, 0, 1, 1], [], []>} : vector<20x128xbf16>, vector<128x128xbf16>, vector<20x128xf32> -> vector<20x128xf32>
    %39 = vector.extract_strided_slice %38 {offsets = [0, 0], sizes = [8, 128], strides = [1, 1]} : vector<20x128xf32> to vector<8x128xf32>
    %40 = vector.extract_strided_slice %38 {offsets = [10, 0], sizes = [8, 128], strides = [1, 1]} : vector<20x128xf32> to vector<8x128xf32>
    %c1_22 = arith.constant 1 : index
    %c0_23 = arith.constant 0 : index
    %c0_24 = arith.constant 0 : index
    %41 = vector.load %arg5[%c1_22, %c0_23, %c0_24] : memref<3x128x128xbf16, #tpu.memory_space<vmem>>, vector<1x128x128xbf16>
    %42 = vector.shape_cast %41 : vector<1x128x128xbf16> to vector<128x128xbf16>
    %cst_25 = arith.constant dense<0.000000e+00> : vector<20x128xf32>
    %43 = tpu.matmul %35, %42, %cst_25 {dimension_numbers = #tpu.dot_dimension_numbers<[1], [0], [0], [1], [0, 0, 1, 1], [], []>} : vector<20x128xbf16>, vector<128x128xbf16>, vector<20x128xf32> -> vector<20x128xf32>
    %44 = vector.extract_strided_slice %43 {offsets = [1, 0], sizes = [8, 128], strides = [1, 1]} : vector<20x128xf32> to vector<8x128xf32>
    %45 = arith.addf %39, %44 : vector<8x128xf32>
    %46 = vector.extract_strided_slice %43 {offsets = [11, 0], sizes = [8, 128], strides = [1, 1]} : vector<20x128xf32> to vector<8x128xf32>
    %47 = arith.addf %40, %46 : vector<8x128xf32>
    %c2_26 = arith.constant 2 : index
    %c0_27 = arith.constant 0 : index
    %c0_28 = arith.constant 0 : index
    %48 = vector.load %arg5[%c2_26, %c0_27, %c0_28] : memref<3x128x128xbf16, #tpu.memory_space<vmem>>, vector<1x128x128xbf16>
    %49 = vector.shape_cast %48 : vector<1x128x128xbf16> to vector<128x128xbf16>
    %cst_29 = arith.constant dense<0.000000e+00> : vector<20x128xf32>
    %50 = tpu.matmul %35, %49, %cst_29 {dimension_numbers = #tpu.dot_dimension_numbers<[1], [0], [0], [1], [0, 0, 1, 1], [], []>} : vector<20x128xbf16>, vector<128x128xbf16>, vector<20x128xf32> -> vector<20x128xf32>
    %51 = vector.extract_strided_slice %50 {offsets = [2, 0], sizes = [8, 128], strides = [1, 1]} : vector<20x128xf32> to vector<8x128xf32>
    %52 = arith.addf %45, %51 : vector<8x128xf32>
    %53 = vector.extract_strided_slice %50 {offsets = [12, 0], sizes = [8, 128], strides = [1, 1]} : vector<20x128xf32> to vector<8x128xf32>
    %54 = arith.addf %47, %53 : vector<8x128xf32>
    %55 = tpu.concatenate %52, %54 in 0 : vector<8x128xf32>, vector<8x128xf32> -> vector<16x128xf32>
    %56 = vector.broadcast %3 : vector<1x128xf32> to vector<16x128xf32>
    %57 = arith.addf %55, %56 : vector<16x128xf32>
    %58 = arith.addf %57, %29 : vector<16x128xf32>
    %cst_30 = arith.constant 0.000000e+00 : f32
    %59 = vector.broadcast %cst_30 : f32 to vector<16x128xf32>
    %60 = arith.maximumf %58, %59 : vector<16x128xf32>
    %c0_31 = arith.constant 0 : index
    %c0_32 = arith.constant 0 : index
    %61 = vector.load %arg7[%c0_31, %c0_32] : memref<16x128xf32, #tpu.memory_space<vmem>>, vector<16x128xf32>
    tpu.vector_store %arg7[%c0_31, %c0_32], %60 {strides = array<i32>} : memref<16x128xf32, #tpu.memory_space<vmem>>, vector<16x128xf32>,
    return
  }
  func.func @transform_0(%arg0: i32) -> (i32, i32) {
    %c0_i32 = arith.constant 0 : i32
    %c0_i32_0 = arith.constant 0 : i32
    %c0_i32_1 = arith.constant 0 : i32
    return %c0_i32, %c0_i32_0 : i32, i32
  }
  func.func @transform_1(%arg0: i32) -> (i32, i32) {
    %c0_i32 = arith.constant 0 : i32
    %c0_i32_0 = arith.constant 0 : i32
    %c0_i32_1 = arith.constant 0 : i32
    return %c0_i32, %c0_i32_0 : i32, i32
  }
  func.func @transform_2(%arg0: i32) -> (i32, i32, i32) {
    %c0_i32 = arith.constant 0 : i32
    %c0_i32_0 = arith.constant 0 : i32
    %c0_i32_1 = arith.constant 0 : i32
    %c0_i32_2 = arith.constant 0 : i32
    return %c0_i32, %c0_i32_0, %c0_i32_1 : i32, i32, i32
  }
  func.func @transform_3(%arg0: i32) -> (i32, i32) {
    %c0_i32 = arith.constant 0 : i32
    %c0_i32_0 = arith.constant 0 : i32
    %c0_i32_1 = arith.constant 0 : i32
    return %c0_i32, %c0_i32_0 : i32, i32
  }
  func.func @transform_4(%arg0: i32) -> (i32, i32, i32) {
    %c0_i32 = arith.constant 0 : i32
    %c0_i32_0 = arith.constant 0 : i32
    %c0_i32_1 = arith.constant 0 : i32
    %c0_i32_2 = arith.constant 0 : i32
    return %c0_i32, %c0_i32_0, %c0_i32_1 : i32, i32, i32
  }
  func.func @transform_5(%arg0: i32) -> (i32, i32) {
    %c0_i32 = arith.constant 0 : i32
    %c0_i32_0 = arith.constant 0 : i32
    %c0_i32_1 = arith.constant 0 : i32
    return %c0_i32, %c0_i32_0 : i32, i32
  }
  func.func @transform_6(%arg0: i32) -> (i32, i32) {
    %c0_i32 = arith.constant 0 : i32
    %c0_i32_0 = arith.constant 0 : i32
    %c0_i32_1 = arith.constant 0 : i32
    return %c0_i32, %c0_i32_0 : i32, i32
  }
}

module attributes {stable_mosaic.version = 11 : i64} {
  func.func @kernel(%arg0: i32, %arg1: memref<10x128xbf16, #tpu.memory_space<vmem>>, %arg2: memref<10x128xbf16, #tpu.memory_space<vmem>>, %arg3: memref<3x128x256xbf16, #tpu.memory_space<vmem>>, %arg4: memref<1x256xf32, #tpu.memory_space<vmem>>, %arg5: memref<3x128x128xbf16, #tpu.memory_space<vmem>>, %arg6: memref<1x128xf32, #tpu.memory_space<vmem>>, %arg7: memref<8x128xf32, #tpu.memory_space<vmem>>) attributes {dimension_semantics = [#tpu.dimension_semantics<arbitrary>], iteration_bounds = array<i64: 1>, scalar_prefetch = 0 : i64, scratch_operands = 0 : i64, tpu.core_type = #tpu.core_type<tc>, window_params = [{pipeline_mode = #tpu.pipeline_mode<synchronous>, transform_indices = @transform_0, window_bounds = array<i64: 10, 128>}, {pipeline_mode = #tpu.pipeline_mode<synchronous>, transform_indices = @transform_1, window_bounds = array<i64: 10, 128>}, {pipeline_mode = #tpu.pipeline_mode<synchronous>, transform_indices = @transform_2, window_bounds = array<i64: 3, 128, 256>}, {pipeline_mode = #tpu.pipeline_mode<synchronous>, transform_indices = @transform_3, window_bounds = array<i64: 1, 256>}, {pipeline_mode = #tpu.pipeline_mode<synchronous>, transform_indices = @transform_4, window_bounds = array<i64: 3, 128, 128>}, {pipeline_mode = #tpu.pipeline_mode<synchronous>, transform_indices = @transform_5, window_bounds = array<i64: 1, 128>}, {pipeline_mode = #tpu.pipeline_mode<synchronous>, transform_indices = @transform_6, window_bounds = array<i64: 8, 128>}]} {
    %c0 = arith.constant 0 : index
    %c0_0 = arith.constant 0 : index
    %0 = vector.load %arg1[%c0, %c0_0] : memref<10x128xbf16, #tpu.memory_space<vmem>>, vector<10x128xbf16>
    %c0_1 = arith.constant 0 : index
    %c0_2 = arith.constant 0 : index
    %1 = vector.load %arg2[%c0_1, %c0_2] : memref<10x128xbf16, #tpu.memory_space<vmem>>, vector<10x128xbf16>
    %c0_3 = arith.constant 0 : index
    %c0_4 = arith.constant 0 : index
    %2 = vector.load %arg4[%c0_3, %c0_4] : memref<1x256xf32, #tpu.memory_space<vmem>>, vector<1x256xf32>
    %c0_5 = arith.constant 0 : index
    %c0_6 = arith.constant 0 : index
    %3 = vector.load %arg6[%c0_5, %c0_6] : memref<1x128xf32, #tpu.memory_space<vmem>>, vector<1x128xf32>
    %c0_7 = arith.constant 0 : index
    %c0_8 = arith.constant 0 : index
    %c0_9 = arith.constant 0 : index
    %4 = vector.load %arg3[%c0_7, %c0_8, %c0_9] : memref<3x128x256xbf16, #tpu.memory_space<vmem>>, vector<1x128x256xbf16>
    %5 = vector.shape_cast %4 : vector<1x128x256xbf16> to vector<128x256xbf16>
    %cst = arith.constant dense<0.000000e+00> : vector<10x256xf32>
    %6 = tpu.matmul %0, %5, %cst {dimension_numbers = #tpu.dot_dimension_numbers<[1], [0], [0], [1], [0, 0, 1, 1], [], []>} : vector<10x128xbf16>, vector<128x256xbf16>, vector<10x256xf32> -> vector<10x256xf32>
    %7 = vector.extract_strided_slice %6 {offsets = [0, 0], sizes = [4, 256], strides = [1, 1]} : vector<10x256xf32> to vector<4x256xf32>
    %8 = vector.extract_strided_slice %6 {offsets = [5, 0], sizes = [4, 256], strides = [1, 1]} : vector<10x256xf32> to vector<4x256xf32>
    %c1 = arith.constant 1 : index
    %c0_10 = arith.constant 0 : index
    %c0_11 = arith.constant 0 : index
    %9 = vector.load %arg3[%c1, %c0_10, %c0_11] : memref<3x128x256xbf16, #tpu.memory_space<vmem>>, vector<1x128x256xbf16>
    %10 = vector.shape_cast %9 : vector<1x128x256xbf16> to vector<128x256xbf16>
    %cst_12 = arith.constant dense<0.000000e+00> : vector<10x256xf32>
    %11 = tpu.matmul %1, %10, %cst_12 {dimension_numbers = #tpu.dot_dimension_numbers<[1], [0], [0], [1], [0, 0, 1, 1], [], []>} : vector<10x128xbf16>, vector<128x256xbf16>, vector<10x256xf32> -> vector<10x256xf32>
    %12 = vector.extract_strided_slice %11 {offsets = [0, 0], sizes = [4, 256], strides = [1, 1]} : vector<10x256xf32> to vector<4x256xf32>
    %13 = arith.addf %7, %12 : vector<4x256xf32>
    %14 = vector.extract_strided_slice %11 {offsets = [5, 0], sizes = [4, 256], strides = [1, 1]} : vector<10x256xf32> to vector<4x256xf32>
    %15 = arith.addf %8, %14 : vector<4x256xf32>
    %c2 = arith.constant 2 : index
    %c0_13 = arith.constant 0 : index
    %c0_14 = arith.constant 0 : index
    %16 = vector.load %arg3[%c2, %c0_13, %c0_14] : memref<3x128x256xbf16, #tpu.memory_space<vmem>>, vector<1x128x256xbf16>
    %17 = vector.shape_cast %16 : vector<1x128x256xbf16> to vector<128x256xbf16>
    %cst_15 = arith.constant dense<0.000000e+00> : vector<10x256xf32>
    %18 = tpu.matmul %0, %17, %cst_15 {dimension_numbers = #tpu.dot_dimension_numbers<[1], [0], [0], [1], [0, 0, 1, 1], [], []>} : vector<10x128xbf16>, vector<128x256xbf16>, vector<10x256xf32> -> vector<10x256xf32>
    %19 = vector.extract_strided_slice %18 {offsets = [1, 0], sizes = [4, 256], strides = [1, 1]} : vector<10x256xf32> to vector<4x256xf32>
    %20 = arith.addf %13, %19 : vector<4x256xf32>
    %21 = vector.extract_strided_slice %18 {offsets = [6, 0], sizes = [4, 256], strides = [1, 1]} : vector<10x256xf32> to vector<4x256xf32>
    %22 = arith.addf %15, %21 : vector<4x256xf32>
    %23 = tpu.concatenate %20, %22 in 0 : vector<4x256xf32>, vector<4x256xf32> -> vector<8x256xf32>
    %24 = vector.broadcast %2 : vector<1x256xf32> to vector<8x256xf32>
    %25 = arith.addf %23, %24 : vector<8x256xf32>
    %26 = vector.extract_strided_slice %25 {offsets = [0, 0], sizes = [8, 128], strides = [1, 1]} : vector<8x256xf32> to vector<8x128xf32>
    %cst_16 = arith.constant 0.000000e+00 : f32
    %27 = vector.broadcast %cst_16 : f32 to vector<8x128xf32>
    %28 = arith.maximumf %26, %27 : vector<8x128xf32>
    %29 = vector.extract_strided_slice %25 {offsets = [0, 128], sizes = [8, 128], strides = [1, 1]} : vector<8x256xf32> to vector<8x128xf32>
    %cst_17 = arith.constant 0.000000e+00 : bf16
    %30 = vector.broadcast %cst_17 : bf16 to vector<1x128xbf16>
    %31 = vector.extract_strided_slice %28 {offsets = [0, 0], sizes = [4, 128], strides = [1, 1]} : vector<8x128xf32> to vector<4x128xf32>
    %32 = arith.truncf %31 : vector<4x128xf32> to vector<4x128xbf16>
    %33 = vector.extract_strided_slice %28 {offsets = [4, 0], sizes = [4, 128], strides = [1, 1]} : vector<8x128xf32> to vector<4x128xf32>
    %34 = arith.truncf %33 : vector<4x128xf32> to vector<4x128xbf16>
    %35 = tpu.concatenate %30, %32, %30, %30, %34, %30 in 0 : vector<1x128xbf16>, vector<4x128xbf16>, vector<1x128xbf16>, vector<1x128xbf16>, vector<4x128xbf16>, vector<1x128xbf16> -> vector<12x128xbf16>
    %c0_18 = arith.constant 0 : index
    %c0_19 = arith.constant 0 : index
    %c0_20 = arith.constant 0 : index
    %36 = vector.load %arg5[%c0_18, %c0_19, %c0_20] : memref<3x128x128xbf16, #tpu.memory_space<vmem>>, vector<1x128x128xbf16>
    %37 = vector.shape_cast %36 : vector<1x128x128xbf16> to vector<128x128xbf16>
    %cst_21 = arith.constant dense<0.000000e+00> : vector<12x128xf32>
    %38 = tpu.matmul %35, %37, %cst_21 {dimension_numbers = #tpu.dot_dimension_numbers<[1], [0], [0], [1], [0, 0, 1, 1], [], []>} : vector<12x128xbf16>, vector<128x128xbf16>, vector<12x128xf32> -> vector<12x128xf32>
    %39 = vector.extract_strided_slice %38 {offsets = [0, 0], sizes = [4, 128], strides = [1, 1]} : vector<12x128xf32> to vector<4x128xf32>
    %40 = vector.extract_strided_slice %38 {offsets = [6, 0], sizes = [4, 128], strides = [1, 1]} : vector<12x128xf32> to vector<4x128xf32>
    %c1_22 = arith.constant 1 : index
    %c0_23 = arith.constant 0 : index
    %c0_24 = arith.constant 0 : index
    %41 = vector.load %arg5[%c1_22, %c0_23, %c0_24] : memref<3x128x128xbf16, #tpu.memory_space<vmem>>, vector<1x128x128xbf16>
    %42 = vector.shape_cast %41 : vector<1x128x128xbf16> to vector<128x128xbf16>
    %cst_25 = arith.constant dense<0.000000e+00> : vector<12x128xf32>
    %43 = tpu.matmul %35, %42, %cst_25 {dimension_numbers = #tpu.dot_dimension_numbers<[1], [0], [0], [1], [0, 0, 1, 1], [], []>} : vector<12x128xbf16>, vector<128x128xbf16>, vector<12x128xf32> -> vector<12x128xf32>
    %44 = vector.extract_strided_slice %43 {offsets = [1, 0], sizes = [4, 128], strides = [1, 1]} : vector<12x128xf32> to vector<4x128xf32>
    %45 = arith.addf %39, %44 : vector<4x128xf32>
    %46 = vector.extract_strided_slice %43 {offsets = [7, 0], sizes = [4, 128], strides = [1, 1]} : vector<12x128xf32> to vector<4x128xf32>
    %47 = arith.addf %40, %46 : vector<4x128xf32>
    %c2_26 = arith.constant 2 : index
    %c0_27 = arith.constant 0 : index
    %c0_28 = arith.constant 0 : index
    %48 = vector.load %arg5[%c2_26, %c0_27, %c0_28] : memref<3x128x128xbf16, #tpu.memory_space<vmem>>, vector<1x128x128xbf16>
    %49 = vector.shape_cast %48 : vector<1x128x128xbf16> to vector<128x128xbf16>
    %cst_29 = arith.constant dense<0.000000e+00> : vector<12x128xf32>
    %50 = tpu.matmul %35, %49, %cst_29 {dimension_numbers = #tpu.dot_dimension_numbers<[1], [0], [0], [1], [0, 0, 1, 1], [], []>} : vector<12x128xbf16>, vector<128x128xbf16>, vector<12x128xf32> -> vector<12x128xf32>
    %51 = vector.extract_strided_slice %50 {offsets = [2, 0], sizes = [4, 128], strides = [1, 1]} : vector<12x128xf32> to vector<4x128xf32>
    %52 = arith.addf %45, %51 : vector<4x128xf32>
    %53 = vector.extract_strided_slice %50 {offsets = [8, 0], sizes = [4, 128], strides = [1, 1]} : vector<12x128xf32> to vector<4x128xf32>
    %54 = arith.addf %47, %53 : vector<4x128xf32>
    %55 = tpu.concatenate %52, %54 in 0 : vector<4x128xf32>, vector<4x128xf32> -> vector<8x128xf32>
    %56 = vector.broadcast %3 : vector<1x128xf32> to vector<8x128xf32>
    %57 = arith.addf %55, %56 : vector<8x128xf32>
    %58 = arith.addf %57, %29 : vector<8x128xf32>
    %cst_30 = arith.constant 0.000000e+00 : f32
    %59 = vector.broadcast %cst_30 : f32 to vector<8x128xf32>
    %60 = arith.maximumf %58, %59 : vector<8x128xf32>
    %c0_31 = arith.constant 0 : index
    %c0_32 = arith.constant 0 : index
    %61 = vector.load %arg7[%c0_31, %c0_32] : memref<8x128xf32, #tpu.memory_space<vmem>>, vector<8x128xf32>
    tpu.vector_store %arg7[%c0_31, %c0_32], %60 {strides = array<i32>} : memref<8x128xf32, #tpu.memory_space<vmem>>, vector<8x128xf32>,
    return
  }
  func.func @transform_0(%arg0: i32) -> (i32, i32) {
    %c0_i32 = arith.constant 0 : i32
    %c0_i32_0 = arith.constant 0 : i32
    %c0_i32_1 = arith.constant 0 : i32
    return %c0_i32, %c0_i32_0 : i32, i32
  }
  func.func @transform_1(%arg0: i32) -> (i32, i32) {
    %c0_i32 = arith.constant 0 : i32
    %c0_i32_0 = arith.constant 0 : i32
    %c0_i32_1 = arith.constant 0 : i32
    return %c0_i32, %c0_i32_0 : i32, i32
  }
  func.func @transform_2(%arg0: i32) -> (i32, i32, i32) {
    %c0_i32 = arith.constant 0 : i32
    %c0_i32_0 = arith.constant 0 : i32
    %c0_i32_1 = arith.constant 0 : i32
    %c0_i32_2 = arith.constant 0 : i32
    return %c0_i32, %c0_i32_0, %c0_i32_1 : i32, i32, i32
  }
  func.func @transform_3(%arg0: i32) -> (i32, i32) {
    %c0_i32 = arith.constant 0 : i32
    %c0_i32_0 = arith.constant 0 : i32
    %c0_i32_1 = arith.constant 0 : i32
    return %c0_i32, %c0_i32_0 : i32, i32
  }
  func.func @transform_4(%arg0: i32) -> (i32, i32, i32) {
    %c0_i32 = arith.constant 0 : i32
    %c0_i32_0 = arith.constant 0 : i32
    %c0_i32_1 = arith.constant 0 : i32
    %c0_i32_2 = arith.constant 0 : i32
    return %c0_i32, %c0_i32_0, %c0_i32_1 : i32, i32, i32
  }
  func.func @transform_5(%arg0: i32) -> (i32, i32) {
    %c0_i32 = arith.constant 0 : i32
    %c0_i32_0 = arith.constant 0 : i32
    %c0_i32_1 = arith.constant 0 : i32
    return %c0_i32, %c0_i32_0 : i32, i32
  }
  func.func @transform_6(%arg0: i32) -> (i32, i32) {
    %c0_i32 = arith.constant 0 : i32
    %c0_i32_0 = arith.constant 0 : i32
    %c0_i32_1 = arith.constant 0 : i32
    return %c0_i32, %c0_i32_0 : i32, i32
  }
}

module attributes {stable_mosaic.version = 11 : i64} {
  func.func @kernel(%arg0: i32, %arg1: memref<6x128xbf16, #tpu.memory_space<vmem>>, %arg2: memref<6x128xbf16, #tpu.memory_space<vmem>>, %arg3: memref<3x128x256xbf16, #tpu.memory_space<vmem>>, %arg4: memref<1x256xf32, #tpu.memory_space<vmem>>, %arg5: memref<3x128x128xbf16, #tpu.memory_space<vmem>>, %arg6: memref<1x128xf32, #tpu.memory_space<vmem>>, %arg7: memref<4x128xf32, #tpu.memory_space<vmem>>) attributes {dimension_semantics = [#tpu.dimension_semantics<arbitrary>], iteration_bounds = array<i64: 1>, scalar_prefetch = 0 : i64, scratch_operands = 0 : i64, tpu.core_type = #tpu.core_type<tc>, window_params = [{pipeline_mode = #tpu.pipeline_mode<synchronous>, transform_indices = @transform_0, window_bounds = array<i64: 6, 128>}, {pipeline_mode = #tpu.pipeline_mode<synchronous>, transform_indices = @transform_1, window_bounds = array<i64: 6, 128>}, {pipeline_mode = #tpu.pipeline_mode<synchronous>, transform_indices = @transform_2, window_bounds = array<i64: 3, 128, 256>}, {pipeline_mode = #tpu.pipeline_mode<synchronous>, transform_indices = @transform_3, window_bounds = array<i64: 1, 256>}, {pipeline_mode = #tpu.pipeline_mode<synchronous>, transform_indices = @transform_4, window_bounds = array<i64: 3, 128, 128>}, {pipeline_mode = #tpu.pipeline_mode<synchronous>, transform_indices = @transform_5, window_bounds = array<i64: 1, 128>}, {pipeline_mode = #tpu.pipeline_mode<synchronous>, transform_indices = @transform_6, window_bounds = array<i64: 4, 128>}]} {
    %c0 = arith.constant 0 : index
    %c0_0 = arith.constant 0 : index
    %0 = vector.load %arg1[%c0, %c0_0] : memref<6x128xbf16, #tpu.memory_space<vmem>>, vector<6x128xbf16>
    %c0_1 = arith.constant 0 : index
    %c0_2 = arith.constant 0 : index
    %1 = vector.load %arg2[%c0_1, %c0_2] : memref<6x128xbf16, #tpu.memory_space<vmem>>, vector<6x128xbf16>
    %c0_3 = arith.constant 0 : index
    %c0_4 = arith.constant 0 : index
    %2 = vector.load %arg4[%c0_3, %c0_4] : memref<1x256xf32, #tpu.memory_space<vmem>>, vector<1x256xf32>
    %c0_5 = arith.constant 0 : index
    %c0_6 = arith.constant 0 : index
    %3 = vector.load %arg6[%c0_5, %c0_6] : memref<1x128xf32, #tpu.memory_space<vmem>>, vector<1x128xf32>
    %c0_7 = arith.constant 0 : index
    %c0_8 = arith.constant 0 : index
    %c0_9 = arith.constant 0 : index
    %4 = vector.load %arg3[%c0_7, %c0_8, %c0_9] : memref<3x128x256xbf16, #tpu.memory_space<vmem>>, vector<1x128x256xbf16>
    %5 = vector.shape_cast %4 : vector<1x128x256xbf16> to vector<128x256xbf16>
    %cst = arith.constant dense<0.000000e+00> : vector<6x256xf32>
    %6 = tpu.matmul %0, %5, %cst {dimension_numbers = #tpu.dot_dimension_numbers<[1], [0], [0], [1], [0, 0, 1, 1], [], []>} : vector<6x128xbf16>, vector<128x256xbf16>, vector<6x256xf32> -> vector<6x256xf32>
    %7 = vector.extract_strided_slice %6 {offsets = [0, 0], sizes = [2, 256], strides = [1, 1]} : vector<6x256xf32> to vector<2x256xf32>
    %8 = vector.extract_strided_slice %6 {offsets = [3, 0], sizes = [2, 256], strides = [1, 1]} : vector<6x256xf32> to vector<2x256xf32>
    %c1 = arith.constant 1 : index
    %c0_10 = arith.constant 0 : index
    %c0_11 = arith.constant 0 : index
    %9 = vector.load %arg3[%c1, %c0_10, %c0_11] : memref<3x128x256xbf16, #tpu.memory_space<vmem>>, vector<1x128x256xbf16>
    %10 = vector.shape_cast %9 : vector<1x128x256xbf16> to vector<128x256xbf16>
    %cst_12 = arith.constant dense<0.000000e+00> : vector<6x256xf32>
    %11 = tpu.matmul %1, %10, %cst_12 {dimension_numbers = #tpu.dot_dimension_numbers<[1], [0], [0], [1], [0, 0, 1, 1], [], []>} : vector<6x128xbf16>, vector<128x256xbf16>, vector<6x256xf32> -> vector<6x256xf32>
    %12 = vector.extract_strided_slice %11 {offsets = [0, 0], sizes = [2, 256], strides = [1, 1]} : vector<6x256xf32> to vector<2x256xf32>
    %13 = arith.addf %7, %12 : vector<2x256xf32>
    %14 = vector.extract_strided_slice %11 {offsets = [3, 0], sizes = [2, 256], strides = [1, 1]} : vector<6x256xf32> to vector<2x256xf32>
    %15 = arith.addf %8, %14 : vector<2x256xf32>
    %c2 = arith.constant 2 : index
    %c0_13 = arith.constant 0 : index
    %c0_14 = arith.constant 0 : index
    %16 = vector.load %arg3[%c2, %c0_13, %c0_14] : memref<3x128x256xbf16, #tpu.memory_space<vmem>>, vector<1x128x256xbf16>
    %17 = vector.shape_cast %16 : vector<1x128x256xbf16> to vector<128x256xbf16>
    %cst_15 = arith.constant dense<0.000000e+00> : vector<6x256xf32>
    %18 = tpu.matmul %0, %17, %cst_15 {dimension_numbers = #tpu.dot_dimension_numbers<[1], [0], [0], [1], [0, 0, 1, 1], [], []>} : vector<6x128xbf16>, vector<128x256xbf16>, vector<6x256xf32> -> vector<6x256xf32>
    %19 = vector.extract_strided_slice %18 {offsets = [1, 0], sizes = [2, 256], strides = [1, 1]} : vector<6x256xf32> to vector<2x256xf32>
    %20 = arith.addf %13, %19 : vector<2x256xf32>
    %21 = vector.extract_strided_slice %18 {offsets = [4, 0], sizes = [2, 256], strides = [1, 1]} : vector<6x256xf32> to vector<2x256xf32>
    %22 = arith.addf %15, %21 : vector<2x256xf32>
    %23 = tpu.concatenate %20, %22 in 0 : vector<2x256xf32>, vector<2x256xf32> -> vector<4x256xf32>
    %24 = vector.broadcast %2 : vector<1x256xf32> to vector<4x256xf32>
    %25 = arith.addf %23, %24 : vector<4x256xf32>
    %26 = vector.extract_strided_slice %25 {offsets = [0, 0], sizes = [4, 128], strides = [1, 1]} : vector<4x256xf32> to vector<4x128xf32>
    %cst_16 = arith.constant 0.000000e+00 : f32
    %27 = vector.broadcast %cst_16 : f32 to vector<4x128xf32>
    %28 = arith.maximumf %26, %27 : vector<4x128xf32>
    %29 = vector.extract_strided_slice %25 {offsets = [0, 128], sizes = [4, 128], strides = [1, 1]} : vector<4x256xf32> to vector<4x128xf32>
    %cst_17 = arith.constant 0.000000e+00 : bf16
    %30 = vector.broadcast %cst_17 : bf16 to vector<1x128xbf16>
    %31 = vector.extract_strided_slice %28 {offsets = [0, 0], sizes = [2, 128], strides = [1, 1]} : vector<4x128xf32> to vector<2x128xf32>
    %32 = arith.truncf %31 : vector<2x128xf32> to vector<2x128xbf16>
    %33 = vector.extract_strided_slice %28 {offsets = [2, 0], sizes = [2, 128], strides = [1, 1]} : vector<4x128xf32> to vector<2x128xf32>
    %34 = arith.truncf %33 : vector<2x128xf32> to vector<2x128xbf16>
    %35 = tpu.concatenate %30, %32, %30, %30, %34, %30 in 0 : vector<1x128xbf16>, vector<2x128xbf16>, vector<1x128xbf16>, vector<1x128xbf16>, vector<2x128xbf16>, vector<1x128xbf16> -> vector<8x128xbf16>
    %c0_18 = arith.constant 0 : index
    %c0_19 = arith.constant 0 : index
    %c0_20 = arith.constant 0 : index
    %36 = vector.load %arg5[%c0_18, %c0_19, %c0_20] : memref<3x128x128xbf16, #tpu.memory_space<vmem>>, vector<1x128x128xbf16>
    %37 = vector.shape_cast %36 : vector<1x128x128xbf16> to vector<128x128xbf16>
    %cst_21 = arith.constant dense<0.000000e+00> : vector<8x128xf32>
    %38 = tpu.matmul %35, %37, %cst_21 {dimension_numbers = #tpu.dot_dimension_numbers<[1], [0], [0], [1], [0, 0, 1, 1], [], []>} : vector<8x128xbf16>, vector<128x128xbf16>, vector<8x128xf32> -> vector<8x128xf32>
    %39 = vector.extract_strided_slice %38 {offsets = [0, 0], sizes = [2, 128], strides = [1, 1]} : vector<8x128xf32> to vector<2x128xf32>
    %40 = vector.extract_strided_slice %38 {offsets = [4, 0], sizes = [2, 128], strides = [1, 1]} : vector<8x128xf32> to vector<2x128xf32>
    %c1_22 = arith.constant 1 : index
    %c0_23 = arith.constant 0 : index
    %c0_24 = arith.constant 0 : index
    %41 = vector.load %arg5[%c1_22, %c0_23, %c0_24] : memref<3x128x128xbf16, #tpu.memory_space<vmem>>, vector<1x128x128xbf16>
    %42 = vector.shape_cast %41 : vector<1x128x128xbf16> to vector<128x128xbf16>
    %cst_25 = arith.constant dense<0.000000e+00> : vector<8x128xf32>
    %43 = tpu.matmul %35, %42, %cst_25 {dimension_numbers = #tpu.dot_dimension_numbers<[1], [0], [0], [1], [0, 0, 1, 1], [], []>} : vector<8x128xbf16>, vector<128x128xbf16>, vector<8x128xf32> -> vector<8x128xf32>
    %44 = vector.extract_strided_slice %43 {offsets = [1, 0], sizes = [2, 128], strides = [1, 1]} : vector<8x128xf32> to vector<2x128xf32>
    %45 = arith.addf %39, %44 : vector<2x128xf32>
    %46 = vector.extract_strided_slice %43 {offsets = [5, 0], sizes = [2, 128], strides = [1, 1]} : vector<8x128xf32> to vector<2x128xf32>
    %47 = arith.addf %40, %46 : vector<2x128xf32>
    %c2_26 = arith.constant 2 : index
    %c0_27 = arith.constant 0 : index
    %c0_28 = arith.constant 0 : index
    %48 = vector.load %arg5[%c2_26, %c0_27, %c0_28] : memref<3x128x128xbf16, #tpu.memory_space<vmem>>, vector<1x128x128xbf16>
    %49 = vector.shape_cast %48 : vector<1x128x128xbf16> to vector<128x128xbf16>
    %cst_29 = arith.constant dense<0.000000e+00> : vector<8x128xf32>
    %50 = tpu.matmul %35, %49, %cst_29 {dimension_numbers = #tpu.dot_dimension_numbers<[1], [0], [0], [1], [0, 0, 1, 1], [], []>} : vector<8x128xbf16>, vector<128x128xbf16>, vector<8x128xf32> -> vector<8x128xf32>
    %51 = vector.extract_strided_slice %50 {offsets = [2, 0], sizes = [2, 128], strides = [1, 1]} : vector<8x128xf32> to vector<2x128xf32>
    %52 = arith.addf %45, %51 : vector<2x128xf32>
    %53 = vector.extract_strided_slice %50 {offsets = [6, 0], sizes = [2, 128], strides = [1, 1]} : vector<8x128xf32> to vector<2x128xf32>
    %54 = arith.addf %47, %53 : vector<2x128xf32>
    %55 = tpu.concatenate %52, %54 in 0 : vector<2x128xf32>, vector<2x128xf32> -> vector<4x128xf32>
    %56 = vector.broadcast %3 : vector<1x128xf32> to vector<4x128xf32>
    %57 = arith.addf %55, %56 : vector<4x128xf32>
    %58 = arith.addf %57, %29 : vector<4x128xf32>
    %cst_30 = arith.constant 0.000000e+00 : f32
    %59 = vector.broadcast %cst_30 : f32 to vector<4x128xf32>
    %60 = arith.maximumf %58, %59 : vector<4x128xf32>
    %c0_31 = arith.constant 0 : index
    %c0_32 = arith.constant 0 : index
    %61 = vector.load %arg7[%c0_31, %c0_32] : memref<4x128xf32, #tpu.memory_space<vmem>>, vector<4x128xf32>
    tpu.vector_store %arg7[%c0_31, %c0_32], %60 {strides = array<i32>} : memref<4x128xf32, #tpu.memory_space<vmem>>, vector<4x128xf32>,
    return
  }
  func.func @transform_0(%arg0: i32) -> (i32, i32) {
    %c0_i32 = arith.constant 0 : i32
    %c0_i32_0 = arith.constant 0 : i32
    %c0_i32_1 = arith.constant 0 : i32
    return %c0_i32, %c0_i32_0 : i32, i32
  }
  func.func @transform_1(%arg0: i32) -> (i32, i32) {
    %c0_i32 = arith.constant 0 : i32
    %c0_i32_0 = arith.constant 0 : i32
    %c0_i32_1 = arith.constant 0 : i32
    return %c0_i32, %c0_i32_0 : i32, i32
  }
  func.func @transform_2(%arg0: i32) -> (i32, i32, i32) {
    %c0_i32 = arith.constant 0 : i32
    %c0_i32_0 = arith.constant 0 : i32
    %c0_i32_1 = arith.constant 0 : i32
    %c0_i32_2 = arith.constant 0 : i32
    return %c0_i32, %c0_i32_0, %c0_i32_1 : i32, i32, i32
  }
  func.func @transform_3(%arg0: i32) -> (i32, i32) {
    %c0_i32 = arith.constant 0 : i32
    %c0_i32_0 = arith.constant 0 : i32
    %c0_i32_1 = arith.constant 0 : i32
    return %c0_i32, %c0_i32_0 : i32, i32
  }
  func.func @transform_4(%arg0: i32) -> (i32, i32, i32) {
    %c0_i32 = arith.constant 0 : i32
    %c0_i32_0 = arith.constant 0 : i32
    %c0_i32_1 = arith.constant 0 : i32
    %c0_i32_2 = arith.constant 0 : i32
    return %c0_i32, %c0_i32_0, %c0_i32_1 : i32, i32, i32
  }
  func.func @transform_5(%arg0: i32) -> (i32, i32) {
    %c0_i32 = arith.constant 0 : i32
    %c0_i32_0 = arith.constant 0 : i32
    %c0_i32_1 = arith.constant 0 : i32
    return %c0_i32, %c0_i32_0 : i32, i32
  }
  func.func @transform_6(%arg0: i32) -> (i32, i32) {
    %c0_i32 = arith.constant 0 : i32
    %c0_i32_0 = arith.constant 0 : i32
    %c0_i32_1 = arith.constant 0 : i32
    return %c0_i32, %c0_i32_0 : i32, i32
  }
}

</mosaic_0001>

<llo_original>
// kernel: tile.63
$region0: #{tile.63}
  #allocation0 [shape = 's32[1]{0}', space=sflag, size = 0x4, scoped, tag = 'scoped memory for tile.63']
  %s0 = inlined_call_operand.vmem [shape: f32[8], index: 0, kind: input, shape index: {}]
  %s1 = inlined_call_operand.vmem [shape: f32[32,8], index: 1, kind: output, shape index: {}]
  // Predicated region
  $region2: #{tile.63} parent=0 // pred_check
    _
  $region3: #{tile.63} parent=0 // pred_check_branch
    %3 = sbr.rel (0) target = $region5
  $region4: #{tile.63} parent=0 // pred_region
    _
  $region5: #{tile.63} parent=0 // pred_fallthru
    _
  %v4 = vld [vmem:[%s0] ss:$0 sm:$0xff]
  %5 = vst [vmem:[%s1] sm:$0xff] %v4
  %s6 = scalar_lea.vmem %s1, 8
  %7 = vst [vmem:[%s6] sm:$0xff] %v4
  %s8 = scalar_lea.vmem %s1, 16
  %9 = vst [vmem:[%s8] sm:$0xff] %v4
  %s10 = scalar_lea.vmem %s1, 24
  %11 = vst [vmem:[%s10] sm:$0xff] %v4

// kernel: tile.64
$region0: #{tile.64}
  %s0 = inlined_call_operand.vmem [shape: f32[32,8], index: 0, kind: input, shape index: {}]
  %s1 = inlined_call_operand.vmem [shape: f32[1,256], index: 1, kind: output, shape index: {}]
  $region1: #{tile.64} parent=0
    #allocation0 [shape = 'u8[8192]{0}', space=vmem, size = 0x2000, scoped, tag = 'scoped mem for output reshape']
    %s2 = smov 3
    %v3 = vld [vmem:[%s0] ss:$16 sm:%s2]
    %vm4 = vcmask 64512
    %5 = vst.msk [vmem:[#allocation0] ss:$8 sm:$0x3] %vm4, %v3
    %s6 = scalar_lea.vmem %s0, 15
    %s7 = smov 3
    %v8 = vld [vmem:[%s6] ss:$16 sm:%s7]
    %9 = vrot.lane.b32.xlu0 %v8, 120
    %v10 = vpop.permute.xlu0 %9
    %vm11 = vcmask 1048512
    %12 = vst.msk [vmem:[#allocation0] ss:$8 sm:$0x3] %vm11, %v10
    %s13 = scalar_lea.vmem %s0, 14
    %s14 = smov 3
    %v15 = vld [vmem:[%s13] ss:$16 sm:%s14]
    %16 = vrot.lane.b32.xlu0 %v15, 112
    %v17 = vpop.permute.xlu0 %16
    %vm18 = vcmask 982912
    %19 = vst.msk [vmem:[#allocation0] ss:$8 sm:$0x3] %vm18, %v17
    %s20 = scalar_lea.vmem %s0, 13
    %s21 = smov 3
    %v22 = vld [vmem:[%s20] ss:$16 sm:%s21]
    %23 = vrot.lane.b32.xlu0 %v22, 104
    %v24 = vpop.permute.xlu0 %23
    %vm25 = vcmask 917312
    %26 = vst.msk [vmem:[#allocation0] ss:$8 sm:$0x3] %vm25, %v24
    %s27 = scalar_lea.vmem %s0, 12
    %s28 = smov 3
    %v29 = vld [vmem:[%s27] ss:$16 sm:%s28]
    %30 = vrot.lane.b32.xlu0 %v29, 96
    %v31 = vpop.permute.xlu0 %30
    %vm32 = vcmask 851712
    %33 = vst.msk [vmem:[#allocation0] ss:$8 sm:$0x3] %vm32, %v31
    %s34 = scalar_lea.vmem %s0, 11
    %s35 = smov 3
    %v36 = vld [vmem:[%s34] ss:$16 sm:%s35]
    %37 = vrot.lane.b32.xlu0 %v36, 88
    %v38 = vpop.permute.xlu0 %37
    %vm39 = vcmask 786112
    %40 = vst.msk [vmem:[#allocation0] ss:$8 sm:$0x3] %vm39, %v38
    %s41 = scalar_lea.vmem %s0, 10
    %s42 = smov 3
    %v43 = vld [vmem:[%s41] ss:$16 sm:%s42]
    %44 = vrot.lane.b32.xlu0 %v43, 80
    %v45 = vpop.permute.xlu0 %44
    %vm46 = vcmask 720512
    %47 = vst.msk [vmem:[#allocation0] ss:$8 sm:$0x3] %vm46, %v45
    %s48 = scalar_lea.vmem %s0, 9
    %s49 = smov 3
    %v50 = vld [vmem:[%s48] ss:$16 sm:%s49]
    %51 = vrot.lane.b32.xlu0 %v50, 72
    %v52 = vpop.permute.xlu0 %51
    %vm53 = vcmask 654912
    %54 = vst.msk [vmem:[#allocation0] ss:$8 sm:$0x3] %vm53, %v52
    %s55 = scalar_lea.vmem %s0, 8
    %s56 = smov 3
    %v57 = vld [vmem:[%s55] ss:$16 sm:%s56]
    %58 = vrot.lane.b32.xlu0 %v57, 64
    %v59 = vpop.permute.xlu0 %58
    %vm60 = vcmask 589312
    %61 = vst.msk [vmem:[#allocation0] ss:$8 sm:$0x3] %vm60, %v59
    %s62 = scalar_lea.vmem %s0, 7
    %s63 = smov 3
    %v64 = vld [vmem:[%s62] ss:$16 sm:%s63]
    %65 = vrot.lane.b32.xlu0 %v64, 56
    %v66 = vpop.permute.xlu0 %65
    %vm67 = vcmask 523712
    %68 = vst.msk [vmem:[#allocation0] ss:$8 sm:$0x3] %vm67, %v66
    %s69 = scalar_lea.vmem %s0, 6
    %s70 = smov 3
    %v71 = vld [vmem:[%s69] ss:$16 sm:%s70]
    %72 = vrot.lane.b32.xlu0 %v71, 48
    %v73 = vpop.permute.xlu0 %72
    %vm74 = vcmask 458112
    %75 = vst.msk [vmem:[#allocation0] ss:$8 sm:$0x3] %vm74, %v73
    %s76 = scalar_lea.vmem %s0, 5
    %s77 = smov 3
    %v78 = vld [vmem:[%s76] ss:$16 sm:%s77]
    %79 = vrot.lane.b32.xlu0 %v78, 40
    %v80 = vpop.permute.xlu0 %79
    %vm81 = vcmask 392512
    %82 = vst.msk [vmem:[#allocation0] ss:$8 sm:$0x3] %vm81, %v80
    %s83 = scalar_lea.vmem %s0, 4
    %s84 = smov 3
    %v85 = vld [vmem:[%s83] ss:$16 sm:%s84]
    %86 = vrot.lane.b32.xlu0 %v85, 32
    %v87 = vpop.permute.xlu0 %86
    %vm88 = vcmask 326912
    %89 = vst.msk [vmem:[#allocation0] ss:$8 sm:$0x3] %vm88, %v87
    %s90 = scalar_lea.vmem %s0, 3
    %s91 = smov 3
    %v92 = vld [vmem:[%s90] ss:$16 sm:%s91]
    %93 = vrot.lane.b32.xlu0 %v92, 24
    %v94 = vpop.permute.xlu0 %93
    %vm95 = vcmask 261312
    %96 = vst.msk [vmem:[#allocation0] ss:$8 sm:$0x3] %vm95, %v94
    %s97 = scalar_lea.vmem %s0, 2
    %s98 = smov 3
    %v99 = vld [vmem:[%s97] ss:$16 sm:%s98]
    %100 = vrot.lane.b32.xlu0 %v99, 16
    %v101 = vpop.permute.xlu0 %100
    %vm102 = vcmask 195712
    %103 = vst.msk [vmem:[#allocation0] ss:$8 sm:$0x3] %vm102, %v101
    %s104 = scalar_lea.vmem %s0, 1
    %s105 = smov 3
    %v106 = vld [vmem:[%s104] ss:$16 sm:%s105]
    %107 = vrot.lane.b32.xlu0 %v106, 8
    %v108 = vpop.permute.xlu0 %107
    %vm109 = vcmask 130112
    %110 = vst.msk [vmem:[#allocation0] ss:$8 sm:$0x3] %vm109, %v108
    %s112 = ssub.s32 2, 1
    %v113 = vld [vmem:[#allocation0] sm:%s112]
    %s115 = ssub.s32 2, 1
    %116 = vst [vmem:[%s1] sm:%s115] %v113
    %s117 = scalar_lea.vmem [#allocation0], 8
    %v118 = vld [vmem:[%s117] sm:%s112]
    %s120 = ssub.s32 2, 1
    %s121 = scalar_lea.vmem %s1, 1
    %122 = vst [vmem:[%s121] sm:%s120] %v118

// kernel: backbone_base_forward.5
$region0: #{backbone_base_forward.5}
  #allocation0 [shape = 'u32[]', space=smem, size = 0x4, offset = 0x4, fixed_abs, tag = 'smem constant byte address 0x4 - core index']
  #allocation1 [shape = 'u32[72,128]{1,0:T(1,128)}', space=vmem, size = 0x9000, scoped, tag = 'internal scratch']
  %s0 = inlined_call_operand.vmem [shape: bf16[70,192], index: 0, kind: input, shape index: {}]
  %s1 = inlined_call_operand.vmem [shape: bf16[70,192], index: 1, kind: input, shape index: {}]
  %s2 = inlined_call_operand.vmem [shape: bf16[7,192,256], index: 2, kind: input, shape index: {}]
  %s3 = inlined_call_operand.vmem [shape: f32[1,256], index: 3, kind: input, shape index: {}]
  %s4 = inlined_call_operand.vmem [shape: f32[3,16,32], index: 4, kind: input, shape index: {}]
  %s5 = inlined_call_operand.vmem [shape: f32[3,256,128], index: 5, kind: input, shape index: {}]
  %s6 = inlined_call_operand.vmem [shape: f32[32,128], index: 6, kind: output, shape index: {}]
  %s7 = sld [smem:[#allocation0]]
  $region34: #{backbone_base_forward.5} parent=0
    _
  %s9 = ssub.s32 1, %s7
  %s10 = scalar_select 0, %s9, %s7
  // Predicated region
  $region2: #{backbone_base_forward.5} parent=0 // pred_check
    _
  $region3: #{backbone_base_forward.5} parent=0 // pred_check_branch
    %12 = sbr.rel (0) target = $region5
  $region4: #{backbone_base_forward.5} parent=0 // pred_region
    _
  $region5: #{backbone_base_forward.5} parent=0 // pred_fallthru
    _
  // Predicated region
  $region6: #{backbone_base_forward.5} parent=0 // pred_check
    _
  $region7: #{backbone_base_forward.5} parent=0 // pred_check_branch
    %14 = sbr.rel (0) target = $region9
  $region8: #{backbone_base_forward.5} parent=0 // pred_region
    _
  $region9: #{backbone_base_forward.5} parent=0 // pred_fallthru
    _
  // Predicated region
  $region10: #{backbone_base_forward.5} parent=0 // pred_check
    _
  $region11: #{backbone_base_forward.5} parent=0 // pred_check_branch
    %16 = sbr.rel (0) target = $region13
  $region12: #{backbone_base_forward.5} parent=0 // pred_region
    _
  $region13: #{backbone_base_forward.5} parent=0 // pred_fallthru
    _
  // Predicated region
  $region14: #{backbone_base_forward.5} parent=0 // pred_check
    _
  $region15: #{backbone_base_forward.5} parent=0 // pred_check_branch
    %18 = sbr.rel (0) target = $region17
  $region16: #{backbone_base_forward.5} parent=0 // pred_region
    _
  $region17: #{backbone_base_forward.5} parent=0 // pred_fallthru
    _
  // Predicated region
  $region18: #{backbone_base_forward.5} parent=0 // pred_check
    _
  $region19: #{backbone_base_forward.5} parent=0 // pred_check_branch
    %20 = sbr.rel (0) target = $region21
  $region20: #{backbone_base_forward.5} parent=0 // pred_region
    _
  $region21: #{backbone_base_forward.5} parent=0 // pred_fallthru
    _
  // Predicated region
  $region22: #{backbone_base_forward.5} parent=0 // pred_check
    _
  $region23: #{backbone_base_forward.5} parent=0 // pred_check_branch
    %22 = sbr.rel (0) target = $region25
  $region24: #{backbone_base_forward.5} parent=0 // pred_region
    _
  $region25: #{backbone_base_forward.5} parent=0 // pred_fallthru
    _
  %v24 = vld [vmem:[%s0] sm:$0xff]
  %v25 = vld [vmem:[%s0 + $0x8] sm:$0xff]
  %v26 = vld [vmem:[%s0 + $0x10] sm:$0xff]
  %v27 = vld [vmem:[%s0 + $0x18] sm:$0xff]
  %v28 = vld [vmem:[%s0 + $0x20] sm:$0xff]
  %v29 = vld [vmem:[%s0 + $0x28] sm:$0xff]
  %v30 = vld [vmem:[%s0 + $0x30] sm:$0xff]
  %v31 = vld [vmem:[%s0 + $0x38] sm:$0xff]
  %v32 = vld [vmem:[%s0 + $0x40] sm:$0x77]
  %v33 = vld [vmem:[%s1] sm:$0xff]
  %v34 = vld [vmem:[%s1 + $0x8] sm:$0xff]
  %v35 = vld [vmem:[%s1 + $0x10] sm:$0xff]
  %v36 = vld [vmem:[%s1 + $0x18] sm:$0xff]
  %v37 = vld [vmem:[%s1 + $0x20] sm:$0xff]
  %v38 = vld [vmem:[%s1 + $0x28] sm:$0xff]
  %v39 = vld [vmem:[%s1 + $0x30] sm:$0xff]
  %v40 = vld [vmem:[%s1 + $0x38] sm:$0xff]
  %v41 = vld [vmem:[%s1 + $0x40] sm:$0x77]
  %v42 = vld [vmem:[%s2] sm:$0xff]
  %v43 = vld [vmem:[%s2 + $0x8] sm:$0xff]
  %v44 = vld [vmem:[%s2 + $0x10] sm:$0xff]
  %v45 = vld [vmem:[%s2 + $0x18] sm:$0xff]
  %v46 = vld [vmem:[%s2 + $0x20] sm:$0xff]
  %v47 = vld [vmem:[%s2 + $0x28] sm:$0xff]
  %v48 = vld [vmem:[%s2 + $0x30] sm:$0xff]
  %v49 = vld [vmem:[%s2 + $0x38] sm:$0xff]
  %v50 = vld [vmem:[%s2 + $0x40] sm:$0xff]
  %v51 = vld [vmem:[%s2 + $0x48] sm:$0xff]
  %v52 = vld [vmem:[%s2 + $0x50] sm:$0xff]
  %v53 = vld [vmem:[%s2 + $0x58] sm:$0xff]
  %v54 = vld [vmem:[%s2 + $0x60] sm:$0xff]
  %v55 = vld [vmem:[%s2 + $0x68] sm:$0xff]
  %v56 = vld [vmem:[%s2 + $0x70] sm:$0xff]
  %v57 = vld [vmem:[%s2 + $0x78] sm:$0xff]
  %v58 = vld [vmem:[%s2 + $0x80] sm:$0xff]
  %v59 = vld [vmem:[%s2 + $0x88] sm:$0xff]
  %v60 = vld [vmem:[%s2 + $0x90] sm:$0xff]
  %v61 = vld [vmem:[%s2 + $0x98] sm:$0xff]
  %v62 = vld [vmem:[%s2 + $0xa0] sm:$0xff]
  %v63 = vld [vmem:[%s2 + $0xa8] sm:$0xff]
  %v64 = vld [vmem:[%s2 + $0xb0] sm:$0xff]
  %v65 = vld [vmem:[%s2 + $0xb8] sm:$0xff]
  %v75 = vunpack.c.l.b16 %v24
  %v76 = vunpack.c.h.b16 %v24
  %v77 = vunpack.c.l.b16 %v25
  %v78 = vunpack.c.h.b16 %v25
  %v79 = vunpack.c.l.b16 %v26
  %v80 = vunpack.c.h.b16 %v26
  %v81 = vunpack.c.l.b16 %v27
  %v82 = vunpack.c.h.b16 %v27
  %v83 = vunpack.c.l.b16 %v28
  %v84 = vunpack.c.h.b16 %v28
  %v85 = vunpack.c.l.b16 %v29
  %v86 = vunpack.c.h.b16 %v29
  %v87 = vunpack.c.l.b16 %v30
  %v88 = vunpack.c.h.b16 %v30
  %v89 = vunpack.c.l.b16 %v31
  %v90 = vunpack.c.h.b16 %v31
  %v91 = vunpack.c.l.b16 %v32
  %v92 = vunpack.c.h.b16 %v32
  %v93 = vpack.c.b16 %v77, %v75
  %v94 = vpack.c.b16 %v78, %v76
  %v95 = vpack.c.b16 %v81, %v79
  %v96 = vpack.c.b16 %v82, %v80
  %v97 = vpack.c.b16 %v85, %v83
  %v98 = vpack.c.b16 %v86, %v84
  %v99 = vpack.c.b16 %v89, %v87
  %v100 = vpack.c.b16 %v90, %v88
  %v101 = vpack.c.b16 %v91, %v91
  %v102 = vpack.c.b16 %v92, %v92
  %v132 = vunpack.c.l.b16 %v42
  %v133 = vunpack.c.h.b16 %v42
  %v134 = vunpack.c.l.b16 %v43
  %v135 = vunpack.c.h.b16 %v43
  %v136 = vunpack.c.l.b16 %v44
  %v137 = vunpack.c.h.b16 %v44
  %v138 = vunpack.c.l.b16 %v45
  %v139 = vunpack.c.h.b16 %v45
  %v140 = vunpack.c.l.b16 %v46
  %v141 = vunpack.c.h.b16 %v46
  %v142 = vunpack.c.l.b16 %v47
  %v143 = vunpack.c.h.b16 %v47
  %v144 = vunpack.c.l.b16 %v48
  %v145 = vunpack.c.h.b16 %v48
  %v146 = vunpack.c.l.b16 %v49
  %v147 = vunpack.c.h.b16 %v49
  %v148 = vunpack.c.l.b16 %v50
  %v149 = vunpack.c.h.b16 %v50
  %v150 = vunpack.c.l.b16 %v51
  %v151 = vunpack.c.h.b16 %v51
  %v152 = vunpack.c.l.b16 %v52
  %v153 = vunpack.c.h.b16 %v52
  %v154 = vunpack.c.l.b16 %v53
  %v155 = vunpack.c.h.b16 %v53
  %v156 = vunpack.c.l.b16 %v54
  %v157 = vunpack.c.h.b16 %v54
  %v158 = vunpack.c.l.b16 %v55
  %v159 = vunpack.c.h.b16 %v55
  %v160 = vunpack.c.l.b16 %v56
  %v161 = vunpack.c.h.b16 %v56
  %v162 = vunpack.c.l.b16 %v57
  %v163 = vunpack.c.h.b16 %v57
  %v164 = vunpack.c.l.b16 %v58
  %v165 = vunpack.c.h.b16 %v58
  %v166 = vunpack.c.l.b16 %v59
  %v167 = vunpack.c.h.b16 %v59
  %v168 = vunpack.c.l.b16 %v60
  %v169 = vunpack.c.h.b16 %v60
  %v170 = vunpack.c.l.b16 %v61
  %v171 = vunpack.c.h.b16 %v61
  %v172 = vunpack.c.l.b16 %v62
  %v173 = vunpack.c.h.b16 %v62
  %v174 = vunpack.c.l.b16 %v63
  %v175 = vunpack.c.h.b16 %v63
  %v176 = vunpack.c.l.b16 %v64
  %v177 = vunpack.c.h.b16 %v64
  %v178 = vunpack.c.l.b16 %v65
  %v179 = vunpack.c.h.b16 %v65
  %v180 = vpack.c.b16 %v134, %v132
  %v181 = vpack.c.b16 %v135, %v133
  %v182 = vpack.c.b16 %v138, %v136
  %v183 = vpack.c.b16 %v139, %v137
  %v184 = vpack.c.b16 %v142, %v140
  %v185 = vpack.c.b16 %v143, %v141
  %v186 = vpack.c.b16 %v146, %v144
  %v187 = vpack.c.b16 %v147, %v145
  %v188 = vpack.c.b16 %v150, %v148
  %v189 = vpack.c.b16 %v151, %v149
  %v190 = vpack.c.b16 %v154, %v152
  %v191 = vpack.c.b16 %v155, %v153
  %v192 = vpack.c.b16 %v158, %v156
  %v193 = vpack.c.b16 %v159, %v157
  %v194 = vpack.c.b16 %v162, %v160
  %v195 = vpack.c.b16 %v163, %v161
  %v196 = vpack.c.b16 %v166, %v164
  %v197 = vpack.c.b16 %v167, %v165
  %v198 = vpack.c.b16 %v170, %v168
  %v199 = vpack.c.b16 %v171, %v169
  %v200 = vpack.c.b16 %v174, %v172
  %v201 = vpack.c.b16 %v175, %v173
  %v202 = vpack.c.b16 %v178, %v176
  %v203 = vpack.c.b16 %v179, %v177
  %vm228 = vcmask 523264
  %v230 = vsel %vm228, %v94, 0
  %v233 = vsel %vm228, %v96, 0
  %v236 = vsel %vm228, %v98, 0
  %v239 = vsel %vm228, %v100, 0
  %v242 = vsel %vm228, %v102, 0
  %244 = vmatpush.bf16.msra.mxu0 %v194
  %245 = vmatpush.bf16.msra.mxu0 %v192
  %246 = vmatpush.bf16.msra.mxu0 %v190
  %247 = vmatpush.bf16.msra.mxu0 %v188
  %248 = vmatpush.bf16.msra.mxu0 %v186
  %249 = vmatpush.bf16.msra.mxu0 %v184
  %250 = vmatpush.bf16.msra.mxu0 %v182
  %251 = vmatpush.bf16.msra.mxu0 %v180
  %252 = vmatmul.bf16.gmra.mxu0 %v93
  %v253 = vpop.f32.mrf.mxu0
  %v254 = vadd.f32 0.0, %v253
  %v255 = vpop.f32.mrf.mxu0
  %v256 = vadd.f32 0.0, %v255
  %257 = vmatmul.bf16.gmra.mxu0 %v95
  %v258 = vpop.f32.mrf.mxu0
  %v259 = vadd.f32 0.0, %v258
  %v260 = vpop.f32.mrf.mxu0
  %v261 = vadd.f32 0.0, %v260
  %262 = vmatmul.bf16.gmra.mxu0 %v97
  %v263 = vpop.f32.mrf.mxu0
  %v264 = vadd.f32 0.0, %v263
  %v265 = vpop.f32.mrf.mxu0
  %v266 = vadd.f32 0.0, %v265
  %267 = vmatmul.bf16.gmra.mxu0 %v99
  %v268 = vpop.f32.mrf.mxu0
  %v269 = vadd.f32 0.0, %v268
  %v270 = vpop.f32.mrf.mxu0
  %v271 = vadd.f32 0.0, %v270
  %272 = vmatmul.bf16.gmra.mxu0 %v101
  %v273 = vpop.f32.mrf.mxu0
  %v274 = vadd.f32 0.0, %v273
  %v275 = vpop.f32.mrf.mxu0
  %276 = vdwg.mxu0
  %277 = vmatpush.bf16.msra.mxu0 0
  %278 = vmatpush.bf16.msra.mxu0 0
  %279 = vmatpush.bf16.msra.mxu0 0
  %280 = vmatpush.bf16.msra.mxu0 0
  %281 = vmatpush.bf16.msra.mxu0 %v202
  %282 = vmatpush.bf16.msra.mxu0 %v200
  %283 = vmatpush.bf16.msra.mxu0 %v198
  %284 = vmatpush.bf16.msra.mxu0 %v196
  %285 = vmatmul.bf16.gmra.mxu0 %v230
  %v286 = vpop.f32.mrf.mxu0
  %v287 = vadd.f32 %v254, %v286
  %v288 = vpop.f32.mrf.mxu0
  %v289 = vadd.f32 %v256, %v288
  %290 = vmatmul.bf16.gmra.mxu0 %v233
  %v291 = vpop.f32.mrf.mxu0
  %v292 = vadd.f32 %v259, %v291
  %v293 = vpop.f32.mrf.mxu0
  %v294 = vadd.f32 %v261, %v293
  %295 = vmatmul.bf16.gmra.mxu0 %v236
  %v296 = vpop.f32.mrf.mxu0
  %v297 = vadd.f32 %v264, %v296
  %v298 = vpop.f32.mrf.mxu0
  %v299 = vadd.f32 %v266, %v298
  %300 = vmatmul.bf16.gmra.mxu0 %v239
  %v301 = vpop.f32.mrf.mxu0
  %v302 = vadd.f32 %v269, %v301
  %v303 = vpop.f32.mrf.mxu0
  %v304 = vadd.f32 %v271, %v303
  %305 = vmatmul.bf16.gmra.mxu0 %v242
  %v306 = vpop.f32.mrf.mxu0
  %v307 = vadd.f32 %v274, %v306
  %v308 = vpop.f32.mrf.mxu0
  %309 = vdwg.mxu0
  %310 = vmatpush.bf16.msra.mxu0 %v195
  %311 = vmatpush.bf16.msra.mxu0 %v193
  %312 = vmatpush.bf16.msra.mxu0 %v191
  %313 = vmatpush.bf16.msra.mxu0 %v189
  %314 = vmatpush.bf16.msra.mxu0 %v187
  %315 = vmatpush.bf16.msra.mxu0 %v185
  %316 = vmatpush.bf16.msra.mxu0 %v183
  %317 = vmatpush.bf16.msra.mxu0 %v181
  %318 = vmatmul.bf16.gmra.mxu0 %v93
  %v319 = vpop.f32.mrf.mxu0
  %v320 = vadd.f32 0.0, %v319
  %v321 = vpop.f32.mrf.mxu0
  %v322 = vadd.f32 0.0, %v321
  %323 = vmatmul.bf16.gmra.mxu0 %v95
  %v324 = vpop.f32.mrf.mxu0
  %v325 = vadd.f32 0.0, %v324
  %v326 = vpop.f32.mrf.mxu0
  %v327 = vadd.f32 0.0, %v326
  %328 = vmatmul.bf16.gmra.mxu0 %v97
  %v329 = vpop.f32.mrf.mxu0
  %v330 = vadd.f32 0.0, %v329
  %v331 = vpop.f32.mrf.mxu0
  %v332 = vadd.f32 0.0, %v331
  %333 = vmatmul.bf16.gmra.mxu0 %v99
  %v334 = vpop.f32.mrf.mxu0
  %v335 = vadd.f32 0.0, %v334
  %v336 = vpop.f32.mrf.mxu0
  %v337 = vadd.f32 0.0, %v336
  %338 = vmatmul.bf16.gmra.mxu0 %v101
  %v339 = vpop.f32.mrf.mxu0
  %v340 = vadd.f32 0.0, %v339
  %v341 = vpop.f32.mrf.mxu0
  %342 = vdwg.mxu0
  %343 = vmatpush.bf16.msra.mxu0 0
  %344 = vmatpush.bf16.msra.mxu0 0
  %345 = vmatpush.bf16.msra.mxu0 0
  %346 = vmatpush.bf16.msra.mxu0 0
  %347 = vmatpush.bf16.msra.mxu0 %v203
  %348 = vmatpush.bf16.msra.mxu0 %v201
  %349 = vmatpush.bf16.msra.mxu0 %v199
  %350 = vmatpush.bf16.msra.mxu0 %v197
  %351 = vmatmul.bf16.gmra.mxu0 %v230
  %v352 = vpop.f32.mrf.mxu0
  %v353 = vadd.f32 %v320, %v352
  %v354 = vpop.f32.mrf.mxu0
  %v355 = vadd.f32 %v322, %v354
  %356 = vmatmul.bf16.gmra.mxu0 %v233
  %v357 = vpop.f32.mrf.mxu0
  %v358 = vadd.f32 %v325, %v357
  %v359 = vpop.f32.mrf.mxu0
  %v360 = vadd.f32 %v327, %v359
  %361 = vmatmul.bf16.gmra.mxu0 %v236
  %v362 = vpop.f32.mrf.mxu0
  %v363 = vadd.f32 %v330, %v362
  %v364 = vpop.f32.mrf.mxu0
  %v365 = vadd.f32 %v332, %v364
  %366 = vmatmul.bf16.gmra.mxu0 %v239
  %v367 = vpop.f32.mrf.mxu0
  %v368 = vadd.f32 %v335, %v367
  %v369 = vpop.f32.mrf.mxu0
  %v370 = vadd.f32 %v337, %v369
  %371 = vmatmul.bf16.gmra.mxu0 %v242
  %v372 = vpop.f32.mrf.mxu0
  %v373 = vadd.f32 %v340, %v372
  %v374 = vpop.f32.mrf.mxu0
  %375 = vdwg.mxu0
  %s376 = scalar_lea.vmem %s2, 192
  %v377 = vld [vmem:[%s376] sm:$0xff]
  %v378 = vld [vmem:[%s376 + $0x8] sm:$0xff]
  %v379 = vld [vmem:[%s376 + $0x10] sm:$0xff]
  %v380 = vld [vmem:[%s376 + $0x18] sm:$0xff]
  %v381 = vld [vmem:[%s376 + $0x20] sm:$0xff]
  %v382 = vld [vmem:[%s376 + $0x28] sm:$0xff]
  %v383 = vld [vmem:[%s376 + $0x30] sm:$0xff]
  %v384 = vld [vmem:[%s376 + $0x38] sm:$0xff]
  %v385 = vld [vmem:[%s376 + $0x40] sm:$0xff]
  %v386 = vld [vmem:[%s376 + $0x48] sm:$0xff]
  %v387 = vld [vmem:[%s376 + $0x50] sm:$0xff]
  %v388 = vld [vmem:[%s376 + $0x58] sm:$0xff]
  %v389 = vld [vmem:[%s376 + $0x60] sm:$0xff]
  %v390 = vld [vmem:[%s376 + $0x68] sm:$0xff]
  %v391 = vld [vmem:[%s376 + $0x70] sm:$0xff]
  %v392 = vld [vmem:[%s376 + $0x78] sm:$0xff]
  %v393 = vld [vmem:[%s376 + $0x80] sm:$0xff]
  %v394 = vld [vmem:[%s376 + $0x88] sm:$0xff]
  %v395 = vld [vmem:[%s376 + $0x90] sm:$0xff]
  %v396 = vld [vmem:[%s376 + $0x98] sm:$0xff]
  %v397 = vld [vmem:[%s376 + $0xa0] sm:$0xff]
  %v398 = vld [vmem:[%s376 + $0xa8] sm:$0xff]
  %v399 = vld [vmem:[%s376 + $0xb0] sm:$0xff]
  %v400 = vld [vmem:[%s376 + $0xb8] sm:$0xff]
  %v410 = vunpack.c.l.b16 %v33
  %v411 = vunpack.c.h.b16 %v33
  %v412 = vunpack.c.l.b16 %v34
  %v413 = vunpack.c.h.b16 %v34
  %v414 = vunpack.c.l.b16 %v35
  %v415 = vunpack.c.h.b16 %v35
  %v416 = vunpack.c.l.b16 %v36
  %v417 = vunpack.c.h.b16 %v36
  %v418 = vunpack.c.l.b16 %v37
  %v419 = vunpack.c.h.b16 %v37
  %v420 = vunpack.c.l.b16 %v38
  %v421 = vunpack.c.h.b16 %v38
  %v422 = vunpack.c.l.b16 %v39
  %v423 = vunpack.c.h.b16 %v39
  %v424 = vunpack.c.l.b16 %v40
  %v425 = vunpack.c.h.b16 %v40
  %v426 = vunpack.c.l.b16 %v41
  %v427 = vunpack.c.h.b16 %v41
  %v428 = vpack.c.b16 %v412, %v410
  %v429 = vpack.c.b16 %v413, %v411
  %v430 = vpack.c.b16 %v416, %v414
  %v431 = vpack.c.b16 %v417, %v415
  %v432 = vpack.c.b16 %v420, %v418
  %v433 = vpack.c.b16 %v421, %v419
  %v434 = vpack.c.b16 %v424, %v422
  %v435 = vpack.c.b16 %v425, %v423
  %v436 = vpack.c.b16 %v426, %v426
  %v437 = vpack.c.b16 %v427, %v427
  %v467 = vunpack.c.l.b16 %v377
  %v468 = vunpack.c.h.b16 %v377
  %v469 = vunpack.c.l.b16 %v378
  %v470 = vunpack.c.h.b16 %v378
  %v471 = vunpack.c.l.b16 %v379
  %v472 = vunpack.c.h.b16 %v379
  %v473 = vunpack.c.l.b16 %v380
  %v474 = vunpack.c.h.b16 %v380
  %v475 = vunpack.c.l.b16 %v381
  %v476 = vunpack.c.h.b16 %v381
  %v477 = vunpack.c.l.b16 %v382
  %v478 = vunpack.c.h.b16 %v382
  %v479 = vunpack.c.l.b16 %v383
  %v480 = vunpack.c.h.b16 %v383
  %v481 = vunpack.c.l.b16 %v384
  %v482 = vunpack.c.h.b16 %v384
  %v483 = vunpack.c.l.b16 %v385
  %v484 = vunpack.c.h.b16 %v385
  %v485 = vunpack.c.l.b16 %v386
  %v486 = vunpack.c.h.b16 %v386
  %v487 = vunpack.c.l.b16 %v387
  %v488 = vunpack.c.h.b16 %v387
  %v489 = vunpack.c.l.b16 %v388
  %v490 = vunpack.c.h.b16 %v388
  %v491 = vunpack.c.l.b16 %v389
  %v492 = vunpack.c.h.b16 %v389
  %v493 = vunpack.c.l.b16 %v390
  %v494 = vunpack.c.h.b16 %v390
  %v495 = vunpack.c.l.b16 %v391
  %v496 = vunpack.c.h.b16 %v391
  %v497 = vunpack.c.l.b16 %v392
  %v498 = vunpack.c.h.b16 %v392
  %v499 = vunpack.c.l.b16 %v393
  %v500 = vunpack.c.h.b16 %v393
  %v501 = vunpack.c.l.b16 %v394
  %v502 = vunpack.c.h.b16 %v394
  %v503 = vunpack.c.l.b16 %v395
  %v504 = vunpack.c.h.b16 %v395
  %v505 = vunpack.c.l.b16 %v396
  %v506 = vunpack.c.h.b16 %v396
  %v507 = vunpack.c.l.b16 %v397
  %v508 = vunpack.c.h.b16 %v397
  %v509 = vunpack.c.l.b16 %v398
  %v510 = vunpack.c.h.b16 %v398
  %v511 = vunpack.c.l.b16 %v399
  %v512 = vunpack.c.h.b16 %v399
  %v513 = vunpack.c.l.b16 %v400
  %v514 = vunpack.c.h.b16 %v400
  %v515 = vpack.c.b16 %v469, %v467
  %v516 = vpack.c.b16 %v470, %v468
  %v517 = vpack.c.b16 %v473, %v471
  %v518 = vpack.c.b16 %v474, %v472
  %v519 = vpack.c.b16 %v477, %v475
  %v520 = vpack.c.b16 %v478, %v476
  %v521 = vpack.c.b16 %v481, %v479
  %v522 = vpack.c.b16 %v482, %v480
  %v523 = vpack.c.b16 %v485, %v483
  %v524 = vpack.c.b16 %v486, %v484
  %v525 = vpack.c.b16 %v489, %v487
  %v526 = vpack.c.b16 %v490, %v488
  %v527 = vpack.c.b16 %v493, %v491
  %v528 = vpack.c.b16 %v494, %v492
  %v529 = vpack.c.b16 %v497, %v495
  %v530 = vpack.c.b16 %v498, %v496
  %v531 = vpack.c.b16 %v501, %v499
  %v532 = vpack.c.b16 %v502, %v500
  %v533 = vpack.c.b16 %v505, %v503
  %v534 = vpack.c.b16 %v506, %v504
  %v535 = vpack.c.b16 %v509, %v507
  %v536 = vpack.c.b16 %v510, %v508
  %v537 = vpack.c.b16 %v513, %v511
  %v538 = vpack.c.b16 %v514, %v512
  %v564 = vsel %vm228, %v429, 0
  %v567 = vsel %vm228, %v431, 0
  %v570 = vsel %vm228, %v433, 0
  %v573 = vsel %vm228, %v435, 0
  %v576 = vsel %vm228, %v437, 0
  %578 = vmatpush.bf16.msra.mxu0 %v529
  %579 = vmatpush.bf16.msra.mxu0 %v527
  %580 = vmatpush.bf16.msra.mxu0 %v525
  %581 = vmatpush.bf16.msra.mxu0 %v523
  %582 = vmatpush.bf16.msra.mxu0 %v521
  %583 = vmatpush.bf16.msra.mxu0 %v519
  %584 = vmatpush.bf16.msra.mxu0 %v517
  %585 = vmatpush.bf16.msra.mxu0 %v515
  %586 = vmatmul.bf16.gmra.mxu0 %v428
  %v587 = vpop.f32.mrf.mxu0
  %v588 = vadd.f32 0.0, %v587
  %v589 = vpop.f32.mrf.mxu0
  %v590 = vadd.f32 0.0, %v589
  %591 = vmatmul.bf16.gmra.mxu0 %v430
  %v592 = vpop.f32.mrf.mxu0
  %v593 = vadd.f32 0.0, %v592
  %v594 = vpop.f32.mrf.mxu0
  %v595 = vadd.f32 0.0, %v594
  %596 = vmatmul.bf16.gmra.mxu0 %v432
  %v597 = vpop.f32.mrf.mxu0
  %v598 = vadd.f32 0.0, %v597
  %v599 = vpop.f32.mrf.mxu0
  %v600 = vadd.f32 0.0, %v599
  %601 = vmatmul.bf16.gmra.mxu0 %v434
  %v602 = vpop.f32.mrf.mxu0
  %v603 = vadd.f32 0.0, %v602
  %v604 = vpop.f32.mrf.mxu0
  %v605 = vadd.f32 0.0, %v604
  %606 = vmatmul.bf16.gmra.mxu0 %v436
  %v607 = vpop.f32.mrf.mxu0
  %v608 = vadd.f32 0.0, %v607
  %v609 = vpop.f32.mrf.mxu0
  %610 = vdwg.mxu0
  %611 = vmatpush.bf16.msra.mxu0 0
  %612 = vmatpush.bf16.msra.mxu0 0
  %613 = vmatpush.bf16.msra.mxu0 0
  %614 = vmatpush.bf16.msra.mxu0 0
  %615 = vmatpush.bf16.msra.mxu0 %v537
  %616 = vmatpush.bf16.msra.mxu0 %v535
  %617 = vmatpush.bf16.msra.mxu0 %v533
  %618 = vmatpush.bf16.msra.mxu0 %v531
  %619 = vmatmul.bf16.gmra.mxu0 %v564
  %v620 = vpop.f32.mrf.mxu0
  %v621 = vadd.f32 %v588, %v620
  %v622 = vpop.f32.mrf.mxu0
  %v623 = vadd.f32 %v590, %v622
  %624 = vmatmul.bf16.gmra.mxu0 %v567
  %v625 = vpop.f32.mrf.mxu0
  %v626 = vadd.f32 %v593, %v625
  %v627 = vpop.f32.mrf.mxu0
  %v628 = vadd.f32 %v595, %v627
  %629 = vmatmul.bf16.gmra.mxu0 %v570
  %v630 = vpop.f32.mrf.mxu0
  %v631 = vadd.f32 %v598, %v630
  %v632 = vpop.f32.mrf.mxu0
  %v633 = vadd.f32 %v600, %v632
  %634 = vmatmul.bf16.gmra.mxu0 %v573
  %v635 = vpop.f32.mrf.mxu0
  %v636 = vadd.f32 %v603, %v635
  %v637 = vpop.f32.mrf.mxu0
  %v638 = vadd.f32 %v605, %v637
  %639 = vmatmul.bf16.gmra.mxu0 %v576
  %v640 = vpop.f32.mrf.mxu0
  %v641 = vadd.f32 %v608, %v640
  %v642 = vpop.f32.mrf.mxu0
  %643 = vdwg.mxu0
  %644 = vmatpush.bf16.msra.mxu0 %v530
  %645 = vmatpush.bf16.msra.mxu0 %v528
  %646 = vmatpush.bf16.msra.mxu0 %v526
  %647 = vmatpush.bf16.msra.mxu0 %v524
  %648 = vmatpush.bf16.msra.mxu0 %v522
  %649 = vmatpush.bf16.msra.mxu0 %v520
  %650 = vmatpush.bf16.msra.mxu0 %v518
  %651 = vmatpush.bf16.msra.mxu0 %v516
  %652 = vmatmul.bf16.gmra.mxu0 %v428
  %v653 = vpop.f32.mrf.mxu0
  %v654 = vadd.f32 0.0, %v653
  %v655 = vpop.f32.mrf.mxu0
  %v656 = vadd.f32 0.0, %v655
  %657 = vmatmul.bf16.gmra.mxu0 %v430
  %v658 = vpop.f32.mrf.mxu0
  %v659 = vadd.f32 0.0, %v658
  %v660 = vpop.f32.mrf.mxu0
  %v661 = vadd.f32 0.0, %v660
  %662 = vmatmul.bf16.gmra.mxu0 %v432
  %v663 = vpop.f32.mrf.mxu0
  %v664 = vadd.f32 0.0, %v663
  %v665 = vpop.f32.mrf.mxu0
  %v666 = vadd.f32 0.0, %v665
  %667 = vmatmul.bf16.gmra.mxu0 %v434
  %v668 = vpop.f32.mrf.mxu0
  %v669 = vadd.f32 0.0, %v668
  %v670 = vpop.f32.mrf.mxu0
  %v671 = vadd.f32 0.0, %v670
  %672 = vmatmul.bf16.gmra.mxu0 %v436
  %v673 = vpop.f32.mrf.mxu0
  %v674 = vadd.f32 0.0, %v673
  %v675 = vpop.f32.mrf.mxu0
  %676 = vdwg.mxu0
  %677 = vmatpush.bf16.msra.mxu0 0
  %678 = vmatpush.bf16.msra.mxu0 0
  %679 = vmatpush.bf16.msra.mxu0 0
  %680 = vmatpush.bf16.msra.mxu0 0
  %681 = vmatpush.bf16.msra.mxu0 %v538
  %682 = vmatpush.bf16.msra.mxu0 %v536
  %683 = vmatpush.bf16.msra.mxu0 %v534
  %684 = vmatpush.bf16.msra.mxu0 %v532
  %685 = vmatmul.bf16.gmra.mxu0 %v564
  %v686 = vpop.f32.mrf.mxu0
  %v687 = vadd.f32 %v654, %v686
  %v688 = vpop.f32.mrf.mxu0
  %v689 = vadd.f32 %v656, %v688
  %690 = vmatmul.bf16.gmra.mxu0 %v567
  %v691 = vpop.f32.mrf.mxu0
  %v692 = vadd.f32 %v659, %v691
  %v693 = vpop.f32.mrf.mxu0
  %v694 = vadd.f32 %v661, %v693
  %695 = vmatmul.bf16.gmra.mxu0 %v570
  %v696 = vpop.f32.mrf.mxu0
  %v697 = vadd.f32 %v664, %v696
  %v698 = vpop.f32.mrf.mxu0
  %v699 = vadd.f32 %v666, %v698
  %700 = vmatmul.bf16.gmra.mxu0 %v573
  %v701 = vpop.f32.mrf.mxu0
  %v702 = vadd.f32 %v669, %v701
  %v703 = vpop.f32.mrf.mxu0
  %v704 = vadd.f32 %v671, %v703
  %705 = vmatmul.bf16.gmra.mxu0 %v576
  %v706 = vpop.f32.mrf.mxu0
  %v707 = vadd.f32 %v674, %v706
  %v708 = vpop.f32.mrf.mxu0
  %709 = vdwg.mxu0
  %v710 = vadd.f32 %v287, %v621
  %v711 = vadd.f32 %v353, %v687
  %v712 = vadd.f32 %v289, %v623
  %v713 = vadd.f32 %v355, %v689
  %v714 = vadd.f32 %v292, %v626
  %v715 = vadd.f32 %v358, %v692
  %v716 = vadd.f32 %v294, %v628
  %v717 = vadd.f32 %v360, %v694
  %v718 = vadd.f32 %v297, %v631
  %v719 = vadd.f32 %v363, %v697
  %v720 = vadd.f32 %v299, %v633
  %v721 = vadd.f32 %v365, %v699
  %v722 = vadd.f32 %v302, %v636
  %v723 = vadd.f32 %v368, %v702
  %v724 = vadd.f32 %v304, %v638
  %v725 = vadd.f32 %v370, %v704
  %v726 = vadd.f32 %v307, %v641
  %v727 = vadd.f32 %v373, %v707
  %s728 = scalar_lea.vmem %s2, 384
  %v729 = vld [vmem:[%s728] sm:$0xff]
  %v730 = vld [vmem:[%s728 + $0x8] sm:$0xff]
  %v731 = vld [vmem:[%s728 + $0x10] sm:$0xff]
  %v732 = vld [vmem:[%s728 + $0x18] sm:$0xff]
  %v733 = vld [vmem:[%s728 + $0x20] sm:$0xff]
  %v734 = vld [vmem:[%s728 + $0x28] sm:$0xff]
  %v735 = vld [vmem:[%s728 + $0x30] sm:$0xff]
  %v736 = vld [vmem:[%s728 + $0x38] sm:$0xff]
  %v737 = vld [vmem:[%s728 + $0x40] sm:$0xff]
  %v738 = vld [vmem:[%s728 + $0x48] sm:$0xff]
  %v739 = vld [vmem:[%s728 + $0x50] sm:$0xff]
  %v740 = vld [vmem:[%s728 + $0x58] sm:$0xff]
  %v741 = vld [vmem:[%s728 + $0x60] sm:$0xff]
  %v742 = vld [vmem:[%s728 + $0x68] sm:$0xff]
  %v743 = vld [vmem:[%s728 + $0x70] sm:$0xff]
  %v744 = vld [vmem:[%s728 + $0x78] sm:$0xff]
  %v745 = vld [vmem:[%s728 + $0x80] sm:$0xff]
  %v746 = vld [vmem:[%s728 + $0x88] sm:$0xff]
  %v747 = vld [vmem:[%s728 + $0x90] sm:$0xff]
  %v748 = vld [vmem:[%s728 + $0x98] sm:$0xff]
  %v749 = vld [vmem:[%s728 + $0xa0] sm:$0xff]
  %v750 = vld [vmem:[%s728 + $0xa8] sm:$0xff]
  %v751 = vld [vmem:[%s728 + $0xb0] sm:$0xff]
  %v752 = vld [vmem:[%s728 + $0xb8] sm:$0xff]
  %v777 = vunpack.c.l.b16 %v729
  %v778 = vunpack.c.h.b16 %v729
  %v779 = vunpack.c.l.b16 %v730
  %v780 = vunpack.c.h.b16 %v730
  %v781 = vunpack.c.l.b16 %v731
  %v782 = vunpack.c.h.b16 %v731
  %v783 = vunpack.c.l.b16 %v732
  %v784 = vunpack.c.h.b16 %v732
  %v785 = vunpack.c.l.b16 %v733
  %v786 = vunpack.c.h.b16 %v733
  %v787 = vunpack.c.l.b16 %v734
  %v788 = vunpack.c.h.b16 %v734
  %v789 = vunpack.c.l.b16 %v735
  %v790 = vunpack.c.h.b16 %v735
  %v791 = vunpack.c.l.b16 %v736
  %v792 = vunpack.c.h.b16 %v736
  %v793 = vunpack.c.l.b16 %v737
  %v794 = vunpack.c.h.b16 %v737
  %v795 = vunpack.c.l.b16 %v738
  %v796 = vunpack.c.h.b16 %v738
  %v797 = vunpack.c.l.b16 %v739
  %v798 = vunpack.c.h.b16 %v739
  %v799 = vunpack.c.l.b16 %v740
  %v800 = vunpack.c.h.b16 %v740
  %v801 = vunpack.c.l.b16 %v741
  %v802 = vunpack.c.h.b16 %v741
  %v803 = vunpack.c.l.b16 %v742
  %v804 = vunpack.c.h.b16 %v742
  %v805 = vunpack.c.l.b16 %v743
  %v806 = vunpack.c.h.b16 %v743
  %v807 = vunpack.c.l.b16 %v744
  %v808 = vunpack.c.h.b16 %v744
  %v809 = vunpack.c.l.b16 %v745
  %v810 = vunpack.c.h.b16 %v745
  %v811 = vunpack.c.l.b16 %v746
  %v812 = vunpack.c.h.b16 %v746
  %v813 = vunpack.c.l.b16 %v747
  %v814 = vunpack.c.h.b16 %v747
  %v815 = vunpack.c.l.b16 %v748
  %v816 = vunpack.c.h.b16 %v748
  %v817 = vunpack.c.l.b16 %v749
  %v818 = vunpack.c.h.b16 %v749
  %v819 = vunpack.c.l.b16 %v750
  %v820 = vunpack.c.h.b16 %v750
  %v821 = vunpack.c.l.b16 %v751
  %v822 = vunpack.c.h.b16 %v751
  %v823 = vunpack.c.l.b16 %v752
  %v824 = vunpack.c.h.b16 %v752
  %v825 = vpack.c.b16 %v779, %v777
  %v826 = vpack.c.b16 %v780, %v778
  %v827 = vpack.c.b16 %v783, %v781
  %v828 = vpack.c.b16 %v784, %v782
  %v829 = vpack.c.b16 %v787, %v785
  %v830 = vpack.c.b16 %v788, %v786
  %v831 = vpack.c.b16 %v791, %v789
  %v832 = vpack.c.b16 %v792, %v790
  %v833 = vpack.c.b16 %v795, %v793
  %v834 = vpack.c.b16 %v796, %v794
  %v835 = vpack.c.b16 %v799, %v797
  %v836 = vpack.c.b16 %v800, %v798
  %v837 = vpack.c.b16 %v803, %v801
  %v838 = vpack.c.b16 %v804, %v802
  %v839 = vpack.c.b16 %v807, %v805
  %v840 = vpack.c.b16 %v808, %v806
  %v841 = vpack.c.b16 %v811, %v809
  %v842 = vpack.c.b16 %v812, %v810
  %v843 = vpack.c.b16 %v815, %v813
  %v844 = vpack.c.b16 %v816, %v814
  %v845 = vpack.c.b16 %v819, %v817
  %v846 = vpack.c.b16 %v820, %v818
  %v847 = vpack.c.b16 %v823, %v821
  %v848 = vpack.c.b16 %v824, %v822
  %873 = vmatpush.bf16.msra.mxu0 %v839
  %874 = vmatpush.bf16.msra.mxu0 %v837
  %875 = vmatpush.bf16.msra.mxu0 %v835
  %876 = vmatpush.bf16.msra.mxu0 %v833
  %877 = vmatpush.bf16.msra.mxu0 %v831
  %878 = vmatpush.bf16.msra.mxu0 %v829
  %879 = vmatpush.bf16.msra.mxu0 %v827
  %880 = vmatpush.bf16.msra.mxu0 %v825
  %881 = vmatmul.bf16.gmra.mxu0 %v93
  %v882 = vpop.f32.mrf.mxu0
  %v883 = vadd.f32 0.0, %v882
  %v884 = vpop.f32.mrf.mxu0
  %v885 = vadd.f32 0.0, %v884
  %886 = vmatmul.bf16.gmra.mxu0 %v95
  %v887 = vpop.f32.mrf.mxu0
  %v888 = vadd.f32 0.0, %v887
  %v889 = vpop.f32.mrf.mxu0
  %v890 = vadd.f32 0.0, %v889
  %891 = vmatmul.bf16.gmra.mxu0 %v97
  %v892 = vpop.f32.mrf.mxu0
  %v893 = vadd.f32 0.0, %v892
  %v894 = vpop.f32.mrf.mxu0
  %v895 = vadd.f32 0.0, %v894
  %896 = vmatmul.bf16.gmra.mxu0 %v99
  %v897 = vpop.f32.mrf.mxu0
  %v898 = vadd.f32 0.0, %v897
  %v899 = vpop.f32.mrf.mxu0
  %v900 = vadd.f32 0.0, %v899
  %901 = vmatmul.bf16.gmra.mxu0 %v101
  %v902 = vpop.f32.mrf.mxu0
  %v903 = vadd.f32 0.0, %v902
  %v904 = vpop.f32.mrf.mxu0
  %905 = vdwg.mxu0
  %906 = vmatpush.bf16.msra.mxu0 0
  %907 = vmatpush.bf16.msra.mxu0 0
  %908 = vmatpush.bf16.msra.mxu0 0
  %909 = vmatpush.bf16.msra.mxu0 0
  %910 = vmatpush.bf16.msra.mxu0 %v847
  %911 = vmatpush.bf16.msra.mxu0 %v845
  %912 = vmatpush.bf16.msra.mxu0 %v843
  %913 = vmatpush.bf16.msra.mxu0 %v841
  %914 = vmatmul.bf16.gmra.mxu0 %v230
  %v915 = vpop.f32.mrf.mxu0
  %v916 = vadd.f32 %v883, %v915
  %v917 = vpop.f32.mrf.mxu0
  %v918 = vadd.f32 %v885, %v917
  %919 = vmatmul.bf16.gmra.mxu0 %v233
  %v920 = vpop.f32.mrf.mxu0
  %v921 = vadd.f32 %v888, %v920
  %v922 = vpop.f32.mrf.mxu0
  %v923 = vadd.f32 %v890, %v922
  %924 = vmatmul.bf16.gmra.mxu0 %v236
  %v925 = vpop.f32.mrf.mxu0
  %v926 = vadd.f32 %v893, %v925
  %v927 = vpop.f32.mrf.mxu0
  %v928 = vadd.f32 %v895, %v927
  %929 = vmatmul.bf16.gmra.mxu0 %v239
  %v930 = vpop.f32.mrf.mxu0
  %v931 = vadd.f32 %v898, %v930
  %v932 = vpop.f32.mrf.mxu0
  %v933 = vadd.f32 %v900, %v932
  %934 = vmatmul.bf16.gmra.mxu0 %v242
  %v935 = vpop.f32.mrf.mxu0
  %v936 = vadd.f32 %v903, %v935
  %v937 = vpop.f32.mrf.mxu0
  %938 = vdwg.mxu0
  %939 = vmatpush.bf16.msra.mxu0 %v840
  %940 = vmatpush.bf16.msra.mxu0 %v838
  %941 = vmatpush.bf16.msra.mxu0 %v836
  %942 = vmatpush.bf16.msra.mxu0 %v834
  %943 = vmatpush.bf16.msra.mxu0 %v832
  %944 = vmatpush.bf16.msra.mxu0 %v830
  %945 = vmatpush.bf16.msra.mxu0 %v828
  %946 = vmatpush.bf16.msra.mxu0 %v826
  %947 = vmatmul.bf16.gmra.mxu0 %v93
  %v948 = vpop.f32.mrf.mxu0
  %v949 = vadd.f32 0.0, %v948
  %v950 = vpop.f32.mrf.mxu0
  %v951 = vadd.f32 0.0, %v950
  %952 = vmatmul.bf16.gmra.mxu0 %v95
  %v953 = vpop.f32.mrf.mxu0
  %v954 = vadd.f32 0.0, %v953
  %v955 = vpop.f32.mrf.mxu0
  %v956 = vadd.f32 0.0, %v955
  %957 = vmatmul.bf16.gmra.mxu0 %v97
  %v958 = vpop.f32.mrf.mxu0
  %v959 = vadd.f32 0.0, %v958
  %v960 = vpop.f32.mrf.mxu0
  %v961 = vadd.f32 0.0, %v960
  %962 = vmatmul.bf16.gmra.mxu0 %v99
  %v963 = vpop.f32.mrf.mxu0
  %v964 = vadd.f32 0.0, %v963
  %v965 = vpop.f32.mrf.mxu0
  %v966 = vadd.f32 0.0, %v965
  %967 = vmatmul.bf16.gmra.mxu0 %v101
  %v968 = vpop.f32.mrf.mxu0
  %v969 = vadd.f32 0.0, %v968
  %v970 = vpop.f32.mrf.mxu0
  %971 = vdwg.mxu0
  %972 = vmatpush.bf16.msra.mxu0 0
  %973 = vmatpush.bf16.msra.mxu0 0
  %974 = vmatpush.bf16.msra.mxu0 0
  %975 = vmatpush.bf16.msra.mxu0 0
  %976 = vmatpush.bf16.msra.mxu0 %v848
  %977 = vmatpush.bf16.msra.mxu0 %v846
  %978 = vmatpush.bf16.msra.mxu0 %v844
  %979 = vmatpush.bf16.msra.mxu0 %v842
  %980 = vmatmul.bf16.gmra.mxu0 %v230
  %v981 = vpop.f32.mrf.mxu0
  %v982 = vadd.f32 %v949, %v981
  %v983 = vpop.f32.mrf.mxu0
  %v984 = vadd.f32 %v951, %v983
  %985 = vmatmul.bf16.gmra.mxu0 %v233
  %v986 = vpop.f32.mrf.mxu0
  %v987 = vadd.f32 %v954, %v986
  %v988 = vpop.f32.mrf.mxu0
  %v989 = vadd.f32 %v956, %v988
  %990 = vmatmul.bf16.gmra.mxu0 %v236
  %v991 = vpop.f32.mrf.mxu0
  %v992 = vadd.f32 %v959, %v991
  %v993 = vpop.f32.mrf.mxu0
  %v994 = vadd.f32 %v961, %v993
  %995 = vmatmul.bf16.gmra.mxu0 %v239
  %v996 = vpop.f32.mrf.mxu0
  %v997 = vadd.f32 %v964, %v996
  %v998 = vpop.f32.mrf.mxu0
  %v999 = vadd.f32 %v966, %v998
  %1000 = vmatmul.bf16.gmra.mxu0 %v242
  %v1001 = vpop.f32.mrf.mxu0
  %v1002 = vadd.f32 %v969, %v1001
  %v1003 = vpop.f32.mrf.mxu0
  %1004 = vdwg.mxu0
  %vm1015 = vcmask 1046528
  %v1016 = vrot.slane %v916, 1
  %v1017 = vrot.slane %v918, 1
  %v1018 = vsel %vm1015, %v1016, %v1017
  %v1019 = vrot.slane %v982, 1
  %v1020 = vrot.slane %v984, 1
  %v1021 = vsel %vm1015, %v1019, %v1020
  %v1022 = vrot.slane %v921, 1
  %v1023 = vsel %vm1015, %v1017, %v1022
  %v1024 = vrot.slane %v987, 1
  %v1025 = vsel %vm1015, %v1020, %v1024
  %v1026 = vrot.slane %v923, 1
  %v1027 = vsel %vm1015, %v1022, %v1026
  %v1028 = vrot.slane %v989, 1
  %v1029 = vsel %vm1015, %v1024, %v1028
  %v1030 = vrot.slane %v926, 1
  %v1031 = vsel %vm1015, %v1026, %v1030
  %v1032 = vrot.slane %v992, 1
  %v1033 = vsel %vm1015, %v1028, %v1032
  %v1042 = vadd.f32 %v710, %v1018
  %v1043 = vadd.f32 %v711, %v1021
  %v1044 = vadd.f32 %v712, %v1023
  %v1045 = vadd.f32 %v713, %v1025
  %v1046 = vadd.f32 %v714, %v1027
  %v1047 = vadd.f32 %v715, %v1029
  %v1048 = vadd.f32 %v716, %v1031
  %v1049 = vadd.f32 %v717, %v1033
  %v1058 = vrot.slane %v928, 1
  %v1059 = vsel %vm1015, %v1030, %v1058
  %v1060 = vrot.slane %v994, 1
  %v1061 = vsel %vm1015, %v1032, %v1060
  %v1062 = vrot.slane %v931, 1
  %v1063 = vsel %vm1015, %v1058, %v1062
  %v1064 = vrot.slane %v997, 1
  %v1065 = vsel %vm1015, %v1060, %v1064
  %v1066 = vrot.slane %v933, 1
  %v1067 = vsel %vm1015, %v1062, %v1066
  %v1068 = vrot.slane %v999, 1
  %v1069 = vsel %vm1015, %v1064, %v1068
  %v1070 = vrot.slane %v936, 1
  %v1071 = vsel %vm1015, %v1066, %v1070
  %v1072 = vrot.slane %v1002, 1
  %v1073 = vsel %vm1015, %v1068, %v1072
  %v1084 = vadd.f32 %v718, %v1059
  %v1085 = vadd.f32 %v719, %v1061
  %v1086 = vadd.f32 %v720, %v1063
  %v1087 = vadd.f32 %v721, %v1065
  %v1088 = vadd.f32 %v722, %v1067
  %v1089 = vadd.f32 %v723, %v1069
  %v1090 = vadd.f32 %v724, %v1071
  %v1091 = vadd.f32 %v725, %v1073
  %v1092 = vadd.f32 %v726, %v1070
  %v1093 = vadd.f32 %v727, %v1072
  %s1094 = scalar_lea.vmem %s2, 576
  %v1095 = vld [vmem:[%s1094] sm:$0xff]
  %v1096 = vld [vmem:[%s1094 + $0x8] sm:$0xff]
  %v1097 = vld [vmem:[%s1094 + $0x10] sm:$0xff]
  %v1098 = vld [vmem:[%s1094 + $0x18] sm:$0xff]
  %v1099 = vld [vmem:[%s1094 + $0x20] sm:$0xff]
  %v1100 = vld [vmem:[%s1094 + $0x28] sm:$0xff]
  %v1101 = vld [vmem:[%s1094 + $0x30] sm:$0xff]
  %v1102 = vld [vmem:[%s1094 + $0x38] sm:$0xff]
  %v1103 = vld [vmem:[%s1094 + $0x40] sm:$0xff]
  %v1104 = vld [vmem:[%s1094 + $0x48] sm:$0xff]
  %v1105 = vld [vmem:[%s1094 + $0x50] sm:$0xff]
  %v1106 = vld [vmem:[%s1094 + $0x58] sm:$0xff]
  %v1107 = vld [vmem:[%s1094 + $0x60] sm:$0xff]
  %v1108 = vld [vmem:[%s1094 + $0x68] sm:$0xff]
  %v1109 = vld [vmem:[%s1094 + $0x70] sm:$0xff]
  %v1110 = vld [vmem:[%s1094 + $0x78] sm:$0xff]
  %v1111 = vld [vmem:[%s1094 + $0x80] sm:$0xff]
  %v1112 = vld [vmem:[%s1094 + $0x88] sm:$0xff]
  %v1113 = vld [vmem:[%s1094 + $0x90] sm:$0xff]
  %v1114 = vld [vmem:[%s1094 + $0x98] sm:$0xff]
  %v1115 = vld [vmem:[%s1094 + $0xa0] sm:$0xff]
  %v1116 = vld [vmem:[%s1094 + $0xa8] sm:$0xff]
  %v1117 = vld [vmem:[%s1094 + $0xb0] sm:$0xff]
  %v1118 = vld [vmem:[%s1094 + $0xb8] sm:$0xff]
  %v1143 = vunpack.c.l.b16 %v1095
  %v1144 = vunpack.c.h.b16 %v1095
  %v1145 = vunpack.c.l.b16 %v1096
  %v1146 = vunpack.c.h.b16 %v1096
  %v1147 = vunpack.c.l.b16 %v1097
  %v1148 = vunpack.c.h.b16 %v1097
  %v1149 = vunpack.c.l.b16 %v1098
  %v1150 = vunpack.c.h.b16 %v1098
  %v1151 = vunpack.c.l.b16 %v1099
  %v1152 = vunpack.c.h.b16 %v1099
  %v1153 = vunpack.c.l.b16 %v1100
  %v1154 = vunpack.c.h.b16 %v1100
  %v1155 = vunpack.c.l.b16 %v1101
  %v1156 = vunpack.c.h.b16 %v1101
  %v1157 = vunpack.c.l.b16 %v1102
  %v1158 = vunpack.c.h.b16 %v1102
  %v1159 = vunpack.c.l.b16 %v1103
  %v1160 = vunpack.c.h.b16 %v1103
  %v1161 = vunpack.c.l.b16 %v1104
  %v1162 = vunpack.c.h.b16 %v1104
  %v1163 = vunpack.c.l.b16 %v1105
  %v1164 = vunpack.c.h.b16 %v1105
  %v1165 = vunpack.c.l.b16 %v1106
  %v1166 = vunpack.c.h.b16 %v1106
  %v1167 = vunpack.c.l.b16 %v1107
  %v1168 = vunpack.c.h.b16 %v1107
  %v1169 = vunpack.c.l.b16 %v1108
  %v1170 = vunpack.c.h.b16 %v1108
  %v1171 = vunpack.c.l.b16 %v1109
  %v1172 = vunpack.c.h.b16 %v1109
  %v1173 = vunpack.c.l.b16 %v1110
  %v1174 = vunpack.c.h.b16 %v1110
  %v1175 = vunpack.c.l.b16 %v1111
  %v1176 = vunpack.c.h.b16 %v1111
  %v1177 = vunpack.c.l.b16 %v1112
  %v1178 = vunpack.c.h.b16 %v1112
  %v1179 = vunpack.c.l.b16 %v1113
  %v1180 = vunpack.c.h.b16 %v1113
  %v1181 = vunpack.c.l.b16 %v1114
  %v1182 = vunpack.c.h.b16 %v1114
  %v1183 = vunpack.c.l.b16 %v1115
  %v1184 = vunpack.c.h.b16 %v1115
  %v1185 = vunpack.c.l.b16 %v1116
  %v1186 = vunpack.c.h.b16 %v1116
  %v1187 = vunpack.c.l.b16 %v1117
  %v1188 = vunpack.c.h.b16 %v1117
  %v1189 = vunpack.c.l.b16 %v1118
  %v1190 = vunpack.c.h.b16 %v1118
  %v1191 = vpack.c.b16 %v1145, %v1143
  %v1192 = vpack.c.b16 %v1146, %v1144
  %v1193 = vpack.c.b16 %v1149, %v1147
  %v1194 = vpack.c.b16 %v1150, %v1148
  %v1195 = vpack.c.b16 %v1153, %v1151
  %v1196 = vpack.c.b16 %v1154, %v1152
  %v1197 = vpack.c.b16 %v1157, %v1155
  %v1198 = vpack.c.b16 %v1158, %v1156
  %v1199 = vpack.c.b16 %v1161, %v1159
  %v1200 = vpack.c.b16 %v1162, %v1160
  %v1201 = vpack.c.b16 %v1165, %v1163
  %v1202 = vpack.c.b16 %v1166, %v1164
  %v1203 = vpack.c.b16 %v1169, %v1167
  %v1204 = vpack.c.b16 %v1170, %v1168
  %v1205 = vpack.c.b16 %v1173, %v1171
  %v1206 = vpack.c.b16 %v1174, %v1172
  %v1207 = vpack.c.b16 %v1177, %v1175
  %v1208 = vpack.c.b16 %v1178, %v1176
  %v1209 = vpack.c.b16 %v1181, %v1179
  %v1210 = vpack.c.b16 %v1182, %v1180
  %v1211 = vpack.c.b16 %v1185, %v1183
  %v1212 = vpack.c.b16 %v1186, %v1184
  %v1213 = vpack.c.b16 %v1189, %v1187
  %v1214 = vpack.c.b16 %v1190, %v1188
  %1239 = vmatpush.bf16.msra.mxu0 %v1205
  %1240 = vmatpush.bf16.msra.mxu0 %v1203
  %1241 = vmatpush.bf16.msra.mxu0 %v1201
  %1242 = vmatpush.bf16.msra.mxu0 %v1199
  %1243 = vmatpush.bf16.msra.mxu0 %v1197
  %1244 = vmatpush.bf16.msra.mxu0 %v1195
  %1245 = vmatpush.bf16.msra.mxu0 %v1193
  %1246 = vmatpush.bf16.msra.mxu0 %v1191
  %1247 = vmatmul.bf16.gmra.mxu0 %v428
  %v1248 = vpop.f32.mrf.mxu0
  %v1249 = vadd.f32 0.0, %v1248
  %v1250 = vpop.f32.mrf.mxu0
  %v1251 = vadd.f32 0.0, %v1250
  %1252 = vmatmul.bf16.gmra.mxu0 %v430
  %v1253 = vpop.f32.mrf.mxu0
  %v1254 = vadd.f32 0.0, %v1253
  %v1255 = vpop.f32.mrf.mxu0
  %v1256 = vadd.f32 0.0, %v1255
  %1257 = vmatmul.bf16.gmra.mxu0 %v432
  %v1258 = vpop.f32.mrf.mxu0
  %v1259 = vadd.f32 0.0, %v1258
  %v1260 = vpop.f32.mrf.mxu0
  %v1261 = vadd.f32 0.0, %v1260
  %1262 = vmatmul.bf16.gmra.mxu0 %v434
  %v1263 = vpop.f32.mrf.mxu0
  %v1264 = vadd.f32 0.0, %v1263
  %v1265 = vpop.f32.mrf.mxu0
  %v1266 = vadd.f32 0.0, %v1265
  %1267 = vmatmul.bf16.gmra.mxu0 %v436
  %v1268 = vpop.f32.mrf.mxu0
  %v1269 = vadd.f32 0.0, %v1268
  %v1270 = vpop.f32.mrf.mxu0
  %1271 = vdwg.mxu0
  %1272 = vmatpush.bf16.msra.mxu0 0
  %1273 = vmatpush.bf16.msra.mxu0 0
  %1274 = vmatpush.bf16.msra.mxu0 0
  %1275 = vmatpush.bf16.msra.mxu0 0
  %1276 = vmatpush.bf16.msra.mxu0 %v1213
  %1277 = vmatpush.bf16.msra.mxu0 %v1211
  %1278 = vmatpush.bf16.msra.mxu0 %v1209
  %1279 = vmatpush.bf16.msra.mxu0 %v1207
  %1280 = vmatmul.bf16.gmra.mxu0 %v564
  %v1281 = vpop.f32.mrf.mxu0
  %v1282 = vadd.f32 %v1249, %v1281
  %v1283 = vpop.f32.mrf.mxu0
  %v1284 = vadd.f32 %v1251, %v1283
  %1285 = vmatmul.bf16.gmra.mxu0 %v567
  %v1286 = vpop.f32.mrf.mxu0
  %v1287 = vadd.f32 %v1254, %v1286
  %v1288 = vpop.f32.mrf.mxu0
  %v1289 = vadd.f32 %v1256, %v1288
  %1290 = vmatmul.bf16.gmra.mxu0 %v570
  %v1291 = vpop.f32.mrf.mxu0
  %v1292 = vadd.f32 %v1259, %v1291
  %v1293 = vpop.f32.mrf.mxu0
  %v1294 = vadd.f32 %v1261, %v1293
  %1295 = vmatmul.bf16.gmra.mxu0 %v573
  %v1296 = vpop.f32.mrf.mxu0
  %v1297 = vadd.f32 %v1264, %v1296
  %v1298 = vpop.f32.mrf.mxu0
  %v1299 = vadd.f32 %v1266, %v1298
  %1300 = vmatmul.bf16.gmra.mxu0 %v576
  %v1301 = vpop.f32.mrf.mxu0
  %v1302 = vadd.f32 %v1269, %v1301
  %v1303 = vpop.f32.mrf.mxu0
  %1304 = vdwg.mxu0
  %1305 = vmatpush.bf16.msra.mxu0 %v1206
  %1306 = vmatpush.bf16.msra.mxu0 %v1204
  %1307 = vmatpush.bf16.msra.mxu0 %v1202
  %1308 = vmatpush.bf16.msra.mxu0 %v1200
  %1309 = vmatpush.bf16.msra.mxu0 %v1198
  %1310 = vmatpush.bf16.msra.mxu0 %v1196
  %1311 = vmatpush.bf16.msra.mxu0 %v1194
  %1312 = vmatpush.bf16.msra.mxu0 %v1192
  %1313 = vmatmul.bf16.gmra.mxu0 %v428
  %v1314 = vpop.f32.mrf.mxu0
  %v1315 = vadd.f32 0.0, %v1314
  %v1316 = vpop.f32.mrf.mxu0
  %v1317 = vadd.f32 0.0, %v1316
  %1318 = vmatmul.bf16.gmra.mxu0 %v430
  %v1319 = vpop.f32.mrf.mxu0
  %v1320 = vadd.f32 0.0, %v1319
  %v1321 = vpop.f32.mrf.mxu0
  %v1322 = vadd.f32 0.0, %v1321
  %1323 = vmatmul.bf16.gmra.mxu0 %v432
  %v1324 = vpop.f32.mrf.mxu0
  %v1325 = vadd.f32 0.0, %v1324
  %v1326 = vpop.f32.mrf.mxu0
  %v1327 = vadd.f32 0.0, %v1326
  %1328 = vmatmul.bf16.gmra.mxu0 %v434
  %v1329 = vpop.f32.mrf.mxu0
  %v1330 = vadd.f32 0.0, %v1329
  %v1331 = vpop.f32.mrf.mxu0
  %v1332 = vadd.f32 0.0, %v1331
  %1333 = vmatmul.bf16.gmra.mxu0 %v436
  %v1334 = vpop.f32.mrf.mxu0
  %v1335 = vadd.f32 0.0, %v1334
  %v1336 = vpop.f32.mrf.mxu0
  %1337 = vdwg.mxu0
  %1338 = vmatpush.bf16.msra.mxu0 0
  %1339 = vmatpush.bf16.msra.mxu0 0
  %1340 = vmatpush.bf16.msra.mxu0 0
  %1341 = vmatpush.bf16.msra.mxu0 0
  %1342 = vmatpush.bf16.msra.mxu0 %v1214
  %1343 = vmatpush.bf16.msra.mxu0 %v1212
  %1344 = vmatpush.bf16.msra.mxu0 %v1210
  %1345 = vmatpush.bf16.msra.mxu0 %v1208
  %1346 = vmatmul.bf16.gmra.mxu0 %v564
  %v1347 = vpop.f32.mrf.mxu0
  %v1348 = vadd.f32 %v1315, %v1347
  %v1349 = vpop.f32.mrf.mxu0
  %v1350 = vadd.f32 %v1317, %v1349
  %1351 = vmatmul.bf16.gmra.mxu0 %v567
  %v1352 = vpop.f32.mrf.mxu0
  %v1353 = vadd.f32 %v1320, %v1352
  %v1354 = vpop.f32.mrf.mxu0
  %v1355 = vadd.f32 %v1322, %v1354
  %1356 = vmatmul.bf16.gmra.mxu0 %v570
  %v1357 = vpop.f32.mrf.mxu0
  %v1358 = vadd.f32 %v1325, %v1357
  %v1359 = vpop.f32.mrf.mxu0
  %v1360 = vadd.f32 %v1327, %v1359
  %1361 = vmatmul.bf16.gmra.mxu0 %v573
  %v1362 = vpop.f32.mrf.mxu0
  %v1363 = vadd.f32 %v1330, %v1362
  %v1364 = vpop.f32.mrf.mxu0
  %v1365 = vadd.f32 %v1332, %v1364
  %1366 = vmatmul.bf16.gmra.mxu0 %v576
  %v1367 = vpop.f32.mrf.mxu0
  %v1368 = vadd.f32 %v1335, %v1367
  %v1369 = vpop.f32.mrf.mxu0
  %1370 = vdwg.mxu0
  %v1381 = vrot.slane %v1282, 1
  %v1382 = vrot.slane %v1284, 1
  %v1383 = vsel %vm1015, %v1381, %v1382
  %v1384 = vrot.slane %v1348, 1
  %v1385 = vrot.slane %v1350, 1
  %v1386 = vsel %vm1015, %v1384, %v1385
  %v1387 = vrot.slane %v1287, 1
  %v1388 = vsel %vm1015, %v1382, %v1387
  %v1389 = vrot.slane %v1353, 1
  %v1390 = vsel %vm1015, %v1385, %v1389
  %v1391 = vrot.slane %v1289, 1
  %v1392 = vsel %vm1015, %v1387, %v1391
  %v1393 = vrot.slane %v1355, 1
  %v1394 = vsel %vm1015, %v1389, %v1393
  %v1395 = vrot.slane %v1292, 1
  %v1396 = vsel %vm1015, %v1391, %v1395
  %v1397 = vrot.slane %v1358, 1
  %v1398 = vsel %vm1015, %v1393, %v1397
  %v1407 = vadd.f32 %v1042, %v1383
  %v1408 = vadd.f32 %v1043, %v1386
  %v1409 = vadd.f32 %v1044, %v1388
  %v1410 = vadd.f32 %v1045, %v1390
  %v1411 = vadd.f32 %v1046, %v1392
  %v1412 = vadd.f32 %v1047, %v1394
  %v1413 = vadd.f32 %v1048, %v1396
  %v1414 = vadd.f32 %v1049, %v1398
  %v1423 = vrot.slane %v1294, 1
  %v1424 = vsel %vm1015, %v1395, %v1423
  %v1425 = vrot.slane %v1360, 1
  %v1426 = vsel %vm1015, %v1397, %v1425
  %v1427 = vrot.slane %v1297, 1
  %v1428 = vsel %vm1015, %v1423, %v1427
  %v1429 = vrot.slane %v1363, 1
  %v1430 = vsel %vm1015, %v1425, %v1429
  %v1431 = vrot.slane %v1299, 1
  %v1432 = vsel %vm1015, %v1427, %v1431
  %v1433 = vrot.slane %v1365, 1
  %v1434 = vsel %vm1015, %v1429, %v1433
  %v1435 = vrot.slane %v1302, 1
  %v1436 = vsel %vm1015, %v1431, %v1435
  %v1437 = vrot.slane %v1368, 1
  %v1438 = vsel %vm1015, %v1433, %v1437
  %v1449 = vadd.f32 %v1084, %v1424
  %v1450 = vadd.f32 %v1085, %v1426
  %v1451 = vadd.f32 %v1086, %v1428
  %v1452 = vadd.f32 %v1087, %v1430
  %v1453 = vadd.f32 %v1088, %v1432
  %v1454 = vadd.f32 %v1089, %v1434
  %v1455 = vadd.f32 %v1090, %v1436
  %v1456 = vadd.f32 %v1091, %v1438
  %v1457 = vadd.f32 %v1092, %v1435
  %v1458 = vadd.f32 %v1093, %v1437
  %s1459 = scalar_lea.vmem %s2, 768
  %v1460 = vld [vmem:[%s1459] sm:$0xff]
  %v1461 = vld [vmem:[%s1459 + $0x8] sm:$0xff]
  %v1462 = vld [vmem:[%s1459 + $0x10] sm:$0xff]
  %v1463 = vld [vmem:[%s1459 + $0x18] sm:$0xff]
  %v1464 = vld [vmem:[%s1459 + $0x20] sm:$0xff]
  %v1465 = vld [vmem:[%s1459 + $0x28] sm:$0xff]
  %v1466 = vld [vmem:[%s1459 + $0x30] sm:$0xff]
  %v1467 = vld [vmem:[%s1459 + $0x38] sm:$0xff]
  %v1468 = vld [vmem:[%s1459 + $0x40] sm:$0xff]
  %v1469 = vld [vmem:[%s1459 + $0x48] sm:$0xff]
  %v1470 = vld [vmem:[%s1459 + $0x50] sm:$0xff]
  %v1471 = vld [vmem:[%s1459 + $0x58] sm:$0xff]
  %v1472 = vld [vmem:[%s1459 + $0x60] sm:$0xff]
  %v1473 = vld [vmem:[%s1459 + $0x68] sm:$0xff]
  %v1474 = vld [vmem:[%s1459 + $0x70] sm:$0xff]
  %v1475 = vld [vmem:[%s1459 + $0x78] sm:$0xff]
  %v1476 = vld [vmem:[%s1459 + $0x80] sm:$0xff]
  %v1477 = vld [vmem:[%s1459 + $0x88] sm:$0xff]
  %v1478 = vld [vmem:[%s1459 + $0x90] sm:$0xff]
  %v1479 = vld [vmem:[%s1459 + $0x98] sm:$0xff]
  %v1480 = vld [vmem:[%s1459 + $0xa0] sm:$0xff]
  %v1481 = vld [vmem:[%s1459 + $0xa8] sm:$0xff]
  %v1482 = vld [vmem:[%s1459 + $0xb0] sm:$0xff]
  %v1483 = vld [vmem:[%s1459 + $0xb8] sm:$0xff]
  %v1508 = vunpack.c.l.b16 %v1460
  %v1509 = vunpack.c.h.b16 %v1460
  %v1510 = vunpack.c.l.b16 %v1461
  %v1511 = vunpack.c.h.b16 %v1461
  %v1512 = vunpack.c.l.b16 %v1462
  %v1513 = vunpack.c.h.b16 %v1462
  %v1514 = vunpack.c.l.b16 %v1463
  %v1515 = vunpack.c.h.b16 %v1463
  %v1516 = vunpack.c.l.b16 %v1464
  %v1517 = vunpack.c.h.b16 %v1464
  %v1518 = vunpack.c.l.b16 %v1465
  %v1519 = vunpack.c.h.b16 %v1465
  %v1520 = vunpack.c.l.b16 %v1466
  %v1521 = vunpack.c.h.b16 %v1466
  %v1522 = vunpack.c.l.b16 %v1467
  %v1523 = vunpack.c.h.b16 %v1467
  %v1524 = vunpack.c.l.b16 %v1468
  %v1525 = vunpack.c.h.b16 %v1468
  %v1526 = vunpack.c.l.b16 %v1469
  %v1527 = vunpack.c.h.b16 %v1469
  %v1528 = vunpack.c.l.b16 %v1470
  %v1529 = vunpack.c.h.b16 %v1470
  %v1530 = vunpack.c.l.b16 %v1471
  %v1531 = vunpack.c.h.b16 %v1471
  %v1532 = vunpack.c.l.b16 %v1472
  %v1533 = vunpack.c.h.b16 %v1472
  %v1534 = vunpack.c.l.b16 %v1473
  %v1535 = vunpack.c.h.b16 %v1473
  %v1536 = vunpack.c.l.b16 %v1474
  %v1537 = vunpack.c.h.b16 %v1474
  %v1538 = vunpack.c.l.b16 %v1475
  %v1539 = vunpack.c.h.b16 %v1475
  %v1540 = vunpack.c.l.b16 %v1476
  %v1541 = vunpack.c.h.b16 %v1476
  %v1542 = vunpack.c.l.b16 %v1477
  %v1543 = vunpack.c.h.b16 %v1477
  %v1544 = vunpack.c.l.b16 %v1478
  %v1545 = vunpack.c.h.b16 %v1478
  %v1546 = vunpack.c.l.b16 %v1479
  %v1547 = vunpack.c.h.b16 %v1479
  %v1548 = vunpack.c.l.b16 %v1480
  %v1549 = vunpack.c.h.b16 %v1480
  %v1550 = vunpack.c.l.b16 %v1481
  %v1551 = vunpack.c.h.b16 %v1481
  %v1552 = vunpack.c.l.b16 %v1482
  %v1553 = vunpack.c.h.b16 %v1482
  %v1554 = vunpack.c.l.b16 %v1483
  %v1555 = vunpack.c.h.b16 %v1483
  %v1556 = vpack.c.b16 %v1510, %v1508
  %v1557 = vpack.c.b16 %v1511, %v1509
  %v1558 = vpack.c.b16 %v1514, %v1512
  %v1559 = vpack.c.b16 %v1515, %v1513
  %v1560 = vpack.c.b16 %v1518, %v1516
  %v1561 = vpack.c.b16 %v1519, %v1517
  %v1562 = vpack.c.b16 %v1522, %v1520
  %v1563 = vpack.c.b16 %v1523, %v1521
  %v1564 = vpack.c.b16 %v1526, %v1524
  %v1565 = vpack.c.b16 %v1527, %v1525
  %v1566 = vpack.c.b16 %v1530, %v1528
  %v1567 = vpack.c.b16 %v1531, %v1529
  %v1568 = vpack.c.b16 %v1534, %v1532
  %v1569 = vpack.c.b16 %v1535, %v1533
  %v1570 = vpack.c.b16 %v1538, %v1536
  %v1571 = vpack.c.b16 %v1539, %v1537
  %v1572 = vpack.c.b16 %v1542, %v1540
  %v1573 = vpack.c.b16 %v1543, %v1541
  %v1574 = vpack.c.b16 %v1546, %v1544
  %v1575 = vpack.c.b16 %v1547, %v1545
  %v1576 = vpack.c.b16 %v1550, %v1548
  %v1577 = vpack.c.b16 %v1551, %v1549
  %v1578 = vpack.c.b16 %v1554, %v1552
  %v1579 = vpack.c.b16 %v1555, %v1553
  %1604 = vmatpush.bf16.msra.mxu0 %v1570
  %1605 = vmatpush.bf16.msra.mxu0 %v1568
  %1606 = vmatpush.bf16.msra.mxu0 %v1566
  %1607 = vmatpush.bf16.msra.mxu0 %v1564
  %1608 = vmatpush.bf16.msra.mxu0 %v1562
  %1609 = vmatpush.bf16.msra.mxu0 %v1560
  %1610 = vmatpush.bf16.msra.mxu0 %v1558
  %1611 = vmatpush.bf16.msra.mxu0 %v1556
  %1612 = vmatmul.bf16.gmra.mxu0 %v93
  %v1613 = vpop.f32.mrf.mxu0
  %v1614 = vadd.f32 0.0, %v1613
  %v1615 = vpop.f32.mrf.mxu0
  %v1616 = vadd.f32 0.0, %v1615
  %1617 = vmatmul.bf16.gmra.mxu0 %v95
  %v1618 = vpop.f32.mrf.mxu0
  %v1619 = vadd.f32 0.0, %v1618
  %v1620 = vpop.f32.mrf.mxu0
  %v1621 = vadd.f32 0.0, %v1620
  %1622 = vmatmul.bf16.gmra.mxu0 %v97
  %v1623 = vpop.f32.mrf.mxu0
  %v1624 = vadd.f32 0.0, %v1623
  %v1625 = vpop.f32.mrf.mxu0
  %v1626 = vadd.f32 0.0, %v1625
  %1627 = vmatmul.bf16.gmra.mxu0 %v99
  %v1628 = vpop.f32.mrf.mxu0
  %v1629 = vadd.f32 0.0, %v1628
  %v1630 = vpop.f32.mrf.mxu0
  %v1631 = vadd.f32 0.0, %v1630
  %1632 = vmatmul.bf16.gmra.mxu0 %v101
  %v1633 = vpop.f32.mrf.mxu0
  %v1634 = vadd.f32 0.0, %v1633
  %v1635 = vpop.f32.mrf.mxu0
  %1636 = vdwg.mxu0
  %1637 = vmatpush.bf16.msra.mxu0 0
  %1638 = vmatpush.bf16.msra.mxu0 0
  %1639 = vmatpush.bf16.msra.mxu0 0
  %1640 = vmatpush.bf16.msra.mxu0 0
  %1641 = vmatpush.bf16.msra.mxu0 %v1578
  %1642 = vmatpush.bf16.msra.mxu0 %v1576
  %1643 = vmatpush.bf16.msra.mxu0 %v1574
  %1644 = vmatpush.bf16.msra.mxu0 %v1572
  %1645 = vmatmul.bf16.gmra.mxu0 %v230
  %v1646 = vpop.f32.mrf.mxu0
  %v1647 = vadd.f32 %v1614, %v1646
  %v1648 = vpop.f32.mrf.mxu0
  %v1649 = vadd.f32 %v1616, %v1648
  %1650 = vmatmul.bf16.gmra.mxu0 %v233
  %v1651 = vpop.f32.mrf.mxu0
  %v1652 = vadd.f32 %v1619, %v1651
  %v1653 = vpop.f32.mrf.mxu0
  %v1654 = vadd.f32 %v1621, %v1653
  %1655 = vmatmul.bf16.gmra.mxu0 %v236
  %v1656 = vpop.f32.mrf.mxu0
  %v1657 = vadd.f32 %v1624, %v1656
  %v1658 = vpop.f32.mrf.mxu0
  %v1659 = vadd.f32 %v1626, %v1658
  %1660 = vmatmul.bf16.gmra.mxu0 %v239
  %v1661 = vpop.f32.mrf.mxu0
  %v1662 = vadd.f32 %v1629, %v1661
  %v1663 = vpop.f32.mrf.mxu0
  %v1664 = vadd.f32 %v1631, %v1663
  %1665 = vmatmul.bf16.gmra.mxu0 %v242
  %v1666 = vpop.f32.mrf.mxu0
  %v1667 = vadd.f32 %v1634, %v1666
  %v1668 = vpop.f32.mrf.mxu0
  %1669 = vdwg.mxu0
  %1670 = vmatpush.bf16.msra.mxu0 %v1571
  %1671 = vmatpush.bf16.msra.mxu0 %v1569
  %1672 = vmatpush.bf16.msra.mxu0 %v1567
  %1673 = vmatpush.bf16.msra.mxu0 %v1565
  %1674 = vmatpush.bf16.msra.mxu0 %v1563
  %1675 = vmatpush.bf16.msra.mxu0 %v1561
  %1676 = vmatpush.bf16.msra.mxu0 %v1559
  %1677 = vmatpush.bf16.msra.mxu0 %v1557
  %1678 = vmatmul.bf16.gmra.mxu0 %v93
  %v1679 = vpop.f32.mrf.mxu0
  %v1680 = vadd.f32 0.0, %v1679
  %v1681 = vpop.f32.mrf.mxu0
  %v1682 = vadd.f32 0.0, %v1681
  %1683 = vmatmul.bf16.gmra.mxu0 %v95
  %v1684 = vpop.f32.mrf.mxu0
  %v1685 = vadd.f32 0.0, %v1684
  %v1686 = vpop.f32.mrf.mxu0
  %v1687 = vadd.f32 0.0, %v1686
  %1688 = vmatmul.bf16.gmra.mxu0 %v97
  %v1689 = vpop.f32.mrf.mxu0
  %v1690 = vadd.f32 0.0, %v1689
  %v1691 = vpop.f32.mrf.mxu0
  %v1692 = vadd.f32 0.0, %v1691
  %1693 = vmatmul.bf16.gmra.mxu0 %v99
  %v1694 = vpop.f32.mrf.mxu0
  %v1695 = vadd.f32 0.0, %v1694
  %v1696 = vpop.f32.mrf.mxu0
  %v1697 = vadd.f32 0.0, %v1696
  %1698 = vmatmul.bf16.gmra.mxu0 %v101
  %v1699 = vpop.f32.mrf.mxu0
  %v1700 = vadd.f32 0.0, %v1699
  %v1701 = vpop.f32.mrf.mxu0
  %1702 = vdwg.mxu0
  %1703 = vmatpush.bf16.msra.mxu0 0
  %1704 = vmatpush.bf16.msra.mxu0 0
  %1705 = vmatpush.bf16.msra.mxu0 0
  %1706 = vmatpush.bf16.msra.mxu0 0
  %1707 = vmatpush.bf16.msra.mxu0 %v1579
  %1708 = vmatpush.bf16.msra.mxu0 %v1577
  %1709 = vmatpush.bf16.msra.mxu0 %v1575
  %1710 = vmatpush.bf16.msra.mxu0 %v1573
  %1711 = vmatmul.bf16.gmra.mxu0 %v230
  %v1712 = vpop.f32.mrf.mxu0
  %v1713 = vadd.f32 %v1680, %v1712
  %v1714 = vpop.f32.mrf.mxu0
  %v1715 = vadd.f32 %v1682, %v1714
  %1716 = vmatmul.bf16.gmra.mxu0 %v233
  %v1717 = vpop.f32.mrf.mxu0
  %v1718 = vadd.f32 %v1685, %v1717
  %v1719 = vpop.f32.mrf.mxu0
  %v1720 = vadd.f32 %v1687, %v1719
  %1721 = vmatmul.bf16.gmra.mxu0 %v236
  %v1722 = vpop.f32.mrf.mxu0
  %v1723 = vadd.f32 %v1690, %v1722
  %v1724 = vpop.f32.mrf.mxu0
  %v1725 = vadd.f32 %v1692, %v1724
  %1726 = vmatmul.bf16.gmra.mxu0 %v239
  %v1727 = vpop.f32.mrf.mxu0
  %v1728 = vadd.f32 %v1695, %v1727
  %v1729 = vpop.f32.mrf.mxu0
  %v1730 = vadd.f32 %v1697, %v1729
  %1731 = vmatmul.bf16.gmra.mxu0 %v242
  %v1732 = vpop.f32.mrf.mxu0
  %v1733 = vadd.f32 %v1700, %v1732
  %v1734 = vpop.f32.mrf.mxu0
  %1735 = vdwg.mxu0
  %vm1746 = vcmask 1045504
  %v1747 = vrot.slane %v1647, 2
  %v1748 = vrot.slane %v1649, 2
  %v1749 = vsel %vm1746, %v1747, %v1748
  %v1750 = vrot.slane %v1713, 2
  %v1751 = vrot.slane %v1715, 2
  %v1752 = vsel %vm1746, %v1750, %v1751
  %v1753 = vrot.slane %v1652, 2
  %v1754 = vsel %vm1746, %v1748, %v1753
  %v1755 = vrot.slane %v1718, 2
  %v1756 = vsel %vm1746, %v1751, %v1755
  %v1757 = vrot.slane %v1654, 2
  %v1758 = vsel %vm1746, %v1753, %v1757
  %v1759 = vrot.slane %v1720, 2
  %v1760 = vsel %vm1746, %v1755, %v1759
  %v1761 = vrot.slane %v1657, 2
  %v1762 = vsel %vm1746, %v1757, %v1761
  %v1763 = vrot.slane %v1723, 2
  %v1764 = vsel %vm1746, %v1759, %v1763
  %v1773 = vadd.f32 %v1407, %v1749
  %v1774 = vadd.f32 %v1408, %v1752
  %v1775 = vadd.f32 %v1409, %v1754
  %v1776 = vadd.f32 %v1410, %v1756
  %v1777 = vadd.f32 %v1411, %v1758
  %v1778 = vadd.f32 %v1412, %v1760
  %v1779 = vadd.f32 %v1413, %v1762
  %v1780 = vadd.f32 %v1414, %v1764
  %v1789 = vrot.slane %v1659, 2
  %v1790 = vsel %vm1746, %v1761, %v1789
  %v1791 = vrot.slane %v1725, 2
  %v1792 = vsel %vm1746, %v1763, %v1791
  %v1793 = vrot.slane %v1662, 2
  %v1794 = vsel %vm1746, %v1789, %v1793
  %v1795 = vrot.slane %v1728, 2
  %v1796 = vsel %vm1746, %v1791, %v1795
  %v1797 = vrot.slane %v1664, 2
  %v1798 = vsel %vm1746, %v1793, %v1797
  %v1799 = vrot.slane %v1730, 2
  %v1800 = vsel %vm1746, %v1795, %v1799
  %v1801 = vrot.slane %v1667, 2
  %v1802 = vsel %vm1746, %v1797, %v1801
  %v1803 = vrot.slane %v1733, 2
  %v1804 = vsel %vm1746, %v1799, %v1803
  %v1815 = vadd.f32 %v1449, %v1790
  %v1816 = vadd.f32 %v1450, %v1792
  %v1817 = vadd.f32 %v1451, %v1794
  %v1818 = vadd.f32 %v1452, %v1796
  %v1819 = vadd.f32 %v1453, %v1798
  %v1820 = vadd.f32 %v1454, %v1800
  %v1821 = vadd.f32 %v1455, %v1802
  %v1822 = vadd.f32 %v1456, %v1804
  %v1823 = vadd.f32 %v1457, %v1801
  %v1824 = vadd.f32 %v1458, %v1803
  %s1825 = scalar_lea.vmem %s2, 960
  %v1826 = vld [vmem:[%s1825] sm:$0xff]
  %v1827 = vld [vmem:[%s1825 + $0x8] sm:$0xff]
  %v1828 = vld [vmem:[%s1825 + $0x10] sm:$0xff]
  %v1829 = vld [vmem:[%s1825 + $0x18] sm:$0xff]
  %v1830 = vld [vmem:[%s1825 + $0x20] sm:$0xff]
  %v1831 = vld [vmem:[%s1825 + $0x28] sm:$0xff]
  %v1832 = vld [vmem:[%s1825 + $0x30] sm:$0xff]
  %v1833 = vld [vmem:[%s1825 + $0x38] sm:$0xff]
  %v1834 = vld [vmem:[%s1825 + $0x40] sm:$0xff]
  %v1835 = vld [vmem:[%s1825 + $0x48] sm:$0xff]
  %v1836 = vld [vmem:[%s1825 + $0x50] sm:$0xff]
  %v1837 = vld [vmem:[%s1825 + $0x58] sm:$0xff]
  %v1838 = vld [vmem:[%s1825 + $0x60] sm:$0xff]
  %v1839 = vld [vmem:[%s1825 + $0x68] sm:$0xff]
  %v1840 = vld [vmem:[%s1825 + $0x70] sm:$0xff]
  %v1841 = vld [vmem:[%s1825 + $0x78] sm:$0xff]
  %v1842 = vld [vmem:[%s1825 + $0x80] sm:$0xff]
  %v1843 = vld [vmem:[%s1825 + $0x88] sm:$0xff]
  %v1844 = vld [vmem:[%s1825 + $0x90] sm:$0xff]
  %v1845 = vld [vmem:[%s1825 + $0x98] sm:$0xff]
  %v1846 = vld [vmem:[%s1825 + $0xa0] sm:$0xff]
  %v1847 = vld [vmem:[%s1825 + $0xa8] sm:$0xff]
  %v1848 = vld [vmem:[%s1825 + $0xb0] sm:$0xff]
  %v1849 = vld [vmem:[%s1825 + $0xb8] sm:$0xff]
  %v1874 = vunpack.c.l.b16 %v1826
  %v1875 = vunpack.c.h.b16 %v1826
  %v1876 = vunpack.c.l.b16 %v1827
  %v1877 = vunpack.c.h.b16 %v1827
  %v1878 = vunpack.c.l.b16 %v1828
  %v1879 = vunpack.c.h.b16 %v1828
  %v1880 = vunpack.c.l.b16 %v1829
  %v1881 = vunpack.c.h.b16 %v1829
  %v1882 = vunpack.c.l.b16 %v1830
  %v1883 = vunpack.c.h.b16 %v1830
  %v1884 = vunpack.c.l.b16 %v1831
  %v1885 = vunpack.c.h.b16 %v1831
  %v1886 = vunpack.c.l.b16 %v1832
  %v1887 = vunpack.c.h.b16 %v1832
  %v1888 = vunpack.c.l.b16 %v1833
  %v1889 = vunpack.c.h.b16 %v1833
  %v1890 = vunpack.c.l.b16 %v1834
  %v1891 = vunpack.c.h.b16 %v1834
  %v1892 = vunpack.c.l.b16 %v1835
  %v1893 = vunpack.c.h.b16 %v1835
  %v1894 = vunpack.c.l.b16 %v1836
  %v1895 = vunpack.c.h.b16 %v1836
  %v1896 = vunpack.c.l.b16 %v1837
  %v1897 = vunpack.c.h.b16 %v1837
  %v1898 = vunpack.c.l.b16 %v1838
  %v1899 = vunpack.c.h.b16 %v1838
  %v1900 = vunpack.c.l.b16 %v1839
  %v1901 = vunpack.c.h.b16 %v1839
  %v1902 = vunpack.c.l.b16 %v1840
  %v1903 = vunpack.c.h.b16 %v1840
  %v1904 = vunpack.c.l.b16 %v1841
  %v1905 = vunpack.c.h.b16 %v1841
  %v1906 = vunpack.c.l.b16 %v1842
  %v1907 = vunpack.c.h.b16 %v1842
  %v1908 = vunpack.c.l.b16 %v1843
  %v1909 = vunpack.c.h.b16 %v1843
  %v1910 = vunpack.c.l.b16 %v1844
  %v1911 = vunpack.c.h.b16 %v1844
  %v1912 = vunpack.c.l.b16 %v1845
  %v1913 = vunpack.c.h.b16 %v1845
  %v1914 = vunpack.c.l.b16 %v1846
  %v1915 = vunpack.c.h.b16 %v1846
  %v1916 = vunpack.c.l.b16 %v1847
  %v1917 = vunpack.c.h.b16 %v1847
  %v1918 = vunpack.c.l.b16 %v1848
  %v1919 = vunpack.c.h.b16 %v1848
  %v1920 = vunpack.c.l.b16 %v1849
  %v1921 = vunpack.c.h.b16 %v1849
  %v1922 = vpack.c.b16 %v1876, %v1874
  %v1923 = vpack.c.b16 %v1877, %v1875
  %v1924 = vpack.c.b16 %v1880, %v1878
  %v1925 = vpack.c.b16 %v1881, %v1879
  %v1926 = vpack.c.b16 %v1884, %v1882
  %v1927 = vpack.c.b16 %v1885, %v1883
  %v1928 = vpack.c.b16 %v1888, %v1886
  %v1929 = vpack.c.b16 %v1889, %v1887
  %v1930 = vpack.c.b16 %v1892, %v1890
  %v1931 = vpack.c.b16 %v1893, %v1891
  %v1932 = vpack.c.b16 %v1896, %v1894
  %v1933 = vpack.c.b16 %v1897, %v1895
  %v1934 = vpack.c.b16 %v1900, %v1898
  %v1935 = vpack.c.b16 %v1901, %v1899
  %v1936 = vpack.c.b16 %v1904, %v1902
  %v1937 = vpack.c.b16 %v1905, %v1903
  %v1938 = vpack.c.b16 %v1908, %v1906
  %v1939 = vpack.c.b16 %v1909, %v1907
  %v1940 = vpack.c.b16 %v1912, %v1910
  %v1941 = vpack.c.b16 %v1913, %v1911
  %v1942 = vpack.c.b16 %v1916, %v1914
  %v1943 = vpack.c.b16 %v1917, %v1915
  %v1944 = vpack.c.b16 %v1920, %v1918
  %v1945 = vpack.c.b16 %v1921, %v1919
  %1970 = vmatpush.bf16.msra.mxu0 %v1936
  %1971 = vmatpush.bf16.msra.mxu0 %v1934
  %1972 = vmatpush.bf16.msra.mxu0 %v1932
  %1973 = vmatpush.bf16.msra.mxu0 %v1930
  %1974 = vmatpush.bf16.msra.mxu0 %v1928
  %1975 = vmatpush.bf16.msra.mxu0 %v1926
  %1976 = vmatpush.bf16.msra.mxu0 %v1924
  %1977 = vmatpush.bf16.msra.mxu0 %v1922
  %1978 = vmatmul.bf16.gmra.mxu0 %v428
  %v1979 = vpop.f32.mrf.mxu0
  %v1980 = vadd.f32 0.0, %v1979
  %v1981 = vpop.f32.mrf.mxu0
  %v1982 = vadd.f32 0.0, %v1981
  %1983 = vmatmul.bf16.gmra.mxu0 %v430
  %v1984 = vpop.f32.mrf.mxu0
  %v1985 = vadd.f32 0.0, %v1984
  %v1986 = vpop.f32.mrf.mxu0
  %v1987 = vadd.f32 0.0, %v1986
  %1988 = vmatmul.bf16.gmra.mxu0 %v432
  %v1989 = vpop.f32.mrf.mxu0
  %v1990 = vadd.f32 0.0, %v1989
  %v1991 = vpop.f32.mrf.mxu0
  %v1992 = vadd.f32 0.0, %v1991
  %1993 = vmatmul.bf16.gmra.mxu0 %v434
  %v1994 = vpop.f32.mrf.mxu0
  %v1995 = vadd.f32 0.0, %v1994
  %v1996 = vpop.f32.mrf.mxu0
  %v1997 = vadd.f32 0.0, %v1996
  %1998 = vmatmul.bf16.gmra.mxu0 %v436
  %v1999 = vpop.f32.mrf.mxu0
  %v2000 = vadd.f32 0.0, %v1999
  %v2001 = vpop.f32.mrf.mxu0
  %2002 = vdwg.mxu0
  %2003 = vmatpush.bf16.msra.mxu0 0
  %2004 = vmatpush.bf16.msra.mxu0 0
  %2005 = vmatpush.bf16.msra.mxu0 0
  %2006 = vmatpush.bf16.msra.mxu0 0
  %2007 = vmatpush.bf16.msra.mxu0 %v1944
  %2008 = vmatpush.bf16.msra.mxu0 %v1942
  %2009 = vmatpush.bf16.msra.mxu0 %v1940
  %2010 = vmatpush.bf16.msra.mxu0 %v1938
  %2011 = vmatmul.bf16.gmra.mxu0 %v564
  %v2012 = vpop.f32.mrf.mxu0
  %v2013 = vadd.f32 %v1980, %v2012
  %v2014 = vpop.f32.mrf.mxu0
  %v2015 = vadd.f32 %v1982, %v2014
  %2016 = vmatmul.bf16.gmra.mxu0 %v567
  %v2017 = vpop.f32.mrf.mxu0
  %v2018 = vadd.f32 %v1985, %v2017
  %v2019 = vpop.f32.mrf.mxu0
  %v2020 = vadd.f32 %v1987, %v2019
  %2021 = vmatmul.bf16.gmra.mxu0 %v570
  %v2022 = vpop.f32.mrf.mxu0
  %v2023 = vadd.f32 %v1990, %v2022
  %v2024 = vpop.f32.mrf.mxu0
  %v2025 = vadd.f32 %v1992, %v2024
  %2026 = vmatmul.bf16.gmra.mxu0 %v573
  %v2027 = vpop.f32.mrf.mxu0
  %v2028 = vadd.f32 %v1995, %v2027
  %v2029 = vpop.f32.mrf.mxu0
  %v2030 = vadd.f32 %v1997, %v2029
  %2031 = vmatmul.bf16.gmra.mxu0 %v576
  %v2032 = vpop.f32.mrf.mxu0
  %v2033 = vadd.f32 %v2000, %v2032
  %v2034 = vpop.f32.mrf.mxu0
  %2035 = vdwg.mxu0
  %2036 = vmatpush.bf16.msra.mxu0 %v1937
  %2037 = vmatpush.bf16.msra.mxu0 %v1935
  %2038 = vmatpush.bf16.msra.mxu0 %v1933
  %2039 = vmatpush.bf16.msra.mxu0 %v1931
  %2040 = vmatpush.bf16.msra.mxu0 %v1929
  %2041 = vmatpush.bf16.msra.mxu0 %v1927
  %2042 = vmatpush.bf16.msra.mxu0 %v1925
  %2043 = vmatpush.bf16.msra.mxu0 %v1923
  %2044 = vmatmul.bf16.gmra.mxu0 %v428
  %v2045 = vpop.f32.mrf.mxu0
  %v2046 = vadd.f32 0.0, %v2045
  %v2047 = vpop.f32.mrf.mxu0
  %v2048 = vadd.f32 0.0, %v2047
  %2049 = vmatmul.bf16.gmra.mxu0 %v430
  %v2050 = vpop.f32.mrf.mxu0
  %v2051 = vadd.f32 0.0, %v2050
  %v2052 = vpop.f32.mrf.mxu0
  %v2053 = vadd.f32 0.0, %v2052
  %2054 = vmatmul.bf16.gmra.mxu0 %v432
  %v2055 = vpop.f32.mrf.mxu0
  %v2056 = vadd.f32 0.0, %v2055
  %v2057 = vpop.f32.mrf.mxu0
  %v2058 = vadd.f32 0.0, %v2057
  %2059 = vmatmul.bf16.gmra.mxu0 %v434
  %v2060 = vpop.f32.mrf.mxu0
  %v2061 = vadd.f32 0.0, %v2060
  %v2062 = vpop.f32.mrf.mxu0
  %v2063 = vadd.f32 0.0, %v2062
  %2064 = vmatmul.bf16.gmra.mxu0 %v436
  %v2065 = vpop.f32.mrf.mxu0
  %v2066 = vadd.f32 0.0, %v2065
  %v2067 = vpop.f32.mrf.mxu0
  %2068 = vdwg.mxu0
  %2069 = vmatpush.bf16.msra.mxu0 0
  %2070 = vmatpush.bf16.msra.mxu0 0
  %2071 = vmatpush.bf16.msra.mxu0 0
  %2072 = vmatpush.bf16.msra.mxu0 0
  %2073 = vmatpush.bf16.msra.mxu0 %v1945
  %2074 = vmatpush.bf16.msra.mxu0 %v1943
  %2075 = vmatpush.bf16.msra.mxu0 %v1941
  %2076 = vmatpush.bf16.msra.mxu0 %v1939
  %2077 = vmatmul.bf16.gmra.mxu0 %v564
  %v2078 = vpop.f32.mrf.mxu0
  %v2079 = vadd.f32 %v2046, %v2078
  %v2080 = vpop.f32.mrf.mxu0
  %v2081 = vadd.f32 %v2048, %v2080
  %2082 = vmatmul.bf16.gmra.mxu0 %v567
  %v2083 = vpop.f32.mrf.mxu0
  %v2084 = vadd.f32 %v2051, %v2083
  %v2085 = vpop.f32.mrf.mxu0
  %v2086 = vadd.f32 %v2053, %v2085
  %2087 = vmatmul.bf16.gmra.mxu0 %v570
  %v2088 = vpop.f32.mrf.mxu0
  %v2089 = vadd.f32 %v2056, %v2088
  %v2090 = vpop.f32.mrf.mxu0
  %v2091 = vadd.f32 %v2058, %v2090
  %2092 = vmatmul.bf16.gmra.mxu0 %v573
  %v2093 = vpop.f32.mrf.mxu0
  %v2094 = vadd.f32 %v2061, %v2093
  %v2095 = vpop.f32.mrf.mxu0
  %v2096 = vadd.f32 %v2063, %v2095
  %2097 = vmatmul.bf16.gmra.mxu0 %v576
  %v2098 = vpop.f32.mrf.mxu0
  %v2099 = vadd.f32 %v2066, %v2098
  %v2100 = vpop.f32.mrf.mxu0
  %2101 = vdwg.mxu0
  %v2112 = vrot.slane %v2013, 2
  %v2113 = vrot.slane %v2015, 2
  %v2114 = vsel %vm1746, %v2112, %v2113
  %v2115 = vrot.slane %v2079, 2
  %v2116 = vrot.slane %v2081, 2
  %v2117 = vsel %vm1746, %v2115, %v2116
  %v2118 = vrot.slane %v2018, 2
  %v2119 = vsel %vm1746, %v2113, %v2118
  %v2120 = vrot.slane %v2084, 2
  %v2121 = vsel %vm1746, %v2116, %v2120
  %v2122 = vrot.slane %v2020, 2
  %v2123 = vsel %vm1746, %v2118, %v2122
  %v2124 = vrot.slane %v2086, 2
  %v2125 = vsel %vm1746, %v2120, %v2124
  %v2126 = vrot.slane %v2023, 2
  %v2127 = vsel %vm1746, %v2122, %v2126
  %v2128 = vrot.slane %v2089, 2
  %v2129 = vsel %vm1746, %v2124, %v2128
  %v2138 = vadd.f32 %v1773, %v2114
  %v2139 = vadd.f32 %v1774, %v2117
  %v2140 = vadd.f32 %v1775, %v2119
  %v2141 = vadd.f32 %v1776, %v2121
  %v2142 = vadd.f32 %v1777, %v2123
  %v2143 = vadd.f32 %v1778, %v2125
  %v2144 = vadd.f32 %v1779, %v2127
  %v2145 = vadd.f32 %v1780, %v2129
  %v2154 = vrot.slane %v2025, 2
  %v2155 = vsel %vm1746, %v2126, %v2154
  %v2156 = vrot.slane %v2091, 2
  %v2157 = vsel %vm1746, %v2128, %v2156
  %v2158 = vrot.slane %v2028, 2
  %v2159 = vsel %vm1746, %v2154, %v2158
  %v2160 = vrot.slane %v2094, 2
  %v2161 = vsel %vm1746, %v2156, %v2160
  %v2162 = vrot.slane %v2030, 2
  %v2163 = vsel %vm1746, %v2158, %v2162
  %v2164 = vrot.slane %v2096, 2
  %v2165 = vsel %vm1746, %v2160, %v2164
  %v2166 = vrot.slane %v2033, 2
  %v2167 = vsel %vm1746, %v2162, %v2166
  %v2168 = vrot.slane %v2099, 2
  %v2169 = vsel %vm1746, %v2164, %v2168
  %v2180 = vadd.f32 %v1815, %v2155
  %v2181 = vadd.f32 %v1816, %v2157
  %v2182 = vadd.f32 %v1817, %v2159
  %v2183 = vadd.f32 %v1818, %v2161
  %v2184 = vadd.f32 %v1819, %v2163
  %v2185 = vadd.f32 %v1820, %v2165
  %v2186 = vadd.f32 %v1821, %v2167
  %v2187 = vadd.f32 %v1822, %v2169
  %v2188 = vadd.f32 %v1823, %v2166
  %v2189 = vadd.f32 %v1824, %v2168
  %s2190 = scalar_lea.vmem %s2, 1152
  %v2191 = vld [vmem:[%s2190] sm:$0xff]
  %v2192 = vld [vmem:[%s2190 + $0x8] sm:$0xff]
  %v2193 = vld [vmem:[%s2190 + $0x10] sm:$0xff]
  %v2194 = vld [vmem:[%s2190 + $0x18] sm:$0xff]
  %v2195 = vld [vmem:[%s2190 + $0x20] sm:$0xff]
  %v2196 = vld [vmem:[%s2190 + $0x28] sm:$0xff]
  %v2197 = vld [vmem:[%s2190 + $0x30] sm:$0xff]
  %v2198 = vld [vmem:[%s2190 + $0x38] sm:$0xff]
  %v2199 = vld [vmem:[%s2190 + $0x40] sm:$0xff]
  %v2200 = vld [vmem:[%s2190 + $0x48] sm:$0xff]
  %v2201 = vld [vmem:[%s2190 + $0x50] sm:$0xff]
  %v2202 = vld [vmem:[%s2190 + $0x58] sm:$0xff]
  %v2203 = vld [vmem:[%s2190 + $0x60] sm:$0xff]
  %v2204 = vld [vmem:[%s2190 + $0x68] sm:$0xff]
  %v2205 = vld [vmem:[%s2190 + $0x70] sm:$0xff]
  %v2206 = vld [vmem:[%s2190 + $0x78] sm:$0xff]
  %v2207 = vld [vmem:[%s2190 + $0x80] sm:$0xff]
  %v2208 = vld [vmem:[%s2190 + $0x88] sm:$0xff]
  %v2209 = vld [vmem:[%s2190 + $0x90] sm:$0xff]
  %v2210 = vld [vmem:[%s2190 + $0x98] sm:$0xff]
  %v2211 = vld [vmem:[%s2190 + $0xa0] sm:$0xff]
  %v2212 = vld [vmem:[%s2190 + $0xa8] sm:$0xff]
  %v2213 = vld [vmem:[%s2190 + $0xb0] sm:$0xff]
  %v2214 = vld [vmem:[%s2190 + $0xb8] sm:$0xff]
  %v2239 = vunpack.c.l.b16 %v2191
  %v2240 = vunpack.c.h.b16 %v2191
  %v2241 = vunpack.c.l.b16 %v2192
  %v2242 = vunpack.c.h.b16 %v2192
  %v2243 = vunpack.c.l.b16 %v2193
  %v2244 = vunpack.c.h.b16 %v2193
  %v2245 = vunpack.c.l.b16 %v2194
  %v2246 = vunpack.c.h.b16 %v2194
  %v2247 = vunpack.c.l.b16 %v2195
  %v2248 = vunpack.c.h.b16 %v2195
  %v2249 = vunpack.c.l.b16 %v2196
  %v2250 = vunpack.c.h.b16 %v2196
  %v2251 = vunpack.c.l.b16 %v2197
  %v2252 = vunpack.c.h.b16 %v2197
  %v2253 = vunpack.c.l.b16 %v2198
  %v2254 = vunpack.c.h.b16 %v2198
  %v2255 = vunpack.c.l.b16 %v2199
  %v2256 = vunpack.c.h.b16 %v2199
  %v2257 = vunpack.c.l.b16 %v2200
  %v2258 = vunpack.c.h.b16 %v2200
  %v2259 = vunpack.c.l.b16 %v2201
  %v2260 = vunpack.c.h.b16 %v2201
  %v2261 = vunpack.c.l.b16 %v2202
  %v2262 = vunpack.c.h.b16 %v2202
  %v2263 = vunpack.c.l.b16 %v2203
  %v2264 = vunpack.c.h.b16 %v2203
  %v2265 = vunpack.c.l.b16 %v2204
  %v2266 = vunpack.c.h.b16 %v2204
  %v2267 = vunpack.c.l.b16 %v2205
  %v2268 = vunpack.c.h.b16 %v2205
  %v2269 = vunpack.c.l.b16 %v2206
  %v2270 = vunpack.c.h.b16 %v2206
  %v2271 = vunpack.c.l.b16 %v2207
  %v2272 = vunpack.c.h.b16 %v2207
  %v2273 = vunpack.c.l.b16 %v2208
  %v2274 = vunpack.c.h.b16 %v2208
  %v2275 = vunpack.c.l.b16 %v2209
  %v2276 = vunpack.c.h.b16 %v2209
  %v2277 = vunpack.c.l.b16 %v2210
  %v2278 = vunpack.c.h.b16 %v2210
  %v2279 = vunpack.c.l.b16 %v2211
  %v2280 = vunpack.c.h.b16 %v2211
  %v2281 = vunpack.c.l.b16 %v2212
  %v2282 = vunpack.c.h.b16 %v2212
  %v2283 = vunpack.c.l.b16 %v2213
  %v2284 = vunpack.c.h.b16 %v2213
  %v2285 = vunpack.c.l.b16 %v2214
  %v2286 = vunpack.c.h.b16 %v2214
  %v2287 = vpack.c.b16 %v2241, %v2239
  %v2288 = vpack.c.b16 %v2242, %v2240
  %v2289 = vpack.c.b16 %v2245, %v2243
  %v2290 = vpack.c.b16 %v2246, %v2244
  %v2291 = vpack.c.b16 %v2249, %v2247
  %v2292 = vpack.c.b16 %v2250, %v2248
  %v2293 = vpack.c.b16 %v2253, %v2251
  %v2294 = vpack.c.b16 %v2254, %v2252
  %v2295 = vpack.c.b16 %v2257, %v2255
  %v2296 = vpack.c.b16 %v2258, %v2256
  %v2297 = vpack.c.b16 %v2261, %v2259
  %v2298 = vpack.c.b16 %v2262, %v2260
  %v2299 = vpack.c.b16 %v2265, %v2263
  %v2300 = vpack.c.b16 %v2266, %v2264
  %v2301 = vpack.c.b16 %v2269, %v2267
  %v2302 = vpack.c.b16 %v2270, %v2268
  %v2303 = vpack.c.b16 %v2273, %v2271
  %v2304 = vpack.c.b16 %v2274, %v2272
  %v2305 = vpack.c.b16 %v2277, %v2275
  %v2306 = vpack.c.b16 %v2278, %v2276
  %v2307 = vpack.c.b16 %v2281, %v2279
  %v2308 = vpack.c.b16 %v2282, %v2280
  %v2309 = vpack.c.b16 %v2285, %v2283
  %v2310 = vpack.c.b16 %v2286, %v2284
  %2335 = vmatpush.bf16.msra.mxu0 %v2301
  %2336 = vmatpush.bf16.msra.mxu0 %v2299
  %2337 = vmatpush.bf16.msra.mxu0 %v2297
  %2338 = vmatpush.bf16.msra.mxu0 %v2295
  %2339 = vmatpush.bf16.msra.mxu0 %v2293
  %2340 = vmatpush.bf16.msra.mxu0 %v2291
  %2341 = vmatpush.bf16.msra.mxu0 %v2289
  %2342 = vmatpush.bf16.msra.mxu0 %v2287
  %2343 = vmatmul.bf16.gmra.mxu0 %v93
  %v2344 = vpop.f32.mrf.mxu0
  %v2345 = vadd.f32 0.0, %v2344
  %v2346 = vpop.f32.mrf.mxu0
  %v2347 = vadd.f32 0.0, %v2346
  %2348 = vmatmul.bf16.gmra.mxu0 %v95
  %v2349 = vpop.f32.mrf.mxu0
  %v2350 = vadd.f32 0.0, %v2349
  %v2351 = vpop.f32.mrf.mxu0
  %v2352 = vadd.f32 0.0, %v2351
  %2353 = vmatmul.bf16.gmra.mxu0 %v97
  %v2354 = vpop.f32.mrf.mxu0
  %v2355 = vadd.f32 0.0, %v2354
  %v2356 = vpop.f32.mrf.mxu0
  %v2357 = vadd.f32 0.0, %v2356
  %2358 = vmatmul.bf16.gmra.mxu0 %v99
  %v2359 = vpop.f32.mrf.mxu0
  %v2360 = vadd.f32 0.0, %v2359
  %v2361 = vpop.f32.mrf.mxu0
  %v2362 = vadd.f32 0.0, %v2361
  %2363 = vmatmul.bf16.gmra.mxu0 %v101
  %v2364 = vpop.f32.mrf.mxu0
  %v2365 = vadd.f32 0.0, %v2364
  %v2366 = vpop.f32.mrf.mxu0
  %2367 = vdwg.mxu0
  %2368 = vmatpush.bf16.msra.mxu0 0
  %2369 = vmatpush.bf16.msra.mxu0 0
  %2370 = vmatpush.bf16.msra.mxu0 0
  %2371 = vmatpush.bf16.msra.mxu0 0
  %2372 = vmatpush.bf16.msra.mxu0 %v2309
  %2373 = vmatpush.bf16.msra.mxu0 %v2307
  %2374 = vmatpush.bf16.msra.mxu0 %v2305
  %2375 = vmatpush.bf16.msra.mxu0 %v2303
  %2376 = vmatmul.bf16.gmra.mxu0 %v230
  %v2377 = vpop.f32.mrf.mxu0
  %v2378 = vadd.f32 %v2345, %v2377
  %v2379 = vpop.f32.mrf.mxu0
  %v2380 = vadd.f32 %v2347, %v2379
  %2381 = vmatmul.bf16.gmra.mxu0 %v233
  %v2382 = vpop.f32.mrf.mxu0
  %v2383 = vadd.f32 %v2350, %v2382
  %v2384 = vpop.f32.mrf.mxu0
  %v2385 = vadd.f32 %v2352, %v2384
  %2386 = vmatmul.bf16.gmra.mxu0 %v236
  %v2387 = vpop.f32.mrf.mxu0
  %v2388 = vadd.f32 %v2355, %v2387
  %v2389 = vpop.f32.mrf.mxu0
  %v2390 = vadd.f32 %v2357, %v2389
  %2391 = vmatmul.bf16.gmra.mxu0 %v239
  %v2392 = vpop.f32.mrf.mxu0
  %v2393 = vadd.f32 %v2360, %v2392
  %v2394 = vpop.f32.mrf.mxu0
  %v2395 = vadd.f32 %v2362, %v2394
  %2396 = vmatmul.bf16.gmra.mxu0 %v242
  %v2397 = vpop.f32.mrf.mxu0
  %v2398 = vadd.f32 %v2365, %v2397
  %v2399 = vpop.f32.mrf.mxu0
  %2400 = vdwg.mxu0
  %2401 = vmatpush.bf16.msra.mxu0 %v2302
  %2402 = vmatpush.bf16.msra.mxu0 %v2300
  %2403 = vmatpush.bf16.msra.mxu0 %v2298
  %2404 = vmatpush.bf16.msra.mxu0 %v2296
  %2405 = vmatpush.bf16.msra.mxu0 %v2294
  %2406 = vmatpush.bf16.msra.mxu0 %v2292
  %2407 = vmatpush.bf16.msra.mxu0 %v2290
  %2408 = vmatpush.bf16.msra.mxu0 %v2288
  %2409 = vmatmul.bf16.gmra.mxu0 %v93
  %v2410 = vpop.f32.mrf.mxu0
  %v2411 = vadd.f32 0.0, %v2410
  %v2412 = vpop.f32.mrf.mxu0
  %v2413 = vadd.f32 0.0, %v2412
  %2414 = vmatmul.bf16.gmra.mxu0 %v95
  %v2415 = vpop.f32.mrf.mxu0
  %v2416 = vadd.f32 0.0, %v2415
  %v2417 = vpop.f32.mrf.mxu0
  %v2418 = vadd.f32 0.0, %v2417
  %2419 = vmatmul.bf16.gmra.mxu0 %v97
  %v2420 = vpop.f32.mrf.mxu0
  %v2421 = vadd.f32 0.0, %v2420
  %v2422 = vpop.f32.mrf.mxu0
  %v2423 = vadd.f32 0.0, %v2422
  %2424 = vmatmul.bf16.gmra.mxu0 %v99
  %v2425 = vpop.f32.mrf.mxu0
  %v2426 = vadd.f32 0.0, %v2425
  %v2427 = vpop.f32.mrf.mxu0
  %v2428 = vadd.f32 0.0, %v2427
  %2429 = vmatmul.bf16.gmra.mxu0 %v101
  %v2430 = vpop.f32.mrf.mxu0
  %v2431 = vadd.f32 0.0, %v2430
  %v2432 = vpop.f32.mrf.mxu0
  %2433 = vdwg.mxu0
  %2434 = vmatpush.bf16.msra.mxu0 0
  %2435 = vmatpush.bf16.msra.mxu0 0
  %2436 = vmatpush.bf16.msra.mxu0 0
  %2437 = vmatpush.bf16.msra.mxu0 0
  %2438 = vmatpush.bf16.msra.mxu0 %v2310
  %2439 = vmatpush.bf16.msra.mxu0 %v2308
  %2440 = vmatpush.bf16.msra.mxu0 %v2306
  %2441 = vmatpush.bf16.msra.mxu0 %v2304
  %2442 = vmatmul.bf16.gmra.mxu0 %v230
  %v2443 = vpop.f32.mrf.mxu0
  %v2444 = vadd.f32 %v2411, %v2443
  %v2445 = vpop.f32.mrf.mxu0
  %v2446 = vadd.f32 %v2413, %v2445
  %2447 = vmatmul.bf16.gmra.mxu0 %v233
  %v2448 = vpop.f32.mrf.mxu0
  %v2449 = vadd.f32 %v2416, %v2448
  %v2450 = vpop.f32.mrf.mxu0
  %v2451 = vadd.f32 %v2418, %v2450
  %2452 = vmatmul.bf16.gmra.mxu0 %v236
  %v2453 = vpop.f32.mrf.mxu0
  %v2454 = vadd.f32 %v2421, %v2453
  %v2455 = vpop.f32.mrf.mxu0
  %v2456 = vadd.f32 %v2423, %v2455
  %2457 = vmatmul.bf16.gmra.mxu0 %v239
  %v2458 = vpop.f32.mrf.mxu0
  %v2459 = vadd.f32 %v2426, %v2458
  %v2460 = vpop.f32.mrf.mxu0
  %v2461 = vadd.f32 %v2428, %v2460
  %2462 = vmatmul.bf16.gmra.mxu0 %v242
  %v2463 = vpop.f32.mrf.mxu0
  %v2464 = vadd.f32 %v2431, %v2463
  %v2465 = vpop.f32.mrf.mxu0
  %2466 = vdwg.mxu0
  %vm2477 = vcmask 1044480
  %v2478 = vrot.slane %v2378, 3
  %v2479 = vrot.slane %v2380, 3
  %v2480 = vsel %vm2477, %v2478, %v2479
  %v2481 = vrot.slane %v2444, 3
  %v2482 = vrot.slane %v2446, 3
  %v2483 = vsel %vm2477, %v2481, %v2482
  %v2484 = vrot.slane %v2383, 3
  %v2485 = vsel %vm2477, %v2479, %v2484
  %v2486 = vrot.slane %v2449, 3
  %v2487 = vsel %vm2477, %v2482, %v2486
  %v2488 = vrot.slane %v2385, 3
  %v2489 = vsel %vm2477, %v2484, %v2488
  %v2490 = vrot.slane %v2451, 3
  %v2491 = vsel %vm2477, %v2486, %v2490
  %v2492 = vrot.slane %v2388, 3
  %v2493 = vsel %vm2477, %v2488, %v2492
  %v2494 = vrot.slane %v2454, 3
  %v2495 = vsel %vm2477, %v2490, %v2494
  %v2504 = vadd.f32 %v2138, %v2480
  %v2505 = vadd.f32 %v2139, %v2483
  %v2506 = vadd.f32 %v2140, %v2485
  %v2507 = vadd.f32 %v2141, %v2487
  %v2508 = vadd.f32 %v2142, %v2489
  %v2509 = vadd.f32 %v2143, %v2491
  %v2510 = vadd.f32 %v2144, %v2493
  %v2511 = vadd.f32 %v2145, %v2495
  %v2520 = vrot.slane %v2390, 3
  %v2521 = vsel %vm2477, %v2492, %v2520
  %v2522 = vrot.slane %v2456, 3
  %v2523 = vsel %vm2477, %v2494, %v2522
  %v2524 = vrot.slane %v2393, 3
  %v2525 = vsel %vm2477, %v2520, %v2524
  %v2526 = vrot.slane %v2459, 3
  %v2527 = vsel %vm2477, %v2522, %v2526
  %v2528 = vrot.slane %v2395, 3
  %v2529 = vsel %vm2477, %v2524, %v2528
  %v2530 = vrot.slane %v2461, 3
  %v2531 = vsel %vm2477, %v2526, %v2530
  %v2532 = vrot.slane %v2398, 3
  %v2533 = vsel %vm2477, %v2528, %v2532
  %v2534 = vrot.slane %v2464, 3
  %v2535 = vsel %vm2477, %v2530, %v2534
  %v2546 = vadd.f32 %v2180, %v2521
  %v2547 = vadd.f32 %v2181, %v2523
  %v2548 = vadd.f32 %v2182, %v2525
  %v2549 = vadd.f32 %v2183, %v2527
  %v2550 = vadd.f32 %v2184, %v2529
  %v2551 = vadd.f32 %v2185, %v2531
  %v2552 = vadd.f32 %v2186, %v2533
  %v2553 = vadd.f32 %v2187, %v2535
  %v2554 = vadd.f32 %v2188, %v2532
  %v2555 = vadd.f32 %v2189, %v2534
  %v2556 = vld [vmem:[%s3] sm:$0x3]
  %v2558 = vperm.slane %v2556, 0
  %v2559 = vperm.slane %v2556, 1
  %v2562 = vadd.f32 %v2504, %v2558
  %v2563 = vadd.f32 %v2505, %v2559
  %v2564 = vadd.f32 %v2506, %v2558
  %v2565 = vadd.f32 %v2507, %v2559
  %v2566 = vadd.f32 %v2508, %v2558
  %v2567 = vadd.f32 %v2509, %v2559
  %v2568 = vadd.f32 %v2510, %v2558
  %v2569 = vadd.f32 %v2511, %v2559
  %v2570 = vmax.f32 %v2562, 0.0
  %v2571 = vmax.f32 %v2563, 0.0
  %v2572 = vmax.f32 %v2564, 0.0
  %v2573 = vmax.f32 %v2565, 0.0
  %v2574 = vmax.f32 %v2566, 0.0
  %v2575 = vmax.f32 %v2567, 0.0
  %v2576 = vmax.f32 %v2568, 0.0
  %v2577 = vmax.f32 %v2569, 0.0
  %v2578 = vld [vmem:[%s4] sm:$0xff]
  %v2579 = vld [vmem:[%s4 + $0x8] sm:$0xff]
  %vm2580 = vcmask 261120
  %v2582 = vsel %vm2580, %v2578, 0
  %v2585 = vsel %vm2580, %v2579, 0
  %2587 = vmatpush.msra.mxu0 0.0
  %2588 = vmatpush.msra.mxu0 0.0
  %2589 = vmatpush.msra.mxu0 0.0
  %2590 = vmatpush.msra.mxu0 0.0
  %2591 = vmatpush.msra.mxu0 0.0
  %2592 = vmatpush.msra.mxu0 0.0
  %2593 = vmatpush.msra.mxu0 0.0
  %2594 = vmatpush.msra.mxu0 0.0
  %2595 = vmatpush.msra.mxu0 0.0
  %2596 = vmatpush.msra.mxu0 0.0
  %2597 = vmatpush.msra.mxu0 0.0
  %2598 = vmatpush.msra.mxu0 0.0
  %2599 = vmatpush.msra.mxu0 %v2576
  %2600 = vmatpush.msra.mxu0 %v2574
  %2601 = vmatpush.msra.mxu0 %v2572
  %2602 = vmatpush.msra.mxu0 %v2570
  %2603 = vmatmul.f32.gmra.mxu0 %v2582
  %v2604 = vpop.f32.mrf.mxu0
  %v2605 = vadd.f32 0.0, %v2604
  %2606 = vmatmul.f32.gmra.mxu0 %v2585
  %v2607 = vpop.f32.mrf.mxu0
  %v2608 = vadd.f32 0.0, %v2607
  %2609 = vdwg.mxu0
  %2610 = vmatpush.msra.mxu0 0.0
  %2611 = vmatpush.msra.mxu0 0.0
  %2612 = vmatpush.msra.mxu0 0.0
  %2613 = vmatpush.msra.mxu0 0.0
  %2614 = vmatpush.msra.mxu0 0.0
  %2615 = vmatpush.msra.mxu0 0.0
  %2616 = vmatpush.msra.mxu0 0.0
  %2617 = vmatpush.msra.mxu0 0.0
  %2618 = vmatpush.msra.mxu0 0.0
  %2619 = vmatpush.msra.mxu0 0.0
  %2620 = vmatpush.msra.mxu0 0.0
  %2621 = vmatpush.msra.mxu0 0.0
  %2622 = vmatpush.msra.mxu0 %v2577
  %2623 = vmatpush.msra.mxu0 %v2575
  %2624 = vmatpush.msra.mxu0 %v2573
  %2625 = vmatpush.msra.mxu0 %v2571
  %2626 = vmatmul.f32.gmra.mxu0 %v2582
  %v2627 = vpop.f32.mrf.mxu0
  %v2628 = vadd.f32 0.0, %v2627
  %2629 = vmatmul.f32.gmra.mxu0 %v2585
  %v2630 = vpop.f32.mrf.mxu0
  %v2631 = vadd.f32 0.0, %v2630
  %2632 = vdwg.mxu0
  %s2633 = scalar_lea.vmem %s4, 16
  %v2634 = vld [vmem:[%s2633] sm:$0xff]
  %v2635 = vld [vmem:[%s2633 + $0x8] sm:$0xff]
  %v2637 = vsel %vm2580, %v2634, 0
  %v2640 = vsel %vm2580, %v2635, 0
  %2642 = vmatpush.msra.mxu0 0.0
  %2643 = vmatpush.msra.mxu0 0.0
  %2644 = vmatpush.msra.mxu0 0.0
  %2645 = vmatpush.msra.mxu0 0.0
  %2646 = vmatpush.msra.mxu0 0.0
  %2647 = vmatpush.msra.mxu0 0.0
  %2648 = vmatpush.msra.mxu0 0.0
  %2649 = vmatpush.msra.mxu0 0.0
  %2650 = vmatpush.msra.mxu0 0.0
  %2651 = vmatpush.msra.mxu0 0.0
  %2652 = vmatpush.msra.mxu0 0.0
  %2653 = vmatpush.msra.mxu0 0.0
  %2654 = vmatpush.msra.mxu0 %v2576
  %2655 = vmatpush.msra.mxu0 %v2574
  %2656 = vmatpush.msra.mxu0 %v2572
  %2657 = vmatpush.msra.mxu0 %v2570
  %2658 = vmatmul.f32.gmra.mxu0 %v2637
  %v2659 = vpop.f32.mrf.mxu0
  %v2660 = vadd.f32 0.0, %v2659
  %2661 = vmatmul.f32.gmra.mxu0 %v2640
  %v2662 = vpop.f32.mrf.mxu0
  %v2663 = vadd.f32 0.0, %v2662
  %2664 = vdwg.mxu0
  %2665 = vmatpush.msra.mxu0 0.0
  %2666 = vmatpush.msra.mxu0 0.0
  %2667 = vmatpush.msra.mxu0 0.0
  %2668 = vmatpush.msra.mxu0 0.0
  %2669 = vmatpush.msra.mxu0 0.0
  %2670 = vmatpush.msra.mxu0 0.0
  %2671 = vmatpush.msra.mxu0 0.0
  %2672 = vmatpush.msra.mxu0 0.0
  %2673 = vmatpush.msra.mxu0 0.0
  %2674 = vmatpush.msra.mxu0 0.0
  %2675 = vmatpush.msra.mxu0 0.0
  %2676 = vmatpush.msra.mxu0 0.0
  %2677 = vmatpush.msra.mxu0 %v2577
  %2678 = vmatpush.msra.mxu0 %v2575
  %2679 = vmatpush.msra.mxu0 %v2573
  %2680 = vmatpush.msra.mxu0 %v2571
  %2681 = vmatmul.f32.gmra.mxu0 %v2637
  %v2682 = vpop.f32.mrf.mxu0
  %v2683 = vadd.f32 0.0, %v2682
  %2684 = vmatmul.f32.gmra.mxu0 %v2640
  %v2685 = vpop.f32.mrf.mxu0
  %v2686 = vadd.f32 0.0, %v2685
  %2687 = vdwg.mxu0
  %v2688 = vmax.f32 %v2605, %v2660
  %v2689 = vmax.f32 %v2628, %v2683
  %v2690 = vmax.f32 %v2608, %v2663
  %v2691 = vmax.f32 %v2631, %v2686
  %s2692 = scalar_lea.vmem %s4, 32
  %v2693 = vld [vmem:[%s2692] sm:$0xff]
  %v2694 = vld [vmem:[%s2692 + $0x8] sm:$0xff]
  %v2696 = vsel %vm2580, %v2693, 0
  %v2699 = vsel %vm2580, %v2694, 0
  %2701 = vmatpush.msra.mxu0 0.0
  %2702 = vmatpush.msra.mxu0 0.0
  %2703 = vmatpush.msra.mxu0 0.0
  %2704 = vmatpush.msra.mxu0 0.0
  %2705 = vmatpush.msra.mxu0 0.0
  %2706 = vmatpush.msra.mxu0 0.0
  %2707 = vmatpush.msra.mxu0 0.0
  %2708 = vmatpush.msra.mxu0 0.0
  %2709 = vmatpush.msra.mxu0 0.0
  %2710 = vmatpush.msra.mxu0 0.0
  %2711 = vmatpush.msra.mxu0 0.0
  %2712 = vmatpush.msra.mxu0 0.0
  %2713 = vmatpush.msra.mxu0 %v2576
  %2714 = vmatpush.msra.mxu0 %v2574
  %2715 = vmatpush.msra.mxu0 %v2572
  %2716 = vmatpush.msra.mxu0 %v2570
  %2717 = vmatmul.f32.gmra.mxu0 %v2696
  %v2718 = vpop.f32.mrf.mxu0
  %v2719 = vadd.f32 0.0, %v2718
  %2720 = vmatmul.f32.gmra.mxu0 %v2699
  %v2721 = vpop.f32.mrf.mxu0
  %v2722 = vadd.f32 0.0, %v2721
  %2723 = vdwg.mxu0
  %2724 = vmatpush.msra.mxu0 0.0
  %2725 = vmatpush.msra.mxu0 0.0
  %2726 = vmatpush.msra.mxu0 0.0
  %2727 = vmatpush.msra.mxu0 0.0
  %2728 = vmatpush.msra.mxu0 0.0
  %2729 = vmatpush.msra.mxu0 0.0
  %2730 = vmatpush.msra.mxu0 0.0
  %2731 = vmatpush.msra.mxu0 0.0
  %2732 = vmatpush.msra.mxu0 0.0
  %2733 = vmatpush.msra.mxu0 0.0
  %2734 = vmatpush.msra.mxu0 0.0
  %2735 = vmatpush.msra.mxu0 0.0
  %2736 = vmatpush.msra.mxu0 %v2577
  %2737 = vmatpush.msra.mxu0 %v2575
  %2738 = vmatpush.msra.mxu0 %v2573
  %2739 = vmatpush.msra.mxu0 %v2571
  %2740 = vmatmul.f32.gmra.mxu0 %v2696
  %v2741 = vpop.f32.mrf.mxu0
  %v2742 = vadd.f32 0.0, %v2741
  %2743 = vmatmul.f32.gmra.mxu0 %v2699
  %v2744 = vpop.f32.mrf.mxu0
  %v2745 = vadd.f32 0.0, %v2744
  %2746 = vdwg.mxu0
  %v2747 = vmax.f32 %v2688, %v2719
  %v2748 = vmax.f32 %v2689, %v2742
  %v2749 = vmax.f32 %v2690, %v2722
  %v2750 = vmax.f32 %v2691, %v2745
  %v2751 = vld [vmem:[%s5] sm:$0xff]
  %v2752 = vld [vmem:[%s5 + $0x8] sm:$0xff]
  %v2753 = vld [vmem:[%s5 + $0x10] sm:$0xff]
  %v2754 = vld [vmem:[%s5 + $0x18] sm:$0xff]
  %v2755 = vld [vmem:[%s5 + $0x20] sm:$0xff]
  %v2756 = vld [vmem:[%s5 + $0x28] sm:$0xff]
  %v2757 = vld [vmem:[%s5 + $0x30] sm:$0xff]
  %v2758 = vld [vmem:[%s5 + $0x38] sm:$0xff]
  %v2759 = vld [vmem:[%s5 + $0x40] sm:$0xff]
  %v2760 = vld [vmem:[%s5 + $0x48] sm:$0xff]
  %v2761 = vld [vmem:[%s5 + $0x50] sm:$0xff]
  %v2762 = vld [vmem:[%s5 + $0x58] sm:$0xff]
  %v2763 = vld [vmem:[%s5 + $0x60] sm:$0xff]
  %v2764 = vld [vmem:[%s5 + $0x68] sm:$0xff]
  %v2765 = vld [vmem:[%s5 + $0x70] sm:$0xff]
  %v2766 = vld [vmem:[%s5 + $0x78] sm:$0xff]
  %v2767 = vld [vmem:[%s5 + $0x80] sm:$0xff]
  %v2768 = vld [vmem:[%s5 + $0x88] sm:$0xff]
  %v2769 = vld [vmem:[%s5 + $0x90] sm:$0xff]
  %v2770 = vld [vmem:[%s5 + $0x98] sm:$0xff]
  %v2771 = vld [vmem:[%s5 + $0xa0] sm:$0xff]
  %v2772 = vld [vmem:[%s5 + $0xa8] sm:$0xff]
  %v2773 = vld [vmem:[%s5 + $0xb0] sm:$0xff]
  %v2774 = vld [vmem:[%s5 + $0xb8] sm:$0xff]
  %v2775 = vld [vmem:[%s5 + $0xc0] sm:$0xff]
  %v2776 = vld [vmem:[%s5 + $0xc8] sm:$0xff]
  %v2777 = vld [vmem:[%s5 + $0xd0] sm:$0xff]
  %v2778 = vld [vmem:[%s5 + $0xd8] sm:$0xff]
  %v2779 = vld [vmem:[%s5 + $0xe0] sm:$0xff]
  %v2780 = vld [vmem:[%s5 + $0xe8] sm:$0xff]
  %v2781 = vld [vmem:[%s5 + $0xf0] sm:$0xff]
  %v2782 = vld [vmem:[%s5 + $0xf8] sm:$0xff]
  %2783 = vmatpush.msra.mxu0 %v2766
  %2784 = vmatpush.msra.mxu0 %v2765
  %2785 = vmatpush.msra.mxu0 %v2764
  %2786 = vmatpush.msra.mxu0 %v2763
  %2787 = vmatpush.msra.mxu0 %v2762
  %2788 = vmatpush.msra.mxu0 %v2761
  %2789 = vmatpush.msra.mxu0 %v2760
  %2790 = vmatpush.msra.mxu0 %v2759
  %2791 = vmatpush.msra.mxu0 %v2758
  %2792 = vmatpush.msra.mxu0 %v2757
  %2793 = vmatpush.msra.mxu0 %v2756
  %2794 = vmatpush.msra.mxu0 %v2755
  %2795 = vmatpush.msra.mxu0 %v2754
  %2796 = vmatpush.msra.mxu0 %v2753
  %2797 = vmatpush.msra.mxu0 %v2752
  %2798 = vmatpush.msra.mxu0 %v2751
  %2799 = vmatmul.f32.gmra.mxu0 %v2747
  %v2800 = vpop.f32.mrf.mxu0
  %v2801 = vadd.f32 0.0, %v2800
  %2802 = vmatmul.f32.gmra.mxu0 %v2749
  %v2803 = vpop.f32.mrf.mxu0
  %v2804 = vadd.f32 0.0, %v2803
  %2805 = vdwg.mxu0
  %2806 = vmatpush.msra.mxu0 %v2782
  %2807 = vmatpush.msra.mxu0 %v2781
  %2808 = vmatpush.msra.mxu0 %v2780
  %2809 = vmatpush.msra.mxu0 %v2779
  %2810 = vmatpush.msra.mxu0 %v2778
  %2811 = vmatpush.msra.mxu0 %v2777
  %2812 = vmatpush.msra.mxu0 %v2776
  %2813 = vmatpush.msra.mxu0 %v2775
  %2814 = vmatpush.msra.mxu0 %v2774
  %2815 = vmatpush.msra.mxu0 %v2773
  %2816 = vmatpush.msra.mxu0 %v2772
  %2817 = vmatpush.msra.mxu0 %v2771
  %2818 = vmatpush.msra.mxu0 %v2770
  %2819 = vmatpush.msra.mxu0 %v2769
  %2820 = vmatpush.msra.mxu0 %v2768
  %2821 = vmatpush.msra.mxu0 %v2767
  %2822 = vmatmul.f32.gmra.mxu0 %v2748
  %v2823 = vpop.f32.mrf.mxu0
  %v2824 = vadd.f32 %v2801, %v2823
  %2825 = vmatmul.f32.gmra.mxu0 %v2750
  %v2826 = vpop.f32.mrf.mxu0
  %v2827 = vadd.f32 %v2804, %v2826
  %2828 = vdwg.mxu0
  %s2829 = scalar_lea.vmem %s5, 256
  %v2830 = vld [vmem:[%s2829] sm:$0xff]
  %v2831 = vld [vmem:[%s2829 + $0x8] sm:$0xff]
  %v2832 = vld [vmem:[%s2829 + $0x10] sm:$0xff]
  %v2833 = vld [vmem:[%s2829 + $0x18] sm:$0xff]
  %v2834 = vld [vmem:[%s2829 + $0x20] sm:$0xff]
  %v2835 = vld [vmem:[%s2829 + $0x28] sm:$0xff]
  %v2836 = vld [vmem:[%s2829 + $0x30] sm:$0xff]
  %v2837 = vld [vmem:[%s2829 + $0x38] sm:$0xff]
  %v2838 = vld [vmem:[%s2829 + $0x40] sm:$0xff]
  %v2839 = vld [vmem:[%s2829 + $0x48] sm:$0xff]
  %v2840 = vld [vmem:[%s2829 + $0x50] sm:$0xff]
  %v2841 = vld [vmem:[%s2829 + $0x58] sm:$0xff]
  %v2842 = vld [vmem:[%s2829 + $0x60] sm:$0xff]
  %v2843 = vld [vmem:[%s2829 + $0x68] sm:$0xff]
  %v2844 = vld [vmem:[%s2829 + $0x70] sm:$0xff]
  %v2845 = vld [vmem:[%s2829 + $0x78] sm:$0xff]
  %v2846 = vld [vmem:[%s2829 + $0x80] sm:$0xff]
  %v2847 = vld [vmem:[%s2829 + $0x88] sm:$0xff]
  %v2848 = vld [vmem:[%s2829 + $0x90] sm:$0xff]
  %v2849 = vld [vmem:[%s2829 + $0x98] sm:$0xff]
  %v2850 = vld [vmem:[%s2829 + $0xa0] sm:$0xff]
  %v2851 = vld [vmem:[%s2829 + $0xa8] sm:$0xff]
  %v2852 = vld [vmem:[%s2829 + $0xb0] sm:$0xff]
  %v2853 = vld [vmem:[%s2829 + $0xb8] sm:$0xff]
  %v2854 = vld [vmem:[%s2829 + $0xc0] sm:$0xff]
  %v2855 = vld [vmem:[%s2829 + $0xc8] sm:$0xff]
  %v2856 = vld [vmem:[%s2829 + $0xd0] sm:$0xff]
  %v2857 = vld [vmem:[%s2829 + $0xd8] sm:$0xff]
  %v2858 = vld [vmem:[%s2829 + $0xe0] sm:$0xff]
  %v2859 = vld [vmem:[%s2829 + $0xe8] sm:$0xff]
  %v2860 = vld [vmem:[%s2829 + $0xf0] sm:$0xff]
  %v2861 = vld [vmem:[%s2829 + $0xf8] sm:$0xff]
  %2862 = vmatpush.msra.mxu0 %v2845
  %2863 = vmatpush.msra.mxu0 %v2844
  %2864 = vmatpush.msra.mxu0 %v2843
  %2865 = vmatpush.msra.mxu0 %v2842
  %2866 = vmatpush.msra.mxu0 %v2841
  %2867 = vmatpush.msra.mxu0 %v2840
  %2868 = vmatpush.msra.mxu0 %v2839
  %2869 = vmatpush.msra.mxu0 %v2838
  %2870 = vmatpush.msra.mxu0 %v2837
  %2871 = vmatpush.msra.mxu0 %v2836
  %2872 = vmatpush.msra.mxu0 %v2835
  %2873 = vmatpush.msra.mxu0 %v2834
  %2874 = vmatpush.msra.mxu0 %v2833
  %2875 = vmatpush.msra.mxu0 %v2832
  %2876 = vmatpush.msra.mxu0 %v2831
  %2877 = vmatpush.msra.mxu0 %v2830
  %2878 = vmatmul.f32.gmra.mxu0 %v2747
  %v2879 = vpop.f32.mrf.mxu0
  %v2880 = vadd.f32 0.0, %v2879
  %2881 = vmatmul.f32.gmra.mxu0 %v2749
  %v2882 = vpop.f32.mrf.mxu0
  %v2883 = vadd.f32 0.0, %v2882
  %2884 = vdwg.mxu0
  %2885 = vmatpush.msra.mxu0 %v2861
  %2886 = vmatpush.msra.mxu0 %v2860
  %2887 = vmatpush.msra.mxu0 %v2859
  %2888 = vmatpush.msra.mxu0 %v2858
  %2889 = vmatpush.msra.mxu0 %v2857
  %2890 = vmatpush.msra.mxu0 %v2856
  %2891 = vmatpush.msra.mxu0 %v2855
  %2892 = vmatpush.msra.mxu0 %v2854
  %2893 = vmatpush.msra.mxu0 %v2853
  %2894 = vmatpush.msra.mxu0 %v2852
  %2895 = vmatpush.msra.mxu0 %v2851
  %2896 = vmatpush.msra.mxu0 %v2850
  %2897 = vmatpush.msra.mxu0 %v2849
  %2898 = vmatpush.msra.mxu0 %v2848
  %2899 = vmatpush.msra.mxu0 %v2847
  %2900 = vmatpush.msra.mxu0 %v2846
  %2901 = vmatmul.f32.gmra.mxu0 %v2748
  %v2902 = vpop.f32.mrf.mxu0
  %v2903 = vadd.f32 %v2880, %v2902
  %2904 = vmatmul.f32.gmra.mxu0 %v2750
  %v2905 = vpop.f32.mrf.mxu0
  %v2906 = vadd.f32 %v2883, %v2905
  %2907 = vdwg.mxu0
  %v2908 = vmax.f32 %v2824, %v2903
  %v2909 = vmax.f32 %v2827, %v2906
  %s2910 = scalar_lea.vmem %s5, 512
  %v2911 = vld [vmem:[%s2910] sm:$0xff]
  %v2912 = vld [vmem:[%s2910 + $0x8] sm:$0xff]
  %v2913 = vld [vmem:[%s2910 + $0x10] sm:$0xff]
  %v2914 = vld [vmem:[%s2910 + $0x18] sm:$0xff]
  %v2915 = vld [vmem:[%s2910 + $0x20] sm:$0xff]
  %v2916 = vld [vmem:[%s2910 + $0x28] sm:$0xff]
  %v2917 = vld [vmem:[%s2910 + $0x30] sm:$0xff]
  %v2918 = vld [vmem:[%s2910 + $0x38] sm:$0xff]
  %v2919 = vld [vmem:[%s2910 + $0x40] sm:$0xff]
  %v2920 = vld [vmem:[%s2910 + $0x48] sm:$0xff]
  %v2921 = vld [vmem:[%s2910 + $0x50] sm:$0xff]
  %v2922 = vld [vmem:[%s2910 + $0x58] sm:$0xff]
  %v2923 = vld [vmem:[%s2910 + $0x60] sm:$0xff]
  %v2924 = vld [vmem:[%s2910 + $0x68] sm:$0xff]
  %v2925 = vld [vmem:[%s2910 + $0x70] sm:$0xff]
  %v2926 = vld [vmem:[%s2910 + $0x78] sm:$0xff]
  %v2927 = vld [vmem:[%s2910 + $0x80] sm:$0xff]
  %v2928 = vld [vmem:[%s2910 + $0x88] sm:$0xff]
  %v2929 = vld [vmem:[%s2910 + $0x90] sm:$0xff]
  %v2930 = vld [vmem:[%s2910 + $0x98] sm:$0xff]
  %v2931 = vld [vmem:[%s2910 + $0xa0] sm:$0xff]
  %v2932 = vld [vmem:[%s2910 + $0xa8] sm:$0xff]
  %v2933 = vld [vmem:[%s2910 + $0xb0] sm:$0xff]
  %v2934 = vld [vmem:[%s2910 + $0xb8] sm:$0xff]
  %v2935 = vld [vmem:[%s2910 + $0xc0] sm:$0xff]
  %v2936 = vld [vmem:[%s2910 + $0xc8] sm:$0xff]
  %v2937 = vld [vmem:[%s2910 + $0xd0] sm:$0xff]
  %v2938 = vld [vmem:[%s2910 + $0xd8] sm:$0xff]
  %v2939 = vld [vmem:[%s2910 + $0xe0] sm:$0xff]
  %v2940 = vld [vmem:[%s2910 + $0xe8] sm:$0xff]
  %v2941 = vld [vmem:[%s2910 + $0xf0] sm:$0xff]
  %v2942 = vld [vmem:[%s2910 + $0xf8] sm:$0xff]
  %2943 = vmatpush.msra.mxu0 %v2926
  %2944 = vmatpush.msra.mxu0 %v2925
  %2945 = vmatpush.msra.mxu0 %v2924
  %2946 = vmatpush.msra.mxu0 %v2923
  %2947 = vmatpush.msra.mxu0 %v2922
  %2948 = vmatpush.msra.mxu0 %v2921
  %2949 = vmatpush.msra.mxu0 %v2920
  %2950 = vmatpush.msra.mxu0 %v2919
  %2951 = vmatpush.msra.mxu0 %v2918
  %2952 = vmatpush.msra.mxu0 %v2917
  %2953 = vmatpush.msra.mxu0 %v2916
  %2954 = vmatpush.msra.mxu0 %v2915
  %2955 = vmatpush.msra.mxu0 %v2914
  %2956 = vmatpush.msra.mxu0 %v2913
  %2957 = vmatpush.msra.mxu0 %v2912
  %2958 = vmatpush.msra.mxu0 %v2911
  %2959 = vmatmul.f32.gmra.mxu0 %v2747
  %v2960 = vpop.f32.mrf.mxu0
  %v2961 = vadd.f32 0.0, %v2960
  %2962 = vmatmul.f32.gmra.mxu0 %v2749
  %v2963 = vpop.f32.mrf.mxu0
  %v2964 = vadd.f32 0.0, %v2963
  %2965 = vdwg.mxu0
  %2966 = vmatpush.msra.mxu0 %v2942
  %2967 = vmatpush.msra.mxu0 %v2941
  %2968 = vmatpush.msra.mxu0 %v2940
  %2969 = vmatpush.msra.mxu0 %v2939
  %2970 = vmatpush.msra.mxu0 %v2938
  %2971 = vmatpush.msra.mxu0 %v2937
  %2972 = vmatpush.msra.mxu0 %v2936
  %2973 = vmatpush.msra.mxu0 %v2935
  %2974 = vmatpush.msra.mxu0 %v2934
  %2975 = vmatpush.msra.mxu0 %v2933
  %2976 = vmatpush.msra.mxu0 %v2932
  %2977 = vmatpush.msra.mxu0 %v2931
  %2978 = vmatpush.msra.mxu0 %v2930
  %2979 = vmatpush.msra.mxu0 %v2929
  %2980 = vmatpush.msra.mxu0 %v2928
  %2981 = vmatpush.msra.mxu0 %v2927
  %2982 = vmatmul.f32.gmra.mxu0 %v2748
  %v2983 = vpop.f32.mrf.mxu0
  %v2984 = vadd.f32 %v2961, %v2983
  %2985 = vmatmul.f32.gmra.mxu0 %v2750
  %v2986 = vpop.f32.mrf.mxu0
  %v2987 = vadd.f32 %v2964, %v2986
  %2988 = vdwg.mxu0
  %v2989 = vmax.f32 %v2908, %v2984
  %v2990 = vmax.f32 %v2909, %v2987
  %v2991 = vadd.f32 %v2546, %v2558
  %v2992 = vadd.f32 %v2547, %v2559
  %v2993 = vadd.f32 %v2548, %v2558
  %v2994 = vadd.f32 %v2549, %v2559
  %v2995 = vadd.f32 %v2550, %v2558
  %v2996 = vadd.f32 %v2551, %v2559
  %v2997 = vadd.f32 %v2552, %v2558
  %v2998 = vadd.f32 %v2553, %v2559
  %v2999 = vadd.f32 %v2554, %v2558
  %v3000 = vadd.f32 %v2555, %v2559
  %v3001 = vmax.f32 %v2991, 0.0
  %v3002 = vmax.f32 %v2992, 0.0
  %v3003 = vmax.f32 %v2993, 0.0
  %v3004 = vmax.f32 %v2994, 0.0
  %v3005 = vmax.f32 %v2995, 0.0
  %v3006 = vmax.f32 %v2996, 0.0
  %v3007 = vmax.f32 %v2997, 0.0
  %v3008 = vmax.f32 %v2998, 0.0
  %v3009 = vmax.f32 %v2999, 0.0
  %v3010 = vmax.f32 %v3000, 0.0
  %v3021 = vrot.slane %v3001, 3
  %v3022 = vrot.slane %v3003, 3
  %v3023 = vsel %vm2477, %v3021, %v3022
  %v3024 = vrot.slane %v3002, 3
  %v3025 = vrot.slane %v3004, 3
  %v3026 = vsel %vm2477, %v3024, %v3025
  %v3027 = vrot.slane %v3005, 3
  %v3028 = vsel %vm2477, %v3022, %v3027
  %v3029 = vrot.slane %v3006, 3
  %v3030 = vsel %vm2477, %v3025, %v3029
  %v3031 = vrot.slane %v3007, 3
  %v3032 = vsel %vm2477, %v3027, %v3031
  %v3033 = vrot.slane %v3008, 3
  %v3034 = vsel %vm2477, %v3029, %v3033
  %v3035 = vrot.slane %v3009, 3
  %v3036 = vsel %vm2477, %v3031, %v3035
  %v3037 = vrot.slane %v3010, 3
  %v3038 = vsel %vm2477, %v3033, %v3037
  %3047 = vmatpush.msra.mxu0 0.0
  %3048 = vmatpush.msra.mxu0 0.0
  %3049 = vmatpush.msra.mxu0 0.0
  %3050 = vmatpush.msra.mxu0 0.0
  %3051 = vmatpush.msra.mxu0 0.0
  %3052 = vmatpush.msra.mxu0 0.0
  %3053 = vmatpush.msra.mxu0 0.0
  %3054 = vmatpush.msra.mxu0 0.0
  %3055 = vmatpush.msra.mxu0 0.0
  %3056 = vmatpush.msra.mxu0 0.0
  %3057 = vmatpush.msra.mxu0 0.0
  %3058 = vmatpush.msra.mxu0 0.0
  %3059 = vmatpush.msra.mxu0 %v3036
  %3060 = vmatpush.msra.mxu0 %v3032
  %3061 = vmatpush.msra.mxu0 %v3028
  %3062 = vmatpush.msra.mxu0 %v3023
  %3063 = vmatmul.f32.gmra.mxu0 %v2582
  %v3064 = vpop.f32.mrf.mxu0
  %v3065 = vadd.f32 0.0, %v3064
  %3066 = vmatmul.f32.gmra.mxu0 %v2585
  %v3067 = vpop.f32.mrf.mxu0
  %v3068 = vadd.f32 0.0, %v3067
  %3069 = vdwg.mxu0
  %3070 = vmatpush.msra.mxu0 0.0
  %3071 = vmatpush.msra.mxu0 0.0
  %3072 = vmatpush.msra.mxu0 0.0
  %3073 = vmatpush.msra.mxu0 0.0
  %3074 = vmatpush.msra.mxu0 0.0
  %3075 = vmatpush.msra.mxu0 0.0
  %3076 = vmatpush.msra.mxu0 0.0
  %3077 = vmatpush.msra.mxu0 0.0
  %3078 = vmatpush.msra.mxu0 0.0
  %3079 = vmatpush.msra.mxu0 0.0
  %3080 = vmatpush.msra.mxu0 0.0
  %3081 = vmatpush.msra.mxu0 0.0
  %3082 = vmatpush.msra.mxu0 %v3038
  %3083 = vmatpush.msra.mxu0 %v3034
  %3084 = vmatpush.msra.mxu0 %v3030
  %3085 = vmatpush.msra.mxu0 %v3026
  %3086 = vmatmul.f32.gmra.mxu0 %v2582
  %v3087 = vpop.f32.mrf.mxu0
  %v3088 = vadd.f32 0.0, %v3087
  %3089 = vmatmul.f32.gmra.mxu0 %v2585
  %v3090 = vpop.f32.mrf.mxu0
  %v3091 = vadd.f32 0.0, %v3090
  %3092 = vdwg.mxu0
  %3093 = vmatpush.msra.mxu0 0.0
  %3094 = vmatpush.msra.mxu0 0.0
  %3095 = vmatpush.msra.mxu0 0.0
  %3096 = vmatpush.msra.mxu0 0.0
  %3097 = vmatpush.msra.mxu0 0.0
  %3098 = vmatpush.msra.mxu0 0.0
  %3099 = vmatpush.msra.mxu0 0.0
  %3100 = vmatpush.msra.mxu0 0.0
  %3101 = vmatpush.msra.mxu0 0.0
  %3102 = vmatpush.msra.mxu0 0.0
  %3103 = vmatpush.msra.mxu0 0.0
  %3104 = vmatpush.msra.mxu0 0.0
  %3105 = vmatpush.msra.mxu0 %v3036
  %3106 = vmatpush.msra.mxu0 %v3032
  %3107 = vmatpush.msra.mxu0 %v3028
  %3108 = vmatpush.msra.mxu0 %v3023
  %3109 = vmatmul.f32.gmra.mxu0 %v2637
  %v3110 = vpop.f32.mrf.mxu0
  %v3111 = vadd.f32 0.0, %v3110
  %3112 = vmatmul.f32.gmra.mxu0 %v2640
  %v3113 = vpop.f32.mrf.mxu0
  %v3114 = vadd.f32 0.0, %v3113
  %3115 = vdwg.mxu0
  %3116 = vmatpush.msra.mxu0 0.0
  %3117 = vmatpush.msra.mxu0 0.0
  %3118 = vmatpush.msra.mxu0 0.0
  %3119 = vmatpush.msra.mxu0 0.0
  %3120 = vmatpush.msra.mxu0 0.0
  %3121 = vmatpush.msra.mxu0 0.0
  %3122 = vmatpush.msra.mxu0 0.0
  %3123 = vmatpush.msra.mxu0 0.0
  %3124 = vmatpush.msra.mxu0 0.0
  %3125 = vmatpush.msra.mxu0 0.0
  %3126 = vmatpush.msra.mxu0 0.0
  %3127 = vmatpush.msra.mxu0 0.0
  %3128 = vmatpush.msra.mxu0 %v3038
  %3129 = vmatpush.msra.mxu0 %v3034
  %3130 = vmatpush.msra.mxu0 %v3030
  %3131 = vmatpush.msra.mxu0 %v3026
  %3132 = vmatmul.f32.gmra.mxu0 %v2637
  %v3133 = vpop.f32.mrf.mxu0
  %v3134 = vadd.f32 0.0, %v3133
  %3135 = vmatmul.f32.gmra.mxu0 %v2640
  %v3136 = vpop.f32.mrf.mxu0
  %v3137 = vadd.f32 0.0, %v3136
  %3138 = vdwg.mxu0
  %v3139 = vmax.f32 %v3065, %v3111
  %v3140 = vmax.f32 %v3088, %v3134
  %v3141 = vmax.f32 %v3068, %v3114
  %v3142 = vmax.f32 %v3091, %v3137
  %3143 = vmatpush.msra.mxu0 0.0
  %3144 = vmatpush.msra.mxu0 0.0
  %3145 = vmatpush.msra.mxu0 0.0
  %3146 = vmatpush.msra.mxu0 0.0
  %3147 = vmatpush.msra.mxu0 0.0
  %3148 = vmatpush.msra.mxu0 0.0
  %3149 = vmatpush.msra.mxu0 0.0
  %3150 = vmatpush.msra.mxu0 0.0
  %3151 = vmatpush.msra.mxu0 0.0
  %3152 = vmatpush.msra.mxu0 0.0
  %3153 = vmatpush.msra.mxu0 0.0
  %3154 = vmatpush.msra.mxu0 0.0
  %3155 = vmatpush.msra.mxu0 %v3036
  %3156 = vmatpush.msra.mxu0 %v3032
  %3157 = vmatpush.msra.mxu0 %v3028
  %3158 = vmatpush.msra.mxu0 %v3023
  %3159 = vmatmul.f32.gmra.mxu0 %v2696
  %v3160 = vpop.f32.mrf.mxu0
  %v3161 = vadd.f32 0.0, %v3160
  %3162 = vmatmul.f32.gmra.mxu0 %v2699
  %v3163 = vpop.f32.mrf.mxu0
  %v3164 = vadd.f32 0.0, %v3163
  %3165 = vdwg.mxu0
  %3166 = vmatpush.msra.mxu0 0.0
  %3167 = vmatpush.msra.mxu0 0.0
  %3168 = vmatpush.msra.mxu0 0.0
  %3169 = vmatpush.msra.mxu0 0.0
  %3170 = vmatpush.msra.mxu0 0.0
  %3171 = vmatpush.msra.mxu0 0.0
  %3172 = vmatpush.msra.mxu0 0.0
  %3173 = vmatpush.msra.mxu0 0.0
  %3174 = vmatpush.msra.mxu0 0.0
  %3175 = vmatpush.msra.mxu0 0.0
  %3176 = vmatpush.msra.mxu0 0.0
  %3177 = vmatpush.msra.mxu0 0.0
  %3178 = vmatpush.msra.mxu0 %v3038
  %3179 = vmatpush.msra.mxu0 %v3034
  %3180 = vmatpush.msra.mxu0 %v3030
  %3181 = vmatpush.msra.mxu0 %v3026
  %3182 = vmatmul.f32.gmra.mxu0 %v2696
  %v3183 = vpop.f32.mrf.mxu0
  %v3184 = vadd.f32 0.0, %v3183
  %3185 = vmatmul.f32.gmra.mxu0 %v2699
  %v3186 = vpop.f32.mrf.mxu0
  %v3187 = vadd.f32 0.0, %v3186
  %3188 = vdwg.mxu0
  %v3189 = vmax.f32 %v3139, %v3161
  %v3190 = vmax.f32 %v3140, %v3184
  %v3191 = vmax.f32 %v3141, %v3164
  %v3192 = vmax.f32 %v3142, %v3187
  %3193 = vmatpush.msra.mxu0 %v2766
  %3194 = vmatpush.msra.mxu0 %v2765
  %3195 = vmatpush.msra.mxu0 %v2764
  %3196 = vmatpush.msra.mxu0 %v2763
  %3197 = vmatpush.msra.mxu0 %v2762
  %3198 = vmatpush.msra.mxu0 %v2761
  %3199 = vmatpush.msra.mxu0 %v2760
  %3200 = vmatpush.msra.mxu0 %v2759
  %3201 = vmatpush.msra.mxu0 %v2758
  %3202 = vmatpush.msra.mxu0 %v2757
  %3203 = vmatpush.msra.mxu0 %v2756
  %3204 = vmatpush.msra.mxu0 %v2755
  %3205 = vmatpush.msra.mxu0 %v2754
  %3206 = vmatpush.msra.mxu0 %v2753
  %3207 = vmatpush.msra.mxu0 %v2752
  %3208 = vmatpush.msra.mxu0 %v2751
  %3209 = vmatmul.f32.gmra.mxu0 %v3189
  %v3210 = vpop.f32.mrf.mxu0
  %v3211 = vadd.f32 0.0, %v3210
  %3212 = vmatmul.f32.gmra.mxu0 %v3191
  %v3213 = vpop.f32.mrf.mxu0
  %v3214 = vadd.f32 0.0, %v3213
  %3215 = vdwg.mxu0
  %3216 = vmatpush.msra.mxu0 %v2782
  %3217 = vmatpush.msra.mxu0 %v2781
  %3218 = vmatpush.msra.mxu0 %v2780
  %3219 = vmatpush.msra.mxu0 %v2779
  %3220 = vmatpush.msra.mxu0 %v2778
  %3221 = vmatpush.msra.mxu0 %v2777
  %3222 = vmatpush.msra.mxu0 %v2776
  %3223 = vmatpush.msra.mxu0 %v2775
  %3224 = vmatpush.msra.mxu0 %v2774
  %3225 = vmatpush.msra.mxu0 %v2773
  %3226 = vmatpush.msra.mxu0 %v2772
  %3227 = vmatpush.msra.mxu0 %v2771
  %3228 = vmatpush.msra.mxu0 %v2770
  %3229 = vmatpush.msra.mxu0 %v2769
  %3230 = vmatpush.msra.mxu0 %v2768
  %3231 = vmatpush.msra.mxu0 %v2767
  %3232 = vmatmul.f32.gmra.mxu0 %v3190
  %v3233 = vpop.f32.mrf.mxu0
  %v3234 = vadd.f32 %v3211, %v3233
  %3235 = vmatmul.f32.gmra.mxu0 %v3192
  %v3236 = vpop.f32.mrf.mxu0
  %v3237 = vadd.f32 %v3214, %v3236
  %3238 = vdwg.mxu0
  %3239 = vmatpush.msra.mxu0 %v2845
  %3240 = vmatpush.msra.mxu0 %v2844
  %3241 = vmatpush.msra.mxu0 %v2843
  %3242 = vmatpush.msra.mxu0 %v2842
  %3243 = vmatpush.msra.mxu0 %v2841
  %3244 = vmatpush.msra.mxu0 %v2840
  %3245 = vmatpush.msra.mxu0 %v2839
  %3246 = vmatpush.msra.mxu0 %v2838
  %3247 = vmatpush.msra.mxu0 %v2837
  %3248 = vmatpush.msra.mxu0 %v2836
  %3249 = vmatpush.msra.mxu0 %v2835
  %3250 = vmatpush.msra.mxu0 %v2834
  %3251 = vmatpush.msra.mxu0 %v2833
  %3252 = vmatpush.msra.mxu0 %v2832
  %3253 = vmatpush.msra.mxu0 %v2831
  %3254 = vmatpush.msra.mxu0 %v2830
  %3255 = vmatmul.f32.gmra.mxu0 %v3189
  %v3256 = vpop.f32.mrf.mxu0
  %v3257 = vadd.f32 0.0, %v3256
  %3258 = vmatmul.f32.gmra.mxu0 %v3191
  %v3259 = vpop.f32.mrf.mxu0
  %v3260 = vadd.f32 0.0, %v3259
  %3261 = vdwg.mxu0
  %3262 = vmatpush.msra.mxu0 %v2861
  %3263 = vmatpush.msra.mxu0 %v2860
  %3264 = vmatpush.msra.mxu0 %v2859
  %3265 = vmatpush.msra.mxu0 %v2858
  %3266 = vmatpush.msra.mxu0 %v2857
  %3267 = vmatpush.msra.mxu0 %v2856
  %3268 = vmatpush.msra.mxu0 %v2855
  %3269 = vmatpush.msra.mxu0 %v2854
  %3270 = vmatpush.msra.mxu0 %v2853
  %3271 = vmatpush.msra.mxu0 %v2852
  %3272 = vmatpush.msra.mxu0 %v2851
  %3273 = vmatpush.msra.mxu0 %v2850
  %3274 = vmatpush.msra.mxu0 %v2849
  %3275 = vmatpush.msra.mxu0 %v2848
  %3276 = vmatpush.msra.mxu0 %v2847
  %3277 = vmatpush.msra.mxu0 %v2846
  %3278 = vmatmul.f32.gmra.mxu0 %v3190
  %v3279 = vpop.f32.mrf.mxu0
  %v3280 = vadd.f32 %v3257, %v3279
  %3281 = vmatmul.f32.gmra.mxu0 %v3192
  %v3282 = vpop.f32.mrf.mxu0
  %v3283 = vadd.f32 %v3260, %v3282
  %3284 = vdwg.mxu0
  %v3285 = vmax.f32 %v3234, %v3280
  %v3286 = vmax.f32 %v3237, %v3283
  %3287 = vmatpush.msra.mxu0 %v2926
  %3288 = vmatpush.msra.mxu0 %v2925
  %3289 = vmatpush.msra.mxu0 %v2924
  %3290 = vmatpush.msra.mxu0 %v2923
  %3291 = vmatpush.msra.mxu0 %v2922
  %3292 = vmatpush.msra.mxu0 %v2921
  %3293 = vmatpush.msra.mxu0 %v2920
  %3294 = vmatpush.msra.mxu0 %v2919
  %3295 = vmatpush.msra.mxu0 %v2918
  %3296 = vmatpush.msra.mxu0 %v2917
  %3297 = vmatpush.msra.mxu0 %v2916
  %3298 = vmatpush.msra.mxu0 %v2915
  %3299 = vmatpush.msra.mxu0 %v2914
  %3300 = vmatpush.msra.mxu0 %v2913
  %3301 = vmatpush.msra.mxu0 %v2912
  %3302 = vmatpush.msra.mxu0 %v2911
  %3303 = vmatmul.f32.gmra.mxu0 %v3189
  %v3304 = vpop.f32.mrf.mxu0
  %v3305 = vadd.f32 0.0, %v3304
  %3306 = vmatmul.f32.gmra.mxu0 %v3191
  %v3307 = vpop.f32.mrf.mxu0
  %v3308 = vadd.f32 0.0, %v3307
  %3309 = vdwg.mxu0
  %3310 = vmatpush.msra.mxu0 %v2942
  %3311 = vmatpush.msra.mxu0 %v2941
  %3312 = vmatpush.msra.mxu0 %v2940
  %3313 = vmatpush.msra.mxu0 %v2939
  %3314 = vmatpush.msra.mxu0 %v2938
  %3315 = vmatpush.msra.mxu0 %v2937
  %3316 = vmatpush.msra.mxu0 %v2936
  %3317 = vmatpush.msra.mxu0 %v2935
  %3318 = vmatpush.msra.mxu0 %v2934
  %3319 = vmatpush.msra.mxu0 %v2933
  %3320 = vmatpush.msra.mxu0 %v2932
  %3321 = vmatpush.msra.mxu0 %v2931
  %3322 = vmatpush.msra.mxu0 %v2930
  %3323 = vmatpush.msra.mxu0 %v2929
  %3324 = vmatpush.msra.mxu0 %v2928
  %3325 = vmatpush.msra.mxu0 %v2927
  %3326 = vmatmul.f32.gmra.mxu0 %v3190
  %v3327 = vpop.f32.mrf.mxu0
  %v3328 = vadd.f32 %v3305, %v3327
  %3329 = vmatmul.f32.gmra.mxu0 %v3192
  %v3330 = vpop.f32.mrf.mxu0
  %v3331 = vadd.f32 %v3308, %v3330
  %3332 = vdwg.mxu0
  %v3333 = vmax.f32 %v3285, %v3328
  %v3334 = vmax.f32 %v3286, %v3331
  %3335 = vst [vmem:[%s6] sm:$0xff] %v2989
  %3336 = vst [vmem:[%s6 + $0x8] sm:$0xff] %v2990
  %3337 = vst [vmem:[%s6 + $0x10] sm:$0xff] %v3333
  %3338 = vst [vmem:[%s6 + $0x18] sm:$0xff] %v3334
  // Predicated region
  $region26: #{backbone_base_forward.5} parent=0 // pred_check
    _
  $region27: #{backbone_base_forward.5} parent=0 // pred_check_branch
    %3340 = sbr.rel (0) target = $region29
  $region28: #{backbone_base_forward.5} parent=0 // pred_region
    _
  $region29: #{backbone_base_forward.5} parent=0 // pred_fallthru
    _
  // Predicated region
  $region30: #{backbone_base_forward.5} parent=0 // pred_check
    _
  $region31: #{backbone_base_forward.5} parent=0 // pred_check_branch
    %3342 = sbr.rel (0) target = $region33
  $region32: #{backbone_base_forward.5} parent=0 // pred_region
    _
  $region33: #{backbone_base_forward.5} parent=0 // pred_fallthru
    _

// kernel: tile.68
$region0: #{tile.68}
  #allocation0 [shape = 's32[1]{0}', space=sflag, size = 0x4, scoped, tag = 'scoped memory for tile.68']
  %s0 = inlined_call_operand.vmem [shape: f32[8], index: 0, kind: input, shape index: {}]
  %s1 = inlined_call_operand.vmem [shape: f32[16,8], index: 1, kind: output, shape index: {}]
  // Predicated region
  $region2: #{tile.68} parent=0 // pred_check
    _
  $region3: #{tile.68} parent=0 // pred_check_branch
    %3 = sbr.rel (0) target = $region5
  $region4: #{tile.68} parent=0 // pred_region
    _
  $region5: #{tile.68} parent=0 // pred_fallthru
    _
  %v4 = vld [vmem:[%s0] ss:$0 sm:$0xff]
  %5 = vst [vmem:[%s1] sm:$0xff] %v4
  %s6 = scalar_lea.vmem %s1, 8
  %7 = vst [vmem:[%s6] sm:$0xff] %v4

// kernel: tile.69
$region0: #{tile.69}
  %s0 = inlined_call_operand.vmem [shape: f32[16,8], index: 0, kind: input, shape index: {}]
  %s1 = inlined_call_operand.vmem [shape: f32[1,128], index: 1, kind: output, shape index: {}]
  $region1: #{tile.69} parent=0
    #allocation0 [shape = 'u8[4096]{0}', space=vmem, size = 0x1000, scoped, tag = 'scoped mem for output reshape']
    %v2 = vld [vmem:[%s0] sm:$0x1]
    %vm3 = vcmask 64512
    %4 = vst.msk [vmem:[#allocation0] sm:$0x1] %vm3, %v2
    %s5 = scalar_lea.vmem %s0, 15
    %v6 = vld [vmem:[%s5] sm:$0x1]
    %7 = vrot.lane.b32.xlu0 %v6, 120
    %v8 = vpop.permute.xlu0 %7
    %vm9 = vcmask 1048512
    %10 = vst.msk [vmem:[#allocation0] sm:$0x1] %vm9, %v8
    %s11 = scalar_lea.vmem %s0, 14
    %v12 = vld [vmem:[%s11] sm:$0x1]
    %13 = vrot.lane.b32.xlu0 %v12, 112
    %v14 = vpop.permute.xlu0 %13
    %vm15 = vcmask 982912
    %16 = vst.msk [vmem:[#allocation0] sm:$0x1] %vm15, %v14
    %s17 = scalar_lea.vmem %s0, 13
    %v18 = vld [vmem:[%s17] sm:$0x1]
    %19 = vrot.lane.b32.xlu0 %v18, 104
    %v20 = vpop.permute.xlu0 %19
    %vm21 = vcmask 917312
    %22 = vst.msk [vmem:[#allocation0] sm:$0x1] %vm21, %v20
    %s23 = scalar_lea.vmem %s0, 12
    %v24 = vld [vmem:[%s23] sm:$0x1]
    %25 = vrot.lane.b32.xlu0 %v24, 96
    %v26 = vpop.permute.xlu0 %25
    %vm27 = vcmask 851712
    %28 = vst.msk [vmem:[#allocation0] sm:$0x1] %vm27, %v26
    %s29 = scalar_lea.vmem %s0, 11
    %v30 = vld [vmem:[%s29] sm:$0x1]
    %31 = vrot.lane.b32.xlu0 %v30, 88
    %v32 = vpop.permute.xlu0 %31
    %vm33 = vcmask 786112
    %34 = vst.msk [vmem:[#allocation0] sm:$0x1] %vm33, %v32
    %s35 = scalar_lea.vmem %s0, 10
    %v36 = vld [vmem:[%s35] sm:$0x1]
    %37 = vrot.lane.b32.xlu0 %v36, 80
    %v38 = vpop.permute.xlu0 %37
    %vm39 = vcmask 720512
    %40 = vst.msk [vmem:[#allocation0] sm:$0x1] %vm39, %v38
    %s41 = scalar_lea.vmem %s0, 9
    %v42 = vld [vmem:[%s41] sm:$0x1]
    %43 = vrot.lane.b32.xlu0 %v42, 72
    %v44 = vpop.permute.xlu0 %43
    %vm45 = vcmask 654912
    %46 = vst.msk [vmem:[#allocation0] sm:$0x1] %vm45, %v44
    %s47 = scalar_lea.vmem %s0, 8
    %v48 = vld [vmem:[%s47] sm:$0x1]
    %49 = vrot.lane.b32.xlu0 %v48, 64
    %v50 = vpop.permute.xlu0 %49
    %vm51 = vcmask 589312
    %52 = vst.msk [vmem:[#allocation0] sm:$0x1] %vm51, %v50
    %s53 = scalar_lea.vmem %s0, 7
    %v54 = vld [vmem:[%s53] sm:$0x1]
    %55 = vrot.lane.b32.xlu0 %v54, 56
    %v56 = vpop.permute.xlu0 %55
    %vm57 = vcmask 523712
    %58 = vst.msk [vmem:[#allocation0] sm:$0x1] %vm57, %v56
    %s59 = scalar_lea.vmem %s0, 6
    %v60 = vld [vmem:[%s59] sm:$0x1]
    %61 = vrot.lane.b32.xlu0 %v60, 48
    %v62 = vpop.permute.xlu0 %61
    %vm63 = vcmask 458112
    %64 = vst.msk [vmem:[#allocation0] sm:$0x1] %vm63, %v62
    %s65 = scalar_lea.vmem %s0, 5
    %v66 = vld [vmem:[%s65] sm:$0x1]
    %67 = vrot.lane.b32.xlu0 %v66, 40
    %v68 = vpop.permute.xlu0 %67
    %vm69 = vcmask 392512
    %70 = vst.msk [vmem:[#allocation0] sm:$0x1] %vm69, %v68
    %s71 = scalar_lea.vmem %s0, 4
    %v72 = vld [vmem:[%s71] sm:$0x1]
    %73 = vrot.lane.b32.xlu0 %v72, 32
    %v74 = vpop.permute.xlu0 %73
    %vm75 = vcmask 326912
    %76 = vst.msk [vmem:[#allocation0] sm:$0x1] %vm75, %v74
    %s77 = scalar_lea.vmem %s0, 3
    %v78 = vld [vmem:[%s77] sm:$0x1]
    %79 = vrot.lane.b32.xlu0 %v78, 24
    %v80 = vpop.permute.xlu0 %79
    %vm81 = vcmask 261312
    %82 = vst.msk [vmem:[#allocation0] sm:$0x1] %vm81, %v80
    %s83 = scalar_lea.vmem %s0, 2
    %v84 = vld [vmem:[%s83] sm:$0x1]
    %85 = vrot.lane.b32.xlu0 %v84, 16
    %v86 = vpop.permute.xlu0 %85
    %vm87 = vcmask 195712
    %88 = vst.msk [vmem:[#allocation0] sm:$0x1] %vm87, %v86
    %s89 = scalar_lea.vmem %s0, 1
    %v90 = vld [vmem:[%s89] sm:$0x1]
    %91 = vrot.lane.b32.xlu0 %v90, 8
    %v92 = vpop.permute.xlu0 %91
    %vm93 = vcmask 130112
    %94 = vst.msk [vmem:[#allocation0] sm:$0x1] %vm93, %v92
    %s96 = ssub.s32 2, 1
    %v97 = vld [vmem:[#allocation0] sm:%s96]
    %s99 = ssub.s32 2, 1
    %100 = vst [vmem:[%s1] sm:%s99] %v97

// kernel: backbone_base_forward.6
$region0: #{backbone_base_forward.6}
  #allocation0 [shape = 'u32[]', space=smem, size = 0x4, offset = 0x4, fixed_abs, tag = 'smem constant byte address 0x4 - core index']
  #allocation1 [shape = 'u32[72,128]{1,0:T(1,128)}', space=vmem, size = 0x9000, scoped, tag = 'internal scratch']
  %s0 = inlined_call_operand.vmem [shape: bf16[36,128], index: 0, kind: input, shape index: {}]
  %s1 = inlined_call_operand.vmem [shape: bf16[3,128,128], index: 1, kind: input, shape index: {}]
  %s2 = inlined_call_operand.vmem [shape: f32[1,128], index: 2, kind: input, shape index: {}]
  %s3 = inlined_call_operand.vmem [shape: bf16[3,128,128], index: 3, kind: input, shape index: {}]
  %s4 = inlined_call_operand.vmem [shape: f32[1,128], index: 4, kind: input, shape index: {}]
  %s5 = inlined_call_operand.vmem [shape: f32[32,128], index: 5, kind: input, shape index: {}]
  %s6 = inlined_call_operand.vmem [shape: f32[32,128], index: 6, kind: output, shape index: {}]
  %s7 = sld [smem:[#allocation0]]
  $region34: #{backbone_base_forward.6} parent=0
    _
  %s9 = ssub.s32 1, %s7
  %s10 = scalar_select 0, %s9, %s7
  // Predicated region
  $region2: #{backbone_base_forward.6} parent=0 // pred_check
    _
  $region3: #{backbone_base_forward.6} parent=0 // pred_check_branch
    %12 = sbr.rel (0) target = $region5
  $region4: #{backbone_base_forward.6} parent=0 // pred_region
    _
  $region5: #{backbone_base_forward.6} parent=0 // pred_fallthru
    _
  // Predicated region
  $region6: #{backbone_base_forward.6} parent=0 // pred_check
    _
  $region7: #{backbone_base_forward.6} parent=0 // pred_check_branch
    %14 = sbr.rel (0) target = $region9
  $region8: #{backbone_base_forward.6} parent=0 // pred_region
    _
  $region9: #{backbone_base_forward.6} parent=0 // pred_fallthru
    _
  // Predicated region
  $region10: #{backbone_base_forward.6} parent=0 // pred_check
    _
  $region11: #{backbone_base_forward.6} parent=0 // pred_check_branch
    %16 = sbr.rel (0) target = $region13
  $region12: #{backbone_base_forward.6} parent=0 // pred_region
    _
  $region13: #{backbone_base_forward.6} parent=0 // pred_fallthru
    _
  // Predicated region
  $region14: #{backbone_base_forward.6} parent=0 // pred_check
    _
  $region15: #{backbone_base_forward.6} parent=0 // pred_check_branch
    %18 = sbr.rel (0) target = $region17
  $region16: #{backbone_base_forward.6} parent=0 // pred_region
    _
  $region17: #{backbone_base_forward.6} parent=0 // pred_fallthru
    _
  // Predicated region
  $region18: #{backbone_base_forward.6} parent=0 // pred_check
    _
  $region19: #{backbone_base_forward.6} parent=0 // pred_check_branch
    %20 = sbr.rel (0) target = $region21
  $region20: #{backbone_base_forward.6} parent=0 // pred_region
    _
  $region21: #{backbone_base_forward.6} parent=0 // pred_fallthru
    _
  // Predicated region
  $region22: #{backbone_base_forward.6} parent=0 // pred_check
    _
  $region23: #{backbone_base_forward.6} parent=0 // pred_check_branch
    %22 = sbr.rel (0) target = $region25
  $region24: #{backbone_base_forward.6} parent=0 // pred_region
    _
  $region25: #{backbone_base_forward.6} parent=0 // pred_fallthru
    _
  %v24 = vld [vmem:[%s0] sm:$0xf]
  %v25 = vld [vmem:[%s0 + $0x4] sm:$0xf]
  %v26 = vld [vmem:[%s0 + $0x8] sm:$0xf]
  %v27 = vld [vmem:[%s0 + $0xc] sm:$0xf]
  %v28 = vld [vmem:[%s0 + $0x10] sm:$0x3]
  %v29 = vld [vmem:[%s2] sm:$0x1]
  %v30 = vld [vmem:[%s4] sm:$0x1]
  %v31 = vld [vmem:[%s5] sm:$0xff]
  %v32 = vld [vmem:[%s5 + $0x8] sm:$0xff]
  %v33 = vld [vmem:[%s5 + $0x10] sm:$0xff]
  %v34 = vld [vmem:[%s5 + $0x18] sm:$0xff]
  %v35 = vld [vmem:[%s1] sm:$0xf]
  %v36 = vld [vmem:[%s1 + $0x4] sm:$0xf]
  %v37 = vld [vmem:[%s1 + $0x8] sm:$0xf]
  %v38 = vld [vmem:[%s1 + $0xc] sm:$0xf]
  %v39 = vld [vmem:[%s1 + $0x10] sm:$0xf]
  %v40 = vld [vmem:[%s1 + $0x14] sm:$0xf]
  %v41 = vld [vmem:[%s1 + $0x18] sm:$0xf]
  %v42 = vld [vmem:[%s1 + $0x1c] sm:$0xf]
  %v43 = vld [vmem:[%s1 + $0x20] sm:$0xf]
  %v44 = vld [vmem:[%s1 + $0x24] sm:$0xf]
  %v45 = vld [vmem:[%s1 + $0x28] sm:$0xf]
  %v46 = vld [vmem:[%s1 + $0x2c] sm:$0xf]
  %v47 = vld [vmem:[%s1 + $0x30] sm:$0xf]
  %v48 = vld [vmem:[%s1 + $0x34] sm:$0xf]
  %v49 = vld [vmem:[%s1 + $0x38] sm:$0xf]
  %v50 = vld [vmem:[%s1 + $0x3c] sm:$0xf]
  %v56 = vunpack.c.l.b16 %v24
  %v57 = vunpack.c.l.b16 %v25
  %v58 = vunpack.c.l.b16 %v26
  %v59 = vunpack.c.l.b16 %v27
  %v60 = vunpack.c.l.b16 %v28
  %v61 = vpack.c.b16 %v57, %v56
  %v62 = vpack.c.b16 %v59, %v58
  %v63 = vpack.c.b16 %v60, %v60
  %v83 = vunpack.c.l.b16 %v35
  %v84 = vunpack.c.l.b16 %v36
  %v85 = vunpack.c.l.b16 %v37
  %v86 = vunpack.c.l.b16 %v38
  %v87 = vunpack.c.l.b16 %v39
  %v88 = vunpack.c.l.b16 %v40
  %v89 = vunpack.c.l.b16 %v41
  %v90 = vunpack.c.l.b16 %v42
  %v91 = vunpack.c.l.b16 %v43
  %v92 = vunpack.c.l.b16 %v44
  %v93 = vunpack.c.l.b16 %v45
  %v94 = vunpack.c.l.b16 %v46
  %v95 = vunpack.c.l.b16 %v47
  %v96 = vunpack.c.l.b16 %v48
  %v97 = vunpack.c.l.b16 %v49
  %v98 = vunpack.c.l.b16 %v50
  %v99 = vpack.c.b16 %v84, %v83
  %v100 = vpack.c.b16 %v86, %v85
  %v101 = vpack.c.b16 %v88, %v87
  %v102 = vpack.c.b16 %v90, %v89
  %v103 = vpack.c.b16 %v92, %v91
  %v104 = vpack.c.b16 %v94, %v93
  %v105 = vpack.c.b16 %v96, %v95
  %v106 = vpack.c.b16 %v98, %v97
  %115 = vmatpush.bf16.msra.mxu0 %v106
  %116 = vmatpush.bf16.msra.mxu0 %v105
  %117 = vmatpush.bf16.msra.mxu0 %v104
  %118 = vmatpush.bf16.msra.mxu0 %v103
  %119 = vmatpush.bf16.msra.mxu0 %v102
  %120 = vmatpush.bf16.msra.mxu0 %v101
  %121 = vmatpush.bf16.msra.mxu0 %v100
  %122 = vmatpush.bf16.msra.mxu0 %v99
  %123 = vmatmul.bf16.gmra.mxu0 %v61
  %v124 = vpop.f32.mrf.mxu0
  %v125 = vadd.f32 0.0, %v124
  %v126 = vpop.f32.mrf.mxu0
  %v127 = vadd.f32 0.0, %v126
  %128 = vmatmul.bf16.gmra.mxu0 %v62
  %v129 = vpop.f32.mrf.mxu0
  %v130 = vadd.f32 0.0, %v129
  %v131 = vpop.f32.mrf.mxu0
  %v132 = vadd.f32 0.0, %v131
  %133 = vmatmul.bf16.gmra.mxu0 %v63
  %v134 = vpop.f32.mrf.mxu0
  %v135 = vadd.f32 0.0, %v134
  %v136 = vpop.f32.mrf.mxu0
  %137 = vdwg.mxu0
  %s138 = scalar_lea.vmem %s1, 64
  %v139 = vld [vmem:[%s138] sm:$0xf]
  %v140 = vld [vmem:[%s138 + $0x4] sm:$0xf]
  %v141 = vld [vmem:[%s138 + $0x8] sm:$0xf]
  %v142 = vld [vmem:[%s138 + $0xc] sm:$0xf]
  %v143 = vld [vmem:[%s138 + $0x10] sm:$0xf]
  %v144 = vld [vmem:[%s138 + $0x14] sm:$0xf]
  %v145 = vld [vmem:[%s138 + $0x18] sm:$0xf]
  %v146 = vld [vmem:[%s138 + $0x1c] sm:$0xf]
  %v147 = vld [vmem:[%s138 + $0x20] sm:$0xf]
  %v148 = vld [vmem:[%s138 + $0x24] sm:$0xf]
  %v149 = vld [vmem:[%s138 + $0x28] sm:$0xf]
  %v150 = vld [vmem:[%s138 + $0x2c] sm:$0xf]
  %v151 = vld [vmem:[%s138 + $0x30] sm:$0xf]
  %v152 = vld [vmem:[%s138 + $0x34] sm:$0xf]
  %v153 = vld [vmem:[%s138 + $0x38] sm:$0xf]
  %v154 = vld [vmem:[%s138 + $0x3c] sm:$0xf]
  %v171 = vunpack.c.l.b16 %v139
  %v172 = vunpack.c.l.b16 %v140
  %v173 = vunpack.c.l.b16 %v141
  %v174 = vunpack.c.l.b16 %v142
  %v175 = vunpack.c.l.b16 %v143
  %v176 = vunpack.c.l.b16 %v144
  %v177 = vunpack.c.l.b16 %v145
  %v178 = vunpack.c.l.b16 %v146
  %v179 = vunpack.c.l.b16 %v147
  %v180 = vunpack.c.l.b16 %v148
  %v181 = vunpack.c.l.b16 %v149
  %v182 = vunpack.c.l.b16 %v150
  %v183 = vunpack.c.l.b16 %v151
  %v184 = vunpack.c.l.b16 %v152
  %v185 = vunpack.c.l.b16 %v153
  %v186 = vunpack.c.l.b16 %v154
  %v187 = vpack.c.b16 %v172, %v171
  %v188 = vpack.c.b16 %v174, %v173
  %v189 = vpack.c.b16 %v176, %v175
  %v190 = vpack.c.b16 %v178, %v177
  %v191 = vpack.c.b16 %v180, %v179
  %v192 = vpack.c.b16 %v182, %v181
  %v193 = vpack.c.b16 %v184, %v183
  %v194 = vpack.c.b16 %v186, %v185
  %203 = vmatpush.bf16.msra.mxu0 %v194
  %204 = vmatpush.bf16.msra.mxu0 %v193
  %205 = vmatpush.bf16.msra.mxu0 %v192
  %206 = vmatpush.bf16.msra.mxu0 %v191
  %207 = vmatpush.bf16.msra.mxu0 %v190
  %208 = vmatpush.bf16.msra.mxu0 %v189
  %209 = vmatpush.bf16.msra.mxu0 %v188
  %210 = vmatpush.bf16.msra.mxu0 %v187
  %211 = vmatmul.bf16.gmra.mxu0 %v61
  %v212 = vpop.f32.mrf.mxu0
  %v213 = vadd.f32 0.0, %v212
  %v214 = vpop.f32.mrf.mxu0
  %v215 = vadd.f32 0.0, %v214
  %216 = vmatmul.bf16.gmra.mxu0 %v62
  %v217 = vpop.f32.mrf.mxu0
  %v218 = vadd.f32 0.0, %v217
  %v219 = vpop.f32.mrf.mxu0
  %v220 = vadd.f32 0.0, %v219
  %221 = vmatmul.bf16.gmra.mxu0 %v63
  %v222 = vpop.f32.mrf.mxu0
  %v223 = vadd.f32 0.0, %v222
  %v224 = vpop.f32.mrf.mxu0
  %225 = vdwg.mxu0
  %vm229 = vcmask 1046528
  %v230 = vrot.slane %v213, 1
  %v231 = vrot.slane %v215, 1
  %v232 = vsel %vm229, %v230, %v231
  %v233 = vrot.slane %v218, 1
  %v234 = vsel %vm229, %v231, %v233
  %v237 = vadd.f32 %v125, %v232
  %v238 = vadd.f32 %v127, %v234
  %v241 = vrot.slane %v220, 1
  %v242 = vsel %vm229, %v233, %v241
  %v243 = vrot.slane %v223, 1
  %v244 = vsel %vm229, %v241, %v243
  %v248 = vadd.f32 %v130, %v242
  %v249 = vadd.f32 %v132, %v244
  %v250 = vadd.f32 %v135, %v243
  %s251 = scalar_lea.vmem %s1, 128
  %v252 = vld [vmem:[%s251] sm:$0xf]
  %v253 = vld [vmem:[%s251 + $0x4] sm:$0xf]
  %v254 = vld [vmem:[%s251 + $0x8] sm:$0xf]
  %v255 = vld [vmem:[%s251 + $0xc] sm:$0xf]
  %v256 = vld [vmem:[%s251 + $0x10] sm:$0xf]
  %v257 = vld [vmem:[%s251 + $0x14] sm:$0xf]
  %v258 = vld [vmem:[%s251 + $0x18] sm:$0xf]
  %v259 = vld [vmem:[%s251 + $0x1c] sm:$0xf]
  %v260 = vld [vmem:[%s251 + $0x20] sm:$0xf]
  %v261 = vld [vmem:[%s251 + $0x24] sm:$0xf]
  %v262 = vld [vmem:[%s251 + $0x28] sm:$0xf]
  %v263 = vld [vmem:[%s251 + $0x2c] sm:$0xf]
  %v264 = vld [vmem:[%s251 + $0x30] sm:$0xf]
  %v265 = vld [vmem:[%s251 + $0x34] sm:$0xf]
  %v266 = vld [vmem:[%s251 + $0x38] sm:$0xf]
  %v267 = vld [vmem:[%s251 + $0x3c] sm:$0xf]
  %v284 = vunpack.c.l.b16 %v252
  %v285 = vunpack.c.l.b16 %v253
  %v286 = vunpack.c.l.b16 %v254
  %v287 = vunpack.c.l.b16 %v255
  %v288 = vunpack.c.l.b16 %v256
  %v289 = vunpack.c.l.b16 %v257
  %v290 = vunpack.c.l.b16 %v258
  %v291 = vunpack.c.l.b16 %v259
  %v292 = vunpack.c.l.b16 %v260
  %v293 = vunpack.c.l.b16 %v261
  %v294 = vunpack.c.l.b16 %v262
  %v295 = vunpack.c.l.b16 %v263
  %v296 = vunpack.c.l.b16 %v264
  %v297 = vunpack.c.l.b16 %v265
  %v298 = vunpack.c.l.b16 %v266
  %v299 = vunpack.c.l.b16 %v267
  %v300 = vpack.c.b16 %v285, %v284
  %v301 = vpack.c.b16 %v287, %v286
  %v302 = vpack.c.b16 %v289, %v288
  %v303 = vpack.c.b16 %v291, %v290
  %v304 = vpack.c.b16 %v293, %v292
  %v305 = vpack.c.b16 %v295, %v294
  %v306 = vpack.c.b16 %v297, %v296
  %v307 = vpack.c.b16 %v299, %v298
  %316 = vmatpush.bf16.msra.mxu0 %v307
  %317 = vmatpush.bf16.msra.mxu0 %v306
  %318 = vmatpush.bf16.msra.mxu0 %v305
  %319 = vmatpush.bf16.msra.mxu0 %v304
  %320 = vmatpush.bf16.msra.mxu0 %v303
  %321 = vmatpush.bf16.msra.mxu0 %v302
  %322 = vmatpush.bf16.msra.mxu0 %v301
  %323 = vmatpush.bf16.msra.mxu0 %v300
  %324 = vmatmul.bf16.gmra.mxu0 %v61
  %v325 = vpop.f32.mrf.mxu0
  %v326 = vadd.f32 0.0, %v325
  %v327 = vpop.f32.mrf.mxu0
  %v328 = vadd.f32 0.0, %v327
  %329 = vmatmul.bf16.gmra.mxu0 %v62
  %v330 = vpop.f32.mrf.mxu0
  %v331 = vadd.f32 0.0, %v330
  %v332 = vpop.f32.mrf.mxu0
  %v333 = vadd.f32 0.0, %v332
  %334 = vmatmul.bf16.gmra.mxu0 %v63
  %v335 = vpop.f32.mrf.mxu0
  %v336 = vadd.f32 0.0, %v335
  %v337 = vpop.f32.mrf.mxu0
  %338 = vdwg.mxu0
  %vm342 = vcmask 1045504
  %v343 = vrot.slane %v326, 2
  %v344 = vrot.slane %v328, 2
  %v345 = vsel %vm342, %v343, %v344
  %v346 = vrot.slane %v331, 2
  %v347 = vsel %vm342, %v344, %v346
  %v350 = vadd.f32 %v237, %v345
  %v351 = vadd.f32 %v238, %v347
  %v354 = vrot.slane %v333, 2
  %v355 = vsel %vm342, %v346, %v354
  %v356 = vrot.slane %v336, 2
  %v357 = vsel %vm342, %v354, %v356
  %v361 = vadd.f32 %v248, %v355
  %v362 = vadd.f32 %v249, %v357
  %v363 = vadd.f32 %v250, %v356
  %v367 = vrot.slane %v361, 2
  %v368 = vrot.slane %v362, 2
  %v369 = vsel %vm342, %v367, %v368
  %v370 = vrot.slane %v363, 2
  %v371 = vsel %vm342, %v368, %v370
  %v375 = vperm.slane %v29, 0
  %v377 = vadd.f32 %v350, %v375
  %v378 = vadd.f32 %v351, %v375
  %v379 = vadd.f32 %v369, %v375
  %v380 = vadd.f32 %v371, %v375
  %v381 = vmax.f32 %v377, 0.0
  %v382 = vmax.f32 %v378, 0.0
  %v383 = vmax.f32 %v379, 0.0
  %v384 = vmax.f32 %v380, 0.0
  %v385 = vpack.c.bf16 %v381, %v381
  %v386 = vpack.c.bf16 %v382, %v382
  %v387 = vpack.c.bf16 %v383, %v383
  %v388 = vpack.c.bf16 %v384, %v384
  %v391 = vunpack.c.l.b16 %v385
  %v392 = vunpack.c.l.b16 %v386
  %v393 = vpack.c.b16 %v392, %v391
  %v395 = vshrl.u32 %v393, 16
  %v397 = vrot.slane %v395, 7
  %v398 = vshll.u32 %v393, 16
  %v400 = vor.u32 %v397, %v398
  %v405 = vunpack.c.l.b16 %v387
  %v406 = vunpack.c.l.b16 %v388
  %v407 = vpack.c.b16 %v406, %v405
  %v409 = vshrl.u32 %v407, 16
  %v411 = vrot.slane %v409, 6
  %v412 = vshll.u32 %v407, 16
  %v414 = vrot.slane %v412, 7
  %v415 = vor.u32 %v411, %v414
  %vm417 = vcmask 1040384
  %vm418 = vsmask.f32 256
  %vm419 = vmand %vm417, %vm418
  %v420 = vsel %vm419, 0, %v400
  %v421 = vsel %vm419, %v397, 0
  %vm422 = vcmask 1040384
  %v425 = vsel %vm422, %v421, 0
  %vm427 = vcmask 1041408
  %vm428 = vsmask.f32 1280
  %vm429 = vmand %vm427, %vm428
  %v430 = vsel %vm429, %v425, %v415
  %v431 = vsel %vm429, %v415, 0
  %v432 = vld [vmem:[%s3] sm:$0xf]
  %v433 = vld [vmem:[%s3 + $0x4] sm:$0xf]
  %v434 = vld [vmem:[%s3 + $0x8] sm:$0xf]
  %v435 = vld [vmem:[%s3 + $0xc] sm:$0xf]
  %v436 = vld [vmem:[%s3 + $0x10] sm:$0xf]
  %v437 = vld [vmem:[%s3 + $0x14] sm:$0xf]
  %v438 = vld [vmem:[%s3 + $0x18] sm:$0xf]
  %v439 = vld [vmem:[%s3 + $0x1c] sm:$0xf]
  %v440 = vld [vmem:[%s3 + $0x20] sm:$0xf]
  %v441 = vld [vmem:[%s3 + $0x24] sm:$0xf]
  %v442 = vld [vmem:[%s3 + $0x28] sm:$0xf]
  %v443 = vld [vmem:[%s3 + $0x2c] sm:$0xf]
  %v444 = vld [vmem:[%s3 + $0x30] sm:$0xf]
  %v445 = vld [vmem:[%s3 + $0x34] sm:$0xf]
  %v446 = vld [vmem:[%s3 + $0x38] sm:$0xf]
  %v447 = vld [vmem:[%s3 + $0x3c] sm:$0xf]
  %v464 = vunpack.c.l.b16 %v432
  %v465 = vunpack.c.l.b16 %v433
  %v466 = vunpack.c.l.b16 %v434
  %v467 = vunpack.c.l.b16 %v435
  %v468 = vunpack.c.l.b16 %v436
  %v469 = vunpack.c.l.b16 %v437
  %v470 = vunpack.c.l.b16 %v438
  %v471 = vunpack.c.l.b16 %v439
  %v472 = vunpack.c.l.b16 %v440
  %v473 = vunpack.c.l.b16 %v441
  %v474 = vunpack.c.l.b16 %v442
  %v475 = vunpack.c.l.b16 %v443
  %v476 = vunpack.c.l.b16 %v444
  %v477 = vunpack.c.l.b16 %v445
  %v478 = vunpack.c.l.b16 %v446
  %v479 = vunpack.c.l.b16 %v447
  %v480 = vpack.c.b16 %v465, %v464
  %v481 = vpack.c.b16 %v467, %v466
  %v482 = vpack.c.b16 %v469, %v468
  %v483 = vpack.c.b16 %v471, %v470
  %v484 = vpack.c.b16 %v473, %v472
  %v485 = vpack.c.b16 %v475, %v474
  %v486 = vpack.c.b16 %v477, %v476
  %v487 = vpack.c.b16 %v479, %v478
  %496 = vmatpush.bf16.msra.mxu0 %v487
  %497 = vmatpush.bf16.msra.mxu0 %v486
  %498 = vmatpush.bf16.msra.mxu0 %v485
  %499 = vmatpush.bf16.msra.mxu0 %v484
  %500 = vmatpush.bf16.msra.mxu0 %v483
  %501 = vmatpush.bf16.msra.mxu0 %v482
  %502 = vmatpush.bf16.msra.mxu0 %v481
  %503 = vmatpush.bf16.msra.mxu0 %v480
  %504 = vmatmul.bf16.gmra.mxu0 %v420
  %v505 = vpop.f32.mrf.mxu0
  %v506 = vadd.f32 0.0, %v505
  %v507 = vpop.f32.mrf.mxu0
  %v508 = vadd.f32 0.0, %v507
  %509 = vmatmul.bf16.gmra.mxu0 %v430
  %v510 = vpop.f32.mrf.mxu0
  %v511 = vadd.f32 0.0, %v510
  %v512 = vpop.f32.mrf.mxu0
  %v513 = vadd.f32 0.0, %v512
  %514 = vmatmul.bf16.gmra.mxu0 %v431
  %v515 = vpop.f32.mrf.mxu0
  %v516 = vadd.f32 0.0, %v515
  %v517 = vpop.f32.mrf.mxu0
  %518 = vdwg.mxu0
  %s519 = scalar_lea.vmem %s3, 64
  %v520 = vld [vmem:[%s519] sm:$0xf]
  %v521 = vld [vmem:[%s519 + $0x4] sm:$0xf]
  %v522 = vld [vmem:[%s519 + $0x8] sm:$0xf]
  %v523 = vld [vmem:[%s519 + $0xc] sm:$0xf]
  %v524 = vld [vmem:[%s519 + $0x10] sm:$0xf]
  %v525 = vld [vmem:[%s519 + $0x14] sm:$0xf]
  %v526 = vld [vmem:[%s519 + $0x18] sm:$0xf]
  %v527 = vld [vmem:[%s519 + $0x1c] sm:$0xf]
  %v528 = vld [vmem:[%s519 + $0x20] sm:$0xf]
  %v529 = vld [vmem:[%s519 + $0x24] sm:$0xf]
  %v530 = vld [vmem:[%s519 + $0x28] sm:$0xf]
  %v531 = vld [vmem:[%s519 + $0x2c] sm:$0xf]
  %v532 = vld [vmem:[%s519 + $0x30] sm:$0xf]
  %v533 = vld [vmem:[%s519 + $0x34] sm:$0xf]
  %v534 = vld [vmem:[%s519 + $0x38] sm:$0xf]
  %v535 = vld [vmem:[%s519 + $0x3c] sm:$0xf]
  %v552 = vunpack.c.l.b16 %v520
  %v553 = vunpack.c.l.b16 %v521
  %v554 = vunpack.c.l.b16 %v522
  %v555 = vunpack.c.l.b16 %v523
  %v556 = vunpack.c.l.b16 %v524
  %v557 = vunpack.c.l.b16 %v525
  %v558 = vunpack.c.l.b16 %v526
  %v559 = vunpack.c.l.b16 %v527
  %v560 = vunpack.c.l.b16 %v528
  %v561 = vunpack.c.l.b16 %v529
  %v562 = vunpack.c.l.b16 %v530
  %v563 = vunpack.c.l.b16 %v531
  %v564 = vunpack.c.l.b16 %v532
  %v565 = vunpack.c.l.b16 %v533
  %v566 = vunpack.c.l.b16 %v534
  %v567 = vunpack.c.l.b16 %v535
  %v568 = vpack.c.b16 %v553, %v552
  %v569 = vpack.c.b16 %v555, %v554
  %v570 = vpack.c.b16 %v557, %v556
  %v571 = vpack.c.b16 %v559, %v558
  %v572 = vpack.c.b16 %v561, %v560
  %v573 = vpack.c.b16 %v563, %v562
  %v574 = vpack.c.b16 %v565, %v564
  %v575 = vpack.c.b16 %v567, %v566
  %584 = vmatpush.bf16.msra.mxu0 %v575
  %585 = vmatpush.bf16.msra.mxu0 %v574
  %586 = vmatpush.bf16.msra.mxu0 %v573
  %587 = vmatpush.bf16.msra.mxu0 %v572
  %588 = vmatpush.bf16.msra.mxu0 %v571
  %589 = vmatpush.bf16.msra.mxu0 %v570
  %590 = vmatpush.bf16.msra.mxu0 %v569
  %591 = vmatpush.bf16.msra.mxu0 %v568
  %592 = vmatmul.bf16.gmra.mxu0 %v420
  %v593 = vpop.f32.mrf.mxu0
  %v594 = vadd.f32 0.0, %v593
  %v595 = vpop.f32.mrf.mxu0
  %v596 = vadd.f32 0.0, %v595
  %597 = vmatmul.bf16.gmra.mxu0 %v430
  %v598 = vpop.f32.mrf.mxu0
  %v599 = vadd.f32 0.0, %v598
  %v600 = vpop.f32.mrf.mxu0
  %v601 = vadd.f32 0.0, %v600
  %602 = vmatmul.bf16.gmra.mxu0 %v431
  %v603 = vpop.f32.mrf.mxu0
  %v604 = vadd.f32 0.0, %v603
  %v605 = vpop.f32.mrf.mxu0
  %606 = vdwg.mxu0
  %v610 = vrot.slane %v594, 1
  %v611 = vrot.slane %v596, 1
  %v612 = vsel %vm229, %v610, %v611
  %v613 = vrot.slane %v599, 1
  %v614 = vsel %vm229, %v611, %v613
  %v617 = vadd.f32 %v506, %v612
  %v618 = vadd.f32 %v508, %v614
  %v621 = vrot.slane %v601, 1
  %v622 = vsel %vm229, %v613, %v621
  %v623 = vrot.slane %v604, 1
  %v624 = vsel %vm229, %v621, %v623
  %v628 = vadd.f32 %v511, %v622
  %v629 = vadd.f32 %v513, %v624
  %v630 = vadd.f32 %v516, %v623
  %s631 = scalar_lea.vmem %s3, 128
  %v632 = vld [vmem:[%s631] sm:$0xf]
  %v633 = vld [vmem:[%s631 + $0x4] sm:$0xf]
  %v634 = vld [vmem:[%s631 + $0x8] sm:$0xf]
  %v635 = vld [vmem:[%s631 + $0xc] sm:$0xf]
  %v636 = vld [vmem:[%s631 + $0x10] sm:$0xf]
  %v637 = vld [vmem:[%s631 + $0x14] sm:$0xf]
  %v638 = vld [vmem:[%s631 + $0x18] sm:$0xf]
  %v639 = vld [vmem:[%s631 + $0x1c] sm:$0xf]
  %v640 = vld [vmem:[%s631 + $0x20] sm:$0xf]
  %v641 = vld [vmem:[%s631 + $0x24] sm:$0xf]
  %v642 = vld [vmem:[%s631 + $0x28] sm:$0xf]
  %v643 = vld [vmem:[%s631 + $0x2c] sm:$0xf]
  %v644 = vld [vmem:[%s631 + $0x30] sm:$0xf]
  %v645 = vld [vmem:[%s631 + $0x34] sm:$0xf]
  %v646 = vld [vmem:[%s631 + $0x38] sm:$0xf]
  %v647 = vld [vmem:[%s631 + $0x3c] sm:$0xf]
  %v664 = vunpack.c.l.b16 %v632
  %v665 = vunpack.c.l.b16 %v633
  %v666 = vunpack.c.l.b16 %v634
  %v667 = vunpack.c.l.b16 %v635
  %v668 = vunpack.c.l.b16 %v636
  %v669 = vunpack.c.l.b16 %v637
  %v670 = vunpack.c.l.b16 %v638
  %v671 = vunpack.c.l.b16 %v639
  %v672 = vunpack.c.l.b16 %v640
  %v673 = vunpack.c.l.b16 %v641
  %v674 = vunpack.c.l.b16 %v642
  %v675 = vunpack.c.l.b16 %v643
  %v676 = vunpack.c.l.b16 %v644
  %v677 = vunpack.c.l.b16 %v645
  %v678 = vunpack.c.l.b16 %v646
  %v679 = vunpack.c.l.b16 %v647
  %v680 = vpack.c.b16 %v665, %v664
  %v681 = vpack.c.b16 %v667, %v666
  %v682 = vpack.c.b16 %v669, %v668
  %v683 = vpack.c.b16 %v671, %v670
  %v684 = vpack.c.b16 %v673, %v672
  %v685 = vpack.c.b16 %v675, %v674
  %v686 = vpack.c.b16 %v677, %v676
  %v687 = vpack.c.b16 %v679, %v678
  %696 = vmatpush.bf16.msra.mxu0 %v687
  %697 = vmatpush.bf16.msra.mxu0 %v686
  %698 = vmatpush.bf16.msra.mxu0 %v685
  %699 = vmatpush.bf16.msra.mxu0 %v684
  %700 = vmatpush.bf16.msra.mxu0 %v683
  %701 = vmatpush.bf16.msra.mxu0 %v682
  %702 = vmatpush.bf16.msra.mxu0 %v681
  %703 = vmatpush.bf16.msra.mxu0 %v680
  %704 = vmatmul.bf16.gmra.mxu0 %v420
  %v705 = vpop.f32.mrf.mxu0
  %v706 = vadd.f32 0.0, %v705
  %v707 = vpop.f32.mrf.mxu0
  %v708 = vadd.f32 0.0, %v707
  %709 = vmatmul.bf16.gmra.mxu0 %v430
  %v710 = vpop.f32.mrf.mxu0
  %v711 = vadd.f32 0.0, %v710
  %v712 = vpop.f32.mrf.mxu0
  %v713 = vadd.f32 0.0, %v712
  %714 = vmatmul.bf16.gmra.mxu0 %v431
  %v715 = vpop.f32.mrf.mxu0
  %v716 = vadd.f32 0.0, %v715
  %v717 = vpop.f32.mrf.mxu0
  %718 = vdwg.mxu0
  %v722 = vrot.slane %v706, 2
  %v723 = vrot.slane %v708, 2
  %v724 = vsel %vm342, %v722, %v723
  %v725 = vrot.slane %v711, 2
  %v726 = vsel %vm342, %v723, %v725
  %v729 = vadd.f32 %v617, %v724
  %v730 = vadd.f32 %v618, %v726
  %v733 = vrot.slane %v713, 2
  %v734 = vsel %vm342, %v725, %v733
  %v735 = vrot.slane %v716, 2
  %v736 = vsel %vm342, %v733, %v735
  %v740 = vadd.f32 %v628, %v734
  %v741 = vadd.f32 %v629, %v736
  %v742 = vadd.f32 %v630, %v735
  %v746 = vrot.slane %v740, 2
  %v747 = vrot.slane %v741, 2
  %v748 = vsel %vm342, %v746, %v747
  %v749 = vrot.slane %v742, 2
  %v750 = vsel %vm342, %v747, %v749
  %v754 = vperm.slane %v30, 0
  %v756 = vadd.f32 %v729, %v754
  %v757 = vadd.f32 %v730, %v754
  %v758 = vadd.f32 %v748, %v754
  %v759 = vadd.f32 %v750, %v754
  %v760 = vadd.f32 %v756, %v31
  %v761 = vadd.f32 %v757, %v32
  %v762 = vadd.f32 %v758, %v33
  %v763 = vadd.f32 %v759, %v34
  %v764 = vmax.f32 %v760, 0.0
  %v765 = vmax.f32 %v761, 0.0
  %v766 = vmax.f32 %v762, 0.0
  %v767 = vmax.f32 %v763, 0.0
  %768 = vst [vmem:[%s6] sm:$0xff] %v764
  %769 = vst [vmem:[%s6 + $0x8] sm:$0xff] %v765
  %770 = vst [vmem:[%s6 + $0x10] sm:$0xff] %v766
  %771 = vst [vmem:[%s6 + $0x18] sm:$0xff] %v767
  // Predicated region
  $region26: #{backbone_base_forward.6} parent=0 // pred_check
    _
  $region27: #{backbone_base_forward.6} parent=0 // pred_check_branch
    %773 = sbr.rel (0) target = $region29
  $region28: #{backbone_base_forward.6} parent=0 // pred_region
    _
  $region29: #{backbone_base_forward.6} parent=0 // pred_fallthru
    _
  // Predicated region
  $region30: #{backbone_base_forward.6} parent=0 // pred_check
    _
  $region31: #{backbone_base_forward.6} parent=0 // pred_check_branch
    %775 = sbr.rel (0) target = $region33
  $region32: #{backbone_base_forward.6} parent=0 // pred_region
    _
  $region33: #{backbone_base_forward.6} parent=0 // pred_fallthru
    _

// kernel: tile.78
$region0: #{tile.78}
  #allocation0 [shape = 's32[1]{0}', space=sflag, size = 0x4, scoped, tag = 'scoped memory for tile.78']
  %s0 = inlined_call_operand.vmem [shape: f32[16], index: 0, kind: input, shape index: {}]
  %s1 = inlined_call_operand.vmem [shape: f32[8,16], index: 1, kind: output, shape index: {}]
  // Predicated region
  $region2: #{tile.78} parent=0 // pred_check
    _
  $region3: #{tile.78} parent=0 // pred_check_branch
    %3 = sbr.rel (0) target = $region5
  $region4: #{tile.78} parent=0 // pred_region
    _
  $region5: #{tile.78} parent=0 // pred_fallthru
    _
  %v4 = vld [vmem:[%s0] ss:$0 sm:$0xff]
  %5 = vst [vmem:[%s1] sm:$0xff] %v4

// kernel: tile.79
$region0: #{tile.79}
  %s0 = inlined_call_operand.vmem [shape: f32[8,16], index: 0, kind: input, shape index: {}]
  %s1 = inlined_call_operand.vmem [shape: f32[128], index: 1, kind: output, shape index: {}]
  $region1: #{tile.79} parent=0
    #allocation0 [shape = 'u8[4096]{0}', space=vmem, size = 0x1000, scoped, tag = 'scoped mem for output reshape']
    %v2 = vld [vmem:[%s0] sm:$0x1]
    %vm3 = vcmask 130048
    %4 = vst.msk [vmem:[#allocation0] sm:$0x1] %vm3, %v2
    %s5 = scalar_lea.vmem %s0, 7
    %v6 = vld [vmem:[%s5] sm:$0x1]
    %7 = vrot.lane.b32.xlu0 %v6, 112
    %v8 = vpop.permute.xlu0 %7
    %vm9 = vcmask 1048448
    %10 = vst.msk [vmem:[#allocation0] sm:$0x1] %vm9, %v8
    %s11 = scalar_lea.vmem %s0, 6
    %v12 = vld [vmem:[%s11] sm:$0x1]
    %13 = vrot.lane.b32.xlu0 %v12, 96
    %v14 = vpop.permute.xlu0 %13
    %vm15 = vcmask 917248
    %16 = vst.msk [vmem:[#allocation0] sm:$0x1] %vm15, %v14
    %s17 = scalar_lea.vmem %s0, 5
    %v18 = vld [vmem:[%s17] sm:$0x1]
    %19 = vrot.lane.b32.xlu0 %v18, 80
    %v20 = vpop.permute.xlu0 %19
    %vm21 = vcmask 786048
    %22 = vst.msk [vmem:[#allocation0] sm:$0x1] %vm21, %v20
    %s23 = scalar_lea.vmem %s0, 4
    %v24 = vld [vmem:[%s23] sm:$0x1]
    %25 = vrot.lane.b32.xlu0 %v24, 64
    %v26 = vpop.permute.xlu0 %25
    %vm27 = vcmask 654848
    %28 = vst.msk [vmem:[#allocation0] sm:$0x1] %vm27, %v26
    %s29 = scalar_lea.vmem %s0, 3
    %v30 = vld [vmem:[%s29] sm:$0x1]
    %31 = vrot.lane.b32.xlu0 %v30, 48
    %v32 = vpop.permute.xlu0 %31
    %vm33 = vcmask 523648
    %34 = vst.msk [vmem:[#allocation0] sm:$0x1] %vm33, %v32
    %s35 = scalar_lea.vmem %s0, 2
    %v36 = vld [vmem:[%s35] sm:$0x1]
    %37 = vrot.lane.b32.xlu0 %v36, 32
    %v38 = vpop.permute.xlu0 %37
    %vm39 = vcmask 392448
    %40 = vst.msk [vmem:[#allocation0] sm:$0x1] %vm39, %v38
    %s41 = scalar_lea.vmem %s0, 1
    %v42 = vld [vmem:[%s41] sm:$0x1]
    %43 = vrot.lane.b32.xlu0 %v42, 16
    %v44 = vpop.permute.xlu0 %43
    %vm45 = vcmask 261248
    %46 = vst.msk [vmem:[#allocation0] sm:$0x1] %vm45, %v44
    %s48 = ssub.s32 2, 1
    %v49 = vld [vmem:[#allocation0] sm:%s48]
    %s51 = ssub.s32 2, 1
    %52 = vst [vmem:[%s1] sm:%s51] %v49

// kernel: tile.89
$region0: #{tile.89}
  %s0 = inlined_call_operand.vmem [shape: f32[8,16], index: 0, kind: input, shape index: {}]
  %s1 = inlined_call_operand.vmem [shape: f32[1,128], index: 1, kind: output, shape index: {}]
  $region1: #{tile.89} parent=0
    #allocation0 [shape = 'u8[4096]{0}', space=vmem, size = 0x1000, scoped, tag = 'scoped mem for output reshape']
    %v2 = vld [vmem:[%s0] sm:$0x1]
    %vm3 = vcmask 130048
    %4 = vst.msk [vmem:[#allocation0] sm:$0x1] %vm3, %v2
    %s5 = scalar_lea.vmem %s0, 7
    %v6 = vld [vmem:[%s5] sm:$0x1]
    %7 = vrot.lane.b32.xlu0 %v6, 112
    %v8 = vpop.permute.xlu0 %7
    %vm9 = vcmask 1048448
    %10 = vst.msk [vmem:[#allocation0] sm:$0x1] %vm9, %v8
    %s11 = scalar_lea.vmem %s0, 6
    %v12 = vld [vmem:[%s11] sm:$0x1]
    %13 = vrot.lane.b32.xlu0 %v12, 96
    %v14 = vpop.permute.xlu0 %13
    %vm15 = vcmask 917248
    %16 = vst.msk [vmem:[#allocation0] sm:$0x1] %vm15, %v14
    %s17 = scalar_lea.vmem %s0, 5
    %v18 = vld [vmem:[%s17] sm:$0x1]
    %19 = vrot.lane.b32.xlu0 %v18, 80
    %v20 = vpop.permute.xlu0 %19
    %vm21 = vcmask 786048
    %22 = vst.msk [vmem:[#allocation0] sm:$0x1] %vm21, %v20
    %s23 = scalar_lea.vmem %s0, 4
    %v24 = vld [vmem:[%s23] sm:$0x1]
    %25 = vrot.lane.b32.xlu0 %v24, 64
    %v26 = vpop.permute.xlu0 %25
    %vm27 = vcmask 654848
    %28 = vst.msk [vmem:[#allocation0] sm:$0x1] %vm27, %v26
    %s29 = scalar_lea.vmem %s0, 3
    %v30 = vld [vmem:[%s29] sm:$0x1]
    %31 = vrot.lane.b32.xlu0 %v30, 48
    %v32 = vpop.permute.xlu0 %31
    %vm33 = vcmask 523648
    %34 = vst.msk [vmem:[#allocation0] sm:$0x1] %vm33, %v32
    %s35 = scalar_lea.vmem %s0, 2
    %v36 = vld [vmem:[%s35] sm:$0x1]
    %37 = vrot.lane.b32.xlu0 %v36, 32
    %v38 = vpop.permute.xlu0 %37
    %vm39 = vcmask 392448
    %40 = vst.msk [vmem:[#allocation0] sm:$0x1] %vm39, %v38
    %s41 = scalar_lea.vmem %s0, 1
    %v42 = vld [vmem:[%s41] sm:$0x1]
    %43 = vrot.lane.b32.xlu0 %v42, 16
    %v44 = vpop.permute.xlu0 %43
    %vm45 = vcmask 261248
    %46 = vst.msk [vmem:[#allocation0] sm:$0x1] %vm45, %v44
    %s48 = ssub.s32 2, 1
    %v49 = vld [vmem:[#allocation0] sm:%s48]
    %s51 = ssub.s32 2, 1
    %52 = vst [vmem:[%s1] sm:%s51] %v49

// kernel: backbone_base_forward.7
$region0: #{backbone_base_forward.7}
  #allocation0 [shape = 'u32[]', space=smem, size = 0x4, offset = 0x4, fixed_abs, tag = 'smem constant byte address 0x4 - core index']
  #allocation1 [shape = 'u32[72,128]{1,0:T(1,128)}', space=vmem, size = 0x9000, scoped, tag = 'internal scratch']
  %s0 = inlined_call_operand.vmem [shape: bf16[18,128], index: 0, kind: input, shape index: {}]
  %s1 = inlined_call_operand.vmem [shape: bf16[18,128], index: 1, kind: input, shape index: {}]
  %s2 = inlined_call_operand.vmem [shape: bf16[3,128,256], index: 2, kind: input, shape index: {}]
  %s3 = inlined_call_operand.vmem [shape: f32[1,256], index: 3, kind: input, shape index: {}]
  %s4 = inlined_call_operand.vmem [shape: bf16[3,128,128], index: 4, kind: input, shape index: {}]
  %s5 = inlined_call_operand.vmem [shape: f32[1,128], index: 5, kind: input, shape index: {}]
  %s6 = inlined_call_operand.vmem [shape: f32[16,128], index: 6, kind: output, shape index: {}]
  %s7 = sld [smem:[#allocation0]]
  $region34: #{backbone_base_forward.7} parent=0
    _
  %s9 = ssub.s32 1, %s7
  %s10 = scalar_select 0, %s9, %s7
  // Predicated region
  $region2: #{backbone_base_forward.7} parent=0 // pred_check
    _
  $region3: #{backbone_base_forward.7} parent=0 // pred_check_branch
    %12 = sbr.rel (0) target = $region5
  $region4: #{backbone_base_forward.7} parent=0 // pred_region
    _
  $region5: #{backbone_base_forward.7} parent=0 // pred_fallthru
    _
  // Predicated region
  $region6: #{backbone_base_forward.7} parent=0 // pred_check
    _
  $region7: #{backbone_base_forward.7} parent=0 // pred_check_branch
    %14 = sbr.rel (0) target = $region9
  $region8: #{backbone_base_forward.7} parent=0 // pred_region
    _
  $region9: #{backbone_base_forward.7} parent=0 // pred_fallthru
    _
  // Predicated region
  $region10: #{backbone_base_forward.7} parent=0 // pred_check
    _
  $region11: #{backbone_base_forward.7} parent=0 // pred_check_branch
    %16 = sbr.rel (0) target = $region13
  $region12: #{backbone_base_forward.7} parent=0 // pred_region
    _
  $region13: #{backbone_base_forward.7} parent=0 // pred_fallthru
    _
  // Predicated region
  $region14: #{backbone_base_forward.7} parent=0 // pred_check
    _
  $region15: #{backbone_base_forward.7} parent=0 // pred_check_branch
    %18 = sbr.rel (0) target = $region17
  $region16: #{backbone_base_forward.7} parent=0 // pred_region
    _
  $region17: #{backbone_base_forward.7} parent=0 // pred_fallthru
    _
  // Predicated region
  $region18: #{backbone_base_forward.7} parent=0 // pred_check
    _
  $region19: #{backbone_base_forward.7} parent=0 // pred_check_branch
    %20 = sbr.rel (0) target = $region21
  $region20: #{backbone_base_forward.7} parent=0 // pred_region
    _
  $region21: #{backbone_base_forward.7} parent=0 // pred_fallthru
    _
  // Predicated region
  $region22: #{backbone_base_forward.7} parent=0 // pred_check
    _
  $region23: #{backbone_base_forward.7} parent=0 // pred_check_branch
    %22 = sbr.rel (0) target = $region25
  $region24: #{backbone_base_forward.7} parent=0 // pred_region
    _
  $region25: #{backbone_base_forward.7} parent=0 // pred_fallthru
    _
  %v24 = vld [vmem:[%s0] sm:$0xf]
  %v25 = vld [vmem:[%s0 + $0x4] sm:$0xf]
  %v26 = vld [vmem:[%s0 + $0x8] sm:$0x1]
  %v27 = vld [vmem:[%s1] sm:$0xf]
  %v28 = vld [vmem:[%s1 + $0x4] sm:$0xf]
  %v29 = vld [vmem:[%s1 + $0x8] sm:$0x1]
  %v30 = vld [vmem:[%s3] sm:$0x3]
  %v31 = vld [vmem:[%s5] sm:$0x1]
  %v32 = vld [vmem:[%s2] sm:$0xff]
  %v33 = vld [vmem:[%s2 + $0x8] sm:$0xff]
  %v34 = vld [vmem:[%s2 + $0x10] sm:$0xff]
  %v35 = vld [vmem:[%s2 + $0x18] sm:$0xff]
  %v36 = vld [vmem:[%s2 + $0x20] sm:$0xff]
  %v37 = vld [vmem:[%s2 + $0x28] sm:$0xff]
  %v38 = vld [vmem:[%s2 + $0x30] sm:$0xff]
  %v39 = vld [vmem:[%s2 + $0x38] sm:$0xff]
  %v40 = vld [vmem:[%s2 + $0x40] sm:$0xff]
  %v41 = vld [vmem:[%s2 + $0x48] sm:$0xff]
  %v42 = vld [vmem:[%s2 + $0x50] sm:$0xff]
  %v43 = vld [vmem:[%s2 + $0x58] sm:$0xff]
  %v44 = vld [vmem:[%s2 + $0x60] sm:$0xff]
  %v45 = vld [vmem:[%s2 + $0x68] sm:$0xff]
  %v46 = vld [vmem:[%s2 + $0x70] sm:$0xff]
  %v47 = vld [vmem:[%s2 + $0x78] sm:$0xff]
  %v51 = vunpack.c.l.b16 %v24
  %v52 = vunpack.c.l.b16 %v25
  %v53 = vunpack.c.l.b16 %v26
  %v54 = vpack.c.b16 %v52, %v51
  %v55 = vpack.c.b16 %v53, %v53
  %v74 = vunpack.c.l.b16 %v32
  %v75 = vunpack.c.h.b16 %v32
  %v76 = vunpack.c.l.b16 %v33
  %v77 = vunpack.c.h.b16 %v33
  %v78 = vunpack.c.l.b16 %v34
  %v79 = vunpack.c.h.b16 %v34
  %v80 = vunpack.c.l.b16 %v35
  %v81 = vunpack.c.h.b16 %v35
  %v82 = vunpack.c.l.b16 %v36
  %v83 = vunpack.c.h.b16 %v36
  %v84 = vunpack.c.l.b16 %v37
  %v85 = vunpack.c.h.b16 %v37
  %v86 = vunpack.c.l.b16 %v38
  %v87 = vunpack.c.h.b16 %v38
  %v88 = vunpack.c.l.b16 %v39
  %v89 = vunpack.c.h.b16 %v39
  %v90 = vunpack.c.l.b16 %v40
  %v91 = vunpack.c.h.b16 %v40
  %v92 = vunpack.c.l.b16 %v41
  %v93 = vunpack.c.h.b16 %v41
  %v94 = vunpack.c.l.b16 %v42
  %v95 = vunpack.c.h.b16 %v42
  %v96 = vunpack.c.l.b16 %v43
  %v97 = vunpack.c.h.b16 %v43
  %v98 = vunpack.c.l.b16 %v44
  %v99 = vunpack.c.h.b16 %v44
  %v100 = vunpack.c.l.b16 %v45
  %v101 = vunpack.c.h.b16 %v45
  %v102 = vunpack.c.l.b16 %v46
  %v103 = vunpack.c.h.b16 %v46
  %v104 = vunpack.c.l.b16 %v47
  %v105 = vunpack.c.h.b16 %v47
  %v106 = vpack.c.b16 %v76, %v74
  %v107 = vpack.c.b16 %v77, %v75
  %v108 = vpack.c.b16 %v80, %v78
  %v109 = vpack.c.b16 %v81, %v79
  %v110 = vpack.c.b16 %v84, %v82
  %v111 = vpack.c.b16 %v85, %v83
  %v112 = vpack.c.b16 %v88, %v86
  %v113 = vpack.c.b16 %v89, %v87
  %v114 = vpack.c.b16 %v92, %v90
  %v115 = vpack.c.b16 %v93, %v91
  %v116 = vpack.c.b16 %v96, %v94
  %v117 = vpack.c.b16 %v97, %v95
  %v118 = vpack.c.b16 %v100, %v98
  %v119 = vpack.c.b16 %v101, %v99
  %v120 = vpack.c.b16 %v104, %v102
  %v121 = vpack.c.b16 %v105, %v103
  %138 = vmatpush.bf16.msra.mxu0 %v120
  %139 = vmatpush.bf16.msra.mxu0 %v118
  %140 = vmatpush.bf16.msra.mxu0 %v116
  %141 = vmatpush.bf16.msra.mxu0 %v114
  %142 = vmatpush.bf16.msra.mxu0 %v112
  %143 = vmatpush.bf16.msra.mxu0 %v110
  %144 = vmatpush.bf16.msra.mxu0 %v108
  %145 = vmatpush.bf16.msra.mxu0 %v106
  %146 = vmatmul.bf16.gmra.mxu0 %v54
  %v147 = vpop.f32.mrf.mxu0
  %v148 = vadd.f32 0.0, %v147
  %v149 = vpop.f32.mrf.mxu0
  %v150 = vadd.f32 0.0, %v149
  %151 = vmatmul.bf16.gmra.mxu0 %v55
  %v152 = vpop.f32.mrf.mxu0
  %v153 = vadd.f32 0.0, %v152
  %v154 = vpop.f32.mrf.mxu0
  %155 = vdwg.mxu0
  %156 = vmatpush.bf16.msra.mxu0 %v121
  %157 = vmatpush.bf16.msra.mxu0 %v119
  %158 = vmatpush.bf16.msra.mxu0 %v117
  %159 = vmatpush.bf16.msra.mxu0 %v115
  %160 = vmatpush.bf16.msra.mxu0 %v113
  %161 = vmatpush.bf16.msra.mxu0 %v111
  %162 = vmatpush.bf16.msra.mxu0 %v109
  %163 = vmatpush.bf16.msra.mxu0 %v107
  %164 = vmatmul.bf16.gmra.mxu0 %v54
  %v165 = vpop.f32.mrf.mxu0
  %v166 = vadd.f32 0.0, %v165
  %v167 = vpop.f32.mrf.mxu0
  %v168 = vadd.f32 0.0, %v167
  %169 = vmatmul.bf16.gmra.mxu0 %v55
  %v170 = vpop.f32.mrf.mxu0
  %v171 = vadd.f32 0.0, %v170
  %v172 = vpop.f32.mrf.mxu0
  %173 = vdwg.mxu0
  %s174 = scalar_lea.vmem %s2, 128
  %v175 = vld [vmem:[%s174] sm:$0xff]
  %v176 = vld [vmem:[%s174 + $0x8] sm:$0xff]
  %v177 = vld [vmem:[%s174 + $0x10] sm:$0xff]
  %v178 = vld [vmem:[%s174 + $0x18] sm:$0xff]
  %v179 = vld [vmem:[%s174 + $0x20] sm:$0xff]
  %v180 = vld [vmem:[%s174 + $0x28] sm:$0xff]
  %v181 = vld [vmem:[%s174 + $0x30] sm:$0xff]
  %v182 = vld [vmem:[%s174 + $0x38] sm:$0xff]
  %v183 = vld [vmem:[%s174 + $0x40] sm:$0xff]
  %v184 = vld [vmem:[%s174 + $0x48] sm:$0xff]
  %v185 = vld [vmem:[%s174 + $0x50] sm:$0xff]
  %v186 = vld [vmem:[%s174 + $0x58] sm:$0xff]
  %v187 = vld [vmem:[%s174 + $0x60] sm:$0xff]
  %v188 = vld [vmem:[%s174 + $0x68] sm:$0xff]
  %v189 = vld [vmem:[%s174 + $0x70] sm:$0xff]
  %v190 = vld [vmem:[%s174 + $0x78] sm:$0xff]
  %v194 = vunpack.c.l.b16 %v27
  %v195 = vunpack.c.l.b16 %v28
  %v196 = vunpack.c.l.b16 %v29
  %v197 = vpack.c.b16 %v195, %v194
  %v198 = vpack.c.b16 %v196, %v196
  %v217 = vunpack.c.l.b16 %v175
  %v218 = vunpack.c.h.b16 %v175
  %v219 = vunpack.c.l.b16 %v176
  %v220 = vunpack.c.h.b16 %v176
  %v221 = vunpack.c.l.b16 %v177
  %v222 = vunpack.c.h.b16 %v177
  %v223 = vunpack.c.l.b16 %v178
  %v224 = vunpack.c.h.b16 %v178
  %v225 = vunpack.c.l.b16 %v179
  %v226 = vunpack.c.h.b16 %v179
  %v227 = vunpack.c.l.b16 %v180
  %v228 = vunpack.c.h.b16 %v180
  %v229 = vunpack.c.l.b16 %v181
  %v230 = vunpack.c.h.b16 %v181
  %v231 = vunpack.c.l.b16 %v182
  %v232 = vunpack.c.h.b16 %v182
  %v233 = vunpack.c.l.b16 %v183
  %v234 = vunpack.c.h.b16 %v183
  %v235 = vunpack.c.l.b16 %v184
  %v236 = vunpack.c.h.b16 %v184
  %v237 = vunpack.c.l.b16 %v185
  %v238 = vunpack.c.h.b16 %v185
  %v239 = vunpack.c.l.b16 %v186
  %v240 = vunpack.c.h.b16 %v186
  %v241 = vunpack.c.l.b16 %v187
  %v242 = vunpack.c.h.b16 %v187
  %v243 = vunpack.c.l.b16 %v188
  %v244 = vunpack.c.h.b16 %v188
  %v245 = vunpack.c.l.b16 %v189
  %v246 = vunpack.c.h.b16 %v189
  %v247 = vunpack.c.l.b16 %v190
  %v248 = vunpack.c.h.b16 %v190
  %v249 = vpack.c.b16 %v219, %v217
  %v250 = vpack.c.b16 %v220, %v218
  %v251 = vpack.c.b16 %v223, %v221
  %v252 = vpack.c.b16 %v224, %v222
  %v253 = vpack.c.b16 %v227, %v225
  %v254 = vpack.c.b16 %v228, %v226
  %v255 = vpack.c.b16 %v231, %v229
  %v256 = vpack.c.b16 %v232, %v230
  %v257 = vpack.c.b16 %v235, %v233
  %v258 = vpack.c.b16 %v236, %v234
  %v259 = vpack.c.b16 %v239, %v237
  %v260 = vpack.c.b16 %v240, %v238
  %v261 = vpack.c.b16 %v243, %v241
  %v262 = vpack.c.b16 %v244, %v242
  %v263 = vpack.c.b16 %v247, %v245
  %v264 = vpack.c.b16 %v248, %v246
  %281 = vmatpush.bf16.msra.mxu0 %v263
  %282 = vmatpush.bf16.msra.mxu0 %v261
  %283 = vmatpush.bf16.msra.mxu0 %v259
  %284 = vmatpush.bf16.msra.mxu0 %v257
  %285 = vmatpush.bf16.msra.mxu0 %v255
  %286 = vmatpush.bf16.msra.mxu0 %v253
  %287 = vmatpush.bf16.msra.mxu0 %v251
  %288 = vmatpush.bf16.msra.mxu0 %v249
  %289 = vmatmul.bf16.gmra.mxu0 %v197
  %v290 = vpop.f32.mrf.mxu0
  %v291 = vadd.f32 0.0, %v290
  %v292 = vpop.f32.mrf.mxu0
  %v293 = vadd.f32 0.0, %v292
  %294 = vmatmul.bf16.gmra.mxu0 %v198
  %v295 = vpop.f32.mrf.mxu0
  %v296 = vadd.f32 0.0, %v295
  %v297 = vpop.f32.mrf.mxu0
  %298 = vdwg.mxu0
  %299 = vmatpush.bf16.msra.mxu0 %v264
  %300 = vmatpush.bf16.msra.mxu0 %v262
  %301 = vmatpush.bf16.msra.mxu0 %v260
  %302 = vmatpush.bf16.msra.mxu0 %v258
  %303 = vmatpush.bf16.msra.mxu0 %v256
  %304 = vmatpush.bf16.msra.mxu0 %v254
  %305 = vmatpush.bf16.msra.mxu0 %v252
  %306 = vmatpush.bf16.msra.mxu0 %v250
  %307 = vmatmul.bf16.gmra.mxu0 %v197
  %v308 = vpop.f32.mrf.mxu0
  %v309 = vadd.f32 0.0, %v308
  %v310 = vpop.f32.mrf.mxu0
  %v311 = vadd.f32 0.0, %v310
  %312 = vmatmul.bf16.gmra.mxu0 %v198
  %v313 = vpop.f32.mrf.mxu0
  %v314 = vadd.f32 0.0, %v313
  %v315 = vpop.f32.mrf.mxu0
  %316 = vdwg.mxu0
  %v317 = vadd.f32 %v148, %v291
  %v318 = vadd.f32 %v166, %v309
  %v319 = vadd.f32 %v150, %v293
  %v320 = vadd.f32 %v168, %v311
  %v321 = vadd.f32 %v153, %v296
  %v322 = vadd.f32 %v171, %v314
  %s323 = scalar_lea.vmem %s2, 256
  %v324 = vld [vmem:[%s323] sm:$0xff]
  %v325 = vld [vmem:[%s323 + $0x8] sm:$0xff]
  %v326 = vld [vmem:[%s323 + $0x10] sm:$0xff]
  %v327 = vld [vmem:[%s323 + $0x18] sm:$0xff]
  %v328 = vld [vmem:[%s323 + $0x20] sm:$0xff]
  %v329 = vld [vmem:[%s323 + $0x28] sm:$0xff]
  %v330 = vld [vmem:[%s323 + $0x30] sm:$0xff]
  %v331 = vld [vmem:[%s323 + $0x38] sm:$0xff]
  %v332 = vld [vmem:[%s323 + $0x40] sm:$0xff]
  %v333 = vld [vmem:[%s323 + $0x48] sm:$0xff]
  %v334 = vld [vmem:[%s323 + $0x50] sm:$0xff]
  %v335 = vld [vmem:[%s323 + $0x58] sm:$0xff]
  %v336 = vld [vmem:[%s323 + $0x60] sm:$0xff]
  %v337 = vld [vmem:[%s323 + $0x68] sm:$0xff]
  %v338 = vld [vmem:[%s323 + $0x70] sm:$0xff]
  %v339 = vld [vmem:[%s323 + $0x78] sm:$0xff]
  %v356 = vunpack.c.l.b16 %v324
  %v357 = vunpack.c.h.b16 %v324
  %v358 = vunpack.c.l.b16 %v325
  %v359 = vunpack.c.h.b16 %v325
  %v360 = vunpack.c.l.b16 %v326
  %v361 = vunpack.c.h.b16 %v326
  %v362 = vunpack.c.l.b16 %v327
  %v363 = vunpack.c.h.b16 %v327
  %v364 = vunpack.c.l.b16 %v328
  %v365 = vunpack.c.h.b16 %v328
  %v366 = vunpack.c.l.b16 %v329
  %v367 = vunpack.c.h.b16 %v329
  %v368 = vunpack.c.l.b16 %v330
  %v369 = vunpack.c.h.b16 %v330
  %v370 = vunpack.c.l.b16 %v331
  %v371 = vunpack.c.h.b16 %v331
  %v372 = vunpack.c.l.b16 %v332
  %v373 = vunpack.c.h.b16 %v332
  %v374 = vunpack.c.l.b16 %v333
  %v375 = vunpack.c.h.b16 %v333
  %v376 = vunpack.c.l.b16 %v334
  %v377 = vunpack.c.h.b16 %v334
  %v378 = vunpack.c.l.b16 %v335
  %v379 = vunpack.c.h.b16 %v335
  %v380 = vunpack.c.l.b16 %v336
  %v381 = vunpack.c.h.b16 %v336
  %v382 = vunpack.c.l.b16 %v337
  %v383 = vunpack.c.h.b16 %v337
  %v384 = vunpack.c.l.b16 %v338
  %v385 = vunpack.c.h.b16 %v338
  %v386 = vunpack.c.l.b16 %v339
  %v387 = vunpack.c.h.b16 %v339
  %v388 = vpack.c.b16 %v358, %v356
  %v389 = vpack.c.b16 %v359, %v357
  %v390 = vpack.c.b16 %v362, %v360
  %v391 = vpack.c.b16 %v363, %v361
  %v392 = vpack.c.b16 %v366, %v364
  %v393 = vpack.c.b16 %v367, %v365
  %v394 = vpack.c.b16 %v370, %v368
  %v395 = vpack.c.b16 %v371, %v369
  %v396 = vpack.c.b16 %v374, %v372
  %v397 = vpack.c.b16 %v375, %v373
  %v398 = vpack.c.b16 %v378, %v376
  %v399 = vpack.c.b16 %v379, %v377
  %v400 = vpack.c.b16 %v382, %v380
  %v401 = vpack.c.b16 %v383, %v381
  %v402 = vpack.c.b16 %v386, %v384
  %v403 = vpack.c.b16 %v387, %v385
  %420 = vmatpush.bf16.msra.mxu0 %v402
  %421 = vmatpush.bf16.msra.mxu0 %v400
  %422 = vmatpush.bf16.msra.mxu0 %v398
  %423 = vmatpush.bf16.msra.mxu0 %v396
  %424 = vmatpush.bf16.msra.mxu0 %v394
  %425 = vmatpush.bf16.msra.mxu0 %v392
  %426 = vmatpush.bf16.msra.mxu0 %v390
  %427 = vmatpush.bf16.msra.mxu0 %v388
  %428 = vmatmul.bf16.gmra.mxu0 %v54
  %v429 = vpop.f32.mrf.mxu0
  %v430 = vadd.f32 0.0, %v429
  %v431 = vpop.f32.mrf.mxu0
  %v432 = vadd.f32 0.0, %v431
  %433 = vmatmul.bf16.gmra.mxu0 %v55
  %v434 = vpop.f32.mrf.mxu0
  %v435 = vadd.f32 0.0, %v434
  %v436 = vpop.f32.mrf.mxu0
  %437 = vdwg.mxu0
  %438 = vmatpush.bf16.msra.mxu0 %v403
  %439 = vmatpush.bf16.msra.mxu0 %v401
  %440 = vmatpush.bf16.msra.mxu0 %v399
  %441 = vmatpush.bf16.msra.mxu0 %v397
  %442 = vmatpush.bf16.msra.mxu0 %v395
  %443 = vmatpush.bf16.msra.mxu0 %v393
  %444 = vmatpush.bf16.msra.mxu0 %v391
  %445 = vmatpush.bf16.msra.mxu0 %v389
  %446 = vmatmul.bf16.gmra.mxu0 %v54
  %v447 = vpop.f32.mrf.mxu0
  %v448 = vadd.f32 0.0, %v447
  %v449 = vpop.f32.mrf.mxu0
  %v450 = vadd.f32 0.0, %v449
  %451 = vmatmul.bf16.gmra.mxu0 %v55
  %v452 = vpop.f32.mrf.mxu0
  %v453 = vadd.f32 0.0, %v452
  %v454 = vpop.f32.mrf.mxu0
  %455 = vdwg.mxu0
  %vm460 = vcmask 1046528
  %v461 = vrot.slane %v430, 1
  %v462 = vrot.slane %v432, 1
  %v463 = vsel %vm460, %v461, %v462
  %v464 = vrot.slane %v448, 1
  %v465 = vrot.slane %v450, 1
  %v466 = vsel %vm460, %v464, %v465
  %v469 = vadd.f32 %v317, %v463
  %v470 = vadd.f32 %v318, %v466
  %v473 = vrot.slane %v435, 1
  %v474 = vsel %vm460, %v462, %v473
  %v475 = vrot.slane %v453, 1
  %v476 = vsel %vm460, %v465, %v475
  %v481 = vadd.f32 %v319, %v474
  %v482 = vadd.f32 %v320, %v476
  %v483 = vadd.f32 %v321, %v473
  %v484 = vadd.f32 %v322, %v475
  %v489 = vrot.slane %v481, 1
  %v490 = vrot.slane %v483, 1
  %v491 = vsel %vm460, %v489, %v490
  %v492 = vrot.slane %v482, 1
  %v493 = vrot.slane %v484, 1
  %v494 = vsel %vm460, %v492, %v493
  %v498 = vperm.slane %v30, 0
  %v499 = vperm.slane %v30, 1
  %v502 = vadd.f32 %v469, %v498
  %v503 = vadd.f32 %v470, %v499
  %v504 = vadd.f32 %v491, %v498
  %v505 = vadd.f32 %v494, %v499
  %v506 = vmax.f32 %v502, 0.0
  %v507 = vmax.f32 %v504, 0.0
  %v508 = vpack.c.bf16 %v506, %v506
  %v509 = vpack.c.bf16 %v507, %v507
  %v511 = vunpack.c.l.b16 %v508
  %v512 = vpack.c.b16 %v511, %v511
  %v514 = vshrl.u32 %v512, 16
  %v516 = vrot.slane %v514, 7
  %v517 = vshll.u32 %v512, 16
  %v519 = vor.u32 %v516, %v517
  %v522 = vunpack.c.l.b16 %v509
  %v523 = vpack.c.b16 %v522, %v522
  %v525 = vshrl.u32 %v523, 16
  %v527 = vrot.slane %v525, 2
  %v528 = vshll.u32 %v523, 16
  %v530 = vrot.slane %v528, 3
  %v531 = vor.u32 %v527, %v530
  %vm533 = vcmask 1040384
  %vm534 = vsmask.f32 256
  %vm535 = vmand %vm533, %vm534
  %v536 = vsel %vm535, 0, %v519
  %vm537 = vcmask 1044480
  %vm538 = vsmask.f32 4352
  %vm539 = vmand %vm537, %vm538
  %v540 = vsel %vm539, %v536, 0
  %vm541 = vcmask 1044480
  %v544 = vsel %vm541, %v540, 0
  %vm546 = vcmask 1045504
  %vm547 = vsmask.f32 5376
  %vm548 = vmand %vm546, %vm547
  %v549 = vsel %vm548, %v544, %v531
  %vm550 = vcmask 1041408
  %vm551 = vsmask.f32 1280
  %vm552 = vmand %vm550, %vm551
  %v553 = vsel %vm552, %v531, 0
  %v554 = vld [vmem:[%s4] sm:$0xf]
  %v555 = vld [vmem:[%s4 + $0x4] sm:$0xf]
  %v556 = vld [vmem:[%s4 + $0x8] sm:$0xf]
  %v557 = vld [vmem:[%s4 + $0xc] sm:$0xf]
  %v558 = vld [vmem:[%s4 + $0x10] sm:$0xf]
  %v559 = vld [vmem:[%s4 + $0x14] sm:$0xf]
  %v560 = vld [vmem:[%s4 + $0x18] sm:$0xf]
  %v561 = vld [vmem:[%s4 + $0x1c] sm:$0xf]
  %v562 = vld [vmem:[%s4 + $0x20] sm:$0xf]
  %v563 = vld [vmem:[%s4 + $0x24] sm:$0xf]
  %v564 = vld [vmem:[%s4 + $0x28] sm:$0xf]
  %v565 = vld [vmem:[%s4 + $0x2c] sm:$0xf]
  %v566 = vld [vmem:[%s4 + $0x30] sm:$0xf]
  %v567 = vld [vmem:[%s4 + $0x34] sm:$0xf]
  %v568 = vld [vmem:[%s4 + $0x38] sm:$0xf]
  %v569 = vld [vmem:[%s4 + $0x3c] sm:$0xf]
  %v586 = vunpack.c.l.b16 %v554
  %v587 = vunpack.c.l.b16 %v555
  %v588 = vunpack.c.l.b16 %v556
  %v589 = vunpack.c.l.b16 %v557
  %v590 = vunpack.c.l.b16 %v558
  %v591 = vunpack.c.l.b16 %v559
  %v592 = vunpack.c.l.b16 %v560
  %v593 = vunpack.c.l.b16 %v561
  %v594 = vunpack.c.l.b16 %v562
  %v595 = vunpack.c.l.b16 %v563
  %v596 = vunpack.c.l.b16 %v564
  %v597 = vunpack.c.l.b16 %v565
  %v598 = vunpack.c.l.b16 %v566
  %v599 = vunpack.c.l.b16 %v567
  %v600 = vunpack.c.l.b16 %v568
  %v601 = vunpack.c.l.b16 %v569
  %v602 = vpack.c.b16 %v587, %v586
  %v603 = vpack.c.b16 %v589, %v588
  %v604 = vpack.c.b16 %v591, %v590
  %v605 = vpack.c.b16 %v593, %v592
  %v606 = vpack.c.b16 %v595, %v594
  %v607 = vpack.c.b16 %v597, %v596
  %v608 = vpack.c.b16 %v599, %v598
  %v609 = vpack.c.b16 %v601, %v600
  %618 = vmatpush.bf16.msra.mxu0 %v609
  %619 = vmatpush.bf16.msra.mxu0 %v608
  %620 = vmatpush.bf16.msra.mxu0 %v607
  %621 = vmatpush.bf16.msra.mxu0 %v606
  %622 = vmatpush.bf16.msra.mxu0 %v605
  %623 = vmatpush.bf16.msra.mxu0 %v604
  %624 = vmatpush.bf16.msra.mxu0 %v603
  %625 = vmatpush.bf16.msra.mxu0 %v602
  %626 = vmatmul.bf16.gmra.mxu0 %v549
  %v627 = vpop.f32.mrf.mxu0
  %v628 = vadd.f32 0.0, %v627
  %v629 = vpop.f32.mrf.mxu0
  %v630 = vadd.f32 0.0, %v629
  %631 = vmatmul.bf16.gmra.mxu0 %v553
  %v632 = vpop.f32.mrf.mxu0
  %v633 = vadd.f32 0.0, %v632
  %v634 = vpop.f32.mrf.mxu0
  %635 = vdwg.mxu0
  %s636 = scalar_lea.vmem %s4, 64
  %v637 = vld [vmem:[%s636] sm:$0xf]
  %v638 = vld [vmem:[%s636 + $0x4] sm:$0xf]
  %v639 = vld [vmem:[%s636 + $0x8] sm:$0xf]
  %v640 = vld [vmem:[%s636 + $0xc] sm:$0xf]
  %v641 = vld [vmem:[%s636 + $0x10] sm:$0xf]
  %v642 = vld [vmem:[%s636 + $0x14] sm:$0xf]
  %v643 = vld [vmem:[%s636 + $0x18] sm:$0xf]
  %v644 = vld [vmem:[%s636 + $0x1c] sm:$0xf]
  %v645 = vld [vmem:[%s636 + $0x20] sm:$0xf]
  %v646 = vld [vmem:[%s636 + $0x24] sm:$0xf]
  %v647 = vld [vmem:[%s636 + $0x28] sm:$0xf]
  %v648 = vld [vmem:[%s636 + $0x2c] sm:$0xf]
  %v649 = vld [vmem:[%s636 + $0x30] sm:$0xf]
  %v650 = vld [vmem:[%s636 + $0x34] sm:$0xf]
  %v651 = vld [vmem:[%s636 + $0x38] sm:$0xf]
  %v652 = vld [vmem:[%s636 + $0x3c] sm:$0xf]
  %v669 = vunpack.c.l.b16 %v637
  %v670 = vunpack.c.l.b16 %v638
  %v671 = vunpack.c.l.b16 %v639
  %v672 = vunpack.c.l.b16 %v640
  %v673 = vunpack.c.l.b16 %v641
  %v674 = vunpack.c.l.b16 %v642
  %v675 = vunpack.c.l.b16 %v643
  %v676 = vunpack.c.l.b16 %v644
  %v677 = vunpack.c.l.b16 %v645
  %v678 = vunpack.c.l.b16 %v646
  %v679 = vunpack.c.l.b16 %v647
  %v680 = vunpack.c.l.b16 %v648
  %v681 = vunpack.c.l.b16 %v649
  %v682 = vunpack.c.l.b16 %v650
  %v683 = vunpack.c.l.b16 %v651
  %v684 = vunpack.c.l.b16 %v652
  %v685 = vpack.c.b16 %v670, %v669
  %v686 = vpack.c.b16 %v672, %v671
  %v687 = vpack.c.b16 %v674, %v673
  %v688 = vpack.c.b16 %v676, %v675
  %v689 = vpack.c.b16 %v678, %v677
  %v690 = vpack.c.b16 %v680, %v679
  %v691 = vpack.c.b16 %v682, %v681
  %v692 = vpack.c.b16 %v684, %v683
  %701 = vmatpush.bf16.msra.mxu0 %v692
  %702 = vmatpush.bf16.msra.mxu0 %v691
  %703 = vmatpush.bf16.msra.mxu0 %v690
  %704 = vmatpush.bf16.msra.mxu0 %v689
  %705 = vmatpush.bf16.msra.mxu0 %v688
  %706 = vmatpush.bf16.msra.mxu0 %v687
  %707 = vmatpush.bf16.msra.mxu0 %v686
  %708 = vmatpush.bf16.msra.mxu0 %v685
  %709 = vmatmul.bf16.gmra.mxu0 %v549
  %v710 = vpop.f32.mrf.mxu0
  %v711 = vadd.f32 0.0, %v710
  %v712 = vpop.f32.mrf.mxu0
  %v713 = vadd.f32 0.0, %v712
  %714 = vmatmul.bf16.gmra.mxu0 %v553
  %v715 = vpop.f32.mrf.mxu0
  %v716 = vadd.f32 0.0, %v715
  %v717 = vpop.f32.mrf.mxu0
  %718 = vdwg.mxu0
  %v721 = vrot.slane %v711, 1
  %v722 = vrot.slane %v713, 1
  %v723 = vsel %vm460, %v721, %v722
  %v725 = vadd.f32 %v628, %v723
  %v727 = vrot.slane %v716, 1
  %v728 = vsel %vm460, %v722, %v727
  %v731 = vadd.f32 %v630, %v728
  %v732 = vadd.f32 %v633, %v727
  %s733 = scalar_lea.vmem %s4, 128
  %v734 = vld [vmem:[%s733] sm:$0xf]
  %v735 = vld [vmem:[%s733 + $0x4] sm:$0xf]
  %v736 = vld [vmem:[%s733 + $0x8] sm:$0xf]
  %v737 = vld [vmem:[%s733 + $0xc] sm:$0xf]
  %v738 = vld [vmem:[%s733 + $0x10] sm:$0xf]
  %v739 = vld [vmem:[%s733 + $0x14] sm:$0xf]
  %v740 = vld [vmem:[%s733 + $0x18] sm:$0xf]
  %v741 = vld [vmem:[%s733 + $0x1c] sm:$0xf]
  %v742 = vld [vmem:[%s733 + $0x20] sm:$0xf]
  %v743 = vld [vmem:[%s733 + $0x24] sm:$0xf]
  %v744 = vld [vmem:[%s733 + $0x28] sm:$0xf]
  %v745 = vld [vmem:[%s733 + $0x2c] sm:$0xf]
  %v746 = vld [vmem:[%s733 + $0x30] sm:$0xf]
  %v747 = vld [vmem:[%s733 + $0x34] sm:$0xf]
  %v748 = vld [vmem:[%s733 + $0x38] sm:$0xf]
  %v749 = vld [vmem:[%s733 + $0x3c] sm:$0xf]
  %v766 = vunpack.c.l.b16 %v734
  %v767 = vunpack.c.l.b16 %v735
  %v768 = vunpack.c.l.b16 %v736
  %v769 = vunpack.c.l.b16 %v737
  %v770 = vunpack.c.l.b16 %v738
  %v771 = vunpack.c.l.b16 %v739
  %v772 = vunpack.c.l.b16 %v740
  %v773 = vunpack.c.l.b16 %v741
  %v774 = vunpack.c.l.b16 %v742
  %v775 = vunpack.c.l.b16 %v743
  %v776 = vunpack.c.l.b16 %v744
  %v777 = vunpack.c.l.b16 %v745
  %v778 = vunpack.c.l.b16 %v746
  %v779 = vunpack.c.l.b16 %v747
  %v780 = vunpack.c.l.b16 %v748
  %v781 = vunpack.c.l.b16 %v749
  %v782 = vpack.c.b16 %v767, %v766
  %v783 = vpack.c.b16 %v769, %v768
  %v784 = vpack.c.b16 %v771, %v770
  %v785 = vpack.c.b16 %v773, %v772
  %v786 = vpack.c.b16 %v775, %v774
  %v787 = vpack.c.b16 %v777, %v776
  %v788 = vpack.c.b16 %v779, %v778
  %v789 = vpack.c.b16 %v781, %v780
  %798 = vmatpush.bf16.msra.mxu0 %v789
  %799 = vmatpush.bf16.msra.mxu0 %v788
  %800 = vmatpush.bf16.msra.mxu0 %v787
  %801 = vmatpush.bf16.msra.mxu0 %v786
  %802 = vmatpush.bf16.msra.mxu0 %v785
  %803 = vmatpush.bf16.msra.mxu0 %v784
  %804 = vmatpush.bf16.msra.mxu0 %v783
  %805 = vmatpush.bf16.msra.mxu0 %v782
  %806 = vmatmul.bf16.gmra.mxu0 %v549
  %v807 = vpop.f32.mrf.mxu0
  %v808 = vadd.f32 0.0, %v807
  %v809 = vpop.f32.mrf.mxu0
  %v810 = vadd.f32 0.0, %v809
  %811 = vmatmul.bf16.gmra.mxu0 %v553
  %v812 = vpop.f32.mrf.mxu0
  %v813 = vadd.f32 0.0, %v812
  %v814 = vpop.f32.mrf.mxu0
  %815 = vdwg.mxu0
  %vm818 = vcmask 1045504
  %v819 = vrot.slane %v808, 2
  %v820 = vrot.slane %v810, 2
  %v821 = vsel %vm818, %v819, %v820
  %v823 = vadd.f32 %v725, %v821
  %v825 = vrot.slane %v813, 2
  %v826 = vsel %vm818, %v820, %v825
  %v829 = vadd.f32 %v731, %v826
  %v830 = vadd.f32 %v732, %v825
  %v833 = vrot.slane %v829, 2
  %v834 = vrot.slane %v830, 2
  %v835 = vsel %vm818, %v833, %v834
  %v838 = vperm.slane %v31, 0
  %v840 = vadd.f32 %v823, %v838
  %v841 = vadd.f32 %v835, %v838
  %v842 = vadd.f32 %v840, %v503
  %v843 = vadd.f32 %v841, %v505
  %v844 = vmax.f32 %v842, 0.0
  %v845 = vmax.f32 %v843, 0.0
  %846 = vst [vmem:[%s6] sm:$0xff] %v844
  %847 = vst [vmem:[%s6 + $0x8] sm:$0xff] %v845
  // Predicated region
  $region26: #{backbone_base_forward.7} parent=0 // pred_check
    _
  $region27: #{backbone_base_forward.7} parent=0 // pred_check_branch
    %849 = sbr.rel (0) target = $region29
  $region28: #{backbone_base_forward.7} parent=0 // pred_region
    _
  $region29: #{backbone_base_forward.7} parent=0 // pred_fallthru
    _
  // Predicated region
  $region30: #{backbone_base_forward.7} parent=0 // pred_check
    _
  $region31: #{backbone_base_forward.7} parent=0 // pred_check_branch
    %851 = sbr.rel (0) target = $region33
  $region32: #{backbone_base_forward.7} parent=0 // pred_region
    _
  $region33: #{backbone_base_forward.7} parent=0 // pred_fallthru
    _

// kernel: tile.93
$region0: #{tile.93}
  #allocation0 [shape = 's32[1]{0}', space=sflag, size = 0x4, scoped, tag = 'scoped memory for tile.93']
  %s0 = inlined_call_operand.vmem [shape: f32[32], index: 0, kind: input, shape index: {}]
  %s1 = inlined_call_operand.vmem [shape: f32[4,32], index: 1, kind: output, shape index: {}]
  // Predicated region
  $region2: #{tile.93} parent=0 // pred_check
    _
  $region3: #{tile.93} parent=0 // pred_check_branch
    %3 = sbr.rel (0) target = $region5
  $region4: #{tile.93} parent=0 // pred_region
    _
  $region5: #{tile.93} parent=0 // pred_fallthru
    _
  %v4 = vld [vmem:[%s0] ss:$0 sm:$0xff]
  %5 = vst [vmem:[%s1] sm:$0xf] %v4

// kernel: tile.94
$region0: #{tile.94}
  %s0 = inlined_call_operand.vmem [shape: f32[4,32], index: 0, kind: input, shape index: {}]
  %s1 = inlined_call_operand.vmem [shape: f32[128], index: 1, kind: output, shape index: {}]
  $region1: #{tile.94} parent=0
    #allocation0 [shape = 'u8[4096]{0}', space=vmem, size = 0x1000, scoped, tag = 'scoped mem for output reshape']
    #allocation1 [shape = 'u8[4096]{0}', space=vmem, size = 0x1000, scoped, tag = 'scoped mem for input reshape']
    %s3 = ssub.s32 16, 1
    %v4 = vld [vmem:[%s0] sm:%s3]
    %5 = vst [vmem:[#allocation1] sm:%s3] %v4
    %v6 = vld [vmem:[#allocation1] sm:$0x1]
    %vm7 = vcmask 261120
    %8 = vst.msk [vmem:[#allocation0] sm:$0x1] %vm7, %v6
    %s9 = scalar_lea.vmem [#allocation1], 3
    %v10 = vld [vmem:[%s9] sm:$0x1]
    %11 = vrot.lane.b32.xlu0 %v10, 96
    %v12 = vpop.permute.xlu0 %11
    %vm13 = vcmask 1048320
    %14 = vst.msk [vmem:[#allocation0] sm:$0x1] %vm13, %v12
    %s15 = scalar_lea.vmem [#allocation1], 2
    %v16 = vld [vmem:[%s15] sm:$0x1]
    %17 = vrot.lane.b32.xlu0 %v16, 64
    %v18 = vpop.permute.xlu0 %17
    %vm19 = vcmask 785920
    %20 = vst.msk [vmem:[#allocation0] sm:$0x1] %vm19, %v18
    %s21 = scalar_lea.vmem [#allocation1], 1
    %v22 = vld [vmem:[%s21] sm:$0x1]
    %23 = vrot.lane.b32.xlu0 %v22, 32
    %v24 = vpop.permute.xlu0 %23
    %vm25 = vcmask 523520
    %26 = vst.msk [vmem:[#allocation0] sm:$0x1] %vm25, %v24
    %s28 = ssub.s32 2, 1
    %v29 = vld [vmem:[#allocation0] sm:%s28]
    %s31 = ssub.s32 2, 1
    %32 = vst [vmem:[%s1] sm:%s31] %v29

// kernel: tile.104
$region0: #{tile.104}
  %s0 = inlined_call_operand.vmem [shape: f32[4,32], index: 0, kind: input, shape index: {}]
  %s1 = inlined_call_operand.vmem [shape: f32[1,128], index: 1, kind: output, shape index: {}]
  $region1: #{tile.104} parent=0
    #allocation0 [shape = 'u8[4096]{0}', space=vmem, size = 0x1000, scoped, tag = 'scoped mem for output reshape']
    #allocation1 [shape = 'u8[4096]{0}', space=vmem, size = 0x1000, scoped, tag = 'scoped mem for input reshape']
    %s3 = ssub.s32 16, 1
    %v4 = vld [vmem:[%s0] sm:%s3]
    %5 = vst [vmem:[#allocation1] sm:%s3] %v4
    %v6 = vld [vmem:[#allocation1] sm:$0x1]
    %vm7 = vcmask 261120
    %8 = vst.msk [vmem:[#allocation0] sm:$0x1] %vm7, %v6
    %s9 = scalar_lea.vmem [#allocation1], 3
    %v10 = vld [vmem:[%s9] sm:$0x1]
    %11 = vrot.lane.b32.xlu0 %v10, 96
    %v12 = vpop.permute.xlu0 %11
    %vm13 = vcmask 1048320
    %14 = vst.msk [vmem:[#allocation0] sm:$0x1] %vm13, %v12
    %s15 = scalar_lea.vmem [#allocation1], 2
    %v16 = vld [vmem:[%s15] sm:$0x1]
    %17 = vrot.lane.b32.xlu0 %v16, 64
    %v18 = vpop.permute.xlu0 %17
    %vm19 = vcmask 785920
    %20 = vst.msk [vmem:[#allocation0] sm:$0x1] %vm19, %v18
    %s21 = scalar_lea.vmem [#allocation1], 1
    %v22 = vld [vmem:[%s21] sm:$0x1]
    %23 = vrot.lane.b32.xlu0 %v22, 32
    %v24 = vpop.permute.xlu0 %23
    %vm25 = vcmask 523520
    %26 = vst.msk [vmem:[#allocation0] sm:$0x1] %vm25, %v24
    %s28 = ssub.s32 2, 1
    %v29 = vld [vmem:[#allocation0] sm:%s28]
    %s31 = ssub.s32 2, 1
    %32 = vst [vmem:[%s1] sm:%s31] %v29

// kernel: backbone_base_forward.8
$region0: #{backbone_base_forward.8}
  #allocation0 [shape = 'u32[]', space=smem, size = 0x4, offset = 0x4, fixed_abs, tag = 'smem constant byte address 0x4 - core index']
  #allocation1 [shape = 'u32[72,128]{1,0:T(1,128)}', space=vmem, size = 0x9000, scoped, tag = 'internal scratch']
  %s0 = inlined_call_operand.vmem [shape: bf16[10,128], index: 0, kind: input, shape index: {}]
  %s1 = inlined_call_operand.vmem [shape: bf16[10,128], index: 1, kind: input, shape index: {}]
  %s2 = inlined_call_operand.vmem [shape: bf16[3,128,256], index: 2, kind: input, shape index: {}]
  %s3 = inlined_call_operand.vmem [shape: f32[1,256], index: 3, kind: input, shape index: {}]
  %s4 = inlined_call_operand.vmem [shape: bf16[3,128,128], index: 4, kind: input, shape index: {}]
  %s5 = inlined_call_operand.vmem [shape: f32[1,128], index: 5, kind: input, shape index: {}]
  %s6 = inlined_call_operand.vmem [shape: f32[8,128], index: 6, kind: output, shape index: {}]
  %s7 = sld [smem:[#allocation0]]
  $region34: #{backbone_base_forward.8} parent=0
    _
  %s9 = ssub.s32 1, %s7
  %s10 = scalar_select 0, %s9, %s7
  // Predicated region
  $region2: #{backbone_base_forward.8} parent=0 // pred_check
    _
  $region3: #{backbone_base_forward.8} parent=0 // pred_check_branch
    %12 = sbr.rel (0) target = $region5
  $region4: #{backbone_base_forward.8} parent=0 // pred_region
    _
  $region5: #{backbone_base_forward.8} parent=0 // pred_fallthru
    _
  // Predicated region
  $region6: #{backbone_base_forward.8} parent=0 // pred_check
    _
  $region7: #{backbone_base_forward.8} parent=0 // pred_check_branch
    %14 = sbr.rel (0) target = $region9
  $region8: #{backbone_base_forward.8} parent=0 // pred_region
    _
  $region9: #{backbone_base_forward.8} parent=0 // pred_fallthru
    _
  // Predicated region
  $region10: #{backbone_base_forward.8} parent=0 // pred_check
    _
  $region11: #{backbone_base_forward.8} parent=0 // pred_check_branch
    %16 = sbr.rel (0) target = $region13
  $region12: #{backbone_base_forward.8} parent=0 // pred_region
    _
  $region13: #{backbone_base_forward.8} parent=0 // pred_fallthru
    _
  // Predicated region
  $region14: #{backbone_base_forward.8} parent=0 // pred_check
    _
  $region15: #{backbone_base_forward.8} parent=0 // pred_check_branch
    %18 = sbr.rel (0) target = $region17
  $region16: #{backbone_base_forward.8} parent=0 // pred_region
    _
  $region17: #{backbone_base_forward.8} parent=0 // pred_fallthru
    _
  // Predicated region
  $region18: #{backbone_base_forward.8} parent=0 // pred_check
    _
  $region19: #{backbone_base_forward.8} parent=0 // pred_check_branch
    %20 = sbr.rel (0) target = $region21
  $region20: #{backbone_base_forward.8} parent=0 // pred_region
    _
  $region21: #{backbone_base_forward.8} parent=0 // pred_fallthru
    _
  // Predicated region
  $region22: #{backbone_base_forward.8} parent=0 // pred_check
    _
  $region23: #{backbone_base_forward.8} parent=0 // pred_check_branch
    %22 = sbr.rel (0) target = $region25
  $region24: #{backbone_base_forward.8} parent=0 // pred_region
    _
  $region25: #{backbone_base_forward.8} parent=0 // pred_fallthru
    _
  %v24 = vld [vmem:[%s0] sm:$0xf]
  %v25 = vld [vmem:[%s0 + $0x4] sm:$0x1]
  %v26 = vld [vmem:[%s1] sm:$0xf]
  %v27 = vld [vmem:[%s1 + $0x4] sm:$0x1]
  %v28 = vld [vmem:[%s3] sm:$0x3]
  %v29 = vld [vmem:[%s5] sm:$0x1]
  %v30 = vld [vmem:[%s2] sm:$0xff]
  %v31 = vld [vmem:[%s2 + $0x8] sm:$0xff]
  %v32 = vld [vmem:[%s2 + $0x10] sm:$0xff]
  %v33 = vld [vmem:[%s2 + $0x18] sm:$0xff]
  %v34 = vld [vmem:[%s2 + $0x20] sm:$0xff]
  %v35 = vld [vmem:[%s2 + $0x28] sm:$0xff]
  %v36 = vld [vmem:[%s2 + $0x30] sm:$0xff]
  %v37 = vld [vmem:[%s2 + $0x38] sm:$0xff]
  %v38 = vld [vmem:[%s2 + $0x40] sm:$0xff]
  %v39 = vld [vmem:[%s2 + $0x48] sm:$0xff]
  %v40 = vld [vmem:[%s2 + $0x50] sm:$0xff]
  %v41 = vld [vmem:[%s2 + $0x58] sm:$0xff]
  %v42 = vld [vmem:[%s2 + $0x60] sm:$0xff]
  %v43 = vld [vmem:[%s2 + $0x68] sm:$0xff]
  %v44 = vld [vmem:[%s2 + $0x70] sm:$0xff]
  %v45 = vld [vmem:[%s2 + $0x78] sm:$0xff]
  %v48 = vunpack.c.l.b16 %v24
  %v49 = vunpack.c.l.b16 %v25
  %v50 = vpack.c.b16 %v49, %v48
  %v68 = vunpack.c.l.b16 %v30
  %v69 = vunpack.c.h.b16 %v30
  %v70 = vunpack.c.l.b16 %v31
  %v71 = vunpack.c.h.b16 %v31
  %v72 = vunpack.c.l.b16 %v32
  %v73 = vunpack.c.h.b16 %v32
  %v74 = vunpack.c.l.b16 %v33
  %v75 = vunpack.c.h.b16 %v33
  %v76 = vunpack.c.l.b16 %v34
  %v77 = vunpack.c.h.b16 %v34
  %v78 = vunpack.c.l.b16 %v35
  %v79 = vunpack.c.h.b16 %v35
  %v80 = vunpack.c.l.b16 %v36
  %v81 = vunpack.c.h.b16 %v36
  %v82 = vunpack.c.l.b16 %v37
  %v83 = vunpack.c.h.b16 %v37
  %v84 = vunpack.c.l.b16 %v38
  %v85 = vunpack.c.h.b16 %v38
  %v86 = vunpack.c.l.b16 %v39
  %v87 = vunpack.c.h.b16 %v39
  %v88 = vunpack.c.l.b16 %v40
  %v89 = vunpack.c.h.b16 %v40
  %v90 = vunpack.c.l.b16 %v41
  %v91 = vunpack.c.h.b16 %v41
  %v92 = vunpack.c.l.b16 %v42
  %v93 = vunpack.c.h.b16 %v42
  %v94 = vunpack.c.l.b16 %v43
  %v95 = vunpack.c.h.b16 %v43
  %v96 = vunpack.c.l.b16 %v44
  %v97 = vunpack.c.h.b16 %v44
  %v98 = vunpack.c.l.b16 %v45
  %v99 = vunpack.c.h.b16 %v45
  %v100 = vpack.c.b16 %v70, %v68
  %v101 = vpack.c.b16 %v71, %v69
  %v102 = vpack.c.b16 %v74, %v72
  %v103 = vpack.c.b16 %v75, %v73
  %v104 = vpack.c.b16 %v78, %v76
  %v105 = vpack.c.b16 %v79, %v77
  %v106 = vpack.c.b16 %v82, %v80
  %v107 = vpack.c.b16 %v83, %v81
  %v108 = vpack.c.b16 %v86, %v84
  %v109 = vpack.c.b16 %v87, %v85
  %v110 = vpack.c.b16 %v90, %v88
  %v111 = vpack.c.b16 %v91, %v89
  %v112 = vpack.c.b16 %v94, %v92
  %v113 = vpack.c.b16 %v95, %v93
  %v114 = vpack.c.b16 %v98, %v96
  %v115 = vpack.c.b16 %v99, %v97
  %132 = vmatpush.bf16.msra.mxu0 %v114
  %133 = vmatpush.bf16.msra.mxu0 %v112
  %134 = vmatpush.bf16.msra.mxu0 %v110
  %135 = vmatpush.bf16.msra.mxu0 %v108
  %136 = vmatpush.bf16.msra.mxu0 %v106
  %137 = vmatpush.bf16.msra.mxu0 %v104
  %138 = vmatpush.bf16.msra.mxu0 %v102
  %139 = vmatpush.bf16.msra.mxu0 %v100
  %140 = vmatmul.bf16.gmra.mxu0 %v50
  %v141 = vpop.f32.mrf.mxu0
  %v142 = vadd.f32 0.0, %v141
  %v143 = vpop.f32.mrf.mxu0
  %v144 = vadd.f32 0.0, %v143
  %145 = vdwg.mxu0
  %146 = vmatpush.bf16.msra.mxu0 %v115
  %147 = vmatpush.bf16.msra.mxu0 %v113
  %148 = vmatpush.bf16.msra.mxu0 %v111
  %149 = vmatpush.bf16.msra.mxu0 %v109
  %150 = vmatpush.bf16.msra.mxu0 %v107
  %151 = vmatpush.bf16.msra.mxu0 %v105
  %152 = vmatpush.bf16.msra.mxu0 %v103
  %153 = vmatpush.bf16.msra.mxu0 %v101
  %154 = vmatmul.bf16.gmra.mxu0 %v50
  %v155 = vpop.f32.mrf.mxu0
  %v156 = vadd.f32 0.0, %v155
  %v157 = vpop.f32.mrf.mxu0
  %v158 = vadd.f32 0.0, %v157
  %159 = vdwg.mxu0
  %s160 = scalar_lea.vmem %s2, 128
  %v161 = vld [vmem:[%s160] sm:$0xff]
  %v162 = vld [vmem:[%s160 + $0x8] sm:$0xff]
  %v163 = vld [vmem:[%s160 + $0x10] sm:$0xff]
  %v164 = vld [vmem:[%s160 + $0x18] sm:$0xff]
  %v165 = vld [vmem:[%s160 + $0x20] sm:$0xff]
  %v166 = vld [vmem:[%s160 + $0x28] sm:$0xff]
  %v167 = vld [vmem:[%s160 + $0x30] sm:$0xff]
  %v168 = vld [vmem:[%s160 + $0x38] sm:$0xff]
  %v169 = vld [vmem:[%s160 + $0x40] sm:$0xff]
  %v170 = vld [vmem:[%s160 + $0x48] sm:$0xff]
  %v171 = vld [vmem:[%s160 + $0x50] sm:$0xff]
  %v172 = vld [vmem:[%s160 + $0x58] sm:$0xff]
  %v173 = vld [vmem:[%s160 + $0x60] sm:$0xff]
  %v174 = vld [vmem:[%s160 + $0x68] sm:$0xff]
  %v175 = vld [vmem:[%s160 + $0x70] sm:$0xff]
  %v176 = vld [vmem:[%s160 + $0x78] sm:$0xff]
  %v179 = vunpack.c.l.b16 %v26
  %v180 = vunpack.c.l.b16 %v27
  %v181 = vpack.c.b16 %v180, %v179
  %v199 = vunpack.c.l.b16 %v161
  %v200 = vunpack.c.h.b16 %v161
  %v201 = vunpack.c.l.b16 %v162
  %v202 = vunpack.c.h.b16 %v162
  %v203 = vunpack.c.l.b16 %v163
  %v204 = vunpack.c.h.b16 %v163
  %v205 = vunpack.c.l.b16 %v164
  %v206 = vunpack.c.h.b16 %v164
  %v207 = vunpack.c.l.b16 %v165
  %v208 = vunpack.c.h.b16 %v165
  %v209 = vunpack.c.l.b16 %v166
  %v210 = vunpack.c.h.b16 %v166
  %v211 = vunpack.c.l.b16 %v167
  %v212 = vunpack.c.h.b16 %v167
  %v213 = vunpack.c.l.b16 %v168
  %v214 = vunpack.c.h.b16 %v168
  %v215 = vunpack.c.l.b16 %v169
  %v216 = vunpack.c.h.b16 %v169
  %v217 = vunpack.c.l.b16 %v170
  %v218 = vunpack.c.h.b16 %v170
  %v219 = vunpack.c.l.b16 %v171
  %v220 = vunpack.c.h.b16 %v171
  %v221 = vunpack.c.l.b16 %v172
  %v222 = vunpack.c.h.b16 %v172
  %v223 = vunpack.c.l.b16 %v173
  %v224 = vunpack.c.h.b16 %v173
  %v225 = vunpack.c.l.b16 %v174
  %v226 = vunpack.c.h.b16 %v174
  %v227 = vunpack.c.l.b16 %v175
  %v228 = vunpack.c.h.b16 %v175
  %v229 = vunpack.c.l.b16 %v176
  %v230 = vunpack.c.h.b16 %v176
  %v231 = vpack.c.b16 %v201, %v199
  %v232 = vpack.c.b16 %v202, %v200
  %v233 = vpack.c.b16 %v205, %v203
  %v234 = vpack.c.b16 %v206, %v204
  %v235 = vpack.c.b16 %v209, %v207
  %v236 = vpack.c.b16 %v210, %v208
  %v237 = vpack.c.b16 %v213, %v211
  %v238 = vpack.c.b16 %v214, %v212
  %v239 = vpack.c.b16 %v217, %v215
  %v240 = vpack.c.b16 %v218, %v216
  %v241 = vpack.c.b16 %v221, %v219
  %v242 = vpack.c.b16 %v222, %v220
  %v243 = vpack.c.b16 %v225, %v223
  %v244 = vpack.c.b16 %v226, %v224
  %v245 = vpack.c.b16 %v229, %v227
  %v246 = vpack.c.b16 %v230, %v228
  %263 = vmatpush.bf16.msra.mxu0 %v245
  %264 = vmatpush.bf16.msra.mxu0 %v243
  %265 = vmatpush.bf16.msra.mxu0 %v241
  %266 = vmatpush.bf16.msra.mxu0 %v239
  %267 = vmatpush.bf16.msra.mxu0 %v237
  %268 = vmatpush.bf16.msra.mxu0 %v235
  %269 = vmatpush.bf16.msra.mxu0 %v233
  %270 = vmatpush.bf16.msra.mxu0 %v231
  %271 = vmatmul.bf16.gmra.mxu0 %v181
  %v272 = vpop.f32.mrf.mxu0
  %v273 = vadd.f32 0.0, %v272
  %v274 = vpop.f32.mrf.mxu0
  %v275 = vadd.f32 0.0, %v274
  %276 = vdwg.mxu0
  %277 = vmatpush.bf16.msra.mxu0 %v246
  %278 = vmatpush.bf16.msra.mxu0 %v244
  %279 = vmatpush.bf16.msra.mxu0 %v242
  %280 = vmatpush.bf16.msra.mxu0 %v240
  %281 = vmatpush.bf16.msra.mxu0 %v238
  %282 = vmatpush.bf16.msra.mxu0 %v236
  %283 = vmatpush.bf16.msra.mxu0 %v234
  %284 = vmatpush.bf16.msra.mxu0 %v232
  %285 = vmatmul.bf16.gmra.mxu0 %v181
  %v286 = vpop.f32.mrf.mxu0
  %v287 = vadd.f32 0.0, %v286
  %v288 = vpop.f32.mrf.mxu0
  %v289 = vadd.f32 0.0, %v288
  %290 = vdwg.mxu0
  %v291 = vadd.f32 %v142, %v273
  %v292 = vadd.f32 %v156, %v287
  %v293 = vadd.f32 %v144, %v275
  %v294 = vadd.f32 %v158, %v289
  %s295 = scalar_lea.vmem %s2, 256
  %v296 = vld [vmem:[%s295] sm:$0xff]
  %v297 = vld [vmem:[%s295 + $0x8] sm:$0xff]
  %v298 = vld [vmem:[%s295 + $0x10] sm:$0xff]
  %v299 = vld [vmem:[%s295 + $0x18] sm:$0xff]
  %v300 = vld [vmem:[%s295 + $0x20] sm:$0xff]
  %v301 = vld [vmem:[%s295 + $0x28] sm:$0xff]
  %v302 = vld [vmem:[%s295 + $0x30] sm:$0xff]
  %v303 = vld [vmem:[%s295 + $0x38] sm:$0xff]
  %v304 = vld [vmem:[%s295 + $0x40] sm:$0xff]
  %v305 = vld [vmem:[%s295 + $0x48] sm:$0xff]
  %v306 = vld [vmem:[%s295 + $0x50] sm:$0xff]
  %v307 = vld [vmem:[%s295 + $0x58] sm:$0xff]
  %v308 = vld [vmem:[%s295 + $0x60] sm:$0xff]
  %v309 = vld [vmem:[%s295 + $0x68] sm:$0xff]
  %v310 = vld [vmem:[%s295 + $0x70] sm:$0xff]
  %v311 = vld [vmem:[%s295 + $0x78] sm:$0xff]
  %v328 = vunpack.c.l.b16 %v296
  %v329 = vunpack.c.h.b16 %v296
  %v330 = vunpack.c.l.b16 %v297
  %v331 = vunpack.c.h.b16 %v297
  %v332 = vunpack.c.l.b16 %v298
  %v333 = vunpack.c.h.b16 %v298
  %v334 = vunpack.c.l.b16 %v299
  %v335 = vunpack.c.h.b16 %v299
  %v336 = vunpack.c.l.b16 %v300
  %v337 = vunpack.c.h.b16 %v300
  %v338 = vunpack.c.l.b16 %v301
  %v339 = vunpack.c.h.b16 %v301
  %v340 = vunpack.c.l.b16 %v302
  %v341 = vunpack.c.h.b16 %v302
  %v342 = vunpack.c.l.b16 %v303
  %v343 = vunpack.c.h.b16 %v303
  %v344 = vunpack.c.l.b16 %v304
  %v345 = vunpack.c.h.b16 %v304
  %v346 = vunpack.c.l.b16 %v305
  %v347 = vunpack.c.h.b16 %v305
  %v348 = vunpack.c.l.b16 %v306
  %v349 = vunpack.c.h.b16 %v306
  %v350 = vunpack.c.l.b16 %v307
  %v351 = vunpack.c.h.b16 %v307
  %v352 = vunpack.c.l.b16 %v308
  %v353 = vunpack.c.h.b16 %v308
  %v354 = vunpack.c.l.b16 %v309
  %v355 = vunpack.c.h.b16 %v309
  %v356 = vunpack.c.l.b16 %v310
  %v357 = vunpack.c.h.b16 %v310
  %v358 = vunpack.c.l.b16 %v311
  %v359 = vunpack.c.h.b16 %v311
  %v360 = vpack.c.b16 %v330, %v328
  %v361 = vpack.c.b16 %v331, %v329
  %v362 = vpack.c.b16 %v334, %v332
  %v363 = vpack.c.b16 %v335, %v333
  %v364 = vpack.c.b16 %v338, %v336
  %v365 = vpack.c.b16 %v339, %v337
  %v366 = vpack.c.b16 %v342, %v340
  %v367 = vpack.c.b16 %v343, %v341
  %v368 = vpack.c.b16 %v346, %v344
  %v369 = vpack.c.b16 %v347, %v345
  %v370 = vpack.c.b16 %v350, %v348
  %v371 = vpack.c.b16 %v351, %v349
  %v372 = vpack.c.b16 %v354, %v352
  %v373 = vpack.c.b16 %v355, %v353
  %v374 = vpack.c.b16 %v358, %v356
  %v375 = vpack.c.b16 %v359, %v357
  %392 = vmatpush.bf16.msra.mxu0 %v374
  %393 = vmatpush.bf16.msra.mxu0 %v372
  %394 = vmatpush.bf16.msra.mxu0 %v370
  %395 = vmatpush.bf16.msra.mxu0 %v368
  %396 = vmatpush.bf16.msra.mxu0 %v366
  %397 = vmatpush.bf16.msra.mxu0 %v364
  %398 = vmatpush.bf16.msra.mxu0 %v362
  %399 = vmatpush.bf16.msra.mxu0 %v360
  %400 = vmatmul.bf16.gmra.mxu0 %v50
  %v401 = vpop.f32.mrf.mxu0
  %v402 = vadd.f32 0.0, %v401
  %v403 = vpop.f32.mrf.mxu0
  %v404 = vadd.f32 0.0, %v403
  %405 = vdwg.mxu0
  %406 = vmatpush.bf16.msra.mxu0 %v375
  %407 = vmatpush.bf16.msra.mxu0 %v373
  %408 = vmatpush.bf16.msra.mxu0 %v371
  %409 = vmatpush.bf16.msra.mxu0 %v369
  %410 = vmatpush.bf16.msra.mxu0 %v367
  %411 = vmatpush.bf16.msra.mxu0 %v365
  %412 = vmatpush.bf16.msra.mxu0 %v363
  %413 = vmatpush.bf16.msra.mxu0 %v361
  %414 = vmatmul.bf16.gmra.mxu0 %v50
  %v415 = vpop.f32.mrf.mxu0
  %v416 = vadd.f32 0.0, %v415
  %v417 = vpop.f32.mrf.mxu0
  %v418 = vadd.f32 0.0, %v417
  %419 = vdwg.mxu0
  %v422 = vrot.slane %v402, 1
  %v423 = vrot.slane %v416, 1
  %v426 = vadd.f32 %v291, %v422
  %v427 = vadd.f32 %v292, %v423
  %vm430 = vcmask 1046528
  %v431 = vrot.slane %v404, 1
  %v432 = vsel %vm430, %v422, %v431
  %v433 = vrot.slane %v418, 1
  %v434 = vsel %vm430, %v423, %v433
  %v439 = vadd.f32 %v291, %v432
  %v440 = vadd.f32 %v292, %v434
  %v441 = vadd.f32 %v293, %v431
  %v442 = vadd.f32 %v294, %v433
  %v447 = vrot.slane %v439, 1
  %v448 = vrot.slane %v441, 1
  %v449 = vsel %vm430, %v447, %v448
  %v450 = vrot.slane %v440, 1
  %v451 = vrot.slane %v442, 1
  %v452 = vsel %vm430, %v450, %v451
  %vm455 = vcmask 1043456
  %v456 = vsel %vm455, %v426, %v449
  %v457 = vsel %vm455, %v427, %v452
  %v459 = vperm.slane %v28, 0
  %v460 = vperm.slane %v28, 1
  %v463 = vadd.f32 %v456, %v459
  %v464 = vadd.f32 %v457, %v460
  %v465 = vmax.f32 %v463, 0.0
  %v466 = vpack.c.bf16 %v465, %v465
  %v468 = vunpack.c.l.b16 %v466
  %v469 = vpack.c.b16 %v468, %v468
  %v471 = vshrl.u32 %v469, 16
  %v473 = vrot.slane %v471, 7
  %v474 = vshll.u32 %v469, 16
  %v476 = vor.u32 %v473, %v474
  %v478 = vrot.slane %v471, 6
  %v479 = vrot.slane %v474, 7
  %v480 = vor.u32 %v478, %v479
  %vm482 = vcmask 1040384
  %vm483 = vsmask.f32 256
  %vm484 = vmand %vm482, %vm483
  %v485 = vsel %vm484, 0, %v476
  %vm486 = vcmask 1042432
  %vm487 = vsmask.f32 2304
  %vm488 = vmand %vm486, %vm487
  %v489 = vsel %vm488, %v485, 0
  %vm490 = vcmask 1042432
  %v493 = vsel %vm490, %v489, 0
  %vm495 = vcmask 1043456
  %vm496 = vsmask.f32 3328
  %vm497 = vmand %vm495, %vm496
  %v498 = vsel %vm497, %v493, %v480
  %vm499 = vcmask 1045504
  %vm500 = vsmask.f32 5376
  %vm501 = vmand %vm499, %vm500
  %v502 = vsel %vm501, %v498, 0
  %v503 = vld [vmem:[%s4] sm:$0xf]
  %v504 = vld [vmem:[%s4 + $0x4] sm:$0xf]
  %v505 = vld [vmem:[%s4 + $0x8] sm:$0xf]
  %v506 = vld [vmem:[%s4 + $0xc] sm:$0xf]
  %v507 = vld [vmem:[%s4 + $0x10] sm:$0xf]
  %v508 = vld [vmem:[%s4 + $0x14] sm:$0xf]
  %v509 = vld [vmem:[%s4 + $0x18] sm:$0xf]
  %v510 = vld [vmem:[%s4 + $0x1c] sm:$0xf]
  %v511 = vld [vmem:[%s4 + $0x20] sm:$0xf]
  %v512 = vld [vmem:[%s4 + $0x24] sm:$0xf]
  %v513 = vld [vmem:[%s4 + $0x28] sm:$0xf]
  %v514 = vld [vmem:[%s4 + $0x2c] sm:$0xf]
  %v515 = vld [vmem:[%s4 + $0x30] sm:$0xf]
  %v516 = vld [vmem:[%s4 + $0x34] sm:$0xf]
  %v517 = vld [vmem:[%s4 + $0x38] sm:$0xf]
  %v518 = vld [vmem:[%s4 + $0x3c] sm:$0xf]
  %v535 = vunpack.c.l.b16 %v503
  %v536 = vunpack.c.l.b16 %v504
  %v537 = vunpack.c.l.b16 %v505
  %v538 = vunpack.c.l.b16 %v506
  %v539 = vunpack.c.l.b16 %v507
  %v540 = vunpack.c.l.b16 %v508
  %v541 = vunpack.c.l.b16 %v509
  %v542 = vunpack.c.l.b16 %v510
  %v543 = vunpack.c.l.b16 %v511
  %v544 = vunpack.c.l.b16 %v512
  %v545 = vunpack.c.l.b16 %v513
  %v546 = vunpack.c.l.b16 %v514
  %v547 = vunpack.c.l.b16 %v515
  %v548 = vunpack.c.l.b16 %v516
  %v549 = vunpack.c.l.b16 %v517
  %v550 = vunpack.c.l.b16 %v518
  %v551 = vpack.c.b16 %v536, %v535
  %v552 = vpack.c.b16 %v538, %v537
  %v553 = vpack.c.b16 %v540, %v539
  %v554 = vpack.c.b16 %v542, %v541
  %v555 = vpack.c.b16 %v544, %v543
  %v556 = vpack.c.b16 %v546, %v545
  %v557 = vpack.c.b16 %v548, %v547
  %v558 = vpack.c.b16 %v550, %v549
  %567 = vmatpush.bf16.msra.mxu0 %v558
  %568 = vmatpush.bf16.msra.mxu0 %v557
  %569 = vmatpush.bf16.msra.mxu0 %v556
  %570 = vmatpush.bf16.msra.mxu0 %v555
  %571 = vmatpush.bf16.msra.mxu0 %v554
  %572 = vmatpush.bf16.msra.mxu0 %v553
  %573 = vmatpush.bf16.msra.mxu0 %v552
  %574 = vmatpush.bf16.msra.mxu0 %v551
  %575 = vmatmul.bf16.gmra.mxu0 %v502
  %v576 = vpop.f32.mrf.mxu0
  %v577 = vadd.f32 0.0, %v576
  %v578 = vpop.f32.mrf.mxu0
  %v579 = vadd.f32 0.0, %v578
  %580 = vdwg.mxu0
  %s581 = scalar_lea.vmem %s4, 64
  %v582 = vld [vmem:[%s581] sm:$0xf]
  %v583 = vld [vmem:[%s581 + $0x4] sm:$0xf]
  %v584 = vld [vmem:[%s581 + $0x8] sm:$0xf]
  %v585 = vld [vmem:[%s581 + $0xc] sm:$0xf]
  %v586 = vld [vmem:[%s581 + $0x10] sm:$0xf]
  %v587 = vld [vmem:[%s581 + $0x14] sm:$0xf]
  %v588 = vld [vmem:[%s581 + $0x18] sm:$0xf]
  %v589 = vld [vmem:[%s581 + $0x1c] sm:$0xf]
  %v590 = vld [vmem:[%s581 + $0x20] sm:$0xf]
  %v591 = vld [vmem:[%s581 + $0x24] sm:$0xf]
  %v592 = vld [vmem:[%s581 + $0x28] sm:$0xf]
  %v593 = vld [vmem:[%s581 + $0x2c] sm:$0xf]
  %v594 = vld [vmem:[%s581 + $0x30] sm:$0xf]
  %v595 = vld [vmem:[%s581 + $0x34] sm:$0xf]
  %v596 = vld [vmem:[%s581 + $0x38] sm:$0xf]
  %v597 = vld [vmem:[%s581 + $0x3c] sm:$0xf]
  %v614 = vunpack.c.l.b16 %v582
  %v615 = vunpack.c.l.b16 %v583
  %v616 = vunpack.c.l.b16 %v584
  %v617 = vunpack.c.l.b16 %v585
  %v618 = vunpack.c.l.b16 %v586
  %v619 = vunpack.c.l.b16 %v587
  %v620 = vunpack.c.l.b16 %v588
  %v621 = vunpack.c.l.b16 %v589
  %v622 = vunpack.c.l.b16 %v590
  %v623 = vunpack.c.l.b16 %v591
  %v624 = vunpack.c.l.b16 %v592
  %v625 = vunpack.c.l.b16 %v593
  %v626 = vunpack.c.l.b16 %v594
  %v627 = vunpack.c.l.b16 %v595
  %v628 = vunpack.c.l.b16 %v596
  %v629 = vunpack.c.l.b16 %v597
  %v630 = vpack.c.b16 %v615, %v614
  %v631 = vpack.c.b16 %v617, %v616
  %v632 = vpack.c.b16 %v619, %v618
  %v633 = vpack.c.b16 %v621, %v620
  %v634 = vpack.c.b16 %v623, %v622
  %v635 = vpack.c.b16 %v625, %v624
  %v636 = vpack.c.b16 %v627, %v626
  %v637 = vpack.c.b16 %v629, %v628
  %646 = vmatpush.bf16.msra.mxu0 %v637
  %647 = vmatpush.bf16.msra.mxu0 %v636
  %648 = vmatpush.bf16.msra.mxu0 %v635
  %649 = vmatpush.bf16.msra.mxu0 %v634
  %650 = vmatpush.bf16.msra.mxu0 %v633
  %651 = vmatpush.bf16.msra.mxu0 %v632
  %652 = vmatpush.bf16.msra.mxu0 %v631
  %653 = vmatpush.bf16.msra.mxu0 %v630
  %654 = vmatmul.bf16.gmra.mxu0 %v502
  %v655 = vpop.f32.mrf.mxu0
  %v656 = vadd.f32 0.0, %v655
  %v657 = vpop.f32.mrf.mxu0
  %v658 = vadd.f32 0.0, %v657
  %659 = vdwg.mxu0
  %v661 = vrot.slane %v656, 1
  %v663 = vadd.f32 %v577, %v661
  %v665 = vrot.slane %v658, 1
  %v666 = vsel %vm430, %v661, %v665
  %v669 = vadd.f32 %v577, %v666
  %v670 = vadd.f32 %v579, %v665
  %s671 = scalar_lea.vmem %s4, 128
  %v672 = vld [vmem:[%s671] sm:$0xf]
  %v673 = vld [vmem:[%s671 + $0x4] sm:$0xf]
  %v674 = vld [vmem:[%s671 + $0x8] sm:$0xf]
  %v675 = vld [vmem:[%s671 + $0xc] sm:$0xf]
  %v676 = vld [vmem:[%s671 + $0x10] sm:$0xf]
  %v677 = vld [vmem:[%s671 + $0x14] sm:$0xf]
  %v678 = vld [vmem:[%s671 + $0x18] sm:$0xf]
  %v679 = vld [vmem:[%s671 + $0x1c] sm:$0xf]
  %v680 = vld [vmem:[%s671 + $0x20] sm:$0xf]
  %v681 = vld [vmem:[%s671 + $0x24] sm:$0xf]
  %v682 = vld [vmem:[%s671 + $0x28] sm:$0xf]
  %v683 = vld [vmem:[%s671 + $0x2c] sm:$0xf]
  %v684 = vld [vmem:[%s671 + $0x30] sm:$0xf]
  %v685 = vld [vmem:[%s671 + $0x34] sm:$0xf]
  %v686 = vld [vmem:[%s671 + $0x38] sm:$0xf]
  %v687 = vld [vmem:[%s671 + $0x3c] sm:$0xf]
  %v704 = vunpack.c.l.b16 %v672
  %v705 = vunpack.c.l.b16 %v673
  %v706 = vunpack.c.l.b16 %v674
  %v707 = vunpack.c.l.b16 %v675
  %v708 = vunpack.c.l.b16 %v676
  %v709 = vunpack.c.l.b16 %v677
  %v710 = vunpack.c.l.b16 %v678
  %v711 = vunpack.c.l.b16 %v679
  %v712 = vunpack.c.l.b16 %v680
  %v713 = vunpack.c.l.b16 %v681
  %v714 = vunpack.c.l.b16 %v682
  %v715 = vunpack.c.l.b16 %v683
  %v716 = vunpack.c.l.b16 %v684
  %v717 = vunpack.c.l.b16 %v685
  %v718 = vunpack.c.l.b16 %v686
  %v719 = vunpack.c.l.b16 %v687
  %v720 = vpack.c.b16 %v705, %v704
  %v721 = vpack.c.b16 %v707, %v706
  %v722 = vpack.c.b16 %v709, %v708
  %v723 = vpack.c.b16 %v711, %v710
  %v724 = vpack.c.b16 %v713, %v712
  %v725 = vpack.c.b16 %v715, %v714
  %v726 = vpack.c.b16 %v717, %v716
  %v727 = vpack.c.b16 %v719, %v718
  %736 = vmatpush.bf16.msra.mxu0 %v727
  %737 = vmatpush.bf16.msra.mxu0 %v726
  %738 = vmatpush.bf16.msra.mxu0 %v725
  %739 = vmatpush.bf16.msra.mxu0 %v724
  %740 = vmatpush.bf16.msra.mxu0 %v723
  %741 = vmatpush.bf16.msra.mxu0 %v722
  %742 = vmatpush.bf16.msra.mxu0 %v721
  %743 = vmatpush.bf16.msra.mxu0 %v720
  %744 = vmatmul.bf16.gmra.mxu0 %v502
  %v745 = vpop.f32.mrf.mxu0
  %v746 = vadd.f32 0.0, %v745
  %v747 = vpop.f32.mrf.mxu0
  %v748 = vadd.f32 0.0, %v747
  %749 = vdwg.mxu0
  %v751 = vrot.slane %v746, 2
  %v753 = vadd.f32 %v663, %v751
  %v755 = vrot.slane %v748, 2
  %v757 = vadd.f32 %v669, %v755
  %v758 = vadd.f32 %v670, %v755
  %vm761 = vcmask 1045504
  %v762 = vrot.slane %v757, 2
  %v763 = vrot.slane %v758, 2
  %v764 = vsel %vm761, %v762, %v763
  %v766 = vsel %vm455, %v753, %v764
  %v768 = vperm.slane %v29, 0
  %v770 = vadd.f32 %v766, %v768
  %v771 = vadd.f32 %v770, %v464
  %v772 = vmax.f32 %v771, 0.0
  %773 = vst [vmem:[%s6] sm:$0xff] %v772
  // Predicated region
  $region26: #{backbone_base_forward.8} parent=0 // pred_check
    _
  $region27: #{backbone_base_forward.8} parent=0 // pred_check_branch
    %775 = sbr.rel (0) target = $region29
  $region28: #{backbone_base_forward.8} parent=0 // pred_region
    _
  $region29: #{backbone_base_forward.8} parent=0 // pred_fallthru
    _
  // Predicated region
  $region30: #{backbone_base_forward.8} parent=0 // pred_check
    _
  $region31: #{backbone_base_forward.8} parent=0 // pred_check_branch
    %777 = sbr.rel (0) target = $region33
  $region32: #{backbone_base_forward.8} parent=0 // pred_region
    _
  $region33: #{backbone_base_forward.8} parent=0 // pred_fallthru
    _

// kernel: tile.108
$region0: #{tile.108}
  #allocation0 [shape = 's32[1]{0}', space=sflag, size = 0x4, scoped, tag = 'scoped memory for tile.108']
  %s0 = inlined_call_operand.vmem [shape: f32[64], index: 0, kind: input, shape index: {}]
  %s1 = inlined_call_operand.vmem [shape: f32[2,64], index: 1, kind: output, shape index: {}]
  // Predicated region
  $region2: #{tile.108} parent=0 // pred_check
    _
  $region3: #{tile.108} parent=0 // pred_check_branch
    %3 = sbr.rel (0) target = $region5
  $region4: #{tile.108} parent=0 // pred_region
    _
  $region5: #{tile.108} parent=0 // pred_fallthru
    _
  %v4 = vld [vmem:[%s0] ss:$0 sm:$0xff]
  %5 = vst [vmem:[%s1] sm:$0x3] %v4

// kernel: tile.109
$region0: #{tile.109}
  %s0 = inlined_call_operand.vmem [shape: f32[2,64], index: 0, kind: input, shape index: {}]
  %s1 = inlined_call_operand.vmem [shape: f32[128], index: 1, kind: output, shape index: {}]
  $region1: #{tile.109} parent=0
    #allocation0 [shape = 'u8[4096]{0}', space=vmem, size = 0x1000, scoped, tag = 'scoped mem for output reshape']
    #allocation1 [shape = 'u8[4096]{0}', space=vmem, size = 0x1000, scoped, tag = 'scoped mem for input reshape']
    %s3 = ssub.s32 4, 1
    %v4 = vld [vmem:[%s0] sm:%s3]
    %5 = vst [vmem:[#allocation1] sm:%s3] %v4
    %v6 = vld [vmem:[#allocation1] sm:$0x1]
    %vm7 = vcmask 523264
    %8 = vst.msk [vmem:[#allocation0] sm:$0x1] %vm7, %v6
    %s9 = scalar_lea.vmem [#allocation1], 1
    %v10 = vld [vmem:[%s9] sm:$0x1]
    %11 = vrot.lane.b32.xlu0 %v10, 64
    %v12 = vpop.permute.xlu0 %11
    %vm13 = vcmask 1048064
    %14 = vst.msk [vmem:[#allocation0] sm:$0x1] %vm13, %v12
    %s16 = ssub.s32 2, 1
    %v17 = vld [vmem:[#allocation0] sm:%s16]
    %s19 = ssub.s32 2, 1
    %20 = vst [vmem:[%s1] sm:%s19] %v17

// kernel: tile.119
$region0: #{tile.119}
  %s0 = inlined_call_operand.vmem [shape: f32[2,64], index: 0, kind: input, shape index: {}]
  %s1 = inlined_call_operand.vmem [shape: f32[1,128], index: 1, kind: output, shape index: {}]
  $region1: #{tile.119} parent=0
    #allocation0 [shape = 'u8[4096]{0}', space=vmem, size = 0x1000, scoped, tag = 'scoped mem for output reshape']
    #allocation1 [shape = 'u8[4096]{0}', space=vmem, size = 0x1000, scoped, tag = 'scoped mem for input reshape']
    %s3 = ssub.s32 4, 1
    %v4 = vld [vmem:[%s0] sm:%s3]
    %5 = vst [vmem:[#allocation1] sm:%s3] %v4
    %v6 = vld [vmem:[#allocation1] sm:$0x1]
    %vm7 = vcmask 523264
    %8 = vst.msk [vmem:[#allocation0] sm:$0x1] %vm7, %v6
    %s9 = scalar_lea.vmem [#allocation1], 1
    %v10 = vld [vmem:[%s9] sm:$0x1]
    %11 = vrot.lane.b32.xlu0 %v10, 64
    %v12 = vpop.permute.xlu0 %11
    %vm13 = vcmask 1048064
    %14 = vst.msk [vmem:[#allocation0] sm:$0x1] %vm13, %v12
    %s16 = ssub.s32 2, 1
    %v17 = vld [vmem:[#allocation0] sm:%s16]
    %s19 = ssub.s32 2, 1
    %20 = vst [vmem:[%s1] sm:%s19] %v17

// kernel: backbone_base_forward.9
$region0: #{backbone_base_forward.9}
  #allocation0 [shape = 'u32[]', space=smem, size = 0x4, offset = 0x4, fixed_abs, tag = 'smem constant byte address 0x4 - core index']
  #allocation1 [shape = 'u32[72,128]{1,0:T(1,128)}', space=vmem, size = 0x9000, scoped, tag = 'internal scratch']
  %s0 = inlined_call_operand.vmem [shape: bf16[6,128], index: 0, kind: input, shape index: {}]
  %s1 = inlined_call_operand.vmem [shape: bf16[6,128], index: 1, kind: input, shape index: {}]
  %s2 = inlined_call_operand.vmem [shape: bf16[3,128,256], index: 2, kind: input, shape index: {}]
  %s3 = inlined_call_operand.vmem [shape: f32[1,256], index: 3, kind: input, shape index: {}]
  %s4 = inlined_call_operand.vmem [shape: bf16[3,128,128], index: 4, kind: input, shape index: {}]
  %s5 = inlined_call_operand.vmem [shape: f32[1,128], index: 5, kind: input, shape index: {}]
  %s6 = inlined_call_operand.vmem [shape: f32[4,128], index: 6, kind: output, shape index: {}]
  %s7 = sld [smem:[#allocation0]]
  $region34: #{backbone_base_forward.9} parent=0
    _
  %s9 = ssub.s32 1, %s7
  %s10 = scalar_select 0, %s9, %s7
  // Predicated region
  $region2: #{backbone_base_forward.9} parent=0 // pred_check
    _
  $region3: #{backbone_base_forward.9} parent=0 // pred_check_branch
    %12 = sbr.rel (0) target = $region5
  $region4: #{backbone_base_forward.9} parent=0 // pred_region
    _
  $region5: #{backbone_base_forward.9} parent=0 // pred_fallthru
    _
  // Predicated region
  $region6: #{backbone_base_forward.9} parent=0 // pred_check
    _
  $region7: #{backbone_base_forward.9} parent=0 // pred_check_branch
    %14 = sbr.rel (0) target = $region9
  $region8: #{backbone_base_forward.9} parent=0 // pred_region
    _
  $region9: #{backbone_base_forward.9} parent=0 // pred_fallthru
    _
  // Predicated region
  $region10: #{backbone_base_forward.9} parent=0 // pred_check
    _
  $region11: #{backbone_base_forward.9} parent=0 // pred_check_branch
    %16 = sbr.rel (0) target = $region13
  $region12: #{backbone_base_forward.9} parent=0 // pred_region
    _
  $region13: #{backbone_base_forward.9} parent=0 // pred_fallthru
    _
  // Predicated region
  $region14: #{backbone_base_forward.9} parent=0 // pred_check
    _
  $region15: #{backbone_base_forward.9} parent=0 // pred_check_branch
    %18 = sbr.rel (0) target = $region17
  $region16: #{backbone_base_forward.9} parent=0 // pred_region
    _
  $region17: #{backbone_base_forward.9} parent=0 // pred_fallthru
    _
  // Predicated region
  $region18: #{backbone_base_forward.9} parent=0 // pred_check
    _
  $region19: #{backbone_base_forward.9} parent=0 // pred_check_branch
    %20 = sbr.rel (0) target = $region21
  $region20: #{backbone_base_forward.9} parent=0 // pred_region
    _
  $region21: #{backbone_base_forward.9} parent=0 // pred_fallthru
    _
  // Predicated region
  $region22: #{backbone_base_forward.9} parent=0 // pred_check
    _
  $region23: #{backbone_base_forward.9} parent=0 // pred_check_branch
    %22 = sbr.rel (0) target = $region25
  $region24: #{backbone_base_forward.9} parent=0 // pred_region
    _
  $region25: #{backbone_base_forward.9} parent=0 // pred_fallthru
    _
  %v24 = vld [vmem:[%s0] sm:$0x7]
  %v25 = vld [vmem:[%s1] sm:$0x7]
  %v26 = vld [vmem:[%s3] sm:$0x3]
  %v27 = vld [vmem:[%s5] sm:$0x1]
  %v28 = vld [vmem:[%s2] sm:$0xff]
  %v29 = vld [vmem:[%s2 + $0x8] sm:$0xff]
  %v30 = vld [vmem:[%s2 + $0x10] sm:$0xff]
  %v31 = vld [vmem:[%s2 + $0x18] sm:$0xff]
  %v32 = vld [vmem:[%s2 + $0x20] sm:$0xff]
  %v33 = vld [vmem:[%s2 + $0x28] sm:$0xff]
  %v34 = vld [vmem:[%s2 + $0x30] sm:$0xff]
  %v35 = vld [vmem:[%s2 + $0x38] sm:$0xff]
  %v36 = vld [vmem:[%s2 + $0x40] sm:$0xff]
  %v37 = vld [vmem:[%s2 + $0x48] sm:$0xff]
  %v38 = vld [vmem:[%s2 + $0x50] sm:$0xff]
  %v39 = vld [vmem:[%s2 + $0x58] sm:$0xff]
  %v40 = vld [vmem:[%s2 + $0x60] sm:$0xff]
  %v41 = vld [vmem:[%s2 + $0x68] sm:$0xff]
  %v42 = vld [vmem:[%s2 + $0x70] sm:$0xff]
  %v43 = vld [vmem:[%s2 + $0x78] sm:$0xff]
  %v60 = vunpack.c.l.b16 %v28
  %v61 = vunpack.c.h.b16 %v28
  %v62 = vunpack.c.l.b16 %v29
  %v63 = vunpack.c.h.b16 %v29
  %v64 = vunpack.c.l.b16 %v30
  %v65 = vunpack.c.h.b16 %v30
  %v66 = vunpack.c.l.b16 %v31
  %v67 = vunpack.c.h.b16 %v31
  %v68 = vunpack.c.l.b16 %v32
  %v69 = vunpack.c.h.b16 %v32
  %v70 = vunpack.c.l.b16 %v33
  %v71 = vunpack.c.h.b16 %v33
  %v72 = vunpack.c.l.b16 %v34
  %v73 = vunpack.c.h.b16 %v34
  %v74 = vunpack.c.l.b16 %v35
  %v75 = vunpack.c.h.b16 %v35
  %v76 = vunpack.c.l.b16 %v36
  %v77 = vunpack.c.h.b16 %v36
  %v78 = vunpack.c.l.b16 %v37
  %v79 = vunpack.c.h.b16 %v37
  %v80 = vunpack.c.l.b16 %v38
  %v81 = vunpack.c.h.b16 %v38
  %v82 = vunpack.c.l.b16 %v39
  %v83 = vunpack.c.h.b16 %v39
  %v84 = vunpack.c.l.b16 %v40
  %v85 = vunpack.c.h.b16 %v40
  %v86 = vunpack.c.l.b16 %v41
  %v87 = vunpack.c.h.b16 %v41
  %v88 = vunpack.c.l.b16 %v42
  %v89 = vunpack.c.h.b16 %v42
  %v90 = vunpack.c.l.b16 %v43
  %v91 = vunpack.c.h.b16 %v43
  %v92 = vpack.c.b16 %v62, %v60
  %v93 = vpack.c.b16 %v63, %v61
  %v94 = vpack.c.b16 %v66, %v64
  %v95 = vpack.c.b16 %v67, %v65
  %v96 = vpack.c.b16 %v70, %v68
  %v97 = vpack.c.b16 %v71, %v69
  %v98 = vpack.c.b16 %v74, %v72
  %v99 = vpack.c.b16 %v75, %v73
  %v100 = vpack.c.b16 %v78, %v76
  %v101 = vpack.c.b16 %v79, %v77
  %v102 = vpack.c.b16 %v82, %v80
  %v103 = vpack.c.b16 %v83, %v81
  %v104 = vpack.c.b16 %v86, %v84
  %v105 = vpack.c.b16 %v87, %v85
  %v106 = vpack.c.b16 %v90, %v88
  %v107 = vpack.c.b16 %v91, %v89
  %124 = vmatpush.bf16.msra.mxu0 %v106
  %125 = vmatpush.bf16.msra.mxu0 %v104
  %126 = vmatpush.bf16.msra.mxu0 %v102
  %127 = vmatpush.bf16.msra.mxu0 %v100
  %128 = vmatpush.bf16.msra.mxu0 %v98
  %129 = vmatpush.bf16.msra.mxu0 %v96
  %130 = vmatpush.bf16.msra.mxu0 %v94
  %131 = vmatpush.bf16.msra.mxu0 %v92
  %132 = vmatmul.bf16.gmra.mxu0 %v24
  %v133 = vpop.f32.mrf.mxu0
  %v134 = vadd.f32 0.0, %v133
  %v135 = vpop.f32.mrf.mxu0
  %136 = vdwg.mxu0
  %137 = vmatpush.bf16.msra.mxu0 %v107
  %138 = vmatpush.bf16.msra.mxu0 %v105
  %139 = vmatpush.bf16.msra.mxu0 %v103
  %140 = vmatpush.bf16.msra.mxu0 %v101
  %141 = vmatpush.bf16.msra.mxu0 %v99
  %142 = vmatpush.bf16.msra.mxu0 %v97
  %143 = vmatpush.bf16.msra.mxu0 %v95
  %144 = vmatpush.bf16.msra.mxu0 %v93
  %145 = vmatmul.bf16.gmra.mxu0 %v24
  %v146 = vpop.f32.mrf.mxu0
  %v147 = vadd.f32 0.0, %v146
  %v148 = vpop.f32.mrf.mxu0
  %149 = vdwg.mxu0
  %s150 = scalar_lea.vmem %s2, 128
  %v151 = vld [vmem:[%s150] sm:$0xff]
  %v152 = vld [vmem:[%s150 + $0x8] sm:$0xff]
  %v153 = vld [vmem:[%s150 + $0x10] sm:$0xff]
  %v154 = vld [vmem:[%s150 + $0x18] sm:$0xff]
  %v155 = vld [vmem:[%s150 + $0x20] sm:$0xff]
  %v156 = vld [vmem:[%s150 + $0x28] sm:$0xff]
  %v157 = vld [vmem:[%s150 + $0x30] sm:$0xff]
  %v158 = vld [vmem:[%s150 + $0x38] sm:$0xff]
  %v159 = vld [vmem:[%s150 + $0x40] sm:$0xff]
  %v160 = vld [vmem:[%s150 + $0x48] sm:$0xff]
  %v161 = vld [vmem:[%s150 + $0x50] sm:$0xff]
  %v162 = vld [vmem:[%s150 + $0x58] sm:$0xff]
  %v163 = vld [vmem:[%s150 + $0x60] sm:$0xff]
  %v164 = vld [vmem:[%s150 + $0x68] sm:$0xff]
  %v165 = vld [vmem:[%s150 + $0x70] sm:$0xff]
  %v166 = vld [vmem:[%s150 + $0x78] sm:$0xff]
  %v183 = vunpack.c.l.b16 %v151
  %v184 = vunpack.c.h.b16 %v151
  %v185 = vunpack.c.l.b16 %v152
  %v186 = vunpack.c.h.b16 %v152
  %v187 = vunpack.c.l.b16 %v153
  %v188 = vunpack.c.h.b16 %v153
  %v189 = vunpack.c.l.b16 %v154
  %v190 = vunpack.c.h.b16 %v154
  %v191 = vunpack.c.l.b16 %v155
  %v192 = vunpack.c.h.b16 %v155
  %v193 = vunpack.c.l.b16 %v156
  %v194 = vunpack.c.h.b16 %v156
  %v195 = vunpack.c.l.b16 %v157
  %v196 = vunpack.c.h.b16 %v157
  %v197 = vunpack.c.l.b16 %v158
  %v198 = vunpack.c.h.b16 %v158
  %v199 = vunpack.c.l.b16 %v159
  %v200 = vunpack.c.h.b16 %v159
  %v201 = vunpack.c.l.b16 %v160
  %v202 = vunpack.c.h.b16 %v160
  %v203 = vunpack.c.l.b16 %v161
  %v204 = vunpack.c.h.b16 %v161
  %v205 = vunpack.c.l.b16 %v162
  %v206 = vunpack.c.h.b16 %v162
  %v207 = vunpack.c.l.b16 %v163
  %v208 = vunpack.c.h.b16 %v163
  %v209 = vunpack.c.l.b16 %v164
  %v210 = vunpack.c.h.b16 %v164
  %v211 = vunpack.c.l.b16 %v165
  %v212 = vunpack.c.h.b16 %v165
  %v213 = vunpack.c.l.b16 %v166
  %v214 = vunpack.c.h.b16 %v166
  %v215 = vpack.c.b16 %v185, %v183
  %v216 = vpack.c.b16 %v186, %v184
  %v217 = vpack.c.b16 %v189, %v187
  %v218 = vpack.c.b16 %v190, %v188
  %v219 = vpack.c.b16 %v193, %v191
  %v220 = vpack.c.b16 %v194, %v192
  %v221 = vpack.c.b16 %v197, %v195
  %v222 = vpack.c.b16 %v198, %v196
  %v223 = vpack.c.b16 %v201, %v199
  %v224 = vpack.c.b16 %v202, %v200
  %v225 = vpack.c.b16 %v205, %v203
  %v226 = vpack.c.b16 %v206, %v204
  %v227 = vpack.c.b16 %v209, %v207
  %v228 = vpack.c.b16 %v210, %v208
  %v229 = vpack.c.b16 %v213, %v211
  %v230 = vpack.c.b16 %v214, %v212
  %247 = vmatpush.bf16.msra.mxu0 %v229
  %248 = vmatpush.bf16.msra.mxu0 %v227
  %249 = vmatpush.bf16.msra.mxu0 %v225
  %250 = vmatpush.bf16.msra.mxu0 %v223
  %251 = vmatpush.bf16.msra.mxu0 %v221
  %252 = vmatpush.bf16.msra.mxu0 %v219
  %253 = vmatpush.bf16.msra.mxu0 %v217
  %254 = vmatpush.bf16.msra.mxu0 %v215
  %255 = vmatmul.bf16.gmra.mxu0 %v25
  %v256 = vpop.f32.mrf.mxu0
  %v257 = vadd.f32 0.0, %v256
  %v258 = vpop.f32.mrf.mxu0
  %259 = vdwg.mxu0
  %260 = vmatpush.bf16.msra.mxu0 %v230
  %261 = vmatpush.bf16.msra.mxu0 %v228
  %262 = vmatpush.bf16.msra.mxu0 %v226
  %263 = vmatpush.bf16.msra.mxu0 %v224
  %264 = vmatpush.bf16.msra.mxu0 %v222
  %265 = vmatpush.bf16.msra.mxu0 %v220
  %266 = vmatpush.bf16.msra.mxu0 %v218
  %267 = vmatpush.bf16.msra.mxu0 %v216
  %268 = vmatmul.bf16.gmra.mxu0 %v25
  %v269 = vpop.f32.mrf.mxu0
  %v270 = vadd.f32 0.0, %v269
  %v271 = vpop.f32.mrf.mxu0
  %272 = vdwg.mxu0
  %v273 = vadd.f32 %v134, %v257
  %v274 = vadd.f32 %v147, %v270
  %s275 = scalar_lea.vmem %s2, 256
  %v276 = vld [vmem:[%s275] sm:$0xff]
  %v277 = vld [vmem:[%s275 + $0x8] sm:$0xff]
  %v278 = vld [vmem:[%s275 + $0x10] sm:$0xff]
  %v279 = vld [vmem:[%s275 + $0x18] sm:$0xff]
  %v280 = vld [vmem:[%s275 + $0x20] sm:$0xff]
  %v281 = vld [vmem:[%s275 + $0x28] sm:$0xff]
  %v282 = vld [vmem:[%s275 + $0x30] sm:$0xff]
  %v283 = vld [vmem:[%s275 + $0x38] sm:$0xff]
  %v284 = vld [vmem:[%s275 + $0x40] sm:$0xff]
  %v285 = vld [vmem:[%s275 + $0x48] sm:$0xff]
  %v286 = vld [vmem:[%s275 + $0x50] sm:$0xff]
  %v287 = vld [vmem:[%s275 + $0x58] sm:$0xff]
  %v288 = vld [vmem:[%s275 + $0x60] sm:$0xff]
  %v289 = vld [vmem:[%s275 + $0x68] sm:$0xff]
  %v290 = vld [vmem:[%s275 + $0x70] sm:$0xff]
  %v291 = vld [vmem:[%s275 + $0x78] sm:$0xff]
  %v308 = vunpack.c.l.b16 %v276
  %v309 = vunpack.c.h.b16 %v276
  %v310 = vunpack.c.l.b16 %v277
  %v311 = vunpack.c.h.b16 %v277
  %v312 = vunpack.c.l.b16 %v278
  %v313 = vunpack.c.h.b16 %v278
  %v314 = vunpack.c.l.b16 %v279
  %v315 = vunpack.c.h.b16 %v279
  %v316 = vunpack.c.l.b16 %v280
  %v317 = vunpack.c.h.b16 %v280
  %v318 = vunpack.c.l.b16 %v281
  %v319 = vunpack.c.h.b16 %v281
  %v320 = vunpack.c.l.b16 %v282
  %v321 = vunpack.c.h.b16 %v282
  %v322 = vunpack.c.l.b16 %v283
  %v323 = vunpack.c.h.b16 %v283
  %v324 = vunpack.c.l.b16 %v284
  %v325 = vunpack.c.h.b16 %v284
  %v326 = vunpack.c.l.b16 %v285
  %v327 = vunpack.c.h.b16 %v285
  %v328 = vunpack.c.l.b16 %v286
  %v329 = vunpack.c.h.b16 %v286
  %v330 = vunpack.c.l.b16 %v287
  %v331 = vunpack.c.h.b16 %v287
  %v332 = vunpack.c.l.b16 %v288
  %v333 = vunpack.c.h.b16 %v288
  %v334 = vunpack.c.l.b16 %v289
  %v335 = vunpack.c.h.b16 %v289
  %v336 = vunpack.c.l.b16 %v290
  %v337 = vunpack.c.h.b16 %v290
  %v338 = vunpack.c.l.b16 %v291
  %v339 = vunpack.c.h.b16 %v291
  %v340 = vpack.c.b16 %v310, %v308
  %v341 = vpack.c.b16 %v311, %v309
  %v342 = vpack.c.b16 %v314, %v312
  %v343 = vpack.c.b16 %v315, %v313
  %v344 = vpack.c.b16 %v318, %v316
  %v345 = vpack.c.b16 %v319, %v317
  %v346 = vpack.c.b16 %v322, %v320
  %v347 = vpack.c.b16 %v323, %v321
  %v348 = vpack.c.b16 %v326, %v324
  %v349 = vpack.c.b16 %v327, %v325
  %v350 = vpack.c.b16 %v330, %v328
  %v351 = vpack.c.b16 %v331, %v329
  %v352 = vpack.c.b16 %v334, %v332
  %v353 = vpack.c.b16 %v335, %v333
  %v354 = vpack.c.b16 %v338, %v336
  %v355 = vpack.c.b16 %v339, %v337
  %372 = vmatpush.bf16.msra.mxu0 %v354
  %373 = vmatpush.bf16.msra.mxu0 %v352
  %374 = vmatpush.bf16.msra.mxu0 %v350
  %375 = vmatpush.bf16.msra.mxu0 %v348
  %376 = vmatpush.bf16.msra.mxu0 %v346
  %377 = vmatpush.bf16.msra.mxu0 %v344
  %378 = vmatpush.bf16.msra.mxu0 %v342
  %379 = vmatpush.bf16.msra.mxu0 %v340
  %380 = vmatmul.bf16.gmra.mxu0 %v24
  %v381 = vpop.f32.mrf.mxu0
  %v382 = vadd.f32 0.0, %v381
  %v383 = vpop.f32.mrf.mxu0
  %384 = vdwg.mxu0
  %385 = vmatpush.bf16.msra.mxu0 %v355
  %386 = vmatpush.bf16.msra.mxu0 %v353
  %387 = vmatpush.bf16.msra.mxu0 %v351
  %388 = vmatpush.bf16.msra.mxu0 %v349
  %389 = vmatpush.bf16.msra.mxu0 %v347
  %390 = vmatpush.bf16.msra.mxu0 %v345
  %391 = vmatpush.bf16.msra.mxu0 %v343
  %392 = vmatpush.bf16.msra.mxu0 %v341
  %393 = vmatmul.bf16.gmra.mxu0 %v24
  %v394 = vpop.f32.mrf.mxu0
  %v395 = vadd.f32 0.0, %v394
  %v396 = vpop.f32.mrf.mxu0
  %397 = vdwg.mxu0
  %v400 = vrot.slane %v382, 1
  %v401 = vrot.slane %v395, 1
  %v404 = vadd.f32 %v273, %v400
  %v405 = vadd.f32 %v274, %v401
  %v408 = vrot.slane %v404, 1
  %v409 = vrot.slane %v405, 1
  %vm412 = vcmask 1041408
  %v413 = vsel %vm412, %v404, %v408
  %v414 = vsel %vm412, %v405, %v409
  %v416 = vperm.slane %v26, 0
  %v417 = vperm.slane %v26, 1
  %v420 = vadd.f32 %v413, %v416
  %v421 = vadd.f32 %v414, %v417
  %v422 = vmax.f32 %v420, 0.0
  %v423 = vpack.c.bf16 %v422, %v422
  %v425 = vunpack.c.l.b16 %v423
  %v426 = vpack.c.b16 %v425, %v425
  %v428 = vshrl.u32 %v426, 16
  %v430 = vrot.slane %v428, 7
  %v431 = vshll.u32 %v426, 16
  %v433 = vor.u32 %v430, %v431
  %v435 = vrot.slane %v428, 6
  %v436 = vrot.slane %v431, 7
  %v437 = vor.u32 %v435, %v436
  %vm439 = vcmask 1040384
  %vm440 = vsmask.f32 256
  %vm441 = vmand %vm439, %vm440
  %v442 = vsel %vm441, 0, %v433
  %vm443 = vcmask 1041408
  %vm444 = vsmask.f32 1280
  %vm445 = vmand %vm443, %vm444
  %v446 = vsel %vm445, %v442, 0
  %v449 = vsel %vm412, %v446, 0
  %vm451 = vcmask 1042432
  %vm452 = vsmask.f32 2304
  %vm453 = vmand %vm451, %vm452
  %v454 = vsel %vm453, %v449, %v437
  %vm455 = vcmask 1043456
  %vm456 = vsmask.f32 3328
  %vm457 = vmand %vm455, %vm456
  %v458 = vsel %vm457, %v454, 0
  %v459 = vld [vmem:[%s4] sm:$0xf]
  %v460 = vld [vmem:[%s4 + $0x4] sm:$0xf]
  %v461 = vld [vmem:[%s4 + $0x8] sm:$0xf]
  %v462 = vld [vmem:[%s4 + $0xc] sm:$0xf]
  %v463 = vld [vmem:[%s4 + $0x10] sm:$0xf]
  %v464 = vld [vmem:[%s4 + $0x14] sm:$0xf]
  %v465 = vld [vmem:[%s4 + $0x18] sm:$0xf]
  %v466 = vld [vmem:[%s4 + $0x1c] sm:$0xf]
  %v467 = vld [vmem:[%s4 + $0x20] sm:$0xf]
  %v468 = vld [vmem:[%s4 + $0x24] sm:$0xf]
  %v469 = vld [vmem:[%s4 + $0x28] sm:$0xf]
  %v470 = vld [vmem:[%s4 + $0x2c] sm:$0xf]
  %v471 = vld [vmem:[%s4 + $0x30] sm:$0xf]
  %v472 = vld [vmem:[%s4 + $0x34] sm:$0xf]
  %v473 = vld [vmem:[%s4 + $0x38] sm:$0xf]
  %v474 = vld [vmem:[%s4 + $0x3c] sm:$0xf]
  %v491 = vunpack.c.l.b16 %v459
  %v492 = vunpack.c.l.b16 %v460
  %v493 = vunpack.c.l.b16 %v461
  %v494 = vunpack.c.l.b16 %v462
  %v495 = vunpack.c.l.b16 %v463
  %v496 = vunpack.c.l.b16 %v464
  %v497 = vunpack.c.l.b16 %v465
  %v498 = vunpack.c.l.b16 %v466
  %v499 = vunpack.c.l.b16 %v467
  %v500 = vunpack.c.l.b16 %v468
  %v501 = vunpack.c.l.b16 %v469
  %v502 = vunpack.c.l.b16 %v470
  %v503 = vunpack.c.l.b16 %v471
  %v504 = vunpack.c.l.b16 %v472
  %v505 = vunpack.c.l.b16 %v473
  %v506 = vunpack.c.l.b16 %v474
  %v507 = vpack.c.b16 %v492, %v491
  %v508 = vpack.c.b16 %v494, %v493
  %v509 = vpack.c.b16 %v496, %v495
  %v510 = vpack.c.b16 %v498, %v497
  %v511 = vpack.c.b16 %v500, %v499
  %v512 = vpack.c.b16 %v502, %v501
  %v513 = vpack.c.b16 %v504, %v503
  %v514 = vpack.c.b16 %v506, %v505
  %523 = vmatpush.bf16.msra.mxu0 %v514
  %524 = vmatpush.bf16.msra.mxu0 %v513
  %525 = vmatpush.bf16.msra.mxu0 %v512
  %526 = vmatpush.bf16.msra.mxu0 %v511
  %527 = vmatpush.bf16.msra.mxu0 %v510
  %528 = vmatpush.bf16.msra.mxu0 %v509
  %529 = vmatpush.bf16.msra.mxu0 %v508
  %530 = vmatpush.bf16.msra.mxu0 %v507
  %531 = vmatmul.bf16.gmra.mxu0 %v458
  %v532 = vpop.f32.mrf.mxu0
  %v533 = vadd.f32 0.0, %v532
  %v534 = vpop.f32.mrf.mxu0
  %535 = vdwg.mxu0
  %s536 = scalar_lea.vmem %s4, 64
  %v537 = vld [vmem:[%s536] sm:$0xf]
  %v538 = vld [vmem:[%s536 + $0x4] sm:$0xf]
  %v539 = vld [vmem:[%s536 + $0x8] sm:$0xf]
  %v540 = vld [vmem:[%s536 + $0xc] sm:$0xf]
  %v541 = vld [vmem:[%s536 + $0x10] sm:$0xf]
  %v542 = vld [vmem:[%s536 + $0x14] sm:$0xf]
  %v543 = vld [vmem:[%s536 + $0x18] sm:$0xf]
  %v544 = vld [vmem:[%s536 + $0x1c] sm:$0xf]
  %v545 = vld [vmem:[%s536 + $0x20] sm:$0xf]
  %v546 = vld [vmem:[%s536 + $0x24] sm:$0xf]
  %v547 = vld [vmem:[%s536 + $0x28] sm:$0xf]
  %v548 = vld [vmem:[%s536 + $0x2c] sm:$0xf]
  %v549 = vld [vmem:[%s536 + $0x30] sm:$0xf]
  %v550 = vld [vmem:[%s536 + $0x34] sm:$0xf]
  %v551 = vld [vmem:[%s536 + $0x38] sm:$0xf]
  %v552 = vld [vmem:[%s536 + $0x3c] sm:$0xf]
  %v569 = vunpack.c.l.b16 %v537
  %v570 = vunpack.c.l.b16 %v538
  %v571 = vunpack.c.l.b16 %v539
  %v572 = vunpack.c.l.b16 %v540
  %v573 = vunpack.c.l.b16 %v541
  %v574 = vunpack.c.l.b16 %v542
  %v575 = vunpack.c.l.b16 %v543
  %v576 = vunpack.c.l.b16 %v544
  %v577 = vunpack.c.l.b16 %v545
  %v578 = vunpack.c.l.b16 %v546
  %v579 = vunpack.c.l.b16 %v547
  %v580 = vunpack.c.l.b16 %v548
  %v581 = vunpack.c.l.b16 %v549
  %v582 = vunpack.c.l.b16 %v550
  %v583 = vunpack.c.l.b16 %v551
  %v584 = vunpack.c.l.b16 %v552
  %v585 = vpack.c.b16 %v570, %v569
  %v586 = vpack.c.b16 %v572, %v571
  %v587 = vpack.c.b16 %v574, %v573
  %v588 = vpack.c.b16 %v576, %v575
  %v589 = vpack.c.b16 %v578, %v577
  %v590 = vpack.c.b16 %v580, %v579
  %v591 = vpack.c.b16 %v582, %v581
  %v592 = vpack.c.b16 %v584, %v583
  %601 = vmatpush.bf16.msra.mxu0 %v592
  %602 = vmatpush.bf16.msra.mxu0 %v591
  %603 = vmatpush.bf16.msra.mxu0 %v590
  %604 = vmatpush.bf16.msra.mxu0 %v589
  %605 = vmatpush.bf16.msra.mxu0 %v588
  %606 = vmatpush.bf16.msra.mxu0 %v587
  %607 = vmatpush.bf16.msra.mxu0 %v586
  %608 = vmatpush.bf16.msra.mxu0 %v585
  %609 = vmatmul.bf16.gmra.mxu0 %v458
  %v610 = vpop.f32.mrf.mxu0
  %v611 = vadd.f32 0.0, %v610
  %v612 = vpop.f32.mrf.mxu0
  %613 = vdwg.mxu0
  %v615 = vrot.slane %v611, 1
  %v617 = vadd.f32 %v533, %v615
  %s618 = scalar_lea.vmem %s4, 128
  %v619 = vld [vmem:[%s618] sm:$0xf]
  %v620 = vld [vmem:[%s618 + $0x4] sm:$0xf]
  %v621 = vld [vmem:[%s618 + $0x8] sm:$0xf]
  %v622 = vld [vmem:[%s618 + $0xc] sm:$0xf]
  %v623 = vld [vmem:[%s618 + $0x10] sm:$0xf]
  %v624 = vld [vmem:[%s618 + $0x14] sm:$0xf]
  %v625 = vld [vmem:[%s618 + $0x18] sm:$0xf]
  %v626 = vld [vmem:[%s618 + $0x1c] sm:$0xf]
  %v627 = vld [vmem:[%s618 + $0x20] sm:$0xf]
  %v628 = vld [vmem:[%s618 + $0x24] sm:$0xf]
  %v629 = vld [vmem:[%s618 + $0x28] sm:$0xf]
  %v630 = vld [vmem:[%s618 + $0x2c] sm:$0xf]
  %v631 = vld [vmem:[%s618 + $0x30] sm:$0xf]
  %v632 = vld [vmem:[%s618 + $0x34] sm:$0xf]
  %v633 = vld [vmem:[%s618 + $0x38] sm:$0xf]
  %v634 = vld [vmem:[%s618 + $0x3c] sm:$0xf]
  %v651 = vunpack.c.l.b16 %v619
  %v652 = vunpack.c.l.b16 %v620
  %v653 = vunpack.c.l.b16 %v621
  %v654 = vunpack.c.l.b16 %v622
  %v655 = vunpack.c.l.b16 %v623
  %v656 = vunpack.c.l.b16 %v624
  %v657 = vunpack.c.l.b16 %v625
  %v658 = vunpack.c.l.b16 %v626
  %v659 = vunpack.c.l.b16 %v627
  %v660 = vunpack.c.l.b16 %v628
  %v661 = vunpack.c.l.b16 %v629
  %v662 = vunpack.c.l.b16 %v630
  %v663 = vunpack.c.l.b16 %v631
  %v664 = vunpack.c.l.b16 %v632
  %v665 = vunpack.c.l.b16 %v633
  %v666 = vunpack.c.l.b16 %v634
  %v667 = vpack.c.b16 %v652, %v651
  %v668 = vpack.c.b16 %v654, %v653
  %v669 = vpack.c.b16 %v656, %v655
  %v670 = vpack.c.b16 %v658, %v657
  %v671 = vpack.c.b16 %v660, %v659
  %v672 = vpack.c.b16 %v662, %v661
  %v673 = vpack.c.b16 %v664, %v663
  %v674 = vpack.c.b16 %v666, %v665
  %683 = vmatpush.bf16.msra.mxu0 %v674
  %684 = vmatpush.bf16.msra.mxu0 %v673
  %685 = vmatpush.bf16.msra.mxu0 %v672
  %686 = vmatpush.bf16.msra.mxu0 %v671
  %687 = vmatpush.bf16.msra.mxu0 %v670
  %688 = vmatpush.bf16.msra.mxu0 %v669
  %689 = vmatpush.bf16.msra.mxu0 %v668
  %690 = vmatpush.bf16.msra.mxu0 %v667
  %691 = vmatmul.bf16.gmra.mxu0 %v458
  %v692 = vpop.f32.mrf.mxu0
  %v693 = vadd.f32 0.0, %v692
  %v694 = vpop.f32.mrf.mxu0
  %695 = vdwg.mxu0
  %v697 = vrot.slane %v693, 2
  %v699 = vadd.f32 %v617, %v697
  %v701 = vrot.slane %v699, 2
  %v703 = vsel %vm412, %v699, %v701
  %v705 = vperm.slane %v27, 0
  %v707 = vadd.f32 %v703, %v705
  %v708 = vadd.f32 %v707, %v421
  %v709 = vmax.f32 %v708, 0.0
  %710 = vst [vmem:[%s6] sm:$0xf] %v709
  // Predicated region
  $region26: #{backbone_base_forward.9} parent=0 // pred_check
    _
  $region27: #{backbone_base_forward.9} parent=0 // pred_check_branch
    %712 = sbr.rel (0) target = $region29
  $region28: #{backbone_base_forward.9} parent=0 // pred_region
    _
  $region29: #{backbone_base_forward.9} parent=0 // pred_fallthru
    _
  // Predicated region
  $region30: #{backbone_base_forward.9} parent=0 // pred_check
    _
  $region31: #{backbone_base_forward.9} parent=0 // pred_check_branch
    %714 = sbr.rel (0) target = $region33
  $region32: #{backbone_base_forward.9} parent=0 // pred_region
    _
  $region33: #{backbone_base_forward.9} parent=0 // pred_fallthru
    _

</llo_original>
